<compile_context>
chip_gen: v7x
topology: tpu7x:2x2x1
jax: 0.10.0
libtpu: 0.0.40
codegen_flags: <defaults>
</compile_context>

<pallas_src>
import functools

import numpy as np
import jax
import jax.numpy as jnp
from jax.experimental import pallas as pl
from jax.experimental.pallas import tpu as pltpu

_HIGHEST = jax.lax.Precision.HIGHEST


# ----------------------------------------------------------------------------
# Pallas kernel: whole SimModule forward for ONE block of Bblk batch elements.
# ----------------------------------------------------------------------------
def _sim_kernel(eps, Dx, Dy, shared, S, Smid, lw_offs, hw_offs,
                x_tm_ref,    # (Lx, Bblk, Dx)  bf16  time-major x (LSTM input)
                x_bm_ref,    # (Bblk, Lx, Dx)  f32   batch-major x (pseudo-align)
                y_ref,       # (Bblk, Ly, Dy)  f32
                lw_ref,      # packed LSTM weights [Wx1; Wh1; Wx2; Wh2]  bf16
                lb_ref,      # (2, 4H) f32 fused LSTM biases
                hw_ref,      # packed head weights [WpxT; WpyT; Wf1T; Wf2T] f32
                hb_ref,      # (5, W) f32: bpx / bpy / bf1 / bf2 / exp(logit_scale)
                out_ref,     # (Bblk, Ly, Dx) f32
                hseq_ref):   # scratch (Bblk, Lx, H) f32: layer-2 LSTM hiddens
    H = S + 1
    Bblk = x_bm_ref.shape[0]
    Lx = x_bm_ref.shape[1]

    # ---- LSTM weights (tiny; hoisted out of the time loop) ------------------
    o_x1, o_h1, o_x2, o_h2 = lw_offs
    wx1 = lw_ref[o_x1:o_x1 + Dx, :]           # (Dx, 4H) bf16
    wh1 = lw_ref[o_h1:o_h1 + H, :]            # (H, 4H)  bf16
    wx2 = lw_ref[o_x2:o_x2 + H, :]            # (H, 4H)  bf16
    wh2 = lw_ref[o_h2:o_h2 + H, :]            # (H, 4H)  bf16
    b1 = lb_ref[0:1, :]                       # (1, 4H)  f32
    b2 = lb_ref[1:2, :]

    def cell(x_part, wx, h, c, wh, b):
        # x_part is bf16; h/c are f32 carries (gate element-wise math stays f32).
        g = (jnp.dot(x_part, wx, preferred_element_type=jnp.float32)
             + jnp.dot(h.astype(jnp.bfloat16), wh,
                       preferred_element_type=jnp.float32)
             + b)                              # (Bblk, 4H); PyTorch gate order i,f,g,o
        sg = jax.nn.sigmoid(g)                 # one EUP pass covers i/f/o
        th = jnp.tanh(g)                       # one EUP pass covers g
        c_new = sg[:, H:2 * H] * c + sg[:, 0:H] * th[:, 2 * H:3 * H]
        h_new = sg[:, 3 * H:4 * H] * jnp.tanh(c_new)
        return h_new, c_new

    def body(t, carry):
        h1, c1, h2, c2 = carry
        xt = x_tm_ref[t]                                              # (Bblk, Dx) bf16
        h1, c1 = cell(xt, wx1, h1, c1, wh1, b1)                       # layer 0
        h2, c2 = cell(h1.astype(jnp.bfloat16), wx2, h2, c2, wh2, b2)  # layer 1
        for n in range(Bblk):
            hseq_ref[n, pl.ds(t, 1), :] = h2[n:n + 1, :]
        return h1, c1, h2, c2

    z0 = jnp.zeros((Bblk, H), jnp.float32)
    jax.lax.fori_loop(0, Lx, body, (z0, z0, z0, z0), unroll=True)

    # ---- head (runs once per grid step; latency-irrelevant, kept accurate) --
    o_px, o_py, o_f1, o_f2 = hw_offs
    wpx = hw_ref[o_px:o_px + Dx, 0:shared]        # (Dx, shared)
    wpy = hw_ref[o_py:o_py + Dy, 0:shared]        # (Dy, shared)
    wf1 = hw_ref[o_f1:o_f1 + S, 0:Smid]           # (S, Smid)
    wf2 = hw_ref[o_f2:o_f2 + Smid, 0:S]           # (Smid, S)
    bpx = hb_ref[0:1, 0:shared]
    bpy = hb_ref[1:2, 0:shared]
    bf1 = hb_ref[2:3, 0:Smid]
    bf2 = hb_ref[3:4, 0:S]
    scale = hb_ref[4:5, 0:1]                      # exp(logit_scale), (1, 1)
    eps2 = eps * eps

    for n in range(Bblk):
        # CTC pseudo-alignment: softmax over hidden channels; the blank channel
        # was reordered to be LAST in the wrapper -> positive channels = prefix.
        hs = hseq_ref[n]                                             # (Lx, H)
        e = jnp.exp(hs - jnp.max(hs, axis=-1, keepdims=True))
        probs = e / jnp.sum(e, axis=-1, keepdims=True)
        pp = probs[:, 0:S]                                           # (Lx, S)
        xb = x_bm_ref[n]                                             # (Lx, Dx)
        pseudo = jax.lax.dot_general(                                # (S, Dx)
            pp, xb, (((0,), (0,)), ((), ())),
            precision=_HIGHEST, preferred_element_type=jnp.float32)

        # shared-space projections + L2 normalization with eps floor
        x_common = jnp.dot(pseudo, wpx, precision=_HIGHEST,
                           preferred_element_type=jnp.float32) + bpx
        x_norm = x_common * jax.lax.rsqrt(
            jnp.maximum(jnp.sum(x_common * x_common, -1, keepdims=True), eps2))

        yb = y_ref[n]                                                # (Ly, Dy)
        y_common = jnp.dot(yb, wpy, precision=_HIGHEST,
                           preferred_element_type=jnp.float32) + bpy
        y_norm = y_common * jax.lax.rsqrt(
            jnp.maximum(jnp.sum(y_common * y_common, -1, keepdims=True), eps2))

        # similarity -> softmax -> fc1 -> relu -> fc2 -> sigmoid -> re-align
        sim = scale * jax.lax.dot_general(                           # (Ly, S)
            y_norm, x_norm, (((1,), (1,)), ((), ())),
            precision=_HIGHEST, preferred_element_type=jnp.float32)
        e2 = jnp.exp(sim - jnp.max(sim, axis=-1, keepdims=True))
        logits = e2 / jnp.sum(e2, axis=-1, keepdims=True)

        hid = jnp.maximum(
            jnp.dot(logits, wf1, precision=_HIGHEST,
                    preferred_element_type=jnp.float32) + bf1, 0.0)
        gate = jax.nn.sigmoid(
            jnp.dot(hid, wf2, precision=_HIGHEST,
                    preferred_element_type=jnp.float32) + bf2)
        out_ref[n] = jnp.dot(gate, pseudo, precision=_HIGHEST,
                             preferred_element_type=jnp.float32)     # (Ly, Dx)


# ----------------------------------------------------------------------------
# Wrapper: parameter packing + pallas_call
# ----------------------------------------------------------------------------
def _prep_lstm_layer(wih, whh, bih, bhh, perm):
    """PyTorch-layout LSTM layer -> (Wx (in,4H), Wh (H,4H), b (1,4H)).

    `perm` permutes the layer's OUTPUT channels (new channel c <- old perm[c]);
    the recurrent-input side is permuted consistently.  Gate order (i,f,g,o)
    is preserved."""
    fourH, in_dim = wih.shape
    H = fourH // 4
    wih_g = wih.reshape(4, H, in_dim)[:, perm, :]           # (4, H, in)
    whh_g = whh.reshape(4, H, H)[:, perm, :][:, :, perm]    # (4, H, H)
    b_g = (bih + bhh).reshape(4, H)[:, perm]                # (4, H)
    wx = jnp.transpose(wih_g, (2, 0, 1)).reshape(in_dim, 4 * H)
    wh = jnp.transpose(whh_g, (2, 0, 1)).reshape(H, 4 * H)
    return wx, wh, b_g.reshape(1, 4 * H)


def _pack_rows(mats, width, align):
    """Stack 2-D f32 arrays into one (rows, width) slab; each piece starts at a
    row offset that is a multiple of `align`.  Returns (slab, offsets)."""
    offs, r = [], 0
    for m in mats:
        offs.append(r)
        r += m.shape[0]
        r = ((r + align - 1) // align) * align
    slab = jnp.zeros((r, width), jnp.float32)
    for m, o in zip(mats, offs):
        slab = slab.at[o:o + m.shape[0], 0:m.shape[1]].set(m)
    return slab, tuple(offs)


def sim_module_forward(x, y, params, eps, block_b=8):
    B, Lx, Dx = x.shape
    _, Ly, Dy = y.shape
    S = params["wf2"].shape[0]            # out_seq_len
    Smid = params["wf1"].shape[0]         # round(out_seq_len / 2)
    shared = params["wpx"].shape[0]
    H = S + 1

    # --- batch blocking: Bblk batch rows per grid step -----------------------
    Bblk = int(min(B, block_b))
    nb = -(-B // Bblk)
    Bpad = nb * Bblk
    if Bpad != B:
        pad = ((0, Bpad - B), (0, 0), (0, 0))
        x_p, y_p = jnp.pad(x, pad), jnp.pad(y, pad)
    else:
        x_p, y_p = x, y
    x_tm = jnp.transpose(x_p, (1, 0, 2)).astype(jnp.bfloat16)   # (Lx, Bpad, Dx)

    # --- LSTM weights; layer-2 output channels reordered: blank channel last -
    ident = np.arange(H)
    blank_last = np.concatenate([np.arange(1, H), [0]])
    wx1, wh1, b1 = _prep_lstm_layer(params["wih1"], params["whh1"],
                                    params["bih1"], params["bhh1"], ident)
    wx2, wh2, b2 = _prep_lstm_layer(params["wih2"], params["whh2"],
                                    params["bih2"], params["bhh2"], blank_last)
    lstm_w_f32, lw_offs = _pack_rows([wx1, wh1, wx2, wh2], 4 * H, 16)
    lstm_w = lstm_w_f32.astype(jnp.bfloat16)
    lstm_b = jnp.concatenate([b1, b2], axis=0).astype(jnp.float32)   # (2, 4H)

    # --- head weights / biases packed into two slabs --------------------------
    WH = max(shared, S)
    head_w, hw_offs = _pack_rows(
        [params["wpx"].T, params["wpy"].T, params["wf1"].T, params["wf2"].T],
        WH, 8)
    head_b = jnp.zeros((5, WH), jnp.float32)
    head_b = head_b.at[0, 0:shared].set(params["bpx"])
    head_b = head_b.at[1, 0:shared].set(params["bpy"])
    head_b = head_b.at[2, 0:Smid].set(params["bf1"])
    head_b = head_b.at[3, 0:S].set(params["bf2"])
    head_b = head_b.at[4, 0].set(jnp.exp(params["logit_scale"]))

    kernel = functools.partial(_sim_kernel, float(eps), Dx, Dy, shared, S, Smid,
                               lw_offs, hw_offs)

    grid_spec = pltpu.PrefetchScalarGridSpec(
        num_scalar_prefetch=0,
        grid=(nb,),
        in_specs=[
            pl.BlockSpec((Lx, Bblk, Dx), lambda i: (0, i, 0)),   # x time-major (bf16)
            pl.BlockSpec((Bblk, Lx, Dx), lambda i: (i, 0, 0)),   # x batch-major (f32)
            pl.BlockSpec((Bblk, Ly, Dy), lambda i: (i, 0, 0)),   # y
            pl.BlockSpec(lstm_w.shape, lambda i: (0, 0)),
            pl.BlockSpec(lstm_b.shape, lambda i: (0, 0)),
            pl.BlockSpec(head_w.shape, lambda i: (0, 0)),
            pl.BlockSpec(head_b.shape, lambda i: (0, 0)),
        ],
        out_specs=pl.BlockSpec((Bblk, Ly, Dx), lambda i: (i, 0, 0)),
        scratch_shapes=[pltpu.VMEM((Bblk, Lx, H), jnp.float32)],
    )

    out = pl.pallas_call(
        kernel,
        out_shape=jax.ShapeDtypeStruct((Bpad, Ly, Dx), jnp.float32),
        grid_spec=grid_spec,
        compiler_params=pltpu.CompilerParams(
            dimension_semantics=("parallel",)),   # independent batch blocks (v7x 2 TCs)
    )(x_tm, x_p, y_p, lstm_w, lstm_b, head_w, head_b)
    return out[:B]


# ----------------------------------------------------------------------------
# Deterministic parameter init (PyTorch-like uniform fan-in init; synthetic)
# ----------------------------------------------------------------------------
def init_params(key, Dx, Dy, shared, S):
    H = S + 1
    Smid = int(round(S / 2))
    ks = jax.random.split(key, 16)

    def u(k, shape, bound):
        return jax.random.uniform(k, shape, jnp.float32, -bound, bound)

    kb = 1.0 / np.sqrt(H)
    return {
        "wih1": u(ks[0], (4 * H, Dx), kb),
        "whh1": u(ks[1], (4 * H, H), kb),
        "bih1": u(ks[2], (4 * H,), kb),
        "bhh1": u(ks[3], (4 * H,), kb),
        "wih2": u(ks[4], (4 * H, H), kb),
        "whh2": u(ks[5], (4 * H, H), kb),
        "bih2": u(ks[6], (4 * H,), kb),
        "bhh2": u(ks[7], (4 * H,), kb),
        "wpx": u(ks[8], (shared, Dx), 1.0 / np.sqrt(Dx)),
        "bpx": u(ks[9], (shared,), 1.0 / np.sqrt(Dx)),
        "wpy": u(ks[10], (shared, Dy), 1.0 / np.sqrt(Dy)),
        "bpy": u(ks[11], (shared,), 1.0 / np.sqrt(Dy)),
        "wf1": u(ks[12], (Smid, S), 1.0 / np.sqrt(S)),
        "bf1": u(ks[13], (Smid,), 1.0 / np.sqrt(S)),
        "wf2": u(ks[14], (S, Smid), 1.0 / np.sqrt(Smid)),
        "bf2": u(ks[15], (S,), 1.0 / np.sqrt(Smid)),
        "logit_scale": jnp.float32(np.log(1.0 / 0.07)),
    }


# ----------------------------------------------------------------------------
# Pure-JAX reference (mirrors the PyTorch f32 forward exactly)
# ----------------------------------------------------------------------------
def reference(x, y, p, eps):
    def lstm(inp, wih, whh, bih, bhh):
        B, L, _ = inp.shape
        H = wih.shape[0] // 4
        wih_t, whh_t, b = wih.T, whh.T, (bih + bhh)[None, :]

        def step(carry, xt):
            h, c = carry
            g = xt @ wih_t + h @ whh_t + b
            i = jax.nn.sigmoid(g[:, :H])
            f = jax.nn.sigmoid(g[:, H:2 * H])
            gg = jnp.tanh(g[:, 2 * H:3 * H])
            o = jax.nn.sigmoid(g[:, 3 * H:])
            c = f * c + i * gg
            h = o * jnp.tanh(c)
            return (h, c), h

        init = (jnp.zeros((B, H), jnp.float32), jnp.zeros((B, H), jnp.float32))
        _, hs = jax.lax.scan(step, init, jnp.swapaxes(inp, 0, 1))
        return jnp.swapaxes(hs, 0, 1)

    h1 = lstm(x, p["wih1"], p["whh1"], p["bih1"], p["bhh1"])
    h2 = lstm(h1, p["wih2"], p["whh2"], p["bih2"], p["bhh2"])
    probs = jax.nn.softmax(h2, axis=2)
    pp = jnp.swapaxes(probs[:, :, 1:], 1, 2)                  # (B, S, Lx)
    pseudo = jnp.einsum("bsl,bld->bsd", pp, x)

    x_common = pseudo @ p["wpx"].T + p["bpx"]
    x_n = jnp.linalg.norm(x_common, axis=-1, keepdims=True)
    x_norm = x_common / jnp.maximum(x_n, eps)
    y_common = y @ p["wpy"].T + p["bpy"]
    y_n = jnp.linalg.norm(y_common, axis=-1, keepdims=True)
    y_norm = y_common / jnp.maximum(y_n, eps)

    sim = jnp.exp(p["logit_scale"]) * jnp.einsum("bld,bsd->bls", y_norm, x_norm)
    logits = jax.nn.softmax(sim, axis=-1)
    logits = jnp.maximum(logits @ p["wf1"].T + p["bf1"], 0.0)
    logits = jax.nn.sigmoid(logits @ p["wf2"].T + p["bf2"])
    return jnp.einsum("bls,bsd->bld", logits, pseudo)


if __name__ == "__main__":
    B, Lx, Dx = 2, 10, 16       # batch, in_seq_len, in_dim_x
    Ly, Dy = 6, 20              # y seq len, in_dim_y
    shared, S = 32, 8           # shared_dim, out_seq_len
    eps = 1e-6

    key = jax.random.PRNGKey(0)
    kx, ky, kp = jax.random.split(key, 3)
    x = jax.random.normal(kx, (B, Lx, Dx), jnp.float32)
    y = jax.random.normal(ky, (B, Ly, Dy), jnp.float32)
    params = init_params(kp, Dx, Dy, shared, S)

    out = jax.block_until_ready(sim_module_forward(x, y, params, eps))

    # Faithful f32 (PyTorch-equivalent) reference.
    with jax.default_matmul_precision("highest"):
        ref = jax.block_until_ready(reference(x, y, params, eps))

    assert out.shape == (B, Ly, Dx)
    assert np.all(np.isfinite(np.asarray(out)))
    # Tolerance covers the bf16 MXU operands used inside the LSTM recurrence.
    np.testing.assert_allclose(np.asarray(out), np.asarray(ref),
                               rtol=1e-2, atol=1e-2)
    print("KERNEL_OK")
</pallas_src>

<mosaic_0001>
module attributes {stable_mosaic.version = 11 : i64} {
  func.func @_sim_kernel(%arg0: i32, %arg1: memref<10x2x16xbf16, #tpu.memory_space<vmem>>, %arg2: memref<2x10x16xf32, #tpu.memory_space<vmem>>, %arg3: memref<2x6x20xf32, #tpu.memory_space<vmem>>, %arg4: memref<64x36xbf16, #tpu.memory_space<vmem>>, %arg5: memref<2x36xf32, #tpu.memory_space<vmem>>, %arg6: memref<56x32xf32, #tpu.memory_space<vmem>>, %arg7: memref<5x32xf32, #tpu.memory_space<vmem>>, %arg8: memref<2x6x16xf32, #tpu.memory_space<vmem>>, %arg9: memref<2x10x9xf32, #tpu.memory_space<vmem>>) attributes {dimension_semantics = [#tpu.dimension_semantics<parallel>], iteration_bounds = array<i64: 1>, scalar_prefetch = 0 : i64, scratch_operands = 1 : i64, tpu.core_type = #tpu.core_type<tc>, window_params = [{transform_indices = @transform_0, window_bounds = array<i64: 10, 2, 16>}, {transform_indices = @transform_1, window_bounds = array<i64: 2, 10, 16>}, {transform_indices = @transform_2, window_bounds = array<i64: 2, 6, 20>}, {pipeline_mode = #tpu.pipeline_mode<synchronous>, transform_indices = @transform_3, window_bounds = array<i64: 64, 36>}, {pipeline_mode = #tpu.pipeline_mode<synchronous>, transform_indices = @transform_4, window_bounds = array<i64: 2, 36>}, {pipeline_mode = #tpu.pipeline_mode<synchronous>, transform_indices = @transform_5, window_bounds = array<i64: 56, 32>}, {pipeline_mode = #tpu.pipeline_mode<synchronous>, transform_indices = @transform_6, window_bounds = array<i64: 5, 32>}, {transform_indices = @transform_7, window_bounds = array<i64: 2, 6, 16>}]} {
    %c0 = arith.constant 0 : index
    %c0_0 = arith.constant 0 : index
    %0 = vector.load %arg4[%c0, %c0_0] : memref<64x36xbf16, #tpu.memory_space<vmem>>, vector<16x36xbf16>
    %c16 = arith.constant 16 : index
    %c0_1 = arith.constant 0 : index
    %1 = vector.load %arg4[%c16, %c0_1] : memref<64x36xbf16, #tpu.memory_space<vmem>>, vector<9x36xbf16>
    %c32 = arith.constant 32 : index
    %c0_2 = arith.constant 0 : index
    %2 = vector.load %arg4[%c32, %c0_2] : memref<64x36xbf16, #tpu.memory_space<vmem>>, vector<9x36xbf16>
    %c48 = arith.constant 48 : index
    %c0_3 = arith.constant 0 : index
    %3 = vector.load %arg4[%c48, %c0_3] : memref<64x36xbf16, #tpu.memory_space<vmem>>, vector<9x36xbf16>
    %c0_4 = arith.constant 0 : index
    %c0_5 = arith.constant 0 : index
    %4 = vector.load %arg5[%c0_4, %c0_5] : memref<2x36xf32, #tpu.memory_space<vmem>>, vector<1x36xf32>
    %c1 = arith.constant 1 : index
    %c0_6 = arith.constant 0 : index
    %5 = vector.load %arg5[%c1, %c0_6] : memref<2x36xf32, #tpu.memory_space<vmem>>, vector<1x36xf32>
    %cst = arith.constant 0.000000e+00 : f32
    %6 = vector.broadcast %cst : f32 to vector<2x9xf32>
    %c0_i32 = arith.constant 0 : i32
    %7 = arith.index_cast %c0_i32 : i32 to index
    %c0_7 = arith.constant 0 : index
    %c0_8 = arith.constant 0 : index
    %8 = vector.load %arg1[%7, %c0_7, %c0_8] : memref<10x2x16xbf16, #tpu.memory_space<vmem>>, vector<1x2x16xbf16>
    %9 = vector.shape_cast %8 : vector<1x2x16xbf16> to vector<2x16xbf16>
    %cst_9 = arith.constant dense<0.000000e+00> : vector<2x36xf32>
    %10 = tpu.matmul %9, %0, %cst_9 {dimension_numbers = #tpu.dot_dimension_numbers<[1], [0], [0], [1], [0, 0, 1, 1], [], []>} : vector<2x16xbf16>, vector<16x36xbf16>, vector<2x36xf32> -> vector<2x36xf32>
    %11 = arith.truncf %6 : vector<2x9xf32> to vector<2x9xbf16>
    %cst_10 = arith.constant dense<0.000000e+00> : vector<2x36xf32>
    %12 = tpu.matmul %11, %1, %cst_10 {dimension_numbers = #tpu.dot_dimension_numbers<[1], [0], [0], [1], [0, 0, 1, 1], [], []>} : vector<2x9xbf16>, vector<9x36xbf16>, vector<2x36xf32> -> vector<2x36xf32>
    %13 = arith.addf %10, %12 : vector<2x36xf32>
    %14 = vector.broadcast %4 : vector<1x36xf32> to vector<2x36xf32>
    %15 = arith.addf %13, %14 : vector<2x36xf32>
    %16 = arith.negf %15 : vector<2x36xf32>
    %17 = math.exp %16 : vector<2x36xf32>
    %cst_11 = arith.constant 1.000000e+00 : f32
    %18 = vector.broadcast %cst_11 : f32 to vector<2x36xf32>
    %19 = arith.addf %18, %17 : vector<2x36xf32>
    %20 = arith.divf %18, %19 : vector<2x36xf32>
    %21 = math.tanh %15 : vector<2x36xf32>
    %22 = vector.extract_strided_slice %20 {offsets = [0, 9], sizes = [2, 9], strides = [1, 1]} : vector<2x36xf32> to vector<2x9xf32>
    %23 = arith.mulf %22, %6 : vector<2x9xf32>
    %24 = vector.extract_strided_slice %20 {offsets = [0, 0], sizes = [2, 9], strides = [1, 1]} : vector<2x36xf32> to vector<2x9xf32>
    %25 = vector.extract_strided_slice %21 {offsets = [0, 18], sizes = [2, 9], strides = [1, 1]} : vector<2x36xf32> to vector<2x9xf32>
    %26 = arith.mulf %24, %25 : vector<2x9xf32>
    %27 = arith.addf %23, %26 : vector<2x9xf32>
    %28 = vector.extract_strided_slice %20 {offsets = [0, 27], sizes = [2, 9], strides = [1, 1]} : vector<2x36xf32> to vector<2x9xf32>
    %29 = math.tanh %27 : vector<2x9xf32>
    %30 = arith.mulf %28, %29 : vector<2x9xf32>
    %31 = arith.truncf %30 : vector<2x9xf32> to vector<2x9xbf16>
    %cst_12 = arith.constant dense<0.000000e+00> : vector<2x36xf32>
    %32 = tpu.matmul %31, %2, %cst_12 {dimension_numbers = #tpu.dot_dimension_numbers<[1], [0], [0], [1], [0, 0, 1, 1], [], []>} : vector<2x9xbf16>, vector<9x36xbf16>, vector<2x36xf32> -> vector<2x36xf32>
    %33 = arith.truncf %6 : vector<2x9xf32> to vector<2x9xbf16>
    %cst_13 = arith.constant dense<0.000000e+00> : vector<2x36xf32>
    %34 = tpu.matmul %33, %3, %cst_13 {dimension_numbers = #tpu.dot_dimension_numbers<[1], [0], [0], [1], [0, 0, 1, 1], [], []>} : vector<2x9xbf16>, vector<9x36xbf16>, vector<2x36xf32> -> vector<2x36xf32>
    %35 = arith.addf %32, %34 : vector<2x36xf32>
    %36 = vector.broadcast %5 : vector<1x36xf32> to vector<2x36xf32>
    %37 = arith.addf %35, %36 : vector<2x36xf32>
    %38 = arith.negf %37 : vector<2x36xf32>
    %39 = math.exp %38 : vector<2x36xf32>
    %cst_14 = arith.constant 1.000000e+00 : f32
    %40 = vector.broadcast %cst_14 : f32 to vector<2x36xf32>
    %41 = arith.addf %40, %39 : vector<2x36xf32>
    %42 = arith.divf %40, %41 : vector<2x36xf32>
    %43 = math.tanh %37 : vector<2x36xf32>
    %44 = vector.extract_strided_slice %42 {offsets = [0, 9], sizes = [2, 9], strides = [1, 1]} : vector<2x36xf32> to vector<2x9xf32>
    %45 = arith.mulf %44, %6 : vector<2x9xf32>
    %46 = vector.extract_strided_slice %42 {offsets = [0, 0], sizes = [2, 9], strides = [1, 1]} : vector<2x36xf32> to vector<2x9xf32>
    %47 = vector.extract_strided_slice %43 {offsets = [0, 18], sizes = [2, 9], strides = [1, 1]} : vector<2x36xf32> to vector<2x9xf32>
    %48 = arith.mulf %46, %47 : vector<2x9xf32>
    %49 = arith.addf %45, %48 : vector<2x9xf32>
    %50 = vector.extract_strided_slice %42 {offsets = [0, 27], sizes = [2, 9], strides = [1, 1]} : vector<2x36xf32> to vector<2x9xf32>
    %51 = math.tanh %49 : vector<2x9xf32>
    %52 = arith.mulf %50, %51 : vector<2x9xf32>
    %53 = vector.extract_strided_slice %52 {offsets = [0, 0], sizes = [1, 9], strides = [1, 1]} : vector<2x9xf32> to vector<1x9xf32>
    %c0_15 = arith.constant 0 : index
    %54 = arith.index_cast %c0_i32 : i32 to index
    %c0_16 = arith.constant 0 : index
    %55 = vector.load %arg9[%c0_15, %54, %c0_16] : memref<2x10x9xf32, #tpu.memory_space<vmem>>, vector<1x1x9xf32>
    %56 = vector.shape_cast %55 : vector<1x1x9xf32> to vector<1x9xf32>
    %57 = vector.shape_cast %53 : vector<1x9xf32> to vector<1x1x9xf32>
    tpu.vector_store %arg9[%c0_15, %54, %c0_16], %57 {strides = array<i32>} : memref<2x10x9xf32, #tpu.memory_space<vmem>>, vector<1x1x9xf32>,
    %58 = vector.extract_strided_slice %52 {offsets = [1, 0], sizes = [1, 9], strides = [1, 1]} : vector<2x9xf32> to vector<1x9xf32>
    %c1_17 = arith.constant 1 : index
    %59 = arith.index_cast %c0_i32 : i32 to index
    %c0_18 = arith.constant 0 : index
    %60 = vector.load %arg9[%c1_17, %59, %c0_18] : memref<2x10x9xf32, #tpu.memory_space<vmem>>, vector<1x1x9xf32>
    %61 = vector.shape_cast %60 : vector<1x1x9xf32> to vector<1x9xf32>
    %62 = vector.shape_cast %58 : vector<1x9xf32> to vector<1x1x9xf32>
    tpu.vector_store %arg9[%c1_17, %59, %c0_18], %62 {strides = array<i32>} : memref<2x10x9xf32, #tpu.memory_space<vmem>>, vector<1x1x9xf32>,
    %c1_i32 = arith.constant 1 : i32
    %63 = arith.index_cast %c1_i32 : i32 to index
    %c0_19 = arith.constant 0 : index
    %c0_20 = arith.constant 0 : index
    %64 = vector.load %arg1[%63, %c0_19, %c0_20] : memref<10x2x16xbf16, #tpu.memory_space<vmem>>, vector<1x2x16xbf16>
    %65 = vector.shape_cast %64 : vector<1x2x16xbf16> to vector<2x16xbf16>
    %cst_21 = arith.constant dense<0.000000e+00> : vector<2x36xf32>
    %66 = tpu.matmul %65, %0, %cst_21 {dimension_numbers = #tpu.dot_dimension_numbers<[1], [0], [0], [1], [0, 0, 1, 1], [], []>} : vector<2x16xbf16>, vector<16x36xbf16>, vector<2x36xf32> -> vector<2x36xf32>
    %67 = arith.truncf %30 : vector<2x9xf32> to vector<2x9xbf16>
    %cst_22 = arith.constant dense<0.000000e+00> : vector<2x36xf32>
    %68 = tpu.matmul %67, %1, %cst_22 {dimension_numbers = #tpu.dot_dimension_numbers<[1], [0], [0], [1], [0, 0, 1, 1], [], []>} : vector<2x9xbf16>, vector<9x36xbf16>, vector<2x36xf32> -> vector<2x36xf32>
    %69 = arith.addf %66, %68 : vector<2x36xf32>
    %70 = vector.broadcast %4 : vector<1x36xf32> to vector<2x36xf32>
    %71 = arith.addf %69, %70 : vector<2x36xf32>
    %72 = arith.negf %71 : vector<2x36xf32>
    %73 = math.exp %72 : vector<2x36xf32>
    %cst_23 = arith.constant 1.000000e+00 : f32
    %74 = vector.broadcast %cst_23 : f32 to vector<2x36xf32>
    %75 = arith.addf %74, %73 : vector<2x36xf32>
    %76 = arith.divf %74, %75 : vector<2x36xf32>
    %77 = math.tanh %71 : vector<2x36xf32>
    %78 = vector.extract_strided_slice %76 {offsets = [0, 9], sizes = [2, 9], strides = [1, 1]} : vector<2x36xf32> to vector<2x9xf32>
    %79 = arith.mulf %78, %27 : vector<2x9xf32>
    %80 = vector.extract_strided_slice %76 {offsets = [0, 0], sizes = [2, 9], strides = [1, 1]} : vector<2x36xf32> to vector<2x9xf32>
    %81 = vector.extract_strided_slice %77 {offsets = [0, 18], sizes = [2, 9], strides = [1, 1]} : vector<2x36xf32> to vector<2x9xf32>
    %82 = arith.mulf %80, %81 : vector<2x9xf32>
    %83 = arith.addf %79, %82 : vector<2x9xf32>
    %84 = vector.extract_strided_slice %76 {offsets = [0, 27], sizes = [2, 9], strides = [1, 1]} : vector<2x36xf32> to vector<2x9xf32>
    %85 = math.tanh %83 : vector<2x9xf32>
    %86 = arith.mulf %84, %85 : vector<2x9xf32>
    %87 = arith.truncf %86 : vector<2x9xf32> to vector<2x9xbf16>
    %cst_24 = arith.constant dense<0.000000e+00> : vector<2x36xf32>
    %88 = tpu.matmul %87, %2, %cst_24 {dimension_numbers = #tpu.dot_dimension_numbers<[1], [0], [0], [1], [0, 0, 1, 1], [], []>} : vector<2x9xbf16>, vector<9x36xbf16>, vector<2x36xf32> -> vector<2x36xf32>
    %89 = arith.truncf %52 : vector<2x9xf32> to vector<2x9xbf16>
    %cst_25 = arith.constant dense<0.000000e+00> : vector<2x36xf32>
    %90 = tpu.matmul %89, %3, %cst_25 {dimension_numbers = #tpu.dot_dimension_numbers<[1], [0], [0], [1], [0, 0, 1, 1], [], []>} : vector<2x9xbf16>, vector<9x36xbf16>, vector<2x36xf32> -> vector<2x36xf32>
    %91 = arith.addf %88, %90 : vector<2x36xf32>
    %92 = vector.broadcast %5 : vector<1x36xf32> to vector<2x36xf32>
    %93 = arith.addf %91, %92 : vector<2x36xf32>
    %94 = arith.negf %93 : vector<2x36xf32>
    %95 = math.exp %94 : vector<2x36xf32>
    %cst_26 = arith.constant 1.000000e+00 : f32
    %96 = vector.broadcast %cst_26 : f32 to vector<2x36xf32>
    %97 = arith.addf %96, %95 : vector<2x36xf32>
    %98 = arith.divf %96, %97 : vector<2x36xf32>
    %99 = math.tanh %93 : vector<2x36xf32>
    %100 = vector.extract_strided_slice %98 {offsets = [0, 9], sizes = [2, 9], strides = [1, 1]} : vector<2x36xf32> to vector<2x9xf32>
    %101 = arith.mulf %100, %49 : vector<2x9xf32>
    %102 = vector.extract_strided_slice %98 {offsets = [0, 0], sizes = [2, 9], strides = [1, 1]} : vector<2x36xf32> to vector<2x9xf32>
    %103 = vector.extract_strided_slice %99 {offsets = [0, 18], sizes = [2, 9], strides = [1, 1]} : vector<2x36xf32> to vector<2x9xf32>
    %104 = arith.mulf %102, %103 : vector<2x9xf32>
    %105 = arith.addf %101, %104 : vector<2x9xf32>
    %106 = vector.extract_strided_slice %98 {offsets = [0, 27], sizes = [2, 9], strides = [1, 1]} : vector<2x36xf32> to vector<2x9xf32>
    %107 = math.tanh %105 : vector<2x9xf32>
    %108 = arith.mulf %106, %107 : vector<2x9xf32>
    %109 = vector.extract_strided_slice %108 {offsets = [0, 0], sizes = [1, 9], strides = [1, 1]} : vector<2x9xf32> to vector<1x9xf32>
    %c0_27 = arith.constant 0 : index
    %110 = arith.index_cast %c1_i32 : i32 to index
    %c0_28 = arith.constant 0 : index
    %111 = vector.load %arg9[%c0_27, %110, %c0_28] : memref<2x10x9xf32, #tpu.memory_space<vmem>>, vector<1x1x9xf32>
    %112 = vector.shape_cast %111 : vector<1x1x9xf32> to vector<1x9xf32>
    %113 = vector.shape_cast %109 : vector<1x9xf32> to vector<1x1x9xf32>
    tpu.vector_store %arg9[%c0_27, %110, %c0_28], %113 {strides = array<i32>} : memref<2x10x9xf32, #tpu.memory_space<vmem>>, vector<1x1x9xf32>,
    %114 = vector.extract_strided_slice %108 {offsets = [1, 0], sizes = [1, 9], strides = [1, 1]} : vector<2x9xf32> to vector<1x9xf32>
    %c1_29 = arith.constant 1 : index
    %115 = arith.index_cast %c1_i32 : i32 to index
    %c0_30 = arith.constant 0 : index
    %116 = vector.load %arg9[%c1_29, %115, %c0_30] : memref<2x10x9xf32, #tpu.memory_space<vmem>>, vector<1x1x9xf32>
    %117 = vector.shape_cast %116 : vector<1x1x9xf32> to vector<1x9xf32>
    %118 = vector.shape_cast %114 : vector<1x9xf32> to vector<1x1x9xf32>
    tpu.vector_store %arg9[%c1_29, %115, %c0_30], %118 {strides = array<i32>} : memref<2x10x9xf32, #tpu.memory_space<vmem>>, vector<1x1x9xf32>,
    %c2_i32 = arith.constant 2 : i32
    %119 = arith.index_cast %c2_i32 : i32 to index
    %c0_31 = arith.constant 0 : index
    %c0_32 = arith.constant 0 : index
    %120 = vector.load %arg1[%119, %c0_31, %c0_32] : memref<10x2x16xbf16, #tpu.memory_space<vmem>>, vector<1x2x16xbf16>
    %121 = vector.shape_cast %120 : vector<1x2x16xbf16> to vector<2x16xbf16>
    %cst_33 = arith.constant dense<0.000000e+00> : vector<2x36xf32>
    %122 = tpu.matmul %121, %0, %cst_33 {dimension_numbers = #tpu.dot_dimension_numbers<[1], [0], [0], [1], [0, 0, 1, 1], [], []>} : vector<2x16xbf16>, vector<16x36xbf16>, vector<2x36xf32> -> vector<2x36xf32>
    %123 = arith.truncf %86 : vector<2x9xf32> to vector<2x9xbf16>
    %cst_34 = arith.constant dense<0.000000e+00> : vector<2x36xf32>
    %124 = tpu.matmul %123, %1, %cst_34 {dimension_numbers = #tpu.dot_dimension_numbers<[1], [0], [0], [1], [0, 0, 1, 1], [], []>} : vector<2x9xbf16>, vector<9x36xbf16>, vector<2x36xf32> -> vector<2x36xf32>
    %125 = arith.addf %122, %124 : vector<2x36xf32>
    %126 = vector.broadcast %4 : vector<1x36xf32> to vector<2x36xf32>
    %127 = arith.addf %125, %126 : vector<2x36xf32>
    %128 = arith.negf %127 : vector<2x36xf32>
    %129 = math.exp %128 : vector<2x36xf32>
    %cst_35 = arith.constant 1.000000e+00 : f32
    %130 = vector.broadcast %cst_35 : f32 to vector<2x36xf32>
    %131 = arith.addf %130, %129 : vector<2x36xf32>
    %132 = arith.divf %130, %131 : vector<2x36xf32>
    %133 = math.tanh %127 : vector<2x36xf32>
    %134 = vector.extract_strided_slice %132 {offsets = [0, 9], sizes = [2, 9], strides = [1, 1]} : vector<2x36xf32> to vector<2x9xf32>
    %135 = arith.mulf %134, %83 : vector<2x9xf32>
    %136 = vector.extract_strided_slice %132 {offsets = [0, 0], sizes = [2, 9], strides = [1, 1]} : vector<2x36xf32> to vector<2x9xf32>
    %137 = vector.extract_strided_slice %133 {offsets = [0, 18], sizes = [2, 9], strides = [1, 1]} : vector<2x36xf32> to vector<2x9xf32>
    %138 = arith.mulf %136, %137 : vector<2x9xf32>
    %139 = arith.addf %135, %138 : vector<2x9xf32>
    %140 = vector.extract_strided_slice %132 {offsets = [0, 27], sizes = [2, 9], strides = [1, 1]} : vector<2x36xf32> to vector<2x9xf32>
    %141 = math.tanh %139 : vector<2x9xf32>
    %142 = arith.mulf %140, %141 : vector<2x9xf32>
    %143 = arith.truncf %142 : vector<2x9xf32> to vector<2x9xbf16>
    %cst_36 = arith.constant dense<0.000000e+00> : vector<2x36xf32>
    %144 = tpu.matmul %143, %2, %cst_36 {dimension_numbers = #tpu.dot_dimension_numbers<[1], [0], [0], [1], [0, 0, 1, 1], [], []>} : vector<2x9xbf16>, vector<9x36xbf16>, vector<2x36xf32> -> vector<2x36xf32>
    %145 = arith.truncf %108 : vector<2x9xf32> to vector<2x9xbf16>
    %cst_37 = arith.constant dense<0.000000e+00> : vector<2x36xf32>
    %146 = tpu.matmul %145, %3, %cst_37 {dimension_numbers = #tpu.dot_dimension_numbers<[1], [0], [0], [1], [0, 0, 1, 1], [], []>} : vector<2x9xbf16>, vector<9x36xbf16>, vector<2x36xf32> -> vector<2x36xf32>
    %147 = arith.addf %144, %146 : vector<2x36xf32>
    %148 = vector.broadcast %5 : vector<1x36xf32> to vector<2x36xf32>
    %149 = arith.addf %147, %148 : vector<2x36xf32>
    %150 = arith.negf %149 : vector<2x36xf32>
    %151 = math.exp %150 : vector<2x36xf32>
    %cst_38 = arith.constant 1.000000e+00 : f32
    %152 = vector.broadcast %cst_38 : f32 to vector<2x36xf32>
    %153 = arith.addf %152, %151 : vector<2x36xf32>
    %154 = arith.divf %152, %153 : vector<2x36xf32>
    %155 = math.tanh %149 : vector<2x36xf32>
    %156 = vector.extract_strided_slice %154 {offsets = [0, 9], sizes = [2, 9], strides = [1, 1]} : vector<2x36xf32> to vector<2x9xf32>
    %157 = arith.mulf %156, %105 : vector<2x9xf32>
    %158 = vector.extract_strided_slice %154 {offsets = [0, 0], sizes = [2, 9], strides = [1, 1]} : vector<2x36xf32> to vector<2x9xf32>
    %159 = vector.extract_strided_slice %155 {offsets = [0, 18], sizes = [2, 9], strides = [1, 1]} : vector<2x36xf32> to vector<2x9xf32>
    %160 = arith.mulf %158, %159 : vector<2x9xf32>
    %161 = arith.addf %157, %160 : vector<2x9xf32>
    %162 = vector.extract_strided_slice %154 {offsets = [0, 27], sizes = [2, 9], strides = [1, 1]} : vector<2x36xf32> to vector<2x9xf32>
    %163 = math.tanh %161 : vector<2x9xf32>
    %164 = arith.mulf %162, %163 : vector<2x9xf32>
    %165 = vector.extract_strided_slice %164 {offsets = [0, 0], sizes = [1, 9], strides = [1, 1]} : vector<2x9xf32> to vector<1x9xf32>
    %c0_39 = arith.constant 0 : index
    %166 = arith.index_cast %c2_i32 : i32 to index
    %c0_40 = arith.constant 0 : index
    %167 = vector.load %arg9[%c0_39, %166, %c0_40] : memref<2x10x9xf32, #tpu.memory_space<vmem>>, vector<1x1x9xf32>
    %168 = vector.shape_cast %167 : vector<1x1x9xf32> to vector<1x9xf32>
    %169 = vector.shape_cast %165 : vector<1x9xf32> to vector<1x1x9xf32>
    tpu.vector_store %arg9[%c0_39, %166, %c0_40], %169 {strides = array<i32>} : memref<2x10x9xf32, #tpu.memory_space<vmem>>, vector<1x1x9xf32>,
    %170 = vector.extract_strided_slice %164 {offsets = [1, 0], sizes = [1, 9], strides = [1, 1]} : vector<2x9xf32> to vector<1x9xf32>
    %c1_41 = arith.constant 1 : index
    %171 = arith.index_cast %c2_i32 : i32 to index
    %c0_42 = arith.constant 0 : index
    %172 = vector.load %arg9[%c1_41, %171, %c0_42] : memref<2x10x9xf32, #tpu.memory_space<vmem>>, vector<1x1x9xf32>
    %173 = vector.shape_cast %172 : vector<1x1x9xf32> to vector<1x9xf32>
    %174 = vector.shape_cast %170 : vector<1x9xf32> to vector<1x1x9xf32>
    tpu.vector_store %arg9[%c1_41, %171, %c0_42], %174 {strides = array<i32>} : memref<2x10x9xf32, #tpu.memory_space<vmem>>, vector<1x1x9xf32>,
    %c3_i32 = arith.constant 3 : i32
    %175 = arith.index_cast %c3_i32 : i32 to index
    %c0_43 = arith.constant 0 : index
    %c0_44 = arith.constant 0 : index
    %176 = vector.load %arg1[%175, %c0_43, %c0_44] : memref<10x2x16xbf16, #tpu.memory_space<vmem>>, vector<1x2x16xbf16>
    %177 = vector.shape_cast %176 : vector<1x2x16xbf16> to vector<2x16xbf16>
    %cst_45 = arith.constant dense<0.000000e+00> : vector<2x36xf32>
    %178 = tpu.matmul %177, %0, %cst_45 {dimension_numbers = #tpu.dot_dimension_numbers<[1], [0], [0], [1], [0, 0, 1, 1], [], []>} : vector<2x16xbf16>, vector<16x36xbf16>, vector<2x36xf32> -> vector<2x36xf32>
    %179 = arith.truncf %142 : vector<2x9xf32> to vector<2x9xbf16>
    %cst_46 = arith.constant dense<0.000000e+00> : vector<2x36xf32>
    %180 = tpu.matmul %179, %1, %cst_46 {dimension_numbers = #tpu.dot_dimension_numbers<[1], [0], [0], [1], [0, 0, 1, 1], [], []>} : vector<2x9xbf16>, vector<9x36xbf16>, vector<2x36xf32> -> vector<2x36xf32>
    %181 = arith.addf %178, %180 : vector<2x36xf32>
    %182 = vector.broadcast %4 : vector<1x36xf32> to vector<2x36xf32>
    %183 = arith.addf %181, %182 : vector<2x36xf32>
    %184 = arith.negf %183 : vector<2x36xf32>
    %185 = math.exp %184 : vector<2x36xf32>
    %cst_47 = arith.constant 1.000000e+00 : f32
    %186 = vector.broadcast %cst_47 : f32 to vector<2x36xf32>
    %187 = arith.addf %186, %185 : vector<2x36xf32>
    %188 = arith.divf %186, %187 : vector<2x36xf32>
    %189 = math.tanh %183 : vector<2x36xf32>
    %190 = vector.extract_strided_slice %188 {offsets = [0, 9], sizes = [2, 9], strides = [1, 1]} : vector<2x36xf32> to vector<2x9xf32>
    %191 = arith.mulf %190, %139 : vector<2x9xf32>
    %192 = vector.extract_strided_slice %188 {offsets = [0, 0], sizes = [2, 9], strides = [1, 1]} : vector<2x36xf32> to vector<2x9xf32>
    %193 = vector.extract_strided_slice %189 {offsets = [0, 18], sizes = [2, 9], strides = [1, 1]} : vector<2x36xf32> to vector<2x9xf32>
    %194 = arith.mulf %192, %193 : vector<2x9xf32>
    %195 = arith.addf %191, %194 : vector<2x9xf32>
    %196 = vector.extract_strided_slice %188 {offsets = [0, 27], sizes = [2, 9], strides = [1, 1]} : vector<2x36xf32> to vector<2x9xf32>
    %197 = math.tanh %195 : vector<2x9xf32>
    %198 = arith.mulf %196, %197 : vector<2x9xf32>
    %199 = arith.truncf %198 : vector<2x9xf32> to vector<2x9xbf16>
    %cst_48 = arith.constant dense<0.000000e+00> : vector<2x36xf32>
    %200 = tpu.matmul %199, %2, %cst_48 {dimension_numbers = #tpu.dot_dimension_numbers<[1], [0], [0], [1], [0, 0, 1, 1], [], []>} : vector<2x9xbf16>, vector<9x36xbf16>, vector<2x36xf32> -> vector<2x36xf32>
    %201 = arith.truncf %164 : vector<2x9xf32> to vector<2x9xbf16>
    %cst_49 = arith.constant dense<0.000000e+00> : vector<2x36xf32>
    %202 = tpu.matmul %201, %3, %cst_49 {dimension_numbers = #tpu.dot_dimension_numbers<[1], [0], [0], [1], [0, 0, 1, 1], [], []>} : vector<2x9xbf16>, vector<9x36xbf16>, vector<2x36xf32> -> vector<2x36xf32>
    %203 = arith.addf %200, %202 : vector<2x36xf32>
    %204 = vector.broadcast %5 : vector<1x36xf32> to vector<2x36xf32>
    %205 = arith.addf %203, %204 : vector<2x36xf32>
    %206 = arith.negf %205 : vector<2x36xf32>
    %207 = math.exp %206 : vector<2x36xf32>
    %cst_50 = arith.constant 1.000000e+00 : f32
    %208 = vector.broadcast %cst_50 : f32 to vector<2x36xf32>
    %209 = arith.addf %208, %207 : vector<2x36xf32>
    %210 = arith.divf %208, %209 : vector<2x36xf32>
    %211 = math.tanh %205 : vector<2x36xf32>
    %212 = vector.extract_strided_slice %210 {offsets = [0, 9], sizes = [2, 9], strides = [1, 1]} : vector<2x36xf32> to vector<2x9xf32>
    %213 = arith.mulf %212, %161 : vector<2x9xf32>
    %214 = vector.extract_strided_slice %210 {offsets = [0, 0], sizes = [2, 9], strides = [1, 1]} : vector<2x36xf32> to vector<2x9xf32>
    %215 = vector.extract_strided_slice %211 {offsets = [0, 18], sizes = [2, 9], strides = [1, 1]} : vector<2x36xf32> to vector<2x9xf32>
    %216 = arith.mulf %214, %215 : vector<2x9xf32>
    %217 = arith.addf %213, %216 : vector<2x9xf32>
    %218 = vector.extract_strided_slice %210 {offsets = [0, 27], sizes = [2, 9], strides = [1, 1]} : vector<2x36xf32> to vector<2x9xf32>
    %219 = math.tanh %217 : vector<2x9xf32>
    %220 = arith.mulf %218, %219 : vector<2x9xf32>
    %221 = vector.extract_strided_slice %220 {offsets = [0, 0], sizes = [1, 9], strides = [1, 1]} : vector<2x9xf32> to vector<1x9xf32>
    %c0_51 = arith.constant 0 : index
    %222 = arith.index_cast %c3_i32 : i32 to index
    %c0_52 = arith.constant 0 : index
    %223 = vector.load %arg9[%c0_51, %222, %c0_52] : memref<2x10x9xf32, #tpu.memory_space<vmem>>, vector<1x1x9xf32>
    %224 = vector.shape_cast %223 : vector<1x1x9xf32> to vector<1x9xf32>
    %225 = vector.shape_cast %221 : vector<1x9xf32> to vector<1x1x9xf32>
    tpu.vector_store %arg9[%c0_51, %222, %c0_52], %225 {strides = array<i32>} : memref<2x10x9xf32, #tpu.memory_space<vmem>>, vector<1x1x9xf32>,
    %226 = vector.extract_strided_slice %220 {offsets = [1, 0], sizes = [1, 9], strides = [1, 1]} : vector<2x9xf32> to vector<1x9xf32>
    %c1_53 = arith.constant 1 : index
    %227 = arith.index_cast %c3_i32 : i32 to index
    %c0_54 = arith.constant 0 : index
    %228 = vector.load %arg9[%c1_53, %227, %c0_54] : memref<2x10x9xf32, #tpu.memory_space<vmem>>, vector<1x1x9xf32>
    %229 = vector.shape_cast %228 : vector<1x1x9xf32> to vector<1x9xf32>
    %230 = vector.shape_cast %226 : vector<1x9xf32> to vector<1x1x9xf32>
    tpu.vector_store %arg9[%c1_53, %227, %c0_54], %230 {strides = array<i32>} : memref<2x10x9xf32, #tpu.memory_space<vmem>>, vector<1x1x9xf32>,
    %c4_i32 = arith.constant 4 : i32
    %231 = arith.index_cast %c4_i32 : i32 to index
    %c0_55 = arith.constant 0 : index
    %c0_56 = arith.constant 0 : index
    %232 = vector.load %arg1[%231, %c0_55, %c0_56] : memref<10x2x16xbf16, #tpu.memory_space<vmem>>, vector<1x2x16xbf16>
    %233 = vector.shape_cast %232 : vector<1x2x16xbf16> to vector<2x16xbf16>
    %cst_57 = arith.constant dense<0.000000e+00> : vector<2x36xf32>
    %234 = tpu.matmul %233, %0, %cst_57 {dimension_numbers = #tpu.dot_dimension_numbers<[1], [0], [0], [1], [0, 0, 1, 1], [], []>} : vector<2x16xbf16>, vector<16x36xbf16>, vector<2x36xf32> -> vector<2x36xf32>
    %235 = arith.truncf %198 : vector<2x9xf32> to vector<2x9xbf16>
    %cst_58 = arith.constant dense<0.000000e+00> : vector<2x36xf32>
    %236 = tpu.matmul %235, %1, %cst_58 {dimension_numbers = #tpu.dot_dimension_numbers<[1], [0], [0], [1], [0, 0, 1, 1], [], []>} : vector<2x9xbf16>, vector<9x36xbf16>, vector<2x36xf32> -> vector<2x36xf32>
    %237 = arith.addf %234, %236 : vector<2x36xf32>
    %238 = vector.broadcast %4 : vector<1x36xf32> to vector<2x36xf32>
    %239 = arith.addf %237, %238 : vector<2x36xf32>
    %240 = arith.negf %239 : vector<2x36xf32>
    %241 = math.exp %240 : vector<2x36xf32>
    %cst_59 = arith.constant 1.000000e+00 : f32
    %242 = vector.broadcast %cst_59 : f32 to vector<2x36xf32>
    %243 = arith.addf %242, %241 : vector<2x36xf32>
    %244 = arith.divf %242, %243 : vector<2x36xf32>
    %245 = math.tanh %239 : vector<2x36xf32>
    %246 = vector.extract_strided_slice %244 {offsets = [0, 9], sizes = [2, 9], strides = [1, 1]} : vector<2x36xf32> to vector<2x9xf32>
    %247 = arith.mulf %246, %195 : vector<2x9xf32>
    %248 = vector.extract_strided_slice %244 {offsets = [0, 0], sizes = [2, 9], strides = [1, 1]} : vector<2x36xf32> to vector<2x9xf32>
    %249 = vector.extract_strided_slice %245 {offsets = [0, 18], sizes = [2, 9], strides = [1, 1]} : vector<2x36xf32> to vector<2x9xf32>
    %250 = arith.mulf %248, %249 : vector<2x9xf32>
    %251 = arith.addf %247, %250 : vector<2x9xf32>
    %252 = vector.extract_strided_slice %244 {offsets = [0, 27], sizes = [2, 9], strides = [1, 1]} : vector<2x36xf32> to vector<2x9xf32>
    %253 = math.tanh %251 : vector<2x9xf32>
    %254 = arith.mulf %252, %253 : vector<2x9xf32>
    %255 = arith.truncf %254 : vector<2x9xf32> to vector<2x9xbf16>
    %cst_60 = arith.constant dense<0.000000e+00> : vector<2x36xf32>
    %256 = tpu.matmul %255, %2, %cst_60 {dimension_numbers = #tpu.dot_dimension_numbers<[1], [0], [0], [1], [0, 0, 1, 1], [], []>} : vector<2x9xbf16>, vector<9x36xbf16>, vector<2x36xf32> -> vector<2x36xf32>
    %257 = arith.truncf %220 : vector<2x9xf32> to vector<2x9xbf16>
    %cst_61 = arith.constant dense<0.000000e+00> : vector<2x36xf32>
    %258 = tpu.matmul %257, %3, %cst_61 {dimension_numbers = #tpu.dot_dimension_numbers<[1], [0], [0], [1], [0, 0, 1, 1], [], []>} : vector<2x9xbf16>, vector<9x36xbf16>, vector<2x36xf32> -> vector<2x36xf32>
    %259 = arith.addf %256, %258 : vector<2x36xf32>
    %260 = vector.broadcast %5 : vector<1x36xf32> to vector<2x36xf32>
    %261 = arith.addf %259, %260 : vector<2x36xf32>
    %262 = arith.negf %261 : vector<2x36xf32>
    %263 = math.exp %262 : vector<2x36xf32>
    %cst_62 = arith.constant 1.000000e+00 : f32
    %264 = vector.broadcast %cst_62 : f32 to vector<2x36xf32>
    %265 = arith.addf %264, %263 : vector<2x36xf32>
    %266 = arith.divf %264, %265 : vector<2x36xf32>
    %267 = math.tanh %261 : vector<2x36xf32>
    %268 = vector.extract_strided_slice %266 {offsets = [0, 9], sizes = [2, 9], strides = [1, 1]} : vector<2x36xf32> to vector<2x9xf32>
    %269 = arith.mulf %268, %217 : vector<2x9xf32>
    %270 = vector.extract_strided_slice %266 {offsets = [0, 0], sizes = [2, 9], strides = [1, 1]} : vector<2x36xf32> to vector<2x9xf32>
    %271 = vector.extract_strided_slice %267 {offsets = [0, 18], sizes = [2, 9], strides = [1, 1]} : vector<2x36xf32> to vector<2x9xf32>
    %272 = arith.mulf %270, %271 : vector<2x9xf32>
    %273 = arith.addf %269, %272 : vector<2x9xf32>
    %274 = vector.extract_strided_slice %266 {offsets = [0, 27], sizes = [2, 9], strides = [1, 1]} : vector<2x36xf32> to vector<2x9xf32>
    %275 = math.tanh %273 : vector<2x9xf32>
    %276 = arith.mulf %274, %275 : vector<2x9xf32>
    %277 = vector.extract_strided_slice %276 {offsets = [0, 0], sizes = [1, 9], strides = [1, 1]} : vector<2x9xf32> to vector<1x9xf32>
    %c0_63 = arith.constant 0 : index
    %278 = arith.index_cast %c4_i32 : i32 to index
    %c0_64 = arith.constant 0 : index
    %279 = vector.load %arg9[%c0_63, %278, %c0_64] : memref<2x10x9xf32, #tpu.memory_space<vmem>>, vector<1x1x9xf32>
    %280 = vector.shape_cast %279 : vector<1x1x9xf32> to vector<1x9xf32>
    %281 = vector.shape_cast %277 : vector<1x9xf32> to vector<1x1x9xf32>
    tpu.vector_store %arg9[%c0_63, %278, %c0_64], %281 {strides = array<i32>} : memref<2x10x9xf32, #tpu.memory_space<vmem>>, vector<1x1x9xf32>,
    %282 = vector.extract_strided_slice %276 {offsets = [1, 0], sizes = [1, 9], strides = [1, 1]} : vector<2x9xf32> to vector<1x9xf32>
    %c1_65 = arith.constant 1 : index
    %283 = arith.index_cast %c4_i32 : i32 to index
    %c0_66 = arith.constant 0 : index
    %284 = vector.load %arg9[%c1_65, %283, %c0_66] : memref<2x10x9xf32, #tpu.memory_space<vmem>>, vector<1x1x9xf32>
    %285 = vector.shape_cast %284 : vector<1x1x9xf32> to vector<1x9xf32>
    %286 = vector.shape_cast %282 : vector<1x9xf32> to vector<1x1x9xf32>
    tpu.vector_store %arg9[%c1_65, %283, %c0_66], %286 {strides = array<i32>} : memref<2x10x9xf32, #tpu.memory_space<vmem>>, vector<1x1x9xf32>,
    %c5_i32 = arith.constant 5 : i32
    %287 = arith.index_cast %c5_i32 : i32 to index
    %c0_67 = arith.constant 0 : index
    %c0_68 = arith.constant 0 : index
    %288 = vector.load %arg1[%287, %c0_67, %c0_68] : memref<10x2x16xbf16, #tpu.memory_space<vmem>>, vector<1x2x16xbf16>
    %289 = vector.shape_cast %288 : vector<1x2x16xbf16> to vector<2x16xbf16>
    %cst_69 = arith.constant dense<0.000000e+00> : vector<2x36xf32>
    %290 = tpu.matmul %289, %0, %cst_69 {dimension_numbers = #tpu.dot_dimension_numbers<[1], [0], [0], [1], [0, 0, 1, 1], [], []>} : vector<2x16xbf16>, vector<16x36xbf16>, vector<2x36xf32> -> vector<2x36xf32>
    %291 = arith.truncf %254 : vector<2x9xf32> to vector<2x9xbf16>
    %cst_70 = arith.constant dense<0.000000e+00> : vector<2x36xf32>
    %292 = tpu.matmul %291, %1, %cst_70 {dimension_numbers = #tpu.dot_dimension_numbers<[1], [0], [0], [1], [0, 0, 1, 1], [], []>} : vector<2x9xbf16>, vector<9x36xbf16>, vector<2x36xf32> -> vector<2x36xf32>
    %293 = arith.addf %290, %292 : vector<2x36xf32>
    %294 = vector.broadcast %4 : vector<1x36xf32> to vector<2x36xf32>
    %295 = arith.addf %293, %294 : vector<2x36xf32>
    %296 = arith.negf %295 : vector<2x36xf32>
    %297 = math.exp %296 : vector<2x36xf32>
    %cst_71 = arith.constant 1.000000e+00 : f32
    %298 = vector.broadcast %cst_71 : f32 to vector<2x36xf32>
    %299 = arith.addf %298, %297 : vector<2x36xf32>
    %300 = arith.divf %298, %299 : vector<2x36xf32>
    %301 = math.tanh %295 : vector<2x36xf32>
    %302 = vector.extract_strided_slice %300 {offsets = [0, 9], sizes = [2, 9], strides = [1, 1]} : vector<2x36xf32> to vector<2x9xf32>
    %303 = arith.mulf %302, %251 : vector<2x9xf32>
    %304 = vector.extract_strided_slice %300 {offsets = [0, 0], sizes = [2, 9], strides = [1, 1]} : vector<2x36xf32> to vector<2x9xf32>
    %305 = vector.extract_strided_slice %301 {offsets = [0, 18], sizes = [2, 9], strides = [1, 1]} : vector<2x36xf32> to vector<2x9xf32>
    %306 = arith.mulf %304, %305 : vector<2x9xf32>
    %307 = arith.addf %303, %306 : vector<2x9xf32>
    %308 = vector.extract_strided_slice %300 {offsets = [0, 27], sizes = [2, 9], strides = [1, 1]} : vector<2x36xf32> to vector<2x9xf32>
    %309 = math.tanh %307 : vector<2x9xf32>
    %310 = arith.mulf %308, %309 : vector<2x9xf32>
    %311 = arith.truncf %310 : vector<2x9xf32> to vector<2x9xbf16>
    %cst_72 = arith.constant dense<0.000000e+00> : vector<2x36xf32>
    %312 = tpu.matmul %311, %2, %cst_72 {dimension_numbers = #tpu.dot_dimension_numbers<[1], [0], [0], [1], [0, 0, 1, 1], [], []>} : vector<2x9xbf16>, vector<9x36xbf16>, vector<2x36xf32> -> vector<2x36xf32>
    %313 = arith.truncf %276 : vector<2x9xf32> to vector<2x9xbf16>
    %cst_73 = arith.constant dense<0.000000e+00> : vector<2x36xf32>
    %314 = tpu.matmul %313, %3, %cst_73 {dimension_numbers = #tpu.dot_dimension_numbers<[1], [0], [0], [1], [0, 0, 1, 1], [], []>} : vector<2x9xbf16>, vector<9x36xbf16>, vector<2x36xf32> -> vector<2x36xf32>
    %315 = arith.addf %312, %314 : vector<2x36xf32>
    %316 = vector.broadcast %5 : vector<1x36xf32> to vector<2x36xf32>
    %317 = arith.addf %315, %316 : vector<2x36xf32>
    %318 = arith.negf %317 : vector<2x36xf32>
    %319 = math.exp %318 : vector<2x36xf32>
    %cst_74 = arith.constant 1.000000e+00 : f32
    %320 = vector.broadcast %cst_74 : f32 to vector<2x36xf32>
    %321 = arith.addf %320, %319 : vector<2x36xf32>
    %322 = arith.divf %320, %321 : vector<2x36xf32>
    %323 = math.tanh %317 : vector<2x36xf32>
    %324 = vector.extract_strided_slice %322 {offsets = [0, 9], sizes = [2, 9], strides = [1, 1]} : vector<2x36xf32> to vector<2x9xf32>
    %325 = arith.mulf %324, %273 : vector<2x9xf32>
    %326 = vector.extract_strided_slice %322 {offsets = [0, 0], sizes = [2, 9], strides = [1, 1]} : vector<2x36xf32> to vector<2x9xf32>
    %327 = vector.extract_strided_slice %323 {offsets = [0, 18], sizes = [2, 9], strides = [1, 1]} : vector<2x36xf32> to vector<2x9xf32>
    %328 = arith.mulf %326, %327 : vector<2x9xf32>
    %329 = arith.addf %325, %328 : vector<2x9xf32>
    %330 = vector.extract_strided_slice %322 {offsets = [0, 27], sizes = [2, 9], strides = [1, 1]} : vector<2x36xf32> to vector<2x9xf32>
    %331 = math.tanh %329 : vector<2x9xf32>
    %332 = arith.mulf %330, %331 : vector<2x9xf32>
    %333 = vector.extract_strided_slice %332 {offsets = [0, 0], sizes = [1, 9], strides = [1, 1]} : vector<2x9xf32> to vector<1x9xf32>
    %c0_75 = arith.constant 0 : index
    %334 = arith.index_cast %c5_i32 : i32 to index
    %c0_76 = arith.constant 0 : index
    %335 = vector.load %arg9[%c0_75, %334, %c0_76] : memref<2x10x9xf32, #tpu.memory_space<vmem>>, vector<1x1x9xf32>
    %336 = vector.shape_cast %335 : vector<1x1x9xf32> to vector<1x9xf32>
    %337 = vector.shape_cast %333 : vector<1x9xf32> to vector<1x1x9xf32>
    tpu.vector_store %arg9[%c0_75, %334, %c0_76], %337 {strides = array<i32>} : memref<2x10x9xf32, #tpu.memory_space<vmem>>, vector<1x1x9xf32>,
    %338 = vector.extract_strided_slice %332 {offsets = [1, 0], sizes = [1, 9], strides = [1, 1]} : vector<2x9xf32> to vector<1x9xf32>
    %c1_77 = arith.constant 1 : index
    %339 = arith.index_cast %c5_i32 : i32 to index
    %c0_78 = arith.constant 0 : index
    %340 = vector.load %arg9[%c1_77, %339, %c0_78] : memref<2x10x9xf32, #tpu.memory_space<vmem>>, vector<1x1x9xf32>
    %341 = vector.shape_cast %340 : vector<1x1x9xf32> to vector<1x9xf32>
    %342 = vector.shape_cast %338 : vector<1x9xf32> to vector<1x1x9xf32>
    tpu.vector_store %arg9[%c1_77, %339, %c0_78], %342 {strides = array<i32>} : memref<2x10x9xf32, #tpu.memory_space<vmem>>, vector<1x1x9xf32>,
    %c6_i32 = arith.constant 6 : i32
    %343 = arith.index_cast %c6_i32 : i32 to index
    %c0_79 = arith.constant 0 : index
    %c0_80 = arith.constant 0 : index
    %344 = vector.load %arg1[%343, %c0_79, %c0_80] : memref<10x2x16xbf16, #tpu.memory_space<vmem>>, vector<1x2x16xbf16>
    %345 = vector.shape_cast %344 : vector<1x2x16xbf16> to vector<2x16xbf16>
    %cst_81 = arith.constant dense<0.000000e+00> : vector<2x36xf32>
    %346 = tpu.matmul %345, %0, %cst_81 {dimension_numbers = #tpu.dot_dimension_numbers<[1], [0], [0], [1], [0, 0, 1, 1], [], []>} : vector<2x16xbf16>, vector<16x36xbf16>, vector<2x36xf32> -> vector<2x36xf32>
    %347 = arith.truncf %310 : vector<2x9xf32> to vector<2x9xbf16>
    %cst_82 = arith.constant dense<0.000000e+00> : vector<2x36xf32>
    %348 = tpu.matmul %347, %1, %cst_82 {dimension_numbers = #tpu.dot_dimension_numbers<[1], [0], [0], [1], [0, 0, 1, 1], [], []>} : vector<2x9xbf16>, vector<9x36xbf16>, vector<2x36xf32> -> vector<2x36xf32>
    %349 = arith.addf %346, %348 : vector<2x36xf32>
    %350 = vector.broadcast %4 : vector<1x36xf32> to vector<2x36xf32>
    %351 = arith.addf %349, %350 : vector<2x36xf32>
    %352 = arith.negf %351 : vector<2x36xf32>
    %353 = math.exp %352 : vector<2x36xf32>
    %cst_83 = arith.constant 1.000000e+00 : f32
    %354 = vector.broadcast %cst_83 : f32 to vector<2x36xf32>
    %355 = arith.addf %354, %353 : vector<2x36xf32>
    %356 = arith.divf %354, %355 : vector<2x36xf32>
    %357 = math.tanh %351 : vector<2x36xf32>
    %358 = vector.extract_strided_slice %356 {offsets = [0, 9], sizes = [2, 9], strides = [1, 1]} : vector<2x36xf32> to vector<2x9xf32>
    %359 = arith.mulf %358, %307 : vector<2x9xf32>
    %360 = vector.extract_strided_slice %356 {offsets = [0, 0], sizes = [2, 9], strides = [1, 1]} : vector<2x36xf32> to vector<2x9xf32>
    %361 = vector.extract_strided_slice %357 {offsets = [0, 18], sizes = [2, 9], strides = [1, 1]} : vector<2x36xf32> to vector<2x9xf32>
    %362 = arith.mulf %360, %361 : vector<2x9xf32>
    %363 = arith.addf %359, %362 : vector<2x9xf32>
    %364 = vector.extract_strided_slice %356 {offsets = [0, 27], sizes = [2, 9], strides = [1, 1]} : vector<2x36xf32> to vector<2x9xf32>
    %365 = math.tanh %363 : vector<2x9xf32>
    %366 = arith.mulf %364, %365 : vector<2x9xf32>
    %367 = arith.truncf %366 : vector<2x9xf32> to vector<2x9xbf16>
    %cst_84 = arith.constant dense<0.000000e+00> : vector<2x36xf32>
    %368 = tpu.matmul %367, %2, %cst_84 {dimension_numbers = #tpu.dot_dimension_numbers<[1], [0], [0], [1], [0, 0, 1, 1], [], []>} : vector<2x9xbf16>, vector<9x36xbf16>, vector<2x36xf32> -> vector<2x36xf32>
    %369 = arith.truncf %332 : vector<2x9xf32> to vector<2x9xbf16>
    %cst_85 = arith.constant dense<0.000000e+00> : vector<2x36xf32>
    %370 = tpu.matmul %369, %3, %cst_85 {dimension_numbers = #tpu.dot_dimension_numbers<[1], [0], [0], [1], [0, 0, 1, 1], [], []>} : vector<2x9xbf16>, vector<9x36xbf16>, vector<2x36xf32> -> vector<2x36xf32>
    %371 = arith.addf %368, %370 : vector<2x36xf32>
    %372 = vector.broadcast %5 : vector<1x36xf32> to vector<2x36xf32>
    %373 = arith.addf %371, %372 : vector<2x36xf32>
    %374 = arith.negf %373 : vector<2x36xf32>
    %375 = math.exp %374 : vector<2x36xf32>
    %cst_86 = arith.constant 1.000000e+00 : f32
    %376 = vector.broadcast %cst_86 : f32 to vector<2x36xf32>
    %377 = arith.addf %376, %375 : vector<2x36xf32>
    %378 = arith.divf %376, %377 : vector<2x36xf32>
    %379 = math.tanh %373 : vector<2x36xf32>
    %380 = vector.extract_strided_slice %378 {offsets = [0, 9], sizes = [2, 9], strides = [1, 1]} : vector<2x36xf32> to vector<2x9xf32>
    %381 = arith.mulf %380, %329 : vector<2x9xf32>
    %382 = vector.extract_strided_slice %378 {offsets = [0, 0], sizes = [2, 9], strides = [1, 1]} : vector<2x36xf32> to vector<2x9xf32>
    %383 = vector.extract_strided_slice %379 {offsets = [0, 18], sizes = [2, 9], strides = [1, 1]} : vector<2x36xf32> to vector<2x9xf32>
    %384 = arith.mulf %382, %383 : vector<2x9xf32>
    %385 = arith.addf %381, %384 : vector<2x9xf32>
    %386 = vector.extract_strided_slice %378 {offsets = [0, 27], sizes = [2, 9], strides = [1, 1]} : vector<2x36xf32> to vector<2x9xf32>
    %387 = math.tanh %385 : vector<2x9xf32>
    %388 = arith.mulf %386, %387 : vector<2x9xf32>
    %389 = vector.extract_strided_slice %388 {offsets = [0, 0], sizes = [1, 9], strides = [1, 1]} : vector<2x9xf32> to vector<1x9xf32>
    %c0_87 = arith.constant 0 : index
    %390 = arith.index_cast %c6_i32 : i32 to index
    %c0_88 = arith.constant 0 : index
    %391 = vector.load %arg9[%c0_87, %390, %c0_88] : memref<2x10x9xf32, #tpu.memory_space<vmem>>, vector<1x1x9xf32>
    %392 = vector.shape_cast %391 : vector<1x1x9xf32> to vector<1x9xf32>
    %393 = vector.shape_cast %389 : vector<1x9xf32> to vector<1x1x9xf32>
    tpu.vector_store %arg9[%c0_87, %390, %c0_88], %393 {strides = array<i32>} : memref<2x10x9xf32, #tpu.memory_space<vmem>>, vector<1x1x9xf32>,
    %394 = vector.extract_strided_slice %388 {offsets = [1, 0], sizes = [1, 9], strides = [1, 1]} : vector<2x9xf32> to vector<1x9xf32>
    %c1_89 = arith.constant 1 : index
    %395 = arith.index_cast %c6_i32 : i32 to index
    %c0_90 = arith.constant 0 : index
    %396 = vector.load %arg9[%c1_89, %395, %c0_90] : memref<2x10x9xf32, #tpu.memory_space<vmem>>, vector<1x1x9xf32>
    %397 = vector.shape_cast %396 : vector<1x1x9xf32> to vector<1x9xf32>
    %398 = vector.shape_cast %394 : vector<1x9xf32> to vector<1x1x9xf32>
    tpu.vector_store %arg9[%c1_89, %395, %c0_90], %398 {strides = array<i32>} : memref<2x10x9xf32, #tpu.memory_space<vmem>>, vector<1x1x9xf32>,
    %c7_i32 = arith.constant 7 : i32
    %399 = arith.index_cast %c7_i32 : i32 to index
    %c0_91 = arith.constant 0 : index
    %c0_92 = arith.constant 0 : index
    %400 = vector.load %arg1[%399, %c0_91, %c0_92] : memref<10x2x16xbf16, #tpu.memory_space<vmem>>, vector<1x2x16xbf16>
    %401 = vector.shape_cast %400 : vector<1x2x16xbf16> to vector<2x16xbf16>
    %cst_93 = arith.constant dense<0.000000e+00> : vector<2x36xf32>
    %402 = tpu.matmul %401, %0, %cst_93 {dimension_numbers = #tpu.dot_dimension_numbers<[1], [0], [0], [1], [0, 0, 1, 1], [], []>} : vector<2x16xbf16>, vector<16x36xbf16>, vector<2x36xf32> -> vector<2x36xf32>
    %403 = arith.truncf %366 : vector<2x9xf32> to vector<2x9xbf16>
    %cst_94 = arith.constant dense<0.000000e+00> : vector<2x36xf32>
    %404 = tpu.matmul %403, %1, %cst_94 {dimension_numbers = #tpu.dot_dimension_numbers<[1], [0], [0], [1], [0, 0, 1, 1], [], []>} : vector<2x9xbf16>, vector<9x36xbf16>, vector<2x36xf32> -> vector<2x36xf32>
    %405 = arith.addf %402, %404 : vector<2x36xf32>
    %406 = vector.broadcast %4 : vector<1x36xf32> to vector<2x36xf32>
    %407 = arith.addf %405, %406 : vector<2x36xf32>
    %408 = arith.negf %407 : vector<2x36xf32>
    %409 = math.exp %408 : vector<2x36xf32>
    %cst_95 = arith.constant 1.000000e+00 : f32
    %410 = vector.broadcast %cst_95 : f32 to vector<2x36xf32>
    %411 = arith.addf %410, %409 : vector<2x36xf32>
    %412 = arith.divf %410, %411 : vector<2x36xf32>
    %413 = math.tanh %407 : vector<2x36xf32>
    %414 = vector.extract_strided_slice %412 {offsets = [0, 9], sizes = [2, 9], strides = [1, 1]} : vector<2x36xf32> to vector<2x9xf32>
    %415 = arith.mulf %414, %363 : vector<2x9xf32>
    %416 = vector.extract_strided_slice %412 {offsets = [0, 0], sizes = [2, 9], strides = [1, 1]} : vector<2x36xf32> to vector<2x9xf32>
    %417 = vector.extract_strided_slice %413 {offsets = [0, 18], sizes = [2, 9], strides = [1, 1]} : vector<2x36xf32> to vector<2x9xf32>
    %418 = arith.mulf %416, %417 : vector<2x9xf32>
    %419 = arith.addf %415, %418 : vector<2x9xf32>
    %420 = vector.extract_strided_slice %412 {offsets = [0, 27], sizes = [2, 9], strides = [1, 1]} : vector<2x36xf32> to vector<2x9xf32>
    %421 = math.tanh %419 : vector<2x9xf32>
    %422 = arith.mulf %420, %421 : vector<2x9xf32>
    %423 = arith.truncf %422 : vector<2x9xf32> to vector<2x9xbf16>
    %cst_96 = arith.constant dense<0.000000e+00> : vector<2x36xf32>
    %424 = tpu.matmul %423, %2, %cst_96 {dimension_numbers = #tpu.dot_dimension_numbers<[1], [0], [0], [1], [0, 0, 1, 1], [], []>} : vector<2x9xbf16>, vector<9x36xbf16>, vector<2x36xf32> -> vector<2x36xf32>
    %425 = arith.truncf %388 : vector<2x9xf32> to vector<2x9xbf16>
    %cst_97 = arith.constant dense<0.000000e+00> : vector<2x36xf32>
    %426 = tpu.matmul %425, %3, %cst_97 {dimension_numbers = #tpu.dot_dimension_numbers<[1], [0], [0], [1], [0, 0, 1, 1], [], []>} : vector<2x9xbf16>, vector<9x36xbf16>, vector<2x36xf32> -> vector<2x36xf32>
    %427 = arith.addf %424, %426 : vector<2x36xf32>
    %428 = vector.broadcast %5 : vector<1x36xf32> to vector<2x36xf32>
    %429 = arith.addf %427, %428 : vector<2x36xf32>
    %430 = arith.negf %429 : vector<2x36xf32>
    %431 = math.exp %430 : vector<2x36xf32>
    %cst_98 = arith.constant 1.000000e+00 : f32
    %432 = vector.broadcast %cst_98 : f32 to vector<2x36xf32>
    %433 = arith.addf %432, %431 : vector<2x36xf32>
    %434 = arith.divf %432, %433 : vector<2x36xf32>
    %435 = math.tanh %429 : vector<2x36xf32>
    %436 = vector.extract_strided_slice %434 {offsets = [0, 9], sizes = [2, 9], strides = [1, 1]} : vector<2x36xf32> to vector<2x9xf32>
    %437 = arith.mulf %436, %385 : vector<2x9xf32>
    %438 = vector.extract_strided_slice %434 {offsets = [0, 0], sizes = [2, 9], strides = [1, 1]} : vector<2x36xf32> to vector<2x9xf32>
    %439 = vector.extract_strided_slice %435 {offsets = [0, 18], sizes = [2, 9], strides = [1, 1]} : vector<2x36xf32> to vector<2x9xf32>
    %440 = arith.mulf %438, %439 : vector<2x9xf32>
    %441 = arith.addf %437, %440 : vector<2x9xf32>
    %442 = vector.extract_strided_slice %434 {offsets = [0, 27], sizes = [2, 9], strides = [1, 1]} : vector<2x36xf32> to vector<2x9xf32>
    %443 = math.tanh %441 : vector<2x9xf32>
    %444 = arith.mulf %442, %443 : vector<2x9xf32>
    %445 = vector.extract_strided_slice %444 {offsets = [0, 0], sizes = [1, 9], strides = [1, 1]} : vector<2x9xf32> to vector<1x9xf32>
    %c0_99 = arith.constant 0 : index
    %446 = arith.index_cast %c7_i32 : i32 to index
    %c0_100 = arith.constant 0 : index
    %447 = vector.load %arg9[%c0_99, %446, %c0_100] : memref<2x10x9xf32, #tpu.memory_space<vmem>>, vector<1x1x9xf32>
    %448 = vector.shape_cast %447 : vector<1x1x9xf32> to vector<1x9xf32>
    %449 = vector.shape_cast %445 : vector<1x9xf32> to vector<1x1x9xf32>
    tpu.vector_store %arg9[%c0_99, %446, %c0_100], %449 {strides = array<i32>} : memref<2x10x9xf32, #tpu.memory_space<vmem>>, vector<1x1x9xf32>,
    %450 = vector.extract_strided_slice %444 {offsets = [1, 0], sizes = [1, 9], strides = [1, 1]} : vector<2x9xf32> to vector<1x9xf32>
    %c1_101 = arith.constant 1 : index
    %451 = arith.index_cast %c7_i32 : i32 to index
    %c0_102 = arith.constant 0 : index
    %452 = vector.load %arg9[%c1_101, %451, %c0_102] : memref<2x10x9xf32, #tpu.memory_space<vmem>>, vector<1x1x9xf32>
    %453 = vector.shape_cast %452 : vector<1x1x9xf32> to vector<1x9xf32>
    %454 = vector.shape_cast %450 : vector<1x9xf32> to vector<1x1x9xf32>
    tpu.vector_store %arg9[%c1_101, %451, %c0_102], %454 {strides = array<i32>} : memref<2x10x9xf32, #tpu.memory_space<vmem>>, vector<1x1x9xf32>,
    %c8_i32 = arith.constant 8 : i32
    %455 = arith.index_cast %c8_i32 : i32 to index
    %c0_103 = arith.constant 0 : index
    %c0_104 = arith.constant 0 : index
    %456 = vector.load %arg1[%455, %c0_103, %c0_104] : memref<10x2x16xbf16, #tpu.memory_space<vmem>>, vector<1x2x16xbf16>
    %457 = vector.shape_cast %456 : vector<1x2x16xbf16> to vector<2x16xbf16>
    %cst_105 = arith.constant dense<0.000000e+00> : vector<2x36xf32>
    %458 = tpu.matmul %457, %0, %cst_105 {dimension_numbers = #tpu.dot_dimension_numbers<[1], [0], [0], [1], [0, 0, 1, 1], [], []>} : vector<2x16xbf16>, vector<16x36xbf16>, vector<2x36xf32> -> vector<2x36xf32>
    %459 = arith.truncf %422 : vector<2x9xf32> to vector<2x9xbf16>
    %cst_106 = arith.constant dense<0.000000e+00> : vector<2x36xf32>
    %460 = tpu.matmul %459, %1, %cst_106 {dimension_numbers = #tpu.dot_dimension_numbers<[1], [0], [0], [1], [0, 0, 1, 1], [], []>} : vector<2x9xbf16>, vector<9x36xbf16>, vector<2x36xf32> -> vector<2x36xf32>
    %461 = arith.addf %458, %460 : vector<2x36xf32>
    %462 = vector.broadcast %4 : vector<1x36xf32> to vector<2x36xf32>
    %463 = arith.addf %461, %462 : vector<2x36xf32>
    %464 = arith.negf %463 : vector<2x36xf32>
    %465 = math.exp %464 : vector<2x36xf32>
    %cst_107 = arith.constant 1.000000e+00 : f32
    %466 = vector.broadcast %cst_107 : f32 to vector<2x36xf32>
    %467 = arith.addf %466, %465 : vector<2x36xf32>
    %468 = arith.divf %466, %467 : vector<2x36xf32>
    %469 = math.tanh %463 : vector<2x36xf32>
    %470 = vector.extract_strided_slice %468 {offsets = [0, 9], sizes = [2, 9], strides = [1, 1]} : vector<2x36xf32> to vector<2x9xf32>
    %471 = arith.mulf %470, %419 : vector<2x9xf32>
    %472 = vector.extract_strided_slice %468 {offsets = [0, 0], sizes = [2, 9], strides = [1, 1]} : vector<2x36xf32> to vector<2x9xf32>
    %473 = vector.extract_strided_slice %469 {offsets = [0, 18], sizes = [2, 9], strides = [1, 1]} : vector<2x36xf32> to vector<2x9xf32>
    %474 = arith.mulf %472, %473 : vector<2x9xf32>
    %475 = arith.addf %471, %474 : vector<2x9xf32>
    %476 = vector.extract_strided_slice %468 {offsets = [0, 27], sizes = [2, 9], strides = [1, 1]} : vector<2x36xf32> to vector<2x9xf32>
    %477 = math.tanh %475 : vector<2x9xf32>
    %478 = arith.mulf %476, %477 : vector<2x9xf32>
    %479 = arith.truncf %478 : vector<2x9xf32> to vector<2x9xbf16>
    %cst_108 = arith.constant dense<0.000000e+00> : vector<2x36xf32>
    %480 = tpu.matmul %479, %2, %cst_108 {dimension_numbers = #tpu.dot_dimension_numbers<[1], [0], [0], [1], [0, 0, 1, 1], [], []>} : vector<2x9xbf16>, vector<9x36xbf16>, vector<2x36xf32> -> vector<2x36xf32>
    %481 = arith.truncf %444 : vector<2x9xf32> to vector<2x9xbf16>
    %cst_109 = arith.constant dense<0.000000e+00> : vector<2x36xf32>
    %482 = tpu.matmul %481, %3, %cst_109 {dimension_numbers = #tpu.dot_dimension_numbers<[1], [0], [0], [1], [0, 0, 1, 1], [], []>} : vector<2x9xbf16>, vector<9x36xbf16>, vector<2x36xf32> -> vector<2x36xf32>
    %483 = arith.addf %480, %482 : vector<2x36xf32>
    %484 = vector.broadcast %5 : vector<1x36xf32> to vector<2x36xf32>
    %485 = arith.addf %483, %484 : vector<2x36xf32>
    %486 = arith.negf %485 : vector<2x36xf32>
    %487 = math.exp %486 : vector<2x36xf32>
    %cst_110 = arith.constant 1.000000e+00 : f32
    %488 = vector.broadcast %cst_110 : f32 to vector<2x36xf32>
    %489 = arith.addf %488, %487 : vector<2x36xf32>
    %490 = arith.divf %488, %489 : vector<2x36xf32>
    %491 = math.tanh %485 : vector<2x36xf32>
    %492 = vector.extract_strided_slice %490 {offsets = [0, 9], sizes = [2, 9], strides = [1, 1]} : vector<2x36xf32> to vector<2x9xf32>
    %493 = arith.mulf %492, %441 : vector<2x9xf32>
    %494 = vector.extract_strided_slice %490 {offsets = [0, 0], sizes = [2, 9], strides = [1, 1]} : vector<2x36xf32> to vector<2x9xf32>
    %495 = vector.extract_strided_slice %491 {offsets = [0, 18], sizes = [2, 9], strides = [1, 1]} : vector<2x36xf32> to vector<2x9xf32>
    %496 = arith.mulf %494, %495 : vector<2x9xf32>
    %497 = arith.addf %493, %496 : vector<2x9xf32>
    %498 = vector.extract_strided_slice %490 {offsets = [0, 27], sizes = [2, 9], strides = [1, 1]} : vector<2x36xf32> to vector<2x9xf32>
    %499 = math.tanh %497 : vector<2x9xf32>
    %500 = arith.mulf %498, %499 : vector<2x9xf32>
    %501 = vector.extract_strided_slice %500 {offsets = [0, 0], sizes = [1, 9], strides = [1, 1]} : vector<2x9xf32> to vector<1x9xf32>
    %c0_111 = arith.constant 0 : index
    %502 = arith.index_cast %c8_i32 : i32 to index
    %c0_112 = arith.constant 0 : index
    %503 = vector.load %arg9[%c0_111, %502, %c0_112] : memref<2x10x9xf32, #tpu.memory_space<vmem>>, vector<1x1x9xf32>
    %504 = vector.shape_cast %503 : vector<1x1x9xf32> to vector<1x9xf32>
    %505 = vector.shape_cast %501 : vector<1x9xf32> to vector<1x1x9xf32>
    tpu.vector_store %arg9[%c0_111, %502, %c0_112], %505 {strides = array<i32>} : memref<2x10x9xf32, #tpu.memory_space<vmem>>, vector<1x1x9xf32>,
    %506 = vector.extract_strided_slice %500 {offsets = [1, 0], sizes = [1, 9], strides = [1, 1]} : vector<2x9xf32> to vector<1x9xf32>
    %c1_113 = arith.constant 1 : index
    %507 = arith.index_cast %c8_i32 : i32 to index
    %c0_114 = arith.constant 0 : index
    %508 = vector.load %arg9[%c1_113, %507, %c0_114] : memref<2x10x9xf32, #tpu.memory_space<vmem>>, vector<1x1x9xf32>
    %509 = vector.shape_cast %508 : vector<1x1x9xf32> to vector<1x9xf32>
    %510 = vector.shape_cast %506 : vector<1x9xf32> to vector<1x1x9xf32>
    tpu.vector_store %arg9[%c1_113, %507, %c0_114], %510 {strides = array<i32>} : memref<2x10x9xf32, #tpu.memory_space<vmem>>, vector<1x1x9xf32>,
    %c9_i32 = arith.constant 9 : i32
    %511 = arith.index_cast %c9_i32 : i32 to index
    %c0_115 = arith.constant 0 : index
    %c0_116 = arith.constant 0 : index
    %512 = vector.load %arg1[%511, %c0_115, %c0_116] : memref<10x2x16xbf16, #tpu.memory_space<vmem>>, vector<1x2x16xbf16>
    %513 = vector.shape_cast %512 : vector<1x2x16xbf16> to vector<2x16xbf16>
    %cst_117 = arith.constant dense<0.000000e+00> : vector<2x36xf32>
    %514 = tpu.matmul %513, %0, %cst_117 {dimension_numbers = #tpu.dot_dimension_numbers<[1], [0], [0], [1], [0, 0, 1, 1], [], []>} : vector<2x16xbf16>, vector<16x36xbf16>, vector<2x36xf32> -> vector<2x36xf32>
    %515 = arith.truncf %478 : vector<2x9xf32> to vector<2x9xbf16>
    %cst_118 = arith.constant dense<0.000000e+00> : vector<2x36xf32>
    %516 = tpu.matmul %515, %1, %cst_118 {dimension_numbers = #tpu.dot_dimension_numbers<[1], [0], [0], [1], [0, 0, 1, 1], [], []>} : vector<2x9xbf16>, vector<9x36xbf16>, vector<2x36xf32> -> vector<2x36xf32>
    %517 = arith.addf %514, %516 : vector<2x36xf32>
    %518 = vector.broadcast %4 : vector<1x36xf32> to vector<2x36xf32>
    %519 = arith.addf %517, %518 : vector<2x36xf32>
    %520 = arith.negf %519 : vector<2x36xf32>
    %521 = math.exp %520 : vector<2x36xf32>
    %cst_119 = arith.constant 1.000000e+00 : f32
    %522 = vector.broadcast %cst_119 : f32 to vector<2x36xf32>
    %523 = arith.addf %522, %521 : vector<2x36xf32>
    %524 = arith.divf %522, %523 : vector<2x36xf32>
    %525 = math.tanh %519 : vector<2x36xf32>
    %526 = vector.extract_strided_slice %524 {offsets = [0, 9], sizes = [2, 9], strides = [1, 1]} : vector<2x36xf32> to vector<2x9xf32>
    %527 = arith.mulf %526, %475 : vector<2x9xf32>
    %528 = vector.extract_strided_slice %524 {offsets = [0, 0], sizes = [2, 9], strides = [1, 1]} : vector<2x36xf32> to vector<2x9xf32>
    %529 = vector.extract_strided_slice %525 {offsets = [0, 18], sizes = [2, 9], strides = [1, 1]} : vector<2x36xf32> to vector<2x9xf32>
    %530 = arith.mulf %528, %529 : vector<2x9xf32>
    %531 = arith.addf %527, %530 : vector<2x9xf32>
    %532 = vector.extract_strided_slice %524 {offsets = [0, 27], sizes = [2, 9], strides = [1, 1]} : vector<2x36xf32> to vector<2x9xf32>
    %533 = math.tanh %531 : vector<2x9xf32>
    %534 = arith.mulf %532, %533 : vector<2x9xf32>
    %535 = arith.truncf %534 : vector<2x9xf32> to vector<2x9xbf16>
    %cst_120 = arith.constant dense<0.000000e+00> : vector<2x36xf32>
    %536 = tpu.matmul %535, %2, %cst_120 {dimension_numbers = #tpu.dot_dimension_numbers<[1], [0], [0], [1], [0, 0, 1, 1], [], []>} : vector<2x9xbf16>, vector<9x36xbf16>, vector<2x36xf32> -> vector<2x36xf32>
    %537 = arith.truncf %500 : vector<2x9xf32> to vector<2x9xbf16>
    %cst_121 = arith.constant dense<0.000000e+00> : vector<2x36xf32>
    %538 = tpu.matmul %537, %3, %cst_121 {dimension_numbers = #tpu.dot_dimension_numbers<[1], [0], [0], [1], [0, 0, 1, 1], [], []>} : vector<2x9xbf16>, vector<9x36xbf16>, vector<2x36xf32> -> vector<2x36xf32>
    %539 = arith.addf %536, %538 : vector<2x36xf32>
    %540 = vector.broadcast %5 : vector<1x36xf32> to vector<2x36xf32>
    %541 = arith.addf %539, %540 : vector<2x36xf32>
    %542 = arith.negf %541 : vector<2x36xf32>
    %543 = math.exp %542 : vector<2x36xf32>
    %cst_122 = arith.constant 1.000000e+00 : f32
    %544 = vector.broadcast %cst_122 : f32 to vector<2x36xf32>
    %545 = arith.addf %544, %543 : vector<2x36xf32>
    %546 = arith.divf %544, %545 : vector<2x36xf32>
    %547 = math.tanh %541 : vector<2x36xf32>
    %548 = vector.extract_strided_slice %546 {offsets = [0, 9], sizes = [2, 9], strides = [1, 1]} : vector<2x36xf32> to vector<2x9xf32>
    %549 = arith.mulf %548, %497 : vector<2x9xf32>
    %550 = vector.extract_strided_slice %546 {offsets = [0, 0], sizes = [2, 9], strides = [1, 1]} : vector<2x36xf32> to vector<2x9xf32>
    %551 = vector.extract_strided_slice %547 {offsets = [0, 18], sizes = [2, 9], strides = [1, 1]} : vector<2x36xf32> to vector<2x9xf32>
    %552 = arith.mulf %550, %551 : vector<2x9xf32>
    %553 = arith.addf %549, %552 : vector<2x9xf32>
    %554 = vector.extract_strided_slice %546 {offsets = [0, 27], sizes = [2, 9], strides = [1, 1]} : vector<2x36xf32> to vector<2x9xf32>
    %555 = math.tanh %553 : vector<2x9xf32>
    %556 = arith.mulf %554, %555 : vector<2x9xf32>
    %557 = vector.extract_strided_slice %556 {offsets = [0, 0], sizes = [1, 9], strides = [1, 1]} : vector<2x9xf32> to vector<1x9xf32>
    %c0_123 = arith.constant 0 : index
    %558 = arith.index_cast %c9_i32 : i32 to index
    %c0_124 = arith.constant 0 : index
    %559 = vector.load %arg9[%c0_123, %558, %c0_124] : memref<2x10x9xf32, #tpu.memory_space<vmem>>, vector<1x1x9xf32>
    %560 = vector.shape_cast %559 : vector<1x1x9xf32> to vector<1x9xf32>
    %561 = vector.shape_cast %557 : vector<1x9xf32> to vector<1x1x9xf32>
    tpu.vector_store %arg9[%c0_123, %558, %c0_124], %561 {strides = array<i32>} : memref<2x10x9xf32, #tpu.memory_space<vmem>>, vector<1x1x9xf32>,
    %562 = vector.extract_strided_slice %556 {offsets = [1, 0], sizes = [1, 9], strides = [1, 1]} : vector<2x9xf32> to vector<1x9xf32>
    %c1_125 = arith.constant 1 : index
    %563 = arith.index_cast %c9_i32 : i32 to index
    %c0_126 = arith.constant 0 : index
    %564 = vector.load %arg9[%c1_125, %563, %c0_126] : memref<2x10x9xf32, #tpu.memory_space<vmem>>, vector<1x1x9xf32>
    %565 = vector.shape_cast %564 : vector<1x1x9xf32> to vector<1x9xf32>
    %566 = vector.shape_cast %562 : vector<1x9xf32> to vector<1x1x9xf32>
    tpu.vector_store %arg9[%c1_125, %563, %c0_126], %566 {strides = array<i32>} : memref<2x10x9xf32, #tpu.memory_space<vmem>>, vector<1x1x9xf32>,
    %c10_i32 = arith.constant 10 : i32
    %c0_127 = arith.constant 0 : index
    %c0_128 = arith.constant 0 : index
    %567 = vector.load %arg6[%c0_127, %c0_128] : memref<56x32xf32, #tpu.memory_space<vmem>>, vector<16x32xf32>
    %c16_129 = arith.constant 16 : index
    %c0_130 = arith.constant 0 : index
    %568 = vector.load %arg6[%c16_129, %c0_130] : memref<56x32xf32, #tpu.memory_space<vmem>>, vector<20x32xf32>
    %c40 = arith.constant 40 : index
    %c0_131 = arith.constant 0 : index
    %569 = vector.load %arg6[%c40, %c0_131] : memref<56x32xf32, #tpu.memory_space<vmem>>, vector<8x4xf32>
    %c48_132 = arith.constant 48 : index
    %c0_133 = arith.constant 0 : index
    %570 = vector.load %arg6[%c48_132, %c0_133] : memref<56x32xf32, #tpu.memory_space<vmem>>, vector<4x8xf32>
    %c0_134 = arith.constant 0 : index
    %c0_135 = arith.constant 0 : index
    %571 = vector.load %arg7[%c0_134, %c0_135] : memref<5x32xf32, #tpu.memory_space<vmem>>, vector<1x32xf32>
    %c1_136 = arith.constant 1 : index
    %c0_137 = arith.constant 0 : index
    %572 = vector.load %arg7[%c1_136, %c0_137] : memref<5x32xf32, #tpu.memory_space<vmem>>, vector<1x32xf32>
    %c2 = arith.constant 2 : index
    %c0_138 = arith.constant 0 : index
    %573 = vector.load %arg7[%c2, %c0_138] : memref<5x32xf32, #tpu.memory_space<vmem>>, vector<1x4xf32>
    %c3 = arith.constant 3 : index
    %c0_139 = arith.constant 0 : index
    %574 = vector.load %arg7[%c3, %c0_139] : memref<5x32xf32, #tpu.memory_space<vmem>>, vector<1x8xf32>
    %c4 = arith.constant 4 : index
    %c0_140 = arith.constant 0 : index
    %575 = vector.load %arg7[%c4, %c0_140] : memref<5x32xf32, #tpu.memory_space<vmem>>, vector<1x1xf32>
    %c0_141 = arith.constant 0 : index
    %c0_142 = arith.constant 0 : index
    %c0_143 = arith.constant 0 : index
    %576 = vector.load %arg9[%c0_141, %c0_142, %c0_143] : memref<2x10x9xf32, #tpu.memory_space<vmem>>, vector<1x10x9xf32>
    %577 = vector.shape_cast %576 : vector<1x10x9xf32> to vector<10x9xf32>
    %cst_144 = arith.constant dense<0xFF800000> : vector<10xf32>
    %578 = vector.multi_reduction <maximumf>, %577, %cst_144 [1] : vector<10x9xf32> to vector<10xf32>
    %579 = vector.shape_cast %578 : vector<10xf32> to vector<10x1xf32>
    %580 = vector.broadcast %579 : vector<10x1xf32> to vector<10x9xf32>
    %581 = arith.subf %577, %580 : vector<10x9xf32>
    %582 = math.exp %581 : vector<10x9xf32>
    %cst_145 = arith.constant dense<0.000000e+00> : vector<10xf32>
    %583 = vector.multi_reduction <add>, %582, %cst_145 [1] : vector<10x9xf32> to vector<10xf32>
    %584 = vector.shape_cast %583 : vector<10xf32> to vector<10x1xf32>
    %585 = vector.broadcast %584 : vector<10x1xf32> to vector<10x9xf32>
    %586 = arith.divf %582, %585 : vector<10x9xf32>
    %587 = vector.extract_strided_slice %586 {offsets = [0, 0], sizes = [10, 8], strides = [1, 1]} : vector<10x9xf32> to vector<10x8xf32>
    %c0_146 = arith.constant 0 : index
    %c0_147 = arith.constant 0 : index
    %c0_148 = arith.constant 0 : index
    %588 = vector.load %arg2[%c0_146, %c0_147, %c0_148] : memref<2x10x16xf32, #tpu.memory_space<vmem>>, vector<1x10x16xf32>
    %589 = vector.shape_cast %588 : vector<1x10x16xf32> to vector<10x16xf32>
    %cst_149 = arith.constant dense<0.000000e+00> : vector<8x16xf32>
    %590 = tpu.matmul %587, %589, %cst_149 {dimension_numbers = #tpu.dot_dimension_numbers<[0], [0], [1], [1], [0, 1, 1, 1], [], []>, precision = #tpu.contract_precision<fp32>} : vector<10x8xf32>, vector<10x16xf32>, vector<8x16xf32> -> vector<8x16xf32>
    %cst_150 = arith.constant dense<0.000000e+00> : vector<8x32xf32>
    %591 = tpu.matmul %590, %567, %cst_150 {dimension_numbers = #tpu.dot_dimension_numbers<[1], [0], [0], [1], [0, 0, 1, 1], [], []>, precision = #tpu.contract_precision<fp32>} : vector<8x16xf32>, vector<16x32xf32>, vector<8x32xf32> -> vector<8x32xf32>
    %592 = vector.broadcast %571 : vector<1x32xf32> to vector<8x32xf32>
    %593 = arith.addf %591, %592 : vector<8x32xf32>
    %594 = arith.mulf %593, %593 : vector<8x32xf32>
    %cst_151 = arith.constant dense<0.000000e+00> : vector<8xf32>
    %595 = vector.multi_reduction <add>, %594, %cst_151 [1] : vector<8x32xf32> to vector<8xf32>
    %596 = vector.shape_cast %595 : vector<8xf32> to vector<8x1xf32>
    %cst_152 = arith.constant 9.99999996E-13 : f32
    %597 = vector.broadcast %cst_152 : f32 to vector<8x1xf32>
    %598 = arith.maximumf %596, %597 : vector<8x1xf32>
    %599 = math.rsqrt %598 : vector<8x1xf32>
    %600 = vector.broadcast %599 : vector<8x1xf32> to vector<8x32xf32>
    %601 = arith.mulf %593, %600 : vector<8x32xf32>
    %c0_153 = arith.constant 0 : index
    %c0_154 = arith.constant 0 : index
    %c0_155 = arith.constant 0 : index
    %602 = vector.load %arg3[%c0_153, %c0_154, %c0_155] : memref<2x6x20xf32, #tpu.memory_space<vmem>>, vector<1x6x20xf32>
    %603 = vector.shape_cast %602 : vector<1x6x20xf32> to vector<6x20xf32>
    %cst_156 = arith.constant dense<0.000000e+00> : vector<6x32xf32>
    %604 = tpu.matmul %603, %568, %cst_156 {dimension_numbers = #tpu.dot_dimension_numbers<[1], [0], [0], [1], [0, 0, 1, 1], [], []>, precision = #tpu.contract_precision<fp32>} : vector<6x20xf32>, vector<20x32xf32>, vector<6x32xf32> -> vector<6x32xf32>
    %605 = vector.broadcast %572 : vector<1x32xf32> to vector<6x32xf32>
    %606 = arith.addf %604, %605 : vector<6x32xf32>
    %607 = arith.mulf %606, %606 : vector<6x32xf32>
    %cst_157 = arith.constant dense<0.000000e+00> : vector<6xf32>
    %608 = vector.multi_reduction <add>, %607, %cst_157 [1] : vector<6x32xf32> to vector<6xf32>
    %609 = vector.shape_cast %608 : vector<6xf32> to vector<6x1xf32>
    %cst_158 = arith.constant 9.99999996E-13 : f32
    %610 = vector.broadcast %cst_158 : f32 to vector<6x1xf32>
    %611 = arith.maximumf %609, %610 : vector<6x1xf32>
    %612 = math.rsqrt %611 : vector<6x1xf32>
    %613 = vector.broadcast %612 : vector<6x1xf32> to vector<6x32xf32>
    %614 = arith.mulf %606, %613 : vector<6x32xf32>
    %cst_159 = arith.constant dense<0.000000e+00> : vector<6x8xf32>
    %615 = tpu.matmul %614, %601, %cst_159 {dimension_numbers = #tpu.dot_dimension_numbers<[1], [1], [0], [0], [0, 0, 1, 0], [], []>, precision = #tpu.contract_precision<fp32>} : vector<6x32xf32>, vector<8x32xf32>, vector<6x8xf32> -> vector<6x8xf32>
    %616 = vector.broadcast %575 : vector<1x1xf32> to vector<6x8xf32>
    %617 = arith.mulf %616, %615 : vector<6x8xf32>
    %cst_160 = arith.constant dense<0xFF800000> : vector<6xf32>
    %618 = vector.multi_reduction <maximumf>, %617, %cst_160 [1] : vector<6x8xf32> to vector<6xf32>
    %619 = vector.shape_cast %618 : vector<6xf32> to vector<6x1xf32>
    %620 = vector.broadcast %619 : vector<6x1xf32> to vector<6x8xf32>
    %621 = arith.subf %617, %620 : vector<6x8xf32>
    %622 = math.exp %621 : vector<6x8xf32>
    %cst_161 = arith.constant dense<0.000000e+00> : vector<6xf32>
    %623 = vector.multi_reduction <add>, %622, %cst_161 [1] : vector<6x8xf32> to vector<6xf32>
    %624 = vector.shape_cast %623 : vector<6xf32> to vector<6x1xf32>
    %625 = vector.broadcast %624 : vector<6x1xf32> to vector<6x8xf32>
    %626 = arith.divf %622, %625 : vector<6x8xf32>
    %cst_162 = arith.constant dense<0.000000e+00> : vector<6x4xf32>
    %627 = tpu.matmul %626, %569, %cst_162 {dimension_numbers = #tpu.dot_dimension_numbers<[1], [0], [0], [1], [0, 0, 1, 1], [], []>, precision = #tpu.contract_precision<fp32>} : vector<6x8xf32>, vector<8x4xf32>, vector<6x4xf32> -> vector<6x4xf32>
    %628 = vector.broadcast %573 : vector<1x4xf32> to vector<6x4xf32>
    %629 = arith.addf %627, %628 : vector<6x4xf32>
    %cst_163 = arith.constant 0.000000e+00 : f32
    %630 = vector.broadcast %cst_163 : f32 to vector<6x4xf32>
    %631 = arith.maximumf %629, %630 : vector<6x4xf32>
    %cst_164 = arith.constant dense<0.000000e+00> : vector<6x8xf32>
    %632 = tpu.matmul %631, %570, %cst_164 {dimension_numbers = #tpu.dot_dimension_numbers<[1], [0], [0], [1], [0, 0, 1, 1], [], []>, precision = #tpu.contract_precision<fp32>} : vector<6x4xf32>, vector<4x8xf32>, vector<6x8xf32> -> vector<6x8xf32>
    %633 = vector.broadcast %574 : vector<1x8xf32> to vector<6x8xf32>
    %634 = arith.addf %632, %633 : vector<6x8xf32>
    %635 = arith.negf %634 : vector<6x8xf32>
    %636 = math.exp %635 : vector<6x8xf32>
    %cst_165 = arith.constant 1.000000e+00 : f32
    %637 = vector.broadcast %cst_165 : f32 to vector<6x8xf32>
    %638 = arith.addf %637, %636 : vector<6x8xf32>
    %639 = arith.divf %637, %638 : vector<6x8xf32>
    %cst_166 = arith.constant dense<0.000000e+00> : vector<6x16xf32>
    %640 = tpu.matmul %639, %590, %cst_166 {dimension_numbers = #tpu.dot_dimension_numbers<[1], [0], [0], [1], [0, 0, 1, 1], [], []>, precision = #tpu.contract_precision<fp32>} : vector<6x8xf32>, vector<8x16xf32>, vector<6x16xf32> -> vector<6x16xf32>
    %c0_167 = arith.constant 0 : index
    %c0_168 = arith.constant 0 : index
    %c0_169 = arith.constant 0 : index
    %641 = vector.load %arg8[%c0_167, %c0_168, %c0_169] : memref<2x6x16xf32, #tpu.memory_space<vmem>>, vector<1x6x16xf32>
    %642 = vector.shape_cast %641 : vector<1x6x16xf32> to vector<6x16xf32>
    %643 = vector.shape_cast %640 : vector<6x16xf32> to vector<1x6x16xf32>
    tpu.vector_store %arg8[%c0_167, %c0_168, %c0_169], %643 {strides = array<i32>} : memref<2x6x16xf32, #tpu.memory_space<vmem>>, vector<1x6x16xf32>,
    %c1_170 = arith.constant 1 : index
    %c0_171 = arith.constant 0 : index
    %c0_172 = arith.constant 0 : index
    %644 = vector.load %arg9[%c1_170, %c0_171, %c0_172] : memref<2x10x9xf32, #tpu.memory_space<vmem>>, vector<1x10x9xf32>
    %645 = vector.shape_cast %644 : vector<1x10x9xf32> to vector<10x9xf32>
    %cst_173 = arith.constant dense<0xFF800000> : vector<10xf32>
    %646 = vector.multi_reduction <maximumf>, %645, %cst_173 [1] : vector<10x9xf32> to vector<10xf32>
    %647 = vector.shape_cast %646 : vector<10xf32> to vector<10x1xf32>
    %648 = vector.broadcast %647 : vector<10x1xf32> to vector<10x9xf32>
    %649 = arith.subf %645, %648 : vector<10x9xf32>
    %650 = math.exp %649 : vector<10x9xf32>
    %cst_174 = arith.constant dense<0.000000e+00> : vector<10xf32>
    %651 = vector.multi_reduction <add>, %650, %cst_174 [1] : vector<10x9xf32> to vector<10xf32>
    %652 = vector.shape_cast %651 : vector<10xf32> to vector<10x1xf32>
    %653 = vector.broadcast %652 : vector<10x1xf32> to vector<10x9xf32>
    %654 = arith.divf %650, %653 : vector<10x9xf32>
    %655 = vector.extract_strided_slice %654 {offsets = [0, 0], sizes = [10, 8], strides = [1, 1]} : vector<10x9xf32> to vector<10x8xf32>
    %c1_175 = arith.constant 1 : index
    %c0_176 = arith.constant 0 : index
    %c0_177 = arith.constant 0 : index
    %656 = vector.load %arg2[%c1_175, %c0_176, %c0_177] : memref<2x10x16xf32, #tpu.memory_space<vmem>>, vector<1x10x16xf32>
    %657 = vector.shape_cast %656 : vector<1x10x16xf32> to vector<10x16xf32>
    %cst_178 = arith.constant dense<0.000000e+00> : vector<8x16xf32>
    %658 = tpu.matmul %655, %657, %cst_178 {dimension_numbers = #tpu.dot_dimension_numbers<[0], [0], [1], [1], [0, 1, 1, 1], [], []>, precision = #tpu.contract_precision<fp32>} : vector<10x8xf32>, vector<10x16xf32>, vector<8x16xf32> -> vector<8x16xf32>
    %cst_179 = arith.constant dense<0.000000e+00> : vector<8x32xf32>
    %659 = tpu.matmul %658, %567, %cst_179 {dimension_numbers = #tpu.dot_dimension_numbers<[1], [0], [0], [1], [0, 0, 1, 1], [], []>, precision = #tpu.contract_precision<fp32>} : vector<8x16xf32>, vector<16x32xf32>, vector<8x32xf32> -> vector<8x32xf32>
    %660 = vector.broadcast %571 : vector<1x32xf32> to vector<8x32xf32>
    %661 = arith.addf %659, %660 : vector<8x32xf32>
    %662 = arith.mulf %661, %661 : vector<8x32xf32>
    %cst_180 = arith.constant dense<0.000000e+00> : vector<8xf32>
    %663 = vector.multi_reduction <add>, %662, %cst_180 [1] : vector<8x32xf32> to vector<8xf32>
    %664 = vector.shape_cast %663 : vector<8xf32> to vector<8x1xf32>
    %cst_181 = arith.constant 9.99999996E-13 : f32
    %665 = vector.broadcast %cst_181 : f32 to vector<8x1xf32>
    %666 = arith.maximumf %664, %665 : vector<8x1xf32>
    %667 = math.rsqrt %666 : vector<8x1xf32>
    %668 = vector.broadcast %667 : vector<8x1xf32> to vector<8x32xf32>
    %669 = arith.mulf %661, %668 : vector<8x32xf32>
    %c1_182 = arith.constant 1 : index
    %c0_183 = arith.constant 0 : index
    %c0_184 = arith.constant 0 : index
    %670 = vector.load %arg3[%c1_182, %c0_183, %c0_184] : memref<2x6x20xf32, #tpu.memory_space<vmem>>, vector<1x6x20xf32>
    %671 = vector.shape_cast %670 : vector<1x6x20xf32> to vector<6x20xf32>
    %cst_185 = arith.constant dense<0.000000e+00> : vector<6x32xf32>
    %672 = tpu.matmul %671, %568, %cst_185 {dimension_numbers = #tpu.dot_dimension_numbers<[1], [0], [0], [1], [0, 0, 1, 1], [], []>, precision = #tpu.contract_precision<fp32>} : vector<6x20xf32>, vector<20x32xf32>, vector<6x32xf32> -> vector<6x32xf32>
    %673 = vector.broadcast %572 : vector<1x32xf32> to vector<6x32xf32>
    %674 = arith.addf %672, %673 : vector<6x32xf32>
    %675 = arith.mulf %674, %674 : vector<6x32xf32>
    %cst_186 = arith.constant dense<0.000000e+00> : vector<6xf32>
    %676 = vector.multi_reduction <add>, %675, %cst_186 [1] : vector<6x32xf32> to vector<6xf32>
    %677 = vector.shape_cast %676 : vector<6xf32> to vector<6x1xf32>
    %cst_187 = arith.constant 9.99999996E-13 : f32
    %678 = vector.broadcast %cst_187 : f32 to vector<6x1xf32>
    %679 = arith.maximumf %677, %678 : vector<6x1xf32>
    %680 = math.rsqrt %679 : vector<6x1xf32>
    %681 = vector.broadcast %680 : vector<6x1xf32> to vector<6x32xf32>
    %682 = arith.mulf %674, %681 : vector<6x32xf32>
    %cst_188 = arith.constant dense<0.000000e+00> : vector<6x8xf32>
    %683 = tpu.matmul %682, %669, %cst_188 {dimension_numbers = #tpu.dot_dimension_numbers<[1], [1], [0], [0], [0, 0, 1, 0], [], []>, precision = #tpu.contract_precision<fp32>} : vector<6x32xf32>, vector<8x32xf32>, vector<6x8xf32> -> vector<6x8xf32>
    %684 = vector.broadcast %575 : vector<1x1xf32> to vector<6x8xf32>
    %685 = arith.mulf %684, %683 : vector<6x8xf32>
    %cst_189 = arith.constant dense<0xFF800000> : vector<6xf32>
    %686 = vector.multi_reduction <maximumf>, %685, %cst_189 [1] : vector<6x8xf32> to vector<6xf32>
    %687 = vector.shape_cast %686 : vector<6xf32> to vector<6x1xf32>
    %688 = vector.broadcast %687 : vector<6x1xf32> to vector<6x8xf32>
    %689 = arith.subf %685, %688 : vector<6x8xf32>
    %690 = math.exp %689 : vector<6x8xf32>
    %cst_190 = arith.constant dense<0.000000e+00> : vector<6xf32>
    %691 = vector.multi_reduction <add>, %690, %cst_190 [1] : vector<6x8xf32> to vector<6xf32>
    %692 = vector.shape_cast %691 : vector<6xf32> to vector<6x1xf32>
    %693 = vector.broadcast %692 : vector<6x1xf32> to vector<6x8xf32>
    %694 = arith.divf %690, %693 : vector<6x8xf32>
    %cst_191 = arith.constant dense<0.000000e+00> : vector<6x4xf32>
    %695 = tpu.matmul %694, %569, %cst_191 {dimension_numbers = #tpu.dot_dimension_numbers<[1], [0], [0], [1], [0, 0, 1, 1], [], []>, precision = #tpu.contract_precision<fp32>} : vector<6x8xf32>, vector<8x4xf32>, vector<6x4xf32> -> vector<6x4xf32>
    %696 = vector.broadcast %573 : vector<1x4xf32> to vector<6x4xf32>
    %697 = arith.addf %695, %696 : vector<6x4xf32>
    %cst_192 = arith.constant 0.000000e+00 : f32
    %698 = vector.broadcast %cst_192 : f32 to vector<6x4xf32>
    %699 = arith.maximumf %697, %698 : vector<6x4xf32>
    %cst_193 = arith.constant dense<0.000000e+00> : vector<6x8xf32>
    %700 = tpu.matmul %699, %570, %cst_193 {dimension_numbers = #tpu.dot_dimension_numbers<[1], [0], [0], [1], [0, 0, 1, 1], [], []>, precision = #tpu.contract_precision<fp32>} : vector<6x4xf32>, vector<4x8xf32>, vector<6x8xf32> -> vector<6x8xf32>
    %701 = vector.broadcast %574 : vector<1x8xf32> to vector<6x8xf32>
    %702 = arith.addf %700, %701 : vector<6x8xf32>
    %703 = arith.negf %702 : vector<6x8xf32>
    %704 = math.exp %703 : vector<6x8xf32>
    %cst_194 = arith.constant 1.000000e+00 : f32
    %705 = vector.broadcast %cst_194 : f32 to vector<6x8xf32>
    %706 = arith.addf %705, %704 : vector<6x8xf32>
    %707 = arith.divf %705, %706 : vector<6x8xf32>
    %cst_195 = arith.constant dense<0.000000e+00> : vector<6x16xf32>
    %708 = tpu.matmul %707, %658, %cst_195 {dimension_numbers = #tpu.dot_dimension_numbers<[1], [0], [0], [1], [0, 0, 1, 1], [], []>, precision = #tpu.contract_precision<fp32>} : vector<6x8xf32>, vector<8x16xf32>, vector<6x16xf32> -> vector<6x16xf32>
    %c1_196 = arith.constant 1 : index
    %c0_197 = arith.constant 0 : index
    %c0_198 = arith.constant 0 : index
    %709 = vector.load %arg8[%c1_196, %c0_197, %c0_198] : memref<2x6x16xf32, #tpu.memory_space<vmem>>, vector<1x6x16xf32>
    %710 = vector.shape_cast %709 : vector<1x6x16xf32> to vector<6x16xf32>
    %711 = vector.shape_cast %708 : vector<6x16xf32> to vector<1x6x16xf32>
    tpu.vector_store %arg8[%c1_196, %c0_197, %c0_198], %711 {strides = array<i32>} : memref<2x6x16xf32, #tpu.memory_space<vmem>>, vector<1x6x16xf32>,
    return
  }
  func.func @transform_0(%arg0: i32) -> (i32, i32, i32) {
    %c0_i32 = arith.constant 0 : i32
    %c0_i32_0 = arith.constant 0 : i32
    %c0_i32_1 = arith.constant 0 : i32
    return %c0_i32, %arg0, %c0_i32_0 : i32, i32, i32
  }
  func.func @transform_1(%arg0: i32) -> (i32, i32, i32) {
    %c0_i32 = arith.constant 0 : i32
    %c0_i32_0 = arith.constant 0 : i32
    %c0_i32_1 = arith.constant 0 : i32
    return %arg0, %c0_i32, %c0_i32_0 : i32, i32, i32
  }
  func.func @transform_2(%arg0: i32) -> (i32, i32, i32) {
    %c0_i32 = arith.constant 0 : i32
    %c0_i32_0 = arith.constant 0 : i32
    %c0_i32_1 = arith.constant 0 : i32
    return %arg0, %c0_i32, %c0_i32_0 : i32, i32, i32
  }
  func.func @transform_3(%arg0: i32) -> (i32, i32) {
    %c0_i32 = arith.constant 0 : i32
    %c0_i32_0 = arith.constant 0 : i32
    %c0_i32_1 = arith.constant 0 : i32
    return %c0_i32, %c0_i32_0 : i32, i32
  }
  func.func @transform_4(%arg0: i32) -> (i32, i32) {
    %c0_i32 = arith.constant 0 : i32
    %c0_i32_0 = arith.constant 0 : i32
    %c0_i32_1 = arith.constant 0 : i32
    return %c0_i32, %c0_i32_0 : i32, i32
  }
  func.func @transform_5(%arg0: i32) -> (i32, i32) {
    %c0_i32 = arith.constant 0 : i32
    %c0_i32_0 = arith.constant 0 : i32
    %c0_i32_1 = arith.constant 0 : i32
    return %c0_i32, %c0_i32_0 : i32, i32
  }
  func.func @transform_6(%arg0: i32) -> (i32, i32) {
    %c0_i32 = arith.constant 0 : i32
    %c0_i32_0 = arith.constant 0 : i32
    %c0_i32_1 = arith.constant 0 : i32
    return %c0_i32, %c0_i32_0 : i32, i32
  }
  func.func @transform_7(%arg0: i32) -> (i32, i32, i32) {
    %c0_i32 = arith.constant 0 : i32
    %c0_i32_0 = arith.constant 0 : i32
    %c0_i32_1 = arith.constant 0 : i32
    return %arg0, %c0_i32, %c0_i32_0 : i32, i32, i32
  }
}

</mosaic_0001>

<llo_original>
// kernel: tpu_custom_call.1
$region0: #{tpu_custom_call.1}
  #allocation0 [shape = 'u32[]', space=smem, size = 0x4, offset = 0x4, fixed_abs, tag = 'smem constant byte address 0x4 - core index']
  #allocation1 [shape = 'u32[144,128]{1,0:T(1,128)}', space=vmem, size = 0x12000, scoped, tag = 'internal scratch']
  #allocation2 [shape = 'f32[2,10,9]{2,1,0:T(8,128)}', space=vmem, size = 0x4000, scoped, tag = 'scratch operand']
  %s0 = inlined_call_operand.vmem [shape: bf16[10,2,16], index: 0, kind: input, shape index: {}]
  %s1 = inlined_call_operand.vmem [shape: f32[2,10,16], index: 1, kind: input, shape index: {}]
  %s2 = inlined_call_operand.vmem [shape: f32[2,6,20], index: 2, kind: input, shape index: {}]
  %s3 = inlined_call_operand.vmem [shape: bf16[64,36], index: 3, kind: input, shape index: {}]
  %s4 = inlined_call_operand.vmem [shape: f32[2,36], index: 4, kind: input, shape index: {}]
  %s5 = inlined_call_operand.vmem [shape: f32[56,32], index: 5, kind: input, shape index: {}]
  %s6 = inlined_call_operand.vmem [shape: f32[5,32], index: 6, kind: input, shape index: {}]
  %s7 = inlined_call_operand.vmem [shape: f32[2,6,16], index: 7, kind: output, shape index: {}]
  %s8 = sld [smem:[#allocation0]]
  $region38: #{tpu_custom_call.1} parent=0
    _
  %s10 = ssub.s32 1, %s8
  %s11 = scalar_select 0, %s10, %s8
  // Predicated region
  $region2: #{tpu_custom_call.1} parent=0 // pred_check
    _
  $region3: #{tpu_custom_call.1} parent=0 // pred_check_branch
    %13 = sbr.rel (0) target = $region5
  $region4: #{tpu_custom_call.1} parent=0 // pred_region
    _
  $region5: #{tpu_custom_call.1} parent=0 // pred_fallthru
    _
  // Predicated region
  $region6: #{tpu_custom_call.1} parent=0 // pred_check
    _
  $region7: #{tpu_custom_call.1} parent=0 // pred_check_branch
    %15 = sbr.rel (0) target = $region9
  $region8: #{tpu_custom_call.1} parent=0 // pred_region
    _
  $region9: #{tpu_custom_call.1} parent=0 // pred_fallthru
    _
  // Predicated region
  $region10: #{tpu_custom_call.1} parent=0 // pred_check
    _
  $region11: #{tpu_custom_call.1} parent=0 // pred_check_branch
    %17 = sbr.rel (0) target = $region13
  $region12: #{tpu_custom_call.1} parent=0 // pred_region
    _
  $region13: #{tpu_custom_call.1} parent=0 // pred_fallthru
    _
  // Predicated region
  $region14: #{tpu_custom_call.1} parent=0 // pred_check
    _
  $region15: #{tpu_custom_call.1} parent=0 // pred_check_branch
    %19 = sbr.rel (0) target = $region17
  $region16: #{tpu_custom_call.1} parent=0 // pred_region
    _
  $region17: #{tpu_custom_call.1} parent=0 // pred_fallthru
    _
  // Predicated region
  $region18: #{tpu_custom_call.1} parent=0 // pred_check
    _
  $region19: #{tpu_custom_call.1} parent=0 // pred_check_branch
    %21 = sbr.rel (0) target = $region21
  $region20: #{tpu_custom_call.1} parent=0 // pred_region
    _
  $region21: #{tpu_custom_call.1} parent=0 // pred_fallthru
    _
  // Predicated region
  $region22: #{tpu_custom_call.1} parent=0 // pred_check
    _
  $region23: #{tpu_custom_call.1} parent=0 // pred_check_branch
    %23 = sbr.rel (0) target = $region25
  $region24: #{tpu_custom_call.1} parent=0 // pred_region
    _
  $region25: #{tpu_custom_call.1} parent=0 // pred_fallthru
    _
  // Predicated region
  $region26: #{tpu_custom_call.1} parent=0 // pred_check
    _
  $region27: #{tpu_custom_call.1} parent=0 // pred_check_branch
    %25 = sbr.rel (0) target = $region29
  $region28: #{tpu_custom_call.1} parent=0 // pred_region
    _
  $region29: #{tpu_custom_call.1} parent=0 // pred_fallthru
    _
  %v27 = vld [vmem:[%s3] sm:$0xf]
  %v28 = vld [vmem:[%s3 + $0x4] sm:$0xf]
  %v29 = vld [vmem:[%s3 + $0x8] sm:$0xf]
  %v30 = vld [vmem:[%s3 + $0xc] sm:$0x1]
  %v31 = vld [vmem:[%s3 + $0x10] sm:$0xf]
  %v32 = vld [vmem:[%s3 + $0x14] sm:$0x1]
  %v33 = vld [vmem:[%s3 + $0x18] sm:$0xf]
  %v34 = vld [vmem:[%s3 + $0x1c] sm:$0x1]
  %v35 = vld [vmem:[%s4] sm:$0x1]
  %v36 = vld [vmem:[%s4 + $0x1] sm:$0x1]
  %v37 = vld [vmem:[%s0] sm:$0x1]
  %v40 = vunpack.c.l.b16 %v29
  %v41 = vunpack.c.l.b16 %v30
  %v42 = vpack.c.b16 %v41, %v40
  %vm43 = vcmask 72704
  %v45 = vsel %vm43, 0, 0
  %vm47 = vcmask 1043456
  %vm48 = vcmask 1044480
  %v49 = vsel %vm47, 4294967295, 65535
  %v50 = vsel %vm48, %v49, 0
  %v52 = vand.u32 %v42, %v50
  %54 = vmatprep.subr.bf16.mxu0 0
  %55 = vmatpush1.bf16.msra.mxu0 %v52
  %56 = vmatprep.subr.bf16.mxu0 0
  %57 = vmatpush1.bf16.msra.mxu0 0
  %58 = vmatprep.subr.bf16.mxu0 0
  %59 = vmatpush1.bf16.msra.mxu0 0
  %60 = vmatprep.subr.bf16.mxu0 0
  %61 = vmatpush1.bf16.msra.mxu0 0
  %62 = vmatprep.subr.bf16.mxu0 0
  %63 = vmatpush1.bf16.msra.mxu0 0
  %64 = vmatprep.subr.bf16.mxu0 0
  %65 = vmatpush1.bf16.msra.mxu0 0
  %66 = vmatprep.subr.bf16.mxu0 0
  %67 = vmatpush1.bf16.msra.mxu0 0
  %68 = vmatprep.subr.bf16.mxu0 0
  %69 = vmatpush1.bf16.msra.mxu0 0
  %70 = vmatprep.subr.bf16.mxu0 0
  %71 = vmatpush1.bf16.msra.mxu0 0
  %72 = vmatprep.subr.bf16.mxu0 0
  %73 = vmatpush1.bf16.msra.mxu0 0
  %74 = vmatprep.subr.bf16.mxu0 0
  %75 = vmatpush1.bf16.msra.mxu0 0
  %76 = vmatprep.subr.bf16.mxu0 0
  %77 = vmatpush1.bf16.msra.mxu0 0
  %78 = vmatprep.subr.bf16.mxu0 0
  %79 = vmatpush1.bf16.msra.mxu0 0
  %80 = vmatprep.subr.bf16.mxu0 0
  %81 = vmatpush1.bf16.msra.mxu0 0
  %82 = vmatprep.subr.bf16.mxu0 0
  %83 = vmatpush1.bf16.msra.mxu0 0
  %84 = vmatprep.subr.bf16.mxu0 0
  %85 = vmatpush1.bf16.msra.mxu0 0
  %86 = vmatprep.mubr.bf16.mxu0 0
  %87 = vmatmul.mubr.bf16.gmra.mrb[0].mxu0 %v45
  %v88 = vpop.f32.mrb[0].mxu0
  %v89 = vadd.f32 0.0, %v88
  %v90 = vpop.f32.mrb[0].mxu0
  %v91 = vpop.f32.mrb[0].mxu0
  %v92 = vpop.f32.mrb[0].mxu0
  %93 = vdwg.mxu0
  %v96 = vunpack.c.l.b16 %v27
  %v97 = vunpack.c.l.b16 %v28
  %v98 = vpack.c.b16 %v97, %v96
  %vm100 = vcmask 130048
  %v102 = vsel %vm100, %v37, 0
  %104 = vmatprep.subr.bf16.mxu0 0
  %105 = vmatpush1.bf16.msra.mxu0 %v98
  %106 = vmatprep.subr.bf16.mxu0 0
  %107 = vmatpush1.bf16.msra.mxu0 0
  %108 = vmatprep.subr.bf16.mxu0 0
  %109 = vmatpush1.bf16.msra.mxu0 0
  %110 = vmatprep.subr.bf16.mxu0 0
  %111 = vmatpush1.bf16.msra.mxu0 0
  %112 = vmatprep.subr.bf16.mxu0 0
  %113 = vmatpush1.bf16.msra.mxu0 0
  %114 = vmatprep.subr.bf16.mxu0 0
  %115 = vmatpush1.bf16.msra.mxu0 0
  %116 = vmatprep.subr.bf16.mxu0 0
  %117 = vmatpush1.bf16.msra.mxu0 0
  %118 = vmatprep.subr.bf16.mxu0 0
  %119 = vmatpush1.bf16.msra.mxu0 0
  %120 = vmatprep.subr.bf16.mxu0 0
  %121 = vmatpush1.bf16.msra.mxu0 0
  %122 = vmatprep.subr.bf16.mxu0 0
  %123 = vmatpush1.bf16.msra.mxu0 0
  %124 = vmatprep.subr.bf16.mxu0 0
  %125 = vmatpush1.bf16.msra.mxu0 0
  %126 = vmatprep.subr.bf16.mxu0 0
  %127 = vmatpush1.bf16.msra.mxu0 0
  %128 = vmatprep.subr.bf16.mxu0 0
  %129 = vmatpush1.bf16.msra.mxu0 0
  %130 = vmatprep.subr.bf16.mxu0 0
  %131 = vmatpush1.bf16.msra.mxu0 0
  %132 = vmatprep.subr.bf16.mxu0 0
  %133 = vmatpush1.bf16.msra.mxu0 0
  %134 = vmatprep.subr.bf16.mxu0 0
  %135 = vmatpush1.bf16.msra.mxu0 0
  %136 = vmatprep.mubr.bf16.mxu0 0
  %137 = vmatmul.mubr.bf16.gmra.mrb[0].mxu0 %v102
  %v138 = vpop.f32.mrb[0].mxu0
  %v139 = vadd.f32 %v89, %v138
  %v140 = vpop.f32.mrb[0].mxu0
  %v141 = vpop.f32.mrb[0].mxu0
  %v142 = vpop.f32.mrb[0].mxu0
  %143 = vdwg.mxu0
  %v144 = vlaneseq
  %v145 = vshrl.u32 %v144, 7
  %v146 = vsub.s32 0, %v145
  %v147 = vrot.slane %v35, %v146
  %v148 = vadd.f32 %v139, %v147
  %v149 = vxor.u32 %v148, 2147483648
  %v150 = vmul.f32 %v149, 1.442695
  %v151 = vpow.pop %v150
  %v152 = vadd.f32 %v151, 1.0
  %v153 = vrcp.pop %v152
  %v154 = vmul.f32 1.0, %v153
  %v155 = vtanh.pop %v148
  %v156 = vmul.f32 %v154, 0.0
  %158 = vrot.lane.b32.xlu0 %v155, 110
  %v159 = vpop.permute.xlu0 %158
  %v161 = vmul.f32 %v154, %v159
  %163 = vrot.lane.b32.xlu0 %v161, 9
  %v164 = vpop.permute.xlu0 %163
  %v166 = vadd.f32 %v156, %v164
  %v167 = vtanh.pop %v166
  %169 = vrot.lane.b32.xlu0 %v167, 18
  %v170 = vpop.permute.xlu0 %169
  %v172 = vmul.f32 %v154, %v170
  %v173 = vpack.c.bf16 %v172, %v172
  %v176 = vunpack.c.l.b16 %v33
  %v177 = vunpack.c.l.b16 %v34
  %v178 = vpack.c.b16 %v177, %v176
  %v180 = vand.u32 %v178, %v50
  %182 = vmatprep.subr.bf16.mxu0 0
  %183 = vmatpush1.bf16.msra.mxu0 %v180
  %184 = vmatprep.subr.bf16.mxu0 0
  %185 = vmatpush1.bf16.msra.mxu0 0
  %186 = vmatprep.subr.bf16.mxu0 0
  %187 = vmatpush1.bf16.msra.mxu0 0
  %188 = vmatprep.subr.bf16.mxu0 0
  %189 = vmatpush1.bf16.msra.mxu0 0
  %190 = vmatprep.subr.bf16.mxu0 0
  %191 = vmatpush1.bf16.msra.mxu0 0
  %192 = vmatprep.subr.bf16.mxu0 0
  %193 = vmatpush1.bf16.msra.mxu0 0
  %194 = vmatprep.subr.bf16.mxu0 0
  %195 = vmatpush1.bf16.msra.mxu0 0
  %196 = vmatprep.subr.bf16.mxu0 0
  %197 = vmatpush1.bf16.msra.mxu0 0
  %198 = vmatprep.subr.bf16.mxu0 0
  %199 = vmatpush1.bf16.msra.mxu0 0
  %200 = vmatprep.subr.bf16.mxu0 0
  %201 = vmatpush1.bf16.msra.mxu0 0
  %202 = vmatprep.subr.bf16.mxu0 0
  %203 = vmatpush1.bf16.msra.mxu0 0
  %204 = vmatprep.subr.bf16.mxu0 0
  %205 = vmatpush1.bf16.msra.mxu0 0
  %206 = vmatprep.subr.bf16.mxu0 0
  %207 = vmatpush1.bf16.msra.mxu0 0
  %208 = vmatprep.subr.bf16.mxu0 0
  %209 = vmatpush1.bf16.msra.mxu0 0
  %210 = vmatprep.subr.bf16.mxu0 0
  %211 = vmatpush1.bf16.msra.mxu0 0
  %212 = vmatprep.subr.bf16.mxu0 0
  %213 = vmatpush1.bf16.msra.mxu0 0
  %214 = vmatprep.mubr.bf16.mxu0 0
  %215 = vmatmul.mubr.bf16.gmra.mrb[0].mxu0 %v45
  %v216 = vpop.f32.mrb[0].mxu0
  %v217 = vadd.f32 0.0, %v216
  %v218 = vpop.f32.mrb[0].mxu0
  %v219 = vpop.f32.mrb[0].mxu0
  %v220 = vpop.f32.mrb[0].mxu0
  %221 = vdwg.mxu0
  %223 = vrot.lane.b32.xlu0 %v173, 101
  %v224 = vpop.permute.xlu0 %223
  %v227 = vunpack.c.l.b16 %v31
  %v228 = vunpack.c.l.b16 %v32
  %v229 = vpack.c.b16 %v228, %v227
  %v231 = vsel %vm43, %v224, 0
  %v234 = vand.u32 %v229, %v50
  %236 = vmatprep.subr.bf16.mxu0 0
  %237 = vmatpush1.bf16.msra.mxu0 %v234
  %238 = vmatprep.subr.bf16.mxu0 0
  %239 = vmatpush1.bf16.msra.mxu0 0
  %240 = vmatprep.subr.bf16.mxu0 0
  %241 = vmatpush1.bf16.msra.mxu0 0
  %242 = vmatprep.subr.bf16.mxu0 0
  %243 = vmatpush1.bf16.msra.mxu0 0
  %244 = vmatprep.subr.bf16.mxu0 0
  %245 = vmatpush1.bf16.msra.mxu0 0
  %246 = vmatprep.subr.bf16.mxu0 0
  %247 = vmatpush1.bf16.msra.mxu0 0
  %248 = vmatprep.subr.bf16.mxu0 0
  %249 = vmatpush1.bf16.msra.mxu0 0
  %250 = vmatprep.subr.bf16.mxu0 0
  %251 = vmatpush1.bf16.msra.mxu0 0
  %252 = vmatprep.subr.bf16.mxu0 0
  %253 = vmatpush1.bf16.msra.mxu0 0
  %254 = vmatprep.subr.bf16.mxu0 0
  %255 = vmatpush1.bf16.msra.mxu0 0
  %256 = vmatprep.subr.bf16.mxu0 0
  %257 = vmatpush1.bf16.msra.mxu0 0
  %258 = vmatprep.subr.bf16.mxu0 0
  %259 = vmatpush1.bf16.msra.mxu0 0
  %260 = vmatprep.subr.bf16.mxu0 0
  %261 = vmatpush1.bf16.msra.mxu0 0
  %262 = vmatprep.subr.bf16.mxu0 0
  %263 = vmatpush1.bf16.msra.mxu0 0
  %264 = vmatprep.subr.bf16.mxu0 0
  %265 = vmatpush1.bf16.msra.mxu0 0
  %266 = vmatprep.subr.bf16.mxu0 0
  %267 = vmatpush1.bf16.msra.mxu0 0
  %268 = vmatprep.mubr.bf16.mxu0 0
  %269 = vmatmul.mubr.bf16.gmra.mrb[0].mxu0 %v231
  %v270 = vpop.f32.mrb[0].mxu0
  %v271 = vadd.f32 %v217, %v270
  %v272 = vpop.f32.mrb[0].mxu0
  %v273 = vpop.f32.mrb[0].mxu0
  %v274 = vpop.f32.mrb[0].mxu0
  %275 = vdwg.mxu0
  %v276 = vlaneseq
  %v277 = vshrl.u32 %v276, 7
  %v278 = vsub.s32 0, %v277
  %v279 = vrot.slane %v36, %v278
  %v280 = vadd.f32 %v271, %v279
  %v281 = vxor.u32 %v280, 2147483648
  %v282 = vmul.f32 %v281, 1.442695
  %v283 = vpow.pop %v282
  %v284 = vadd.f32 %v283, 1.0
  %v285 = vrcp.pop %v284
  %v286 = vmul.f32 1.0, %v285
  %v287 = vtanh.pop %v280
  %v288 = vmul.f32 %v286, 0.0
  %290 = vrot.lane.b32.xlu0 %v287, 110
  %v291 = vpop.permute.xlu0 %290
  %v293 = vmul.f32 %v286, %v291
  %295 = vrot.lane.b32.xlu0 %v293, 9
  %v296 = vpop.permute.xlu0 %295
  %v298 = vadd.f32 %v288, %v296
  %v299 = vtanh.pop %v298
  %301 = vrot.lane.b32.xlu0 %v299, 18
  %v302 = vpop.permute.xlu0 %301
  %v304 = vmul.f32 %v286, %v302
  %306 = vrot.lane.b32.xlu0 %v304, 101
  %v307 = vpop.permute.xlu0 %306
  %vm309 = vcmask 65536
  %310 = vst.msk [vmem:[#allocation2] sm:$0x1] %vm309, %v307
  %s311 = scalar_lea.vmem [#allocation2], 16
  %vm312 = vcmask 66561
  %313 = vst.msk [vmem:[%s311 - $0x1] sm:$0x2] %vm312, %v307
  %s314 = scalar_lea.vmem %s0, 1
  %v315 = vld [vmem:[%s314] sm:$0x1]
  %316 = vmatprep.subr.bf16.mxu0 0
  %317 = vmatpush1.bf16.msra.mxu0 %v52
  %318 = vmatprep.subr.bf16.mxu0 0
  %319 = vmatpush1.bf16.msra.mxu0 0
  %320 = vmatprep.subr.bf16.mxu0 0
  %321 = vmatpush1.bf16.msra.mxu0 0
  %322 = vmatprep.subr.bf16.mxu0 0
  %323 = vmatpush1.bf16.msra.mxu0 0
  %324 = vmatprep.subr.bf16.mxu0 0
  %325 = vmatpush1.bf16.msra.mxu0 0
  %326 = vmatprep.subr.bf16.mxu0 0
  %327 = vmatpush1.bf16.msra.mxu0 0
  %328 = vmatprep.subr.bf16.mxu0 0
  %329 = vmatpush1.bf16.msra.mxu0 0
  %330 = vmatprep.subr.bf16.mxu0 0
  %331 = vmatpush1.bf16.msra.mxu0 0
  %332 = vmatprep.subr.bf16.mxu0 0
  %333 = vmatpush1.bf16.msra.mxu0 0
  %334 = vmatprep.subr.bf16.mxu0 0
  %335 = vmatpush1.bf16.msra.mxu0 0
  %336 = vmatprep.subr.bf16.mxu0 0
  %337 = vmatpush1.bf16.msra.mxu0 0
  %338 = vmatprep.subr.bf16.mxu0 0
  %339 = vmatpush1.bf16.msra.mxu0 0
  %340 = vmatprep.subr.bf16.mxu0 0
  %341 = vmatpush1.bf16.msra.mxu0 0
  %342 = vmatprep.subr.bf16.mxu0 0
  %343 = vmatpush1.bf16.msra.mxu0 0
  %344 = vmatprep.subr.bf16.mxu0 0
  %345 = vmatpush1.bf16.msra.mxu0 0
  %346 = vmatprep.subr.bf16.mxu0 0
  %347 = vmatpush1.bf16.msra.mxu0 0
  %348 = vmatprep.mubr.bf16.mxu0 0
  %349 = vmatmul.mubr.bf16.gmra.mrb[0].mxu0 %v231
  %v350 = vpop.f32.mrb[0].mxu0
  %v351 = vadd.f32 0.0, %v350
  %v352 = vpop.f32.mrb[0].mxu0
  %v353 = vpop.f32.mrb[0].mxu0
  %v354 = vpop.f32.mrb[0].mxu0
  %355 = vdwg.mxu0
  %v357 = vsel %vm100, %v315, 0
  %359 = vmatprep.subr.bf16.mxu0 0
  %360 = vmatpush1.bf16.msra.mxu0 %v98
  %361 = vmatprep.subr.bf16.mxu0 0
  %362 = vmatpush1.bf16.msra.mxu0 0
  %363 = vmatprep.subr.bf16.mxu0 0
  %364 = vmatpush1.bf16.msra.mxu0 0
  %365 = vmatprep.subr.bf16.mxu0 0
  %366 = vmatpush1.bf16.msra.mxu0 0
  %367 = vmatprep.subr.bf16.mxu0 0
  %368 = vmatpush1.bf16.msra.mxu0 0
  %369 = vmatprep.subr.bf16.mxu0 0
  %370 = vmatpush1.bf16.msra.mxu0 0
  %371 = vmatprep.subr.bf16.mxu0 0
  %372 = vmatpush1.bf16.msra.mxu0 0
  %373 = vmatprep.subr.bf16.mxu0 0
  %374 = vmatpush1.bf16.msra.mxu0 0
  %375 = vmatprep.subr.bf16.mxu0 0
  %376 = vmatpush1.bf16.msra.mxu0 0
  %377 = vmatprep.subr.bf16.mxu0 0
  %378 = vmatpush1.bf16.msra.mxu0 0
  %379 = vmatprep.subr.bf16.mxu0 0
  %380 = vmatpush1.bf16.msra.mxu0 0
  %381 = vmatprep.subr.bf16.mxu0 0
  %382 = vmatpush1.bf16.msra.mxu0 0
  %383 = vmatprep.subr.bf16.mxu0 0
  %384 = vmatpush1.bf16.msra.mxu0 0
  %385 = vmatprep.subr.bf16.mxu0 0
  %386 = vmatpush1.bf16.msra.mxu0 0
  %387 = vmatprep.subr.bf16.mxu0 0
  %388 = vmatpush1.bf16.msra.mxu0 0
  %389 = vmatprep.subr.bf16.mxu0 0
  %390 = vmatpush1.bf16.msra.mxu0 0
  %391 = vmatprep.mubr.bf16.mxu0 0
  %392 = vmatmul.mubr.bf16.gmra.mrb[0].mxu0 %v357
  %v393 = vpop.f32.mrb[0].mxu0
  %v394 = vadd.f32 %v351, %v393
  %v395 = vpop.f32.mrb[0].mxu0
  %v396 = vpop.f32.mrb[0].mxu0
  %v397 = vpop.f32.mrb[0].mxu0
  %398 = vdwg.mxu0
  %v399 = vadd.f32 %v394, %v147
  %v400 = vxor.u32 %v399, 2147483648
  %v401 = vmul.f32 %v400, 1.442695
  %v402 = vpow.pop %v401
  %v403 = vadd.f32 %v402, 1.0
  %v404 = vrcp.pop %v403
  %v405 = vmul.f32 1.0, %v404
  %v406 = vtanh.pop %v399
  %v407 = vmul.f32 %v405, %v166
  %409 = vrot.lane.b32.xlu0 %v406, 110
  %v410 = vpop.permute.xlu0 %409
  %v412 = vmul.f32 %v405, %v410
  %414 = vrot.lane.b32.xlu0 %v412, 9
  %v415 = vpop.permute.xlu0 %414
  %v417 = vadd.f32 %v407, %v415
  %v418 = vtanh.pop %v417
  %420 = vrot.lane.b32.xlu0 %v418, 18
  %v421 = vpop.permute.xlu0 %420
  %v423 = vmul.f32 %v405, %v421
  %v424 = vpack.c.bf16 %v423, %v423
  %v425 = vpack.c.bf16 %v304, %v304
  %427 = vrot.lane.b32.xlu0 %v425, 101
  %v428 = vpop.permute.xlu0 %427
  %v430 = vsel %vm43, %v428, 0
  %432 = vmatprep.subr.bf16.mxu0 0
  %433 = vmatpush1.bf16.msra.mxu0 %v180
  %434 = vmatprep.subr.bf16.mxu0 0
  %435 = vmatpush1.bf16.msra.mxu0 0
  %436 = vmatprep.subr.bf16.mxu0 0
  %437 = vmatpush1.bf16.msra.mxu0 0
  %438 = vmatprep.subr.bf16.mxu0 0
  %439 = vmatpush1.bf16.msra.mxu0 0
  %440 = vmatprep.subr.bf16.mxu0 0
  %441 = vmatpush1.bf16.msra.mxu0 0
  %442 = vmatprep.subr.bf16.mxu0 0
  %443 = vmatpush1.bf16.msra.mxu0 0
  %444 = vmatprep.subr.bf16.mxu0 0
  %445 = vmatpush1.bf16.msra.mxu0 0
  %446 = vmatprep.subr.bf16.mxu0 0
  %447 = vmatpush1.bf16.msra.mxu0 0
  %448 = vmatprep.subr.bf16.mxu0 0
  %449 = vmatpush1.bf16.msra.mxu0 0
  %450 = vmatprep.subr.bf16.mxu0 0
  %451 = vmatpush1.bf16.msra.mxu0 0
  %452 = vmatprep.subr.bf16.mxu0 0
  %453 = vmatpush1.bf16.msra.mxu0 0
  %454 = vmatprep.subr.bf16.mxu0 0
  %455 = vmatpush1.bf16.msra.mxu0 0
  %456 = vmatprep.subr.bf16.mxu0 0
  %457 = vmatpush1.bf16.msra.mxu0 0
  %458 = vmatprep.subr.bf16.mxu0 0
  %459 = vmatpush1.bf16.msra.mxu0 0
  %460 = vmatprep.subr.bf16.mxu0 0
  %461 = vmatpush1.bf16.msra.mxu0 0
  %462 = vmatprep.subr.bf16.mxu0 0
  %463 = vmatpush1.bf16.msra.mxu0 0
  %464 = vmatprep.mubr.bf16.mxu0 0
  %465 = vmatmul.mubr.bf16.gmra.mrb[0].mxu0 %v430
  %v466 = vpop.f32.mrb[0].mxu0
  %v467 = vadd.f32 0.0, %v466
  %v468 = vpop.f32.mrb[0].mxu0
  %v469 = vpop.f32.mrb[0].mxu0
  %v470 = vpop.f32.mrb[0].mxu0
  %471 = vdwg.mxu0
  %473 = vrot.lane.b32.xlu0 %v424, 101
  %v474 = vpop.permute.xlu0 %473
  %v476 = vsel %vm43, %v474, 0
  %478 = vmatprep.subr.bf16.mxu0 0
  %479 = vmatpush1.bf16.msra.mxu0 %v234
  %480 = vmatprep.subr.bf16.mxu0 0
  %481 = vmatpush1.bf16.msra.mxu0 0
  %482 = vmatprep.subr.bf16.mxu0 0
  %483 = vmatpush1.bf16.msra.mxu0 0
  %484 = vmatprep.subr.bf16.mxu0 0
  %485 = vmatpush1.bf16.msra.mxu0 0
  %486 = vmatprep.subr.bf16.mxu0 0
  %487 = vmatpush1.bf16.msra.mxu0 0
  %488 = vmatprep.subr.bf16.mxu0 0
  %489 = vmatpush1.bf16.msra.mxu0 0
  %490 = vmatprep.subr.bf16.mxu0 0
  %491 = vmatpush1.bf16.msra.mxu0 0
  %492 = vmatprep.subr.bf16.mxu0 0
  %493 = vmatpush1.bf16.msra.mxu0 0
  %494 = vmatprep.subr.bf16.mxu0 0
  %495 = vmatpush1.bf16.msra.mxu0 0
  %496 = vmatprep.subr.bf16.mxu0 0
  %497 = vmatpush1.bf16.msra.mxu0 0
  %498 = vmatprep.subr.bf16.mxu0 0
  %499 = vmatpush1.bf16.msra.mxu0 0
  %500 = vmatprep.subr.bf16.mxu0 0
  %501 = vmatpush1.bf16.msra.mxu0 0
  %502 = vmatprep.subr.bf16.mxu0 0
  %503 = vmatpush1.bf16.msra.mxu0 0
  %504 = vmatprep.subr.bf16.mxu0 0
  %505 = vmatpush1.bf16.msra.mxu0 0
  %506 = vmatprep.subr.bf16.mxu0 0
  %507 = vmatpush1.bf16.msra.mxu0 0
  %508 = vmatprep.subr.bf16.mxu0 0
  %509 = vmatpush1.bf16.msra.mxu0 0
  %510 = vmatprep.mubr.bf16.mxu0 0
  %511 = vmatmul.mubr.bf16.gmra.mrb[0].mxu0 %v476
  %v512 = vpop.f32.mrb[0].mxu0
  %v513 = vadd.f32 %v467, %v512
  %v514 = vpop.f32.mrb[0].mxu0
  %v515 = vpop.f32.mrb[0].mxu0
  %v516 = vpop.f32.mrb[0].mxu0
  %517 = vdwg.mxu0
  %v518 = vadd.f32 %v513, %v279
  %v519 = vxor.u32 %v518, 2147483648
  %v520 = vmul.f32 %v519, 1.442695
  %v521 = vpow.pop %v520
  %v522 = vadd.f32 %v521, 1.0
  %v523 = vrcp.pop %v522
  %v524 = vmul.f32 1.0, %v523
  %v525 = vtanh.pop %v518
  %v526 = vmul.f32 %v524, %v298
  %528 = vrot.lane.b32.xlu0 %v525, 110
  %v529 = vpop.permute.xlu0 %528
  %v531 = vmul.f32 %v524, %v529
  %533 = vrot.lane.b32.xlu0 %v531, 9
  %v534 = vpop.permute.xlu0 %533
  %v536 = vadd.f32 %v526, %v534
  %v537 = vtanh.pop %v536
  %539 = vrot.lane.b32.xlu0 %v537, 18
  %v540 = vpop.permute.xlu0 %539
  %v542 = vmul.f32 %v524, %v540
  %544 = vrot.lane.b32.xlu0 %v542, 101
  %v545 = vpop.permute.xlu0 %544
  %547 = vst.msk [vmem:[#allocation2 + $0x1] sm:$0x1] %vm309, %v545
  %548 = vst.msk [vmem:[%s311] sm:$0x2] %vm312, %v545
  %s549 = scalar_lea.vmem %s0, 2
  %v550 = vld [vmem:[%s549] sm:$0x1]
  %551 = vmatprep.subr.bf16.mxu0 0
  %552 = vmatpush1.bf16.msra.mxu0 %v52
  %553 = vmatprep.subr.bf16.mxu0 0
  %554 = vmatpush1.bf16.msra.mxu0 0
  %555 = vmatprep.subr.bf16.mxu0 0
  %556 = vmatpush1.bf16.msra.mxu0 0
  %557 = vmatprep.subr.bf16.mxu0 0
  %558 = vmatpush1.bf16.msra.mxu0 0
  %559 = vmatprep.subr.bf16.mxu0 0
  %560 = vmatpush1.bf16.msra.mxu0 0
  %561 = vmatprep.subr.bf16.mxu0 0
  %562 = vmatpush1.bf16.msra.mxu0 0
  %563 = vmatprep.subr.bf16.mxu0 0
  %564 = vmatpush1.bf16.msra.mxu0 0
  %565 = vmatprep.subr.bf16.mxu0 0
  %566 = vmatpush1.bf16.msra.mxu0 0
  %567 = vmatprep.subr.bf16.mxu0 0
  %568 = vmatpush1.bf16.msra.mxu0 0
  %569 = vmatprep.subr.bf16.mxu0 0
  %570 = vmatpush1.bf16.msra.mxu0 0
  %571 = vmatprep.subr.bf16.mxu0 0
  %572 = vmatpush1.bf16.msra.mxu0 0
  %573 = vmatprep.subr.bf16.mxu0 0
  %574 = vmatpush1.bf16.msra.mxu0 0
  %575 = vmatprep.subr.bf16.mxu0 0
  %576 = vmatpush1.bf16.msra.mxu0 0
  %577 = vmatprep.subr.bf16.mxu0 0
  %578 = vmatpush1.bf16.msra.mxu0 0
  %579 = vmatprep.subr.bf16.mxu0 0
  %580 = vmatpush1.bf16.msra.mxu0 0
  %581 = vmatprep.subr.bf16.mxu0 0
  %582 = vmatpush1.bf16.msra.mxu0 0
  %583 = vmatprep.mubr.bf16.mxu0 0
  %584 = vmatmul.mubr.bf16.gmra.mrb[0].mxu0 %v476
  %v585 = vpop.f32.mrb[0].mxu0
  %v586 = vadd.f32 0.0, %v585
  %v587 = vpop.f32.mrb[0].mxu0
  %v588 = vpop.f32.mrb[0].mxu0
  %v589 = vpop.f32.mrb[0].mxu0
  %590 = vdwg.mxu0
  %v592 = vsel %vm100, %v550, 0
  %594 = vmatprep.subr.bf16.mxu0 0
  %595 = vmatpush1.bf16.msra.mxu0 %v98
  %596 = vmatprep.subr.bf16.mxu0 0
  %597 = vmatpush1.bf16.msra.mxu0 0
  %598 = vmatprep.subr.bf16.mxu0 0
  %599 = vmatpush1.bf16.msra.mxu0 0
  %600 = vmatprep.subr.bf16.mxu0 0
  %601 = vmatpush1.bf16.msra.mxu0 0
  %602 = vmatprep.subr.bf16.mxu0 0
  %603 = vmatpush1.bf16.msra.mxu0 0
  %604 = vmatprep.subr.bf16.mxu0 0
  %605 = vmatpush1.bf16.msra.mxu0 0
  %606 = vmatprep.subr.bf16.mxu0 0
  %607 = vmatpush1.bf16.msra.mxu0 0
  %608 = vmatprep.subr.bf16.mxu0 0
  %609 = vmatpush1.bf16.msra.mxu0 0
  %610 = vmatprep.subr.bf16.mxu0 0
  %611 = vmatpush1.bf16.msra.mxu0 0
  %612 = vmatprep.subr.bf16.mxu0 0
  %613 = vmatpush1.bf16.msra.mxu0 0
  %614 = vmatprep.subr.bf16.mxu0 0
  %615 = vmatpush1.bf16.msra.mxu0 0
  %616 = vmatprep.subr.bf16.mxu0 0
  %617 = vmatpush1.bf16.msra.mxu0 0
  %618 = vmatprep.subr.bf16.mxu0 0
  %619 = vmatpush1.bf16.msra.mxu0 0
  %620 = vmatprep.subr.bf16.mxu0 0
  %621 = vmatpush1.bf16.msra.mxu0 0
  %622 = vmatprep.subr.bf16.mxu0 0
  %623 = vmatpush1.bf16.msra.mxu0 0
  %624 = vmatprep.subr.bf16.mxu0 0
  %625 = vmatpush1.bf16.msra.mxu0 0
  %626 = vmatprep.mubr.bf16.mxu0 0
  %627 = vmatmul.mubr.bf16.gmra.mrb[0].mxu0 %v592
  %v628 = vpop.f32.mrb[0].mxu0
  %v629 = vadd.f32 %v586, %v628
  %v630 = vpop.f32.mrb[0].mxu0
  %v631 = vpop.f32.mrb[0].mxu0
  %v632 = vpop.f32.mrb[0].mxu0
  %633 = vdwg.mxu0
  %v634 = vadd.f32 %v629, %v147
  %v635 = vxor.u32 %v634, 2147483648
  %v636 = vmul.f32 %v635, 1.442695
  %v637 = vpow.pop %v636
  %v638 = vadd.f32 %v637, 1.0
  %v639 = vrcp.pop %v638
  %v640 = vmul.f32 1.0, %v639
  %v641 = vtanh.pop %v634
  %v642 = vmul.f32 %v640, %v417
  %644 = vrot.lane.b32.xlu0 %v641, 110
  %v645 = vpop.permute.xlu0 %644
  %v647 = vmul.f32 %v640, %v645
  %649 = vrot.lane.b32.xlu0 %v647, 9
  %v650 = vpop.permute.xlu0 %649
  %v652 = vadd.f32 %v642, %v650
  %v653 = vtanh.pop %v652
  %655 = vrot.lane.b32.xlu0 %v653, 18
  %v656 = vpop.permute.xlu0 %655
  %v658 = vmul.f32 %v640, %v656
  %v659 = vpack.c.bf16 %v658, %v658
  %v660 = vpack.c.bf16 %v542, %v542
  %662 = vrot.lane.b32.xlu0 %v660, 101
  %v663 = vpop.permute.xlu0 %662
  %v665 = vsel %vm43, %v663, 0
  %667 = vmatprep.subr.bf16.mxu0 0
  %668 = vmatpush1.bf16.msra.mxu0 %v180
  %669 = vmatprep.subr.bf16.mxu0 0
  %670 = vmatpush1.bf16.msra.mxu0 0
  %671 = vmatprep.subr.bf16.mxu0 0
  %672 = vmatpush1.bf16.msra.mxu0 0
  %673 = vmatprep.subr.bf16.mxu0 0
  %674 = vmatpush1.bf16.msra.mxu0 0
  %675 = vmatprep.subr.bf16.mxu0 0
  %676 = vmatpush1.bf16.msra.mxu0 0
  %677 = vmatprep.subr.bf16.mxu0 0
  %678 = vmatpush1.bf16.msra.mxu0 0
  %679 = vmatprep.subr.bf16.mxu0 0
  %680 = vmatpush1.bf16.msra.mxu0 0
  %681 = vmatprep.subr.bf16.mxu0 0
  %682 = vmatpush1.bf16.msra.mxu0 0
  %683 = vmatprep.subr.bf16.mxu0 0
  %684 = vmatpush1.bf16.msra.mxu0 0
  %685 = vmatprep.subr.bf16.mxu0 0
  %686 = vmatpush1.bf16.msra.mxu0 0
  %687 = vmatprep.subr.bf16.mxu0 0
  %688 = vmatpush1.bf16.msra.mxu0 0
  %689 = vmatprep.subr.bf16.mxu0 0
  %690 = vmatpush1.bf16.msra.mxu0 0
  %691 = vmatprep.subr.bf16.mxu0 0
  %692 = vmatpush1.bf16.msra.mxu0 0
  %693 = vmatprep.subr.bf16.mxu0 0
  %694 = vmatpush1.bf16.msra.mxu0 0
  %695 = vmatprep.subr.bf16.mxu0 0
  %696 = vmatpush1.bf16.msra.mxu0 0
  %697 = vmatprep.subr.bf16.mxu0 0
  %698 = vmatpush1.bf16.msra.mxu0 0
  %699 = vmatprep.mubr.bf16.mxu0 0
  %700 = vmatmul.mubr.bf16.gmra.mrb[0].mxu0 %v665
  %v701 = vpop.f32.mrb[0].mxu0
  %v702 = vadd.f32 0.0, %v701
  %v703 = vpop.f32.mrb[0].mxu0
  %v704 = vpop.f32.mrb[0].mxu0
  %v705 = vpop.f32.mrb[0].mxu0
  %706 = vdwg.mxu0
  %708 = vrot.lane.b32.xlu0 %v659, 101
  %v709 = vpop.permute.xlu0 %708
  %v711 = vsel %vm43, %v709, 0
  %713 = vmatprep.subr.bf16.mxu0 0
  %714 = vmatpush1.bf16.msra.mxu0 %v234
  %715 = vmatprep.subr.bf16.mxu0 0
  %716 = vmatpush1.bf16.msra.mxu0 0
  %717 = vmatprep.subr.bf16.mxu0 0
  %718 = vmatpush1.bf16.msra.mxu0 0
  %719 = vmatprep.subr.bf16.mxu0 0
  %720 = vmatpush1.bf16.msra.mxu0 0
  %721 = vmatprep.subr.bf16.mxu0 0
  %722 = vmatpush1.bf16.msra.mxu0 0
  %723 = vmatprep.subr.bf16.mxu0 0
  %724 = vmatpush1.bf16.msra.mxu0 0
  %725 = vmatprep.subr.bf16.mxu0 0
  %726 = vmatpush1.bf16.msra.mxu0 0
  %727 = vmatprep.subr.bf16.mxu0 0
  %728 = vmatpush1.bf16.msra.mxu0 0
  %729 = vmatprep.subr.bf16.mxu0 0
  %730 = vmatpush1.bf16.msra.mxu0 0
  %731 = vmatprep.subr.bf16.mxu0 0
  %732 = vmatpush1.bf16.msra.mxu0 0
  %733 = vmatprep.subr.bf16.mxu0 0
  %734 = vmatpush1.bf16.msra.mxu0 0
  %735 = vmatprep.subr.bf16.mxu0 0
  %736 = vmatpush1.bf16.msra.mxu0 0
  %737 = vmatprep.subr.bf16.mxu0 0
  %738 = vmatpush1.bf16.msra.mxu0 0
  %739 = vmatprep.subr.bf16.mxu0 0
  %740 = vmatpush1.bf16.msra.mxu0 0
  %741 = vmatprep.subr.bf16.mxu0 0
  %742 = vmatpush1.bf16.msra.mxu0 0
  %743 = vmatprep.subr.bf16.mxu0 0
  %744 = vmatpush1.bf16.msra.mxu0 0
  %745 = vmatprep.mubr.bf16.mxu0 0
  %746 = vmatmul.mubr.bf16.gmra.mrb[0].mxu0 %v711
  %v747 = vpop.f32.mrb[0].mxu0
  %v748 = vadd.f32 %v702, %v747
  %v749 = vpop.f32.mrb[0].mxu0
  %v750 = vpop.f32.mrb[0].mxu0
  %v751 = vpop.f32.mrb[0].mxu0
  %752 = vdwg.mxu0
  %v753 = vadd.f32 %v748, %v279
  %v754 = vxor.u32 %v753, 2147483648
  %v755 = vmul.f32 %v754, 1.442695
  %v756 = vpow.pop %v755
  %v757 = vadd.f32 %v756, 1.0
  %v758 = vrcp.pop %v757
  %v759 = vmul.f32 1.0, %v758
  %v760 = vtanh.pop %v753
  %v761 = vmul.f32 %v759, %v536
  %763 = vrot.lane.b32.xlu0 %v760, 110
  %v764 = vpop.permute.xlu0 %763
  %v766 = vmul.f32 %v759, %v764
  %768 = vrot.lane.b32.xlu0 %v766, 9
  %v769 = vpop.permute.xlu0 %768
  %v771 = vadd.f32 %v761, %v769
  %v772 = vtanh.pop %v771
  %774 = vrot.lane.b32.xlu0 %v772, 18
  %v775 = vpop.permute.xlu0 %774
  %v777 = vmul.f32 %v759, %v775
  %779 = vrot.lane.b32.xlu0 %v777, 101
  %v780 = vpop.permute.xlu0 %779
  %782 = vst.msk [vmem:[#allocation2 + $0x2] sm:$0x1] %vm309, %v780
  %783 = vst.msk [vmem:[%s311 + $0x1] sm:$0x2] %vm312, %v780
  %s784 = scalar_lea.vmem %s0, 3
  %v785 = vld [vmem:[%s784] sm:$0x1]
  %786 = vmatprep.subr.bf16.mxu0 0
  %787 = vmatpush1.bf16.msra.mxu0 %v52
  %788 = vmatprep.subr.bf16.mxu0 0
  %789 = vmatpush1.bf16.msra.mxu0 0
  %790 = vmatprep.subr.bf16.mxu0 0
  %791 = vmatpush1.bf16.msra.mxu0 0
  %792 = vmatprep.subr.bf16.mxu0 0
  %793 = vmatpush1.bf16.msra.mxu0 0
  %794 = vmatprep.subr.bf16.mxu0 0
  %795 = vmatpush1.bf16.msra.mxu0 0
  %796 = vmatprep.subr.bf16.mxu0 0
  %797 = vmatpush1.bf16.msra.mxu0 0
  %798 = vmatprep.subr.bf16.mxu0 0
  %799 = vmatpush1.bf16.msra.mxu0 0
  %800 = vmatprep.subr.bf16.mxu0 0
  %801 = vmatpush1.bf16.msra.mxu0 0
  %802 = vmatprep.subr.bf16.mxu0 0
  %803 = vmatpush1.bf16.msra.mxu0 0
  %804 = vmatprep.subr.bf16.mxu0 0
  %805 = vmatpush1.bf16.msra.mxu0 0
  %806 = vmatprep.subr.bf16.mxu0 0
  %807 = vmatpush1.bf16.msra.mxu0 0
  %808 = vmatprep.subr.bf16.mxu0 0
  %809 = vmatpush1.bf16.msra.mxu0 0
  %810 = vmatprep.subr.bf16.mxu0 0
  %811 = vmatpush1.bf16.msra.mxu0 0
  %812 = vmatprep.subr.bf16.mxu0 0
  %813 = vmatpush1.bf16.msra.mxu0 0
  %814 = vmatprep.subr.bf16.mxu0 0
  %815 = vmatpush1.bf16.msra.mxu0 0
  %816 = vmatprep.subr.bf16.mxu0 0
  %817 = vmatpush1.bf16.msra.mxu0 0
  %818 = vmatprep.mubr.bf16.mxu0 0
  %819 = vmatmul.mubr.bf16.gmra.mrb[0].mxu0 %v711
  %v820 = vpop.f32.mrb[0].mxu0
  %v821 = vadd.f32 0.0, %v820
  %v822 = vpop.f32.mrb[0].mxu0
  %v823 = vpop.f32.mrb[0].mxu0
  %v824 = vpop.f32.mrb[0].mxu0
  %825 = vdwg.mxu0
  %v827 = vsel %vm100, %v785, 0
  %829 = vmatprep.subr.bf16.mxu0 0
  %830 = vmatpush1.bf16.msra.mxu0 %v98
  %831 = vmatprep.subr.bf16.mxu0 0
  %832 = vmatpush1.bf16.msra.mxu0 0
  %833 = vmatprep.subr.bf16.mxu0 0
  %834 = vmatpush1.bf16.msra.mxu0 0
  %835 = vmatprep.subr.bf16.mxu0 0
  %836 = vmatpush1.bf16.msra.mxu0 0
  %837 = vmatprep.subr.bf16.mxu0 0
  %838 = vmatpush1.bf16.msra.mxu0 0
  %839 = vmatprep.subr.bf16.mxu0 0
  %840 = vmatpush1.bf16.msra.mxu0 0
  %841 = vmatprep.subr.bf16.mxu0 0
  %842 = vmatpush1.bf16.msra.mxu0 0
  %843 = vmatprep.subr.bf16.mxu0 0
  %844 = vmatpush1.bf16.msra.mxu0 0
  %845 = vmatprep.subr.bf16.mxu0 0
  %846 = vmatpush1.bf16.msra.mxu0 0
  %847 = vmatprep.subr.bf16.mxu0 0
  %848 = vmatpush1.bf16.msra.mxu0 0
  %849 = vmatprep.subr.bf16.mxu0 0
  %850 = vmatpush1.bf16.msra.mxu0 0
  %851 = vmatprep.subr.bf16.mxu0 0
  %852 = vmatpush1.bf16.msra.mxu0 0
  %853 = vmatprep.subr.bf16.mxu0 0
  %854 = vmatpush1.bf16.msra.mxu0 0
  %855 = vmatprep.subr.bf16.mxu0 0
  %856 = vmatpush1.bf16.msra.mxu0 0
  %857 = vmatprep.subr.bf16.mxu0 0
  %858 = vmatpush1.bf16.msra.mxu0 0
  %859 = vmatprep.subr.bf16.mxu0 0
  %860 = vmatpush1.bf16.msra.mxu0 0
  %861 = vmatprep.mubr.bf16.mxu0 0
  %862 = vmatmul.mubr.bf16.gmra.mrb[0].mxu0 %v827
  %v863 = vpop.f32.mrb[0].mxu0
  %v864 = vadd.f32 %v821, %v863
  %v865 = vpop.f32.mrb[0].mxu0
  %v866 = vpop.f32.mrb[0].mxu0
  %v867 = vpop.f32.mrb[0].mxu0
  %868 = vdwg.mxu0
  %v869 = vadd.f32 %v864, %v147
  %v870 = vxor.u32 %v869, 2147483648
  %v871 = vmul.f32 %v870, 1.442695
  %v872 = vpow.pop %v871
  %v873 = vadd.f32 %v872, 1.0
  %v874 = vrcp.pop %v873
  %v875 = vmul.f32 1.0, %v874
  %v876 = vtanh.pop %v869
  %v877 = vmul.f32 %v875, %v652
  %879 = vrot.lane.b32.xlu0 %v876, 110
  %v880 = vpop.permute.xlu0 %879
  %v882 = vmul.f32 %v875, %v880
  %884 = vrot.lane.b32.xlu0 %v882, 9
  %v885 = vpop.permute.xlu0 %884
  %v887 = vadd.f32 %v877, %v885
  %v888 = vtanh.pop %v887
  %890 = vrot.lane.b32.xlu0 %v888, 18
  %v891 = vpop.permute.xlu0 %890
  %v893 = vmul.f32 %v875, %v891
  %v894 = vpack.c.bf16 %v893, %v893
  %v895 = vpack.c.bf16 %v777, %v777
  %897 = vrot.lane.b32.xlu0 %v895, 101
  %v898 = vpop.permute.xlu0 %897
  %v900 = vsel %vm43, %v898, 0
  %902 = vmatprep.subr.bf16.mxu0 0
  %903 = vmatpush1.bf16.msra.mxu0 %v180
  %904 = vmatprep.subr.bf16.mxu0 0
  %905 = vmatpush1.bf16.msra.mxu0 0
  %906 = vmatprep.subr.bf16.mxu0 0
  %907 = vmatpush1.bf16.msra.mxu0 0
  %908 = vmatprep.subr.bf16.mxu0 0
  %909 = vmatpush1.bf16.msra.mxu0 0
  %910 = vmatprep.subr.bf16.mxu0 0
  %911 = vmatpush1.bf16.msra.mxu0 0
  %912 = vmatprep.subr.bf16.mxu0 0
  %913 = vmatpush1.bf16.msra.mxu0 0
  %914 = vmatprep.subr.bf16.mxu0 0
  %915 = vmatpush1.bf16.msra.mxu0 0
  %916 = vmatprep.subr.bf16.mxu0 0
  %917 = vmatpush1.bf16.msra.mxu0 0
  %918 = vmatprep.subr.bf16.mxu0 0
  %919 = vmatpush1.bf16.msra.mxu0 0
  %920 = vmatprep.subr.bf16.mxu0 0
  %921 = vmatpush1.bf16.msra.mxu0 0
  %922 = vmatprep.subr.bf16.mxu0 0
  %923 = vmatpush1.bf16.msra.mxu0 0
  %924 = vmatprep.subr.bf16.mxu0 0
  %925 = vmatpush1.bf16.msra.mxu0 0
  %926 = vmatprep.subr.bf16.mxu0 0
  %927 = vmatpush1.bf16.msra.mxu0 0
  %928 = vmatprep.subr.bf16.mxu0 0
  %929 = vmatpush1.bf16.msra.mxu0 0
  %930 = vmatprep.subr.bf16.mxu0 0
  %931 = vmatpush1.bf16.msra.mxu0 0
  %932 = vmatprep.subr.bf16.mxu0 0
  %933 = vmatpush1.bf16.msra.mxu0 0
  %934 = vmatprep.mubr.bf16.mxu0 0
  %935 = vmatmul.mubr.bf16.gmra.mrb[0].mxu0 %v900
  %v936 = vpop.f32.mrb[0].mxu0
  %v937 = vadd.f32 0.0, %v936
  %v938 = vpop.f32.mrb[0].mxu0
  %v939 = vpop.f32.mrb[0].mxu0
  %v940 = vpop.f32.mrb[0].mxu0
  %941 = vdwg.mxu0
  %943 = vrot.lane.b32.xlu0 %v894, 101
  %v944 = vpop.permute.xlu0 %943
  %v946 = vsel %vm43, %v944, 0
  %948 = vmatprep.subr.bf16.mxu0 0
  %949 = vmatpush1.bf16.msra.mxu0 %v234
  %950 = vmatprep.subr.bf16.mxu0 0
  %951 = vmatpush1.bf16.msra.mxu0 0
  %952 = vmatprep.subr.bf16.mxu0 0
  %953 = vmatpush1.bf16.msra.mxu0 0
  %954 = vmatprep.subr.bf16.mxu0 0
  %955 = vmatpush1.bf16.msra.mxu0 0
  %956 = vmatprep.subr.bf16.mxu0 0
  %957 = vmatpush1.bf16.msra.mxu0 0
  %958 = vmatprep.subr.bf16.mxu0 0
  %959 = vmatpush1.bf16.msra.mxu0 0
  %960 = vmatprep.subr.bf16.mxu0 0
  %961 = vmatpush1.bf16.msra.mxu0 0
  %962 = vmatprep.subr.bf16.mxu0 0
  %963 = vmatpush1.bf16.msra.mxu0 0
  %964 = vmatprep.subr.bf16.mxu0 0
  %965 = vmatpush1.bf16.msra.mxu0 0
  %966 = vmatprep.subr.bf16.mxu0 0
  %967 = vmatpush1.bf16.msra.mxu0 0
  %968 = vmatprep.subr.bf16.mxu0 0
  %969 = vmatpush1.bf16.msra.mxu0 0
  %970 = vmatprep.subr.bf16.mxu0 0
  %971 = vmatpush1.bf16.msra.mxu0 0
  %972 = vmatprep.subr.bf16.mxu0 0
  %973 = vmatpush1.bf16.msra.mxu0 0
  %974 = vmatprep.subr.bf16.mxu0 0
  %975 = vmatpush1.bf16.msra.mxu0 0
  %976 = vmatprep.subr.bf16.mxu0 0
  %977 = vmatpush1.bf16.msra.mxu0 0
  %978 = vmatprep.subr.bf16.mxu0 0
  %979 = vmatpush1.bf16.msra.mxu0 0
  %980 = vmatprep.mubr.bf16.mxu0 0
  %981 = vmatmul.mubr.bf16.gmra.mrb[0].mxu0 %v946
  %v982 = vpop.f32.mrb[0].mxu0
  %v983 = vadd.f32 %v937, %v982
  %v984 = vpop.f32.mrb[0].mxu0
  %v985 = vpop.f32.mrb[0].mxu0
  %v986 = vpop.f32.mrb[0].mxu0
  %987 = vdwg.mxu0
  %v988 = vadd.f32 %v983, %v279
  %v989 = vxor.u32 %v988, 2147483648
  %v990 = vmul.f32 %v989, 1.442695
  %v991 = vpow.pop %v990
  %v992 = vadd.f32 %v991, 1.0
  %v993 = vrcp.pop %v992
  %v994 = vmul.f32 1.0, %v993
  %v995 = vtanh.pop %v988
  %v996 = vmul.f32 %v994, %v771
  %998 = vrot.lane.b32.xlu0 %v995, 110
  %v999 = vpop.permute.xlu0 %998
  %v1001 = vmul.f32 %v994, %v999
  %1003 = vrot.lane.b32.xlu0 %v1001, 9
  %v1004 = vpop.permute.xlu0 %1003
  %v1006 = vadd.f32 %v996, %v1004
  %v1007 = vtanh.pop %v1006
  %1009 = vrot.lane.b32.xlu0 %v1007, 18
  %v1010 = vpop.permute.xlu0 %1009
  %v1012 = vmul.f32 %v994, %v1010
  %1014 = vrot.lane.b32.xlu0 %v1012, 101
  %v1015 = vpop.permute.xlu0 %1014
  %1017 = vst.msk [vmem:[#allocation2 + $0x3] sm:$0x1] %vm309, %v1015
  %1018 = vst.msk [vmem:[%s311 + $0x2] sm:$0x2] %vm312, %v1015
  %s1019 = scalar_lea.vmem %s0, 4
  %v1020 = vld [vmem:[%s1019] sm:$0x1]
  %1021 = vmatprep.subr.bf16.mxu0 0
  %1022 = vmatpush1.bf16.msra.mxu0 %v52
  %1023 = vmatprep.subr.bf16.mxu0 0
  %1024 = vmatpush1.bf16.msra.mxu0 0
  %1025 = vmatprep.subr.bf16.mxu0 0
  %1026 = vmatpush1.bf16.msra.mxu0 0
  %1027 = vmatprep.subr.bf16.mxu0 0
  %1028 = vmatpush1.bf16.msra.mxu0 0
  %1029 = vmatprep.subr.bf16.mxu0 0
  %1030 = vmatpush1.bf16.msra.mxu0 0
  %1031 = vmatprep.subr.bf16.mxu0 0
  %1032 = vmatpush1.bf16.msra.mxu0 0
  %1033 = vmatprep.subr.bf16.mxu0 0
  %1034 = vmatpush1.bf16.msra.mxu0 0
  %1035 = vmatprep.subr.bf16.mxu0 0
  %1036 = vmatpush1.bf16.msra.mxu0 0
  %1037 = vmatprep.subr.bf16.mxu0 0
  %1038 = vmatpush1.bf16.msra.mxu0 0
  %1039 = vmatprep.subr.bf16.mxu0 0
  %1040 = vmatpush1.bf16.msra.mxu0 0
  %1041 = vmatprep.subr.bf16.mxu0 0
  %1042 = vmatpush1.bf16.msra.mxu0 0
  %1043 = vmatprep.subr.bf16.mxu0 0
  %1044 = vmatpush1.bf16.msra.mxu0 0
  %1045 = vmatprep.subr.bf16.mxu0 0
  %1046 = vmatpush1.bf16.msra.mxu0 0
  %1047 = vmatprep.subr.bf16.mxu0 0
  %1048 = vmatpush1.bf16.msra.mxu0 0
  %1049 = vmatprep.subr.bf16.mxu0 0
  %1050 = vmatpush1.bf16.msra.mxu0 0
  %1051 = vmatprep.subr.bf16.mxu0 0
  %1052 = vmatpush1.bf16.msra.mxu0 0
  %1053 = vmatprep.mubr.bf16.mxu0 0
  %1054 = vmatmul.mubr.bf16.gmra.mrb[0].mxu0 %v946
  %v1055 = vpop.f32.mrb[0].mxu0
  %v1056 = vadd.f32 0.0, %v1055
  %v1057 = vpop.f32.mrb[0].mxu0
  %v1058 = vpop.f32.mrb[0].mxu0
  %v1059 = vpop.f32.mrb[0].mxu0
  %1060 = vdwg.mxu0
  %v1062 = vsel %vm100, %v1020, 0
  %1064 = vmatprep.subr.bf16.mxu0 0
  %1065 = vmatpush1.bf16.msra.mxu0 %v98
  %1066 = vmatprep.subr.bf16.mxu0 0
  %1067 = vmatpush1.bf16.msra.mxu0 0
  %1068 = vmatprep.subr.bf16.mxu0 0
  %1069 = vmatpush1.bf16.msra.mxu0 0
  %1070 = vmatprep.subr.bf16.mxu0 0
  %1071 = vmatpush1.bf16.msra.mxu0 0
  %1072 = vmatprep.subr.bf16.mxu0 0
  %1073 = vmatpush1.bf16.msra.mxu0 0
  %1074 = vmatprep.subr.bf16.mxu0 0
  %1075 = vmatpush1.bf16.msra.mxu0 0
  %1076 = vmatprep.subr.bf16.mxu0 0
  %1077 = vmatpush1.bf16.msra.mxu0 0
  %1078 = vmatprep.subr.bf16.mxu0 0
  %1079 = vmatpush1.bf16.msra.mxu0 0
  %1080 = vmatprep.subr.bf16.mxu0 0
  %1081 = vmatpush1.bf16.msra.mxu0 0
  %1082 = vmatprep.subr.bf16.mxu0 0
  %1083 = vmatpush1.bf16.msra.mxu0 0
  %1084 = vmatprep.subr.bf16.mxu0 0
  %1085 = vmatpush1.bf16.msra.mxu0 0
  %1086 = vmatprep.subr.bf16.mxu0 0
  %1087 = vmatpush1.bf16.msra.mxu0 0
  %1088 = vmatprep.subr.bf16.mxu0 0
  %1089 = vmatpush1.bf16.msra.mxu0 0
  %1090 = vmatprep.subr.bf16.mxu0 0
  %1091 = vmatpush1.bf16.msra.mxu0 0
  %1092 = vmatprep.subr.bf16.mxu0 0
  %1093 = vmatpush1.bf16.msra.mxu0 0
  %1094 = vmatprep.subr.bf16.mxu0 0
  %1095 = vmatpush1.bf16.msra.mxu0 0
  %1096 = vmatprep.mubr.bf16.mxu0 0
  %1097 = vmatmul.mubr.bf16.gmra.mrb[0].mxu0 %v1062
  %v1098 = vpop.f32.mrb[0].mxu0
  %v1099 = vadd.f32 %v1056, %v1098
  %v1100 = vpop.f32.mrb[0].mxu0
  %v1101 = vpop.f32.mrb[0].mxu0
  %v1102 = vpop.f32.mrb[0].mxu0
  %1103 = vdwg.mxu0
  %v1104 = vadd.f32 %v1099, %v147
  %v1105 = vxor.u32 %v1104, 2147483648
  %v1106 = vmul.f32 %v1105, 1.442695
  %v1107 = vpow.pop %v1106
  %v1108 = vadd.f32 %v1107, 1.0
  %v1109 = vrcp.pop %v1108
  %v1110 = vmul.f32 1.0, %v1109
  %v1111 = vtanh.pop %v1104
  %v1112 = vmul.f32 %v1110, %v887
  %1114 = vrot.lane.b32.xlu0 %v1111, 110
  %v1115 = vpop.permute.xlu0 %1114
  %v1117 = vmul.f32 %v1110, %v1115
  %1119 = vrot.lane.b32.xlu0 %v1117, 9
  %v1120 = vpop.permute.xlu0 %1119
  %v1122 = vadd.f32 %v1112, %v1120
  %v1123 = vtanh.pop %v1122
  %1125 = vrot.lane.b32.xlu0 %v1123, 18
  %v1126 = vpop.permute.xlu0 %1125
  %v1128 = vmul.f32 %v1110, %v1126
  %v1129 = vpack.c.bf16 %v1128, %v1128
  %v1130 = vpack.c.bf16 %v1012, %v1012
  %1132 = vrot.lane.b32.xlu0 %v1130, 101
  %v1133 = vpop.permute.xlu0 %1132
  %v1135 = vsel %vm43, %v1133, 0
  %1137 = vmatprep.subr.bf16.mxu0 0
  %1138 = vmatpush1.bf16.msra.mxu0 %v180
  %1139 = vmatprep.subr.bf16.mxu0 0
  %1140 = vmatpush1.bf16.msra.mxu0 0
  %1141 = vmatprep.subr.bf16.mxu0 0
  %1142 = vmatpush1.bf16.msra.mxu0 0
  %1143 = vmatprep.subr.bf16.mxu0 0
  %1144 = vmatpush1.bf16.msra.mxu0 0
  %1145 = vmatprep.subr.bf16.mxu0 0
  %1146 = vmatpush1.bf16.msra.mxu0 0
  %1147 = vmatprep.subr.bf16.mxu0 0
  %1148 = vmatpush1.bf16.msra.mxu0 0
  %1149 = vmatprep.subr.bf16.mxu0 0
  %1150 = vmatpush1.bf16.msra.mxu0 0
  %1151 = vmatprep.subr.bf16.mxu0 0
  %1152 = vmatpush1.bf16.msra.mxu0 0
  %1153 = vmatprep.subr.bf16.mxu0 0
  %1154 = vmatpush1.bf16.msra.mxu0 0
  %1155 = vmatprep.subr.bf16.mxu0 0
  %1156 = vmatpush1.bf16.msra.mxu0 0
  %1157 = vmatprep.subr.bf16.mxu0 0
  %1158 = vmatpush1.bf16.msra.mxu0 0
  %1159 = vmatprep.subr.bf16.mxu0 0
  %1160 = vmatpush1.bf16.msra.mxu0 0
  %1161 = vmatprep.subr.bf16.mxu0 0
  %1162 = vmatpush1.bf16.msra.mxu0 0
  %1163 = vmatprep.subr.bf16.mxu0 0
  %1164 = vmatpush1.bf16.msra.mxu0 0
  %1165 = vmatprep.subr.bf16.mxu0 0
  %1166 = vmatpush1.bf16.msra.mxu0 0
  %1167 = vmatprep.subr.bf16.mxu0 0
  %1168 = vmatpush1.bf16.msra.mxu0 0
  %1169 = vmatprep.mubr.bf16.mxu0 0
  %1170 = vmatmul.mubr.bf16.gmra.mrb[0].mxu0 %v1135
  %v1171 = vpop.f32.mrb[0].mxu0
  %v1172 = vadd.f32 0.0, %v1171
  %v1173 = vpop.f32.mrb[0].mxu0
  %v1174 = vpop.f32.mrb[0].mxu0
  %v1175 = vpop.f32.mrb[0].mxu0
  %1176 = vdwg.mxu0
  %1178 = vrot.lane.b32.xlu0 %v1129, 101
  %v1179 = vpop.permute.xlu0 %1178
  %v1181 = vsel %vm43, %v1179, 0
  %1183 = vmatprep.subr.bf16.mxu0 0
  %1184 = vmatpush1.bf16.msra.mxu0 %v234
  %1185 = vmatprep.subr.bf16.mxu0 0
  %1186 = vmatpush1.bf16.msra.mxu0 0
  %1187 = vmatprep.subr.bf16.mxu0 0
  %1188 = vmatpush1.bf16.msra.mxu0 0
  %1189 = vmatprep.subr.bf16.mxu0 0
  %1190 = vmatpush1.bf16.msra.mxu0 0
  %1191 = vmatprep.subr.bf16.mxu0 0
  %1192 = vmatpush1.bf16.msra.mxu0 0
  %1193 = vmatprep.subr.bf16.mxu0 0
  %1194 = vmatpush1.bf16.msra.mxu0 0
  %1195 = vmatprep.subr.bf16.mxu0 0
  %1196 = vmatpush1.bf16.msra.mxu0 0
  %1197 = vmatprep.subr.bf16.mxu0 0
  %1198 = vmatpush1.bf16.msra.mxu0 0
  %1199 = vmatprep.subr.bf16.mxu0 0
  %1200 = vmatpush1.bf16.msra.mxu0 0
  %1201 = vmatprep.subr.bf16.mxu0 0
  %1202 = vmatpush1.bf16.msra.mxu0 0
  %1203 = vmatprep.subr.bf16.mxu0 0
  %1204 = vmatpush1.bf16.msra.mxu0 0
  %1205 = vmatprep.subr.bf16.mxu0 0
  %1206 = vmatpush1.bf16.msra.mxu0 0
  %1207 = vmatprep.subr.bf16.mxu0 0
  %1208 = vmatpush1.bf16.msra.mxu0 0
  %1209 = vmatprep.subr.bf16.mxu0 0
  %1210 = vmatpush1.bf16.msra.mxu0 0
  %1211 = vmatprep.subr.bf16.mxu0 0
  %1212 = vmatpush1.bf16.msra.mxu0 0
  %1213 = vmatprep.subr.bf16.mxu0 0
  %1214 = vmatpush1.bf16.msra.mxu0 0
  %1215 = vmatprep.mubr.bf16.mxu0 0
  %1216 = vmatmul.mubr.bf16.gmra.mrb[0].mxu0 %v1181
  %v1217 = vpop.f32.mrb[0].mxu0
  %v1218 = vadd.f32 %v1172, %v1217
  %v1219 = vpop.f32.mrb[0].mxu0
  %v1220 = vpop.f32.mrb[0].mxu0
  %v1221 = vpop.f32.mrb[0].mxu0
  %1222 = vdwg.mxu0
  %v1223 = vadd.f32 %v1218, %v279
  %v1224 = vxor.u32 %v1223, 2147483648
  %v1225 = vmul.f32 %v1224, 1.442695
  %v1226 = vpow.pop %v1225
  %v1227 = vadd.f32 %v1226, 1.0
  %v1228 = vrcp.pop %v1227
  %v1229 = vmul.f32 1.0, %v1228
  %v1230 = vtanh.pop %v1223
  %v1231 = vmul.f32 %v1229, %v1006
  %1233 = vrot.lane.b32.xlu0 %v1230, 110
  %v1234 = vpop.permute.xlu0 %1233
  %v1236 = vmul.f32 %v1229, %v1234
  %1238 = vrot.lane.b32.xlu0 %v1236, 9
  %v1239 = vpop.permute.xlu0 %1238
  %v1241 = vadd.f32 %v1231, %v1239
  %v1242 = vtanh.pop %v1241
  %1244 = vrot.lane.b32.xlu0 %v1242, 18
  %v1245 = vpop.permute.xlu0 %1244
  %v1247 = vmul.f32 %v1229, %v1245
  %1249 = vrot.lane.b32.xlu0 %v1247, 101
  %v1250 = vpop.permute.xlu0 %1249
  %1252 = vst.msk [vmem:[#allocation2 + $0x4] sm:$0x1] %vm309, %v1250
  %1253 = vst.msk [vmem:[%s311 + $0x3] sm:$0x2] %vm312, %v1250
  %s1254 = scalar_lea.vmem %s0, 5
  %v1255 = vld [vmem:[%s1254] sm:$0x1]
  %1256 = vmatprep.subr.bf16.mxu0 0
  %1257 = vmatpush1.bf16.msra.mxu0 %v52
  %1258 = vmatprep.subr.bf16.mxu0 0
  %1259 = vmatpush1.bf16.msra.mxu0 0
  %1260 = vmatprep.subr.bf16.mxu0 0
  %1261 = vmatpush1.bf16.msra.mxu0 0
  %1262 = vmatprep.subr.bf16.mxu0 0
  %1263 = vmatpush1.bf16.msra.mxu0 0
  %1264 = vmatprep.subr.bf16.mxu0 0
  %1265 = vmatpush1.bf16.msra.mxu0 0
  %1266 = vmatprep.subr.bf16.mxu0 0
  %1267 = vmatpush1.bf16.msra.mxu0 0
  %1268 = vmatprep.subr.bf16.mxu0 0
  %1269 = vmatpush1.bf16.msra.mxu0 0
  %1270 = vmatprep.subr.bf16.mxu0 0
  %1271 = vmatpush1.bf16.msra.mxu0 0
  %1272 = vmatprep.subr.bf16.mxu0 0
  %1273 = vmatpush1.bf16.msra.mxu0 0
  %1274 = vmatprep.subr.bf16.mxu0 0
  %1275 = vmatpush1.bf16.msra.mxu0 0
  %1276 = vmatprep.subr.bf16.mxu0 0
  %1277 = vmatpush1.bf16.msra.mxu0 0
  %1278 = vmatprep.subr.bf16.mxu0 0
  %1279 = vmatpush1.bf16.msra.mxu0 0
  %1280 = vmatprep.subr.bf16.mxu0 0
  %1281 = vmatpush1.bf16.msra.mxu0 0
  %1282 = vmatprep.subr.bf16.mxu0 0
  %1283 = vmatpush1.bf16.msra.mxu0 0
  %1284 = vmatprep.subr.bf16.mxu0 0
  %1285 = vmatpush1.bf16.msra.mxu0 0
  %1286 = vmatprep.subr.bf16.mxu0 0
  %1287 = vmatpush1.bf16.msra.mxu0 0
  %1288 = vmatprep.mubr.bf16.mxu0 0
  %1289 = vmatmul.mubr.bf16.gmra.mrb[0].mxu0 %v1181
  %v1290 = vpop.f32.mrb[0].mxu0
  %v1291 = vadd.f32 0.0, %v1290
  %v1292 = vpop.f32.mrb[0].mxu0
  %v1293 = vpop.f32.mrb[0].mxu0
  %v1294 = vpop.f32.mrb[0].mxu0
  %1295 = vdwg.mxu0
  %v1297 = vsel %vm100, %v1255, 0
  %1299 = vmatprep.subr.bf16.mxu0 0
  %1300 = vmatpush1.bf16.msra.mxu0 %v98
  %1301 = vmatprep.subr.bf16.mxu0 0
  %1302 = vmatpush1.bf16.msra.mxu0 0
  %1303 = vmatprep.subr.bf16.mxu0 0
  %1304 = vmatpush1.bf16.msra.mxu0 0
  %1305 = vmatprep.subr.bf16.mxu0 0
  %1306 = vmatpush1.bf16.msra.mxu0 0
  %1307 = vmatprep.subr.bf16.mxu0 0
  %1308 = vmatpush1.bf16.msra.mxu0 0
  %1309 = vmatprep.subr.bf16.mxu0 0
  %1310 = vmatpush1.bf16.msra.mxu0 0
  %1311 = vmatprep.subr.bf16.mxu0 0
  %1312 = vmatpush1.bf16.msra.mxu0 0
  %1313 = vmatprep.subr.bf16.mxu0 0
  %1314 = vmatpush1.bf16.msra.mxu0 0
  %1315 = vmatprep.subr.bf16.mxu0 0
  %1316 = vmatpush1.bf16.msra.mxu0 0
  %1317 = vmatprep.subr.bf16.mxu0 0
  %1318 = vmatpush1.bf16.msra.mxu0 0
  %1319 = vmatprep.subr.bf16.mxu0 0
  %1320 = vmatpush1.bf16.msra.mxu0 0
  %1321 = vmatprep.subr.bf16.mxu0 0
  %1322 = vmatpush1.bf16.msra.mxu0 0
  %1323 = vmatprep.subr.bf16.mxu0 0
  %1324 = vmatpush1.bf16.msra.mxu0 0
  %1325 = vmatprep.subr.bf16.mxu0 0
  %1326 = vmatpush1.bf16.msra.mxu0 0
  %1327 = vmatprep.subr.bf16.mxu0 0
  %1328 = vmatpush1.bf16.msra.mxu0 0
  %1329 = vmatprep.subr.bf16.mxu0 0
  %1330 = vmatpush1.bf16.msra.mxu0 0
  %1331 = vmatprep.mubr.bf16.mxu0 0
  %1332 = vmatmul.mubr.bf16.gmra.mrb[0].mxu0 %v1297
  %v1333 = vpop.f32.mrb[0].mxu0
  %v1334 = vadd.f32 %v1291, %v1333
  %v1335 = vpop.f32.mrb[0].mxu0
  %v1336 = vpop.f32.mrb[0].mxu0
  %v1337 = vpop.f32.mrb[0].mxu0
  %1338 = vdwg.mxu0
  %v1339 = vadd.f32 %v1334, %v147
  %v1340 = vxor.u32 %v1339, 2147483648
  %v1341 = vmul.f32 %v1340, 1.442695
  %v1342 = vpow.pop %v1341
  %v1343 = vadd.f32 %v1342, 1.0
  %v1344 = vrcp.pop %v1343
  %v1345 = vmul.f32 1.0, %v1344
  %v1346 = vtanh.pop %v1339
  %v1347 = vmul.f32 %v1345, %v1122
  %1349 = vrot.lane.b32.xlu0 %v1346, 110
  %v1350 = vpop.permute.xlu0 %1349
  %v1352 = vmul.f32 %v1345, %v1350
  %1354 = vrot.lane.b32.xlu0 %v1352, 9
  %v1355 = vpop.permute.xlu0 %1354
  %v1357 = vadd.f32 %v1347, %v1355
  %v1358 = vtanh.pop %v1357
  %1360 = vrot.lane.b32.xlu0 %v1358, 18
  %v1361 = vpop.permute.xlu0 %1360
  %v1363 = vmul.f32 %v1345, %v1361
  %v1364 = vpack.c.bf16 %v1363, %v1363
  %v1365 = vpack.c.bf16 %v1247, %v1247
  %1367 = vrot.lane.b32.xlu0 %v1365, 101
  %v1368 = vpop.permute.xlu0 %1367
  %v1370 = vsel %vm43, %v1368, 0
  %1372 = vmatprep.subr.bf16.mxu0 0
  %1373 = vmatpush1.bf16.msra.mxu0 %v180
  %1374 = vmatprep.subr.bf16.mxu0 0
  %1375 = vmatpush1.bf16.msra.mxu0 0
  %1376 = vmatprep.subr.bf16.mxu0 0
  %1377 = vmatpush1.bf16.msra.mxu0 0
  %1378 = vmatprep.subr.bf16.mxu0 0
  %1379 = vmatpush1.bf16.msra.mxu0 0
  %1380 = vmatprep.subr.bf16.mxu0 0
  %1381 = vmatpush1.bf16.msra.mxu0 0
  %1382 = vmatprep.subr.bf16.mxu0 0
  %1383 = vmatpush1.bf16.msra.mxu0 0
  %1384 = vmatprep.subr.bf16.mxu0 0
  %1385 = vmatpush1.bf16.msra.mxu0 0
  %1386 = vmatprep.subr.bf16.mxu0 0
  %1387 = vmatpush1.bf16.msra.mxu0 0
  %1388 = vmatprep.subr.bf16.mxu0 0
  %1389 = vmatpush1.bf16.msra.mxu0 0
  %1390 = vmatprep.subr.bf16.mxu0 0
  %1391 = vmatpush1.bf16.msra.mxu0 0
  %1392 = vmatprep.subr.bf16.mxu0 0
  %1393 = vmatpush1.bf16.msra.mxu0 0
  %1394 = vmatprep.subr.bf16.mxu0 0
  %1395 = vmatpush1.bf16.msra.mxu0 0
  %1396 = vmatprep.subr.bf16.mxu0 0
  %1397 = vmatpush1.bf16.msra.mxu0 0
  %1398 = vmatprep.subr.bf16.mxu0 0
  %1399 = vmatpush1.bf16.msra.mxu0 0
  %1400 = vmatprep.subr.bf16.mxu0 0
  %1401 = vmatpush1.bf16.msra.mxu0 0
  %1402 = vmatprep.subr.bf16.mxu0 0
  %1403 = vmatpush1.bf16.msra.mxu0 0
  %1404 = vmatprep.mubr.bf16.mxu0 0
  %1405 = vmatmul.mubr.bf16.gmra.mrb[0].mxu0 %v1370
  %v1406 = vpop.f32.mrb[0].mxu0
  %v1407 = vadd.f32 0.0, %v1406
  %v1408 = vpop.f32.mrb[0].mxu0
  %v1409 = vpop.f32.mrb[0].mxu0
  %v1410 = vpop.f32.mrb[0].mxu0
  %1411 = vdwg.mxu0
  %1413 = vrot.lane.b32.xlu0 %v1364, 101
  %v1414 = vpop.permute.xlu0 %1413
  %v1416 = vsel %vm43, %v1414, 0
  %1418 = vmatprep.subr.bf16.mxu0 0
  %1419 = vmatpush1.bf16.msra.mxu0 %v234
  %1420 = vmatprep.subr.bf16.mxu0 0
  %1421 = vmatpush1.bf16.msra.mxu0 0
  %1422 = vmatprep.subr.bf16.mxu0 0
  %1423 = vmatpush1.bf16.msra.mxu0 0
  %1424 = vmatprep.subr.bf16.mxu0 0
  %1425 = vmatpush1.bf16.msra.mxu0 0
  %1426 = vmatprep.subr.bf16.mxu0 0
  %1427 = vmatpush1.bf16.msra.mxu0 0
  %1428 = vmatprep.subr.bf16.mxu0 0
  %1429 = vmatpush1.bf16.msra.mxu0 0
  %1430 = vmatprep.subr.bf16.mxu0 0
  %1431 = vmatpush1.bf16.msra.mxu0 0
  %1432 = vmatprep.subr.bf16.mxu0 0
  %1433 = vmatpush1.bf16.msra.mxu0 0
  %1434 = vmatprep.subr.bf16.mxu0 0
  %1435 = vmatpush1.bf16.msra.mxu0 0
  %1436 = vmatprep.subr.bf16.mxu0 0
  %1437 = vmatpush1.bf16.msra.mxu0 0
  %1438 = vmatprep.subr.bf16.mxu0 0
  %1439 = vmatpush1.bf16.msra.mxu0 0
  %1440 = vmatprep.subr.bf16.mxu0 0
  %1441 = vmatpush1.bf16.msra.mxu0 0
  %1442 = vmatprep.subr.bf16.mxu0 0
  %1443 = vmatpush1.bf16.msra.mxu0 0
  %1444 = vmatprep.subr.bf16.mxu0 0
  %1445 = vmatpush1.bf16.msra.mxu0 0
  %1446 = vmatprep.subr.bf16.mxu0 0
  %1447 = vmatpush1.bf16.msra.mxu0 0
  %1448 = vmatprep.subr.bf16.mxu0 0
  %1449 = vmatpush1.bf16.msra.mxu0 0
  %1450 = vmatprep.mubr.bf16.mxu0 0
  %1451 = vmatmul.mubr.bf16.gmra.mrb[0].mxu0 %v1416
  %v1452 = vpop.f32.mrb[0].mxu0
  %v1453 = vadd.f32 %v1407, %v1452
  %v1454 = vpop.f32.mrb[0].mxu0
  %v1455 = vpop.f32.mrb[0].mxu0
  %v1456 = vpop.f32.mrb[0].mxu0
  %1457 = vdwg.mxu0
  %v1458 = vadd.f32 %v1453, %v279
  %v1459 = vxor.u32 %v1458, 2147483648
  %v1460 = vmul.f32 %v1459, 1.442695
  %v1461 = vpow.pop %v1460
  %v1462 = vadd.f32 %v1461, 1.0
  %v1463 = vrcp.pop %v1462
  %v1464 = vmul.f32 1.0, %v1463
  %v1465 = vtanh.pop %v1458
  %v1466 = vmul.f32 %v1464, %v1241
  %1468 = vrot.lane.b32.xlu0 %v1465, 110
  %v1469 = vpop.permute.xlu0 %1468
  %v1471 = vmul.f32 %v1464, %v1469
  %1473 = vrot.lane.b32.xlu0 %v1471, 9
  %v1474 = vpop.permute.xlu0 %1473
  %v1476 = vadd.f32 %v1466, %v1474
  %v1477 = vtanh.pop %v1476
  %1479 = vrot.lane.b32.xlu0 %v1477, 18
  %v1480 = vpop.permute.xlu0 %1479
  %v1482 = vmul.f32 %v1464, %v1480
  %1484 = vrot.lane.b32.xlu0 %v1482, 101
  %v1485 = vpop.permute.xlu0 %1484
  %1487 = vst.msk [vmem:[#allocation2 + $0x5] sm:$0x1] %vm309, %v1485
  %1488 = vst.msk [vmem:[%s311 + $0x4] sm:$0x2] %vm312, %v1485
  %s1489 = scalar_lea.vmem %s0, 6
  %v1490 = vld [vmem:[%s1489] sm:$0x1]
  %1491 = vmatprep.subr.bf16.mxu0 0
  %1492 = vmatpush1.bf16.msra.mxu0 %v52
  %1493 = vmatprep.subr.bf16.mxu0 0
  %1494 = vmatpush1.bf16.msra.mxu0 0
  %1495 = vmatprep.subr.bf16.mxu0 0
  %1496 = vmatpush1.bf16.msra.mxu0 0
  %1497 = vmatprep.subr.bf16.mxu0 0
  %1498 = vmatpush1.bf16.msra.mxu0 0
  %1499 = vmatprep.subr.bf16.mxu0 0
  %1500 = vmatpush1.bf16.msra.mxu0 0
  %1501 = vmatprep.subr.bf16.mxu0 0
  %1502 = vmatpush1.bf16.msra.mxu0 0
  %1503 = vmatprep.subr.bf16.mxu0 0
  %1504 = vmatpush1.bf16.msra.mxu0 0
  %1505 = vmatprep.subr.bf16.mxu0 0
  %1506 = vmatpush1.bf16.msra.mxu0 0
  %1507 = vmatprep.subr.bf16.mxu0 0
  %1508 = vmatpush1.bf16.msra.mxu0 0
  %1509 = vmatprep.subr.bf16.mxu0 0
  %1510 = vmatpush1.bf16.msra.mxu0 0
  %1511 = vmatprep.subr.bf16.mxu0 0
  %1512 = vmatpush1.bf16.msra.mxu0 0
  %1513 = vmatprep.subr.bf16.mxu0 0
  %1514 = vmatpush1.bf16.msra.mxu0 0
  %1515 = vmatprep.subr.bf16.mxu0 0
  %1516 = vmatpush1.bf16.msra.mxu0 0
  %1517 = vmatprep.subr.bf16.mxu0 0
  %1518 = vmatpush1.bf16.msra.mxu0 0
  %1519 = vmatprep.subr.bf16.mxu0 0
  %1520 = vmatpush1.bf16.msra.mxu0 0
  %1521 = vmatprep.subr.bf16.mxu0 0
  %1522 = vmatpush1.bf16.msra.mxu0 0
  %1523 = vmatprep.mubr.bf16.mxu0 0
  %1524 = vmatmul.mubr.bf16.gmra.mrb[0].mxu0 %v1416
  %v1525 = vpop.f32.mrb[0].mxu0
  %v1526 = vadd.f32 0.0, %v1525
  %v1527 = vpop.f32.mrb[0].mxu0
  %v1528 = vpop.f32.mrb[0].mxu0
  %v1529 = vpop.f32.mrb[0].mxu0
  %1530 = vdwg.mxu0
  %v1532 = vsel %vm100, %v1490, 0
  %1534 = vmatprep.subr.bf16.mxu0 0
  %1535 = vmatpush1.bf16.msra.mxu0 %v98
  %1536 = vmatprep.subr.bf16.mxu0 0
  %1537 = vmatpush1.bf16.msra.mxu0 0
  %1538 = vmatprep.subr.bf16.mxu0 0
  %1539 = vmatpush1.bf16.msra.mxu0 0
  %1540 = vmatprep.subr.bf16.mxu0 0
  %1541 = vmatpush1.bf16.msra.mxu0 0
  %1542 = vmatprep.subr.bf16.mxu0 0
  %1543 = vmatpush1.bf16.msra.mxu0 0
  %1544 = vmatprep.subr.bf16.mxu0 0
  %1545 = vmatpush1.bf16.msra.mxu0 0
  %1546 = vmatprep.subr.bf16.mxu0 0
  %1547 = vmatpush1.bf16.msra.mxu0 0
  %1548 = vmatprep.subr.bf16.mxu0 0
  %1549 = vmatpush1.bf16.msra.mxu0 0
  %1550 = vmatprep.subr.bf16.mxu0 0
  %1551 = vmatpush1.bf16.msra.mxu0 0
  %1552 = vmatprep.subr.bf16.mxu0 0
  %1553 = vmatpush1.bf16.msra.mxu0 0
  %1554 = vmatprep.subr.bf16.mxu0 0
  %1555 = vmatpush1.bf16.msra.mxu0 0
  %1556 = vmatprep.subr.bf16.mxu0 0
  %1557 = vmatpush1.bf16.msra.mxu0 0
  %1558 = vmatprep.subr.bf16.mxu0 0
  %1559 = vmatpush1.bf16.msra.mxu0 0
  %1560 = vmatprep.subr.bf16.mxu0 0
  %1561 = vmatpush1.bf16.msra.mxu0 0
  %1562 = vmatprep.subr.bf16.mxu0 0
  %1563 = vmatpush1.bf16.msra.mxu0 0
  %1564 = vmatprep.subr.bf16.mxu0 0
  %1565 = vmatpush1.bf16.msra.mxu0 0
  %1566 = vmatprep.mubr.bf16.mxu0 0
  %1567 = vmatmul.mubr.bf16.gmra.mrb[0].mxu0 %v1532
  %v1568 = vpop.f32.mrb[0].mxu0
  %v1569 = vadd.f32 %v1526, %v1568
  %v1570 = vpop.f32.mrb[0].mxu0
  %v1571 = vpop.f32.mrb[0].mxu0
  %v1572 = vpop.f32.mrb[0].mxu0
  %1573 = vdwg.mxu0
  %v1574 = vadd.f32 %v1569, %v147
  %v1575 = vxor.u32 %v1574, 2147483648
  %v1576 = vmul.f32 %v1575, 1.442695
  %v1577 = vpow.pop %v1576
  %v1578 = vadd.f32 %v1577, 1.0
  %v1579 = vrcp.pop %v1578
  %v1580 = vmul.f32 1.0, %v1579
  %v1581 = vtanh.pop %v1574
  %v1582 = vmul.f32 %v1580, %v1357
  %1584 = vrot.lane.b32.xlu0 %v1581, 110
  %v1585 = vpop.permute.xlu0 %1584
  %v1587 = vmul.f32 %v1580, %v1585
  %1589 = vrot.lane.b32.xlu0 %v1587, 9
  %v1590 = vpop.permute.xlu0 %1589
  %v1592 = vadd.f32 %v1582, %v1590
  %v1593 = vtanh.pop %v1592
  %1595 = vrot.lane.b32.xlu0 %v1593, 18
  %v1596 = vpop.permute.xlu0 %1595
  %v1598 = vmul.f32 %v1580, %v1596
  %v1599 = vpack.c.bf16 %v1598, %v1598
  %v1600 = vpack.c.bf16 %v1482, %v1482
  %1602 = vrot.lane.b32.xlu0 %v1600, 101
  %v1603 = vpop.permute.xlu0 %1602
  %v1605 = vsel %vm43, %v1603, 0
  %1607 = vmatprep.subr.bf16.mxu0 0
  %1608 = vmatpush1.bf16.msra.mxu0 %v180
  %1609 = vmatprep.subr.bf16.mxu0 0
  %1610 = vmatpush1.bf16.msra.mxu0 0
  %1611 = vmatprep.subr.bf16.mxu0 0
  %1612 = vmatpush1.bf16.msra.mxu0 0
  %1613 = vmatprep.subr.bf16.mxu0 0
  %1614 = vmatpush1.bf16.msra.mxu0 0
  %1615 = vmatprep.subr.bf16.mxu0 0
  %1616 = vmatpush1.bf16.msra.mxu0 0
  %1617 = vmatprep.subr.bf16.mxu0 0
  %1618 = vmatpush1.bf16.msra.mxu0 0
  %1619 = vmatprep.subr.bf16.mxu0 0
  %1620 = vmatpush1.bf16.msra.mxu0 0
  %1621 = vmatprep.subr.bf16.mxu0 0
  %1622 = vmatpush1.bf16.msra.mxu0 0
  %1623 = vmatprep.subr.bf16.mxu0 0
  %1624 = vmatpush1.bf16.msra.mxu0 0
  %1625 = vmatprep.subr.bf16.mxu0 0
  %1626 = vmatpush1.bf16.msra.mxu0 0
  %1627 = vmatprep.subr.bf16.mxu0 0
  %1628 = vmatpush1.bf16.msra.mxu0 0
  %1629 = vmatprep.subr.bf16.mxu0 0
  %1630 = vmatpush1.bf16.msra.mxu0 0
  %1631 = vmatprep.subr.bf16.mxu0 0
  %1632 = vmatpush1.bf16.msra.mxu0 0
  %1633 = vmatprep.subr.bf16.mxu0 0
  %1634 = vmatpush1.bf16.msra.mxu0 0
  %1635 = vmatprep.subr.bf16.mxu0 0
  %1636 = vmatpush1.bf16.msra.mxu0 0
  %1637 = vmatprep.subr.bf16.mxu0 0
  %1638 = vmatpush1.bf16.msra.mxu0 0
  %1639 = vmatprep.mubr.bf16.mxu0 0
  %1640 = vmatmul.mubr.bf16.gmra.mrb[0].mxu0 %v1605
  %v1641 = vpop.f32.mrb[0].mxu0
  %v1642 = vadd.f32 0.0, %v1641
  %v1643 = vpop.f32.mrb[0].mxu0
  %v1644 = vpop.f32.mrb[0].mxu0
  %v1645 = vpop.f32.mrb[0].mxu0
  %1646 = vdwg.mxu0
  %1648 = vrot.lane.b32.xlu0 %v1599, 101
  %v1649 = vpop.permute.xlu0 %1648
  %v1651 = vsel %vm43, %v1649, 0
  %1653 = vmatprep.subr.bf16.mxu0 0
  %1654 = vmatpush1.bf16.msra.mxu0 %v234
  %1655 = vmatprep.subr.bf16.mxu0 0
  %1656 = vmatpush1.bf16.msra.mxu0 0
  %1657 = vmatprep.subr.bf16.mxu0 0
  %1658 = vmatpush1.bf16.msra.mxu0 0
  %1659 = vmatprep.subr.bf16.mxu0 0
  %1660 = vmatpush1.bf16.msra.mxu0 0
  %1661 = vmatprep.subr.bf16.mxu0 0
  %1662 = vmatpush1.bf16.msra.mxu0 0
  %1663 = vmatprep.subr.bf16.mxu0 0
  %1664 = vmatpush1.bf16.msra.mxu0 0
  %1665 = vmatprep.subr.bf16.mxu0 0
  %1666 = vmatpush1.bf16.msra.mxu0 0
  %1667 = vmatprep.subr.bf16.mxu0 0
  %1668 = vmatpush1.bf16.msra.mxu0 0
  %1669 = vmatprep.subr.bf16.mxu0 0
  %1670 = vmatpush1.bf16.msra.mxu0 0
  %1671 = vmatprep.subr.bf16.mxu0 0
  %1672 = vmatpush1.bf16.msra.mxu0 0
  %1673 = vmatprep.subr.bf16.mxu0 0
  %1674 = vmatpush1.bf16.msra.mxu0 0
  %1675 = vmatprep.subr.bf16.mxu0 0
  %1676 = vmatpush1.bf16.msra.mxu0 0
  %1677 = vmatprep.subr.bf16.mxu0 0
  %1678 = vmatpush1.bf16.msra.mxu0 0
  %1679 = vmatprep.subr.bf16.mxu0 0
  %1680 = vmatpush1.bf16.msra.mxu0 0
  %1681 = vmatprep.subr.bf16.mxu0 0
  %1682 = vmatpush1.bf16.msra.mxu0 0
  %1683 = vmatprep.subr.bf16.mxu0 0
  %1684 = vmatpush1.bf16.msra.mxu0 0
  %1685 = vmatprep.mubr.bf16.mxu0 0
  %1686 = vmatmul.mubr.bf16.gmra.mrb[0].mxu0 %v1651
  %v1687 = vpop.f32.mrb[0].mxu0
  %v1688 = vadd.f32 %v1642, %v1687
  %v1689 = vpop.f32.mrb[0].mxu0
  %v1690 = vpop.f32.mrb[0].mxu0
  %v1691 = vpop.f32.mrb[0].mxu0
  %1692 = vdwg.mxu0
  %v1693 = vadd.f32 %v1688, %v279
  %v1694 = vxor.u32 %v1693, 2147483648
  %v1695 = vmul.f32 %v1694, 1.442695
  %v1696 = vpow.pop %v1695
  %v1697 = vadd.f32 %v1696, 1.0
  %v1698 = vrcp.pop %v1697
  %v1699 = vmul.f32 1.0, %v1698
  %v1700 = vtanh.pop %v1693
  %v1701 = vmul.f32 %v1699, %v1476
  %1703 = vrot.lane.b32.xlu0 %v1700, 110
  %v1704 = vpop.permute.xlu0 %1703
  %v1706 = vmul.f32 %v1699, %v1704
  %1708 = vrot.lane.b32.xlu0 %v1706, 9
  %v1709 = vpop.permute.xlu0 %1708
  %v1711 = vadd.f32 %v1701, %v1709
  %v1712 = vtanh.pop %v1711
  %1714 = vrot.lane.b32.xlu0 %v1712, 18
  %v1715 = vpop.permute.xlu0 %1714
  %v1717 = vmul.f32 %v1699, %v1715
  %1719 = vrot.lane.b32.xlu0 %v1717, 101
  %v1720 = vpop.permute.xlu0 %1719
  %1722 = vst.msk [vmem:[#allocation2 + $0x6] sm:$0x1] %vm309, %v1720
  %1723 = vst.msk [vmem:[%s311 + $0x5] sm:$0x2] %vm312, %v1720
  %s1724 = scalar_lea.vmem %s0, 7
  %v1725 = vld [vmem:[%s1724] sm:$0x1]
  %1726 = vmatprep.subr.bf16.mxu0 0
  %1727 = vmatpush1.bf16.msra.mxu0 %v52
  %1728 = vmatprep.subr.bf16.mxu0 0
  %1729 = vmatpush1.bf16.msra.mxu0 0
  %1730 = vmatprep.subr.bf16.mxu0 0
  %1731 = vmatpush1.bf16.msra.mxu0 0
  %1732 = vmatprep.subr.bf16.mxu0 0
  %1733 = vmatpush1.bf16.msra.mxu0 0
  %1734 = vmatprep.subr.bf16.mxu0 0
  %1735 = vmatpush1.bf16.msra.mxu0 0
  %1736 = vmatprep.subr.bf16.mxu0 0
  %1737 = vmatpush1.bf16.msra.mxu0 0
  %1738 = vmatprep.subr.bf16.mxu0 0
  %1739 = vmatpush1.bf16.msra.mxu0 0
  %1740 = vmatprep.subr.bf16.mxu0 0
  %1741 = vmatpush1.bf16.msra.mxu0 0
  %1742 = vmatprep.subr.bf16.mxu0 0
  %1743 = vmatpush1.bf16.msra.mxu0 0
  %1744 = vmatprep.subr.bf16.mxu0 0
  %1745 = vmatpush1.bf16.msra.mxu0 0
  %1746 = vmatprep.subr.bf16.mxu0 0
  %1747 = vmatpush1.bf16.msra.mxu0 0
  %1748 = vmatprep.subr.bf16.mxu0 0
  %1749 = vmatpush1.bf16.msra.mxu0 0
  %1750 = vmatprep.subr.bf16.mxu0 0
  %1751 = vmatpush1.bf16.msra.mxu0 0
  %1752 = vmatprep.subr.bf16.mxu0 0
  %1753 = vmatpush1.bf16.msra.mxu0 0
  %1754 = vmatprep.subr.bf16.mxu0 0
  %1755 = vmatpush1.bf16.msra.mxu0 0
  %1756 = vmatprep.subr.bf16.mxu0 0
  %1757 = vmatpush1.bf16.msra.mxu0 0
  %1758 = vmatprep.mubr.bf16.mxu0 0
  %1759 = vmatmul.mubr.bf16.gmra.mrb[0].mxu0 %v1651
  %v1760 = vpop.f32.mrb[0].mxu0
  %v1761 = vadd.f32 0.0, %v1760
  %v1762 = vpop.f32.mrb[0].mxu0
  %v1763 = vpop.f32.mrb[0].mxu0
  %v1764 = vpop.f32.mrb[0].mxu0
  %1765 = vdwg.mxu0
  %v1767 = vsel %vm100, %v1725, 0
  %1769 = vmatprep.subr.bf16.mxu0 0
  %1770 = vmatpush1.bf16.msra.mxu0 %v98
  %1771 = vmatprep.subr.bf16.mxu0 0
  %1772 = vmatpush1.bf16.msra.mxu0 0
  %1773 = vmatprep.subr.bf16.mxu0 0
  %1774 = vmatpush1.bf16.msra.mxu0 0
  %1775 = vmatprep.subr.bf16.mxu0 0
  %1776 = vmatpush1.bf16.msra.mxu0 0
  %1777 = vmatprep.subr.bf16.mxu0 0
  %1778 = vmatpush1.bf16.msra.mxu0 0
  %1779 = vmatprep.subr.bf16.mxu0 0
  %1780 = vmatpush1.bf16.msra.mxu0 0
  %1781 = vmatprep.subr.bf16.mxu0 0
  %1782 = vmatpush1.bf16.msra.mxu0 0
  %1783 = vmatprep.subr.bf16.mxu0 0
  %1784 = vmatpush1.bf16.msra.mxu0 0
  %1785 = vmatprep.subr.bf16.mxu0 0
  %1786 = vmatpush1.bf16.msra.mxu0 0
  %1787 = vmatprep.subr.bf16.mxu0 0
  %1788 = vmatpush1.bf16.msra.mxu0 0
  %1789 = vmatprep.subr.bf16.mxu0 0
  %1790 = vmatpush1.bf16.msra.mxu0 0
  %1791 = vmatprep.subr.bf16.mxu0 0
  %1792 = vmatpush1.bf16.msra.mxu0 0
  %1793 = vmatprep.subr.bf16.mxu0 0
  %1794 = vmatpush1.bf16.msra.mxu0 0
  %1795 = vmatprep.subr.bf16.mxu0 0
  %1796 = vmatpush1.bf16.msra.mxu0 0
  %1797 = vmatprep.subr.bf16.mxu0 0
  %1798 = vmatpush1.bf16.msra.mxu0 0
  %1799 = vmatprep.subr.bf16.mxu0 0
  %1800 = vmatpush1.bf16.msra.mxu0 0
  %1801 = vmatprep.mubr.bf16.mxu0 0
  %1802 = vmatmul.mubr.bf16.gmra.mrb[0].mxu0 %v1767
  %v1803 = vpop.f32.mrb[0].mxu0
  %v1804 = vadd.f32 %v1761, %v1803
  %v1805 = vpop.f32.mrb[0].mxu0
  %v1806 = vpop.f32.mrb[0].mxu0
  %v1807 = vpop.f32.mrb[0].mxu0
  %1808 = vdwg.mxu0
  %v1809 = vadd.f32 %v1804, %v147
  %v1810 = vxor.u32 %v1809, 2147483648
  %v1811 = vmul.f32 %v1810, 1.442695
  %v1812 = vpow.pop %v1811
  %v1813 = vadd.f32 %v1812, 1.0
  %v1814 = vrcp.pop %v1813
  %v1815 = vmul.f32 1.0, %v1814
  %v1816 = vtanh.pop %v1809
  %v1817 = vmul.f32 %v1815, %v1592
  %1819 = vrot.lane.b32.xlu0 %v1816, 110
  %v1820 = vpop.permute.xlu0 %1819
  %v1822 = vmul.f32 %v1815, %v1820
  %1824 = vrot.lane.b32.xlu0 %v1822, 9
  %v1825 = vpop.permute.xlu0 %1824
  %v1827 = vadd.f32 %v1817, %v1825
  %v1828 = vtanh.pop %v1827
  %1830 = vrot.lane.b32.xlu0 %v1828, 18
  %v1831 = vpop.permute.xlu0 %1830
  %v1833 = vmul.f32 %v1815, %v1831
  %v1834 = vpack.c.bf16 %v1833, %v1833
  %v1835 = vpack.c.bf16 %v1717, %v1717
  %1837 = vrot.lane.b32.xlu0 %v1835, 101
  %v1838 = vpop.permute.xlu0 %1837
  %v1840 = vsel %vm43, %v1838, 0
  %1842 = vmatprep.subr.bf16.mxu0 0
  %1843 = vmatpush1.bf16.msra.mxu0 %v180
  %1844 = vmatprep.subr.bf16.mxu0 0
  %1845 = vmatpush1.bf16.msra.mxu0 0
  %1846 = vmatprep.subr.bf16.mxu0 0
  %1847 = vmatpush1.bf16.msra.mxu0 0
  %1848 = vmatprep.subr.bf16.mxu0 0
  %1849 = vmatpush1.bf16.msra.mxu0 0
  %1850 = vmatprep.subr.bf16.mxu0 0
  %1851 = vmatpush1.bf16.msra.mxu0 0
  %1852 = vmatprep.subr.bf16.mxu0 0
  %1853 = vmatpush1.bf16.msra.mxu0 0
  %1854 = vmatprep.subr.bf16.mxu0 0
  %1855 = vmatpush1.bf16.msra.mxu0 0
  %1856 = vmatprep.subr.bf16.mxu0 0
  %1857 = vmatpush1.bf16.msra.mxu0 0
  %1858 = vmatprep.subr.bf16.mxu0 0
  %1859 = vmatpush1.bf16.msra.mxu0 0
  %1860 = vmatprep.subr.bf16.mxu0 0
  %1861 = vmatpush1.bf16.msra.mxu0 0
  %1862 = vmatprep.subr.bf16.mxu0 0
  %1863 = vmatpush1.bf16.msra.mxu0 0
  %1864 = vmatprep.subr.bf16.mxu0 0
  %1865 = vmatpush1.bf16.msra.mxu0 0
  %1866 = vmatprep.subr.bf16.mxu0 0
  %1867 = vmatpush1.bf16.msra.mxu0 0
  %1868 = vmatprep.subr.bf16.mxu0 0
  %1869 = vmatpush1.bf16.msra.mxu0 0
  %1870 = vmatprep.subr.bf16.mxu0 0
  %1871 = vmatpush1.bf16.msra.mxu0 0
  %1872 = vmatprep.subr.bf16.mxu0 0
  %1873 = vmatpush1.bf16.msra.mxu0 0
  %1874 = vmatprep.mubr.bf16.mxu0 0
  %1875 = vmatmul.mubr.bf16.gmra.mrb[0].mxu0 %v1840
  %v1876 = vpop.f32.mrb[0].mxu0
  %v1877 = vadd.f32 0.0, %v1876
  %v1878 = vpop.f32.mrb[0].mxu0
  %v1879 = vpop.f32.mrb[0].mxu0
  %v1880 = vpop.f32.mrb[0].mxu0
  %1881 = vdwg.mxu0
  %1883 = vrot.lane.b32.xlu0 %v1834, 101
  %v1884 = vpop.permute.xlu0 %1883
  %v1886 = vsel %vm43, %v1884, 0
  %1888 = vmatprep.subr.bf16.mxu0 0
  %1889 = vmatpush1.bf16.msra.mxu0 %v234
  %1890 = vmatprep.subr.bf16.mxu0 0
  %1891 = vmatpush1.bf16.msra.mxu0 0
  %1892 = vmatprep.subr.bf16.mxu0 0
  %1893 = vmatpush1.bf16.msra.mxu0 0
  %1894 = vmatprep.subr.bf16.mxu0 0
  %1895 = vmatpush1.bf16.msra.mxu0 0
  %1896 = vmatprep.subr.bf16.mxu0 0
  %1897 = vmatpush1.bf16.msra.mxu0 0
  %1898 = vmatprep.subr.bf16.mxu0 0
  %1899 = vmatpush1.bf16.msra.mxu0 0
  %1900 = vmatprep.subr.bf16.mxu0 0
  %1901 = vmatpush1.bf16.msra.mxu0 0
  %1902 = vmatprep.subr.bf16.mxu0 0
  %1903 = vmatpush1.bf16.msra.mxu0 0
  %1904 = vmatprep.subr.bf16.mxu0 0
  %1905 = vmatpush1.bf16.msra.mxu0 0
  %1906 = vmatprep.subr.bf16.mxu0 0
  %1907 = vmatpush1.bf16.msra.mxu0 0
  %1908 = vmatprep.subr.bf16.mxu0 0
  %1909 = vmatpush1.bf16.msra.mxu0 0
  %1910 = vmatprep.subr.bf16.mxu0 0
  %1911 = vmatpush1.bf16.msra.mxu0 0
  %1912 = vmatprep.subr.bf16.mxu0 0
  %1913 = vmatpush1.bf16.msra.mxu0 0
  %1914 = vmatprep.subr.bf16.mxu0 0
  %1915 = vmatpush1.bf16.msra.mxu0 0
  %1916 = vmatprep.subr.bf16.mxu0 0
  %1917 = vmatpush1.bf16.msra.mxu0 0
  %1918 = vmatprep.subr.bf16.mxu0 0
  %1919 = vmatpush1.bf16.msra.mxu0 0
  %1920 = vmatprep.mubr.bf16.mxu0 0
  %1921 = vmatmul.mubr.bf16.gmra.mrb[0].mxu0 %v1886
  %v1922 = vpop.f32.mrb[0].mxu0
  %v1923 = vadd.f32 %v1877, %v1922
  %v1924 = vpop.f32.mrb[0].mxu0
  %v1925 = vpop.f32.mrb[0].mxu0
  %v1926 = vpop.f32.mrb[0].mxu0
  %1927 = vdwg.mxu0
  %v1928 = vadd.f32 %v1923, %v279
  %v1929 = vxor.u32 %v1928, 2147483648
  %v1930 = vmul.f32 %v1929, 1.442695
  %v1931 = vpow.pop %v1930
  %v1932 = vadd.f32 %v1931, 1.0
  %v1933 = vrcp.pop %v1932
  %v1934 = vmul.f32 1.0, %v1933
  %v1935 = vtanh.pop %v1928
  %v1936 = vmul.f32 %v1934, %v1711
  %1938 = vrot.lane.b32.xlu0 %v1935, 110
  %v1939 = vpop.permute.xlu0 %1938
  %v1941 = vmul.f32 %v1934, %v1939
  %1943 = vrot.lane.b32.xlu0 %v1941, 9
  %v1944 = vpop.permute.xlu0 %1943
  %v1946 = vadd.f32 %v1936, %v1944
  %v1947 = vtanh.pop %v1946
  %1949 = vrot.lane.b32.xlu0 %v1947, 18
  %v1950 = vpop.permute.xlu0 %1949
  %v1952 = vmul.f32 %v1934, %v1950
  %1954 = vrot.lane.b32.xlu0 %v1952, 101
  %v1955 = vpop.permute.xlu0 %1954
  %1957 = vst.msk [vmem:[#allocation2 + $0x7] sm:$0x1] %vm309, %v1955
  %1958 = vst.msk [vmem:[%s311 + $0x6] sm:$0x2] %vm312, %v1955
  %s1959 = scalar_lea.vmem %s0, 8
  %v1960 = vld [vmem:[%s1959] sm:$0x1]
  %1961 = vmatprep.subr.bf16.mxu0 0
  %1962 = vmatpush1.bf16.msra.mxu0 %v52
  %1963 = vmatprep.subr.bf16.mxu0 0
  %1964 = vmatpush1.bf16.msra.mxu0 0
  %1965 = vmatprep.subr.bf16.mxu0 0
  %1966 = vmatpush1.bf16.msra.mxu0 0
  %1967 = vmatprep.subr.bf16.mxu0 0
  %1968 = vmatpush1.bf16.msra.mxu0 0
  %1969 = vmatprep.subr.bf16.mxu0 0
  %1970 = vmatpush1.bf16.msra.mxu0 0
  %1971 = vmatprep.subr.bf16.mxu0 0
  %1972 = vmatpush1.bf16.msra.mxu0 0
  %1973 = vmatprep.subr.bf16.mxu0 0
  %1974 = vmatpush1.bf16.msra.mxu0 0
  %1975 = vmatprep.subr.bf16.mxu0 0
  %1976 = vmatpush1.bf16.msra.mxu0 0
  %1977 = vmatprep.subr.bf16.mxu0 0
  %1978 = vmatpush1.bf16.msra.mxu0 0
  %1979 = vmatprep.subr.bf16.mxu0 0
  %1980 = vmatpush1.bf16.msra.mxu0 0
  %1981 = vmatprep.subr.bf16.mxu0 0
  %1982 = vmatpush1.bf16.msra.mxu0 0
  %1983 = vmatprep.subr.bf16.mxu0 0
  %1984 = vmatpush1.bf16.msra.mxu0 0
  %1985 = vmatprep.subr.bf16.mxu0 0
  %1986 = vmatpush1.bf16.msra.mxu0 0
  %1987 = vmatprep.subr.bf16.mxu0 0
  %1988 = vmatpush1.bf16.msra.mxu0 0
  %1989 = vmatprep.subr.bf16.mxu0 0
  %1990 = vmatpush1.bf16.msra.mxu0 0
  %1991 = vmatprep.subr.bf16.mxu0 0
  %1992 = vmatpush1.bf16.msra.mxu0 0
  %1993 = vmatprep.mubr.bf16.mxu0 0
  %1994 = vmatmul.mubr.bf16.gmra.mrb[0].mxu0 %v1886
  %v1995 = vpop.f32.mrb[0].mxu0
  %v1996 = vadd.f32 0.0, %v1995
  %v1997 = vpop.f32.mrb[0].mxu0
  %v1998 = vpop.f32.mrb[0].mxu0
  %v1999 = vpop.f32.mrb[0].mxu0
  %2000 = vdwg.mxu0
  %v2002 = vsel %vm100, %v1960, 0
  %2004 = vmatprep.subr.bf16.mxu0 0
  %2005 = vmatpush1.bf16.msra.mxu0 %v98
  %2006 = vmatprep.subr.bf16.mxu0 0
  %2007 = vmatpush1.bf16.msra.mxu0 0
  %2008 = vmatprep.subr.bf16.mxu0 0
  %2009 = vmatpush1.bf16.msra.mxu0 0
  %2010 = vmatprep.subr.bf16.mxu0 0
  %2011 = vmatpush1.bf16.msra.mxu0 0
  %2012 = vmatprep.subr.bf16.mxu0 0
  %2013 = vmatpush1.bf16.msra.mxu0 0
  %2014 = vmatprep.subr.bf16.mxu0 0
  %2015 = vmatpush1.bf16.msra.mxu0 0
  %2016 = vmatprep.subr.bf16.mxu0 0
  %2017 = vmatpush1.bf16.msra.mxu0 0
  %2018 = vmatprep.subr.bf16.mxu0 0
  %2019 = vmatpush1.bf16.msra.mxu0 0
  %2020 = vmatprep.subr.bf16.mxu0 0
  %2021 = vmatpush1.bf16.msra.mxu0 0
  %2022 = vmatprep.subr.bf16.mxu0 0
  %2023 = vmatpush1.bf16.msra.mxu0 0
  %2024 = vmatprep.subr.bf16.mxu0 0
  %2025 = vmatpush1.bf16.msra.mxu0 0
  %2026 = vmatprep.subr.bf16.mxu0 0
  %2027 = vmatpush1.bf16.msra.mxu0 0
  %2028 = vmatprep.subr.bf16.mxu0 0
  %2029 = vmatpush1.bf16.msra.mxu0 0
  %2030 = vmatprep.subr.bf16.mxu0 0
  %2031 = vmatpush1.bf16.msra.mxu0 0
  %2032 = vmatprep.subr.bf16.mxu0 0
  %2033 = vmatpush1.bf16.msra.mxu0 0
  %2034 = vmatprep.subr.bf16.mxu0 0
  %2035 = vmatpush1.bf16.msra.mxu0 0
  %2036 = vmatprep.mubr.bf16.mxu0 0
  %2037 = vmatmul.mubr.bf16.gmra.mrb[0].mxu0 %v2002
  %v2038 = vpop.f32.mrb[0].mxu0
  %v2039 = vadd.f32 %v1996, %v2038
  %v2040 = vpop.f32.mrb[0].mxu0
  %v2041 = vpop.f32.mrb[0].mxu0
  %v2042 = vpop.f32.mrb[0].mxu0
  %2043 = vdwg.mxu0
  %v2044 = vadd.f32 %v2039, %v147
  %v2045 = vxor.u32 %v2044, 2147483648
  %v2046 = vmul.f32 %v2045, 1.442695
  %v2047 = vpow.pop %v2046
  %v2048 = vadd.f32 %v2047, 1.0
  %v2049 = vrcp.pop %v2048
  %v2050 = vmul.f32 1.0, %v2049
  %v2051 = vtanh.pop %v2044
  %v2052 = vmul.f32 %v2050, %v1827
  %2054 = vrot.lane.b32.xlu0 %v2051, 110
  %v2055 = vpop.permute.xlu0 %2054
  %v2057 = vmul.f32 %v2050, %v2055
  %2059 = vrot.lane.b32.xlu0 %v2057, 9
  %v2060 = vpop.permute.xlu0 %2059
  %v2062 = vadd.f32 %v2052, %v2060
  %v2063 = vtanh.pop %v2062
  %2065 = vrot.lane.b32.xlu0 %v2063, 18
  %v2066 = vpop.permute.xlu0 %2065
  %v2068 = vmul.f32 %v2050, %v2066
  %v2069 = vpack.c.bf16 %v2068, %v2068
  %v2070 = vpack.c.bf16 %v1952, %v1952
  %2072 = vrot.lane.b32.xlu0 %v2070, 101
  %v2073 = vpop.permute.xlu0 %2072
  %v2075 = vsel %vm43, %v2073, 0
  %2077 = vmatprep.subr.bf16.mxu0 0
  %2078 = vmatpush1.bf16.msra.mxu0 %v180
  %2079 = vmatprep.subr.bf16.mxu0 0
  %2080 = vmatpush1.bf16.msra.mxu0 0
  %2081 = vmatprep.subr.bf16.mxu0 0
  %2082 = vmatpush1.bf16.msra.mxu0 0
  %2083 = vmatprep.subr.bf16.mxu0 0
  %2084 = vmatpush1.bf16.msra.mxu0 0
  %2085 = vmatprep.subr.bf16.mxu0 0
  %2086 = vmatpush1.bf16.msra.mxu0 0
  %2087 = vmatprep.subr.bf16.mxu0 0
  %2088 = vmatpush1.bf16.msra.mxu0 0
  %2089 = vmatprep.subr.bf16.mxu0 0
  %2090 = vmatpush1.bf16.msra.mxu0 0
  %2091 = vmatprep.subr.bf16.mxu0 0
  %2092 = vmatpush1.bf16.msra.mxu0 0
  %2093 = vmatprep.subr.bf16.mxu0 0
  %2094 = vmatpush1.bf16.msra.mxu0 0
  %2095 = vmatprep.subr.bf16.mxu0 0
  %2096 = vmatpush1.bf16.msra.mxu0 0
  %2097 = vmatprep.subr.bf16.mxu0 0
  %2098 = vmatpush1.bf16.msra.mxu0 0
  %2099 = vmatprep.subr.bf16.mxu0 0
  %2100 = vmatpush1.bf16.msra.mxu0 0
  %2101 = vmatprep.subr.bf16.mxu0 0
  %2102 = vmatpush1.bf16.msra.mxu0 0
  %2103 = vmatprep.subr.bf16.mxu0 0
  %2104 = vmatpush1.bf16.msra.mxu0 0
  %2105 = vmatprep.subr.bf16.mxu0 0
  %2106 = vmatpush1.bf16.msra.mxu0 0
  %2107 = vmatprep.subr.bf16.mxu0 0
  %2108 = vmatpush1.bf16.msra.mxu0 0
  %2109 = vmatprep.mubr.bf16.mxu0 0
  %2110 = vmatmul.mubr.bf16.gmra.mrb[0].mxu0 %v2075
  %v2111 = vpop.f32.mrb[0].mxu0
  %v2112 = vadd.f32 0.0, %v2111
  %v2113 = vpop.f32.mrb[0].mxu0
  %v2114 = vpop.f32.mrb[0].mxu0
  %v2115 = vpop.f32.mrb[0].mxu0
  %2116 = vdwg.mxu0
  %2118 = vrot.lane.b32.xlu0 %v2069, 101
  %v2119 = vpop.permute.xlu0 %2118
  %v2121 = vsel %vm43, %v2119, 0
  %2123 = vmatprep.subr.bf16.mxu0 0
  %2124 = vmatpush1.bf16.msra.mxu0 %v234
  %2125 = vmatprep.subr.bf16.mxu0 0
  %2126 = vmatpush1.bf16.msra.mxu0 0
  %2127 = vmatprep.subr.bf16.mxu0 0
  %2128 = vmatpush1.bf16.msra.mxu0 0
  %2129 = vmatprep.subr.bf16.mxu0 0
  %2130 = vmatpush1.bf16.msra.mxu0 0
  %2131 = vmatprep.subr.bf16.mxu0 0
  %2132 = vmatpush1.bf16.msra.mxu0 0
  %2133 = vmatprep.subr.bf16.mxu0 0
  %2134 = vmatpush1.bf16.msra.mxu0 0
  %2135 = vmatprep.subr.bf16.mxu0 0
  %2136 = vmatpush1.bf16.msra.mxu0 0
  %2137 = vmatprep.subr.bf16.mxu0 0
  %2138 = vmatpush1.bf16.msra.mxu0 0
  %2139 = vmatprep.subr.bf16.mxu0 0
  %2140 = vmatpush1.bf16.msra.mxu0 0
  %2141 = vmatprep.subr.bf16.mxu0 0
  %2142 = vmatpush1.bf16.msra.mxu0 0
  %2143 = vmatprep.subr.bf16.mxu0 0
  %2144 = vmatpush1.bf16.msra.mxu0 0
  %2145 = vmatprep.subr.bf16.mxu0 0
  %2146 = vmatpush1.bf16.msra.mxu0 0
  %2147 = vmatprep.subr.bf16.mxu0 0
  %2148 = vmatpush1.bf16.msra.mxu0 0
  %2149 = vmatprep.subr.bf16.mxu0 0
  %2150 = vmatpush1.bf16.msra.mxu0 0
  %2151 = vmatprep.subr.bf16.mxu0 0
  %2152 = vmatpush1.bf16.msra.mxu0 0
  %2153 = vmatprep.subr.bf16.mxu0 0
  %2154 = vmatpush1.bf16.msra.mxu0 0
  %2155 = vmatprep.mubr.bf16.mxu0 0
  %2156 = vmatmul.mubr.bf16.gmra.mrb[0].mxu0 %v2121
  %v2157 = vpop.f32.mrb[0].mxu0
  %v2158 = vadd.f32 %v2112, %v2157
  %v2159 = vpop.f32.mrb[0].mxu0
  %v2160 = vpop.f32.mrb[0].mxu0
  %v2161 = vpop.f32.mrb[0].mxu0
  %2162 = vdwg.mxu0
  %v2163 = vadd.f32 %v2158, %v279
  %v2164 = vxor.u32 %v2163, 2147483648
  %v2165 = vmul.f32 %v2164, 1.442695
  %v2166 = vpow.pop %v2165
  %v2167 = vadd.f32 %v2166, 1.0
  %v2168 = vrcp.pop %v2167
  %v2169 = vmul.f32 1.0, %v2168
  %v2170 = vtanh.pop %v2163
  %v2171 = vmul.f32 %v2169, %v1946
  %2173 = vrot.lane.b32.xlu0 %v2170, 110
  %v2174 = vpop.permute.xlu0 %2173
  %v2176 = vmul.f32 %v2169, %v2174
  %2178 = vrot.lane.b32.xlu0 %v2176, 9
  %v2179 = vpop.permute.xlu0 %2178
  %v2181 = vadd.f32 %v2171, %v2179
  %v2182 = vtanh.pop %v2181
  %2184 = vrot.lane.b32.xlu0 %v2182, 18
  %v2185 = vpop.permute.xlu0 %2184
  %v2187 = vmul.f32 %v2169, %v2185
  %2189 = vrot.lane.b32.xlu0 %v2187, 101
  %v2190 = vpop.permute.xlu0 %2189
  %2192 = vst.msk [vmem:[#allocation2 + $0x8] sm:$0x1] %vm309, %v2190
  %2193 = vst.msk [vmem:[%s311 + $0x7] sm:$0x2] %vm312, %v2190
  %s2194 = scalar_lea.vmem %s0, 9
  %v2195 = vld [vmem:[%s2194] sm:$0x1]
  %2196 = vmatprep.subr.bf16.mxu0 0
  %2197 = vmatpush1.bf16.msra.mxu0 %v52
  %2198 = vmatprep.subr.bf16.mxu0 0
  %2199 = vmatpush1.bf16.msra.mxu0 0
  %2200 = vmatprep.subr.bf16.mxu0 0
  %2201 = vmatpush1.bf16.msra.mxu0 0
  %2202 = vmatprep.subr.bf16.mxu0 0
  %2203 = vmatpush1.bf16.msra.mxu0 0
  %2204 = vmatprep.subr.bf16.mxu0 0
  %2205 = vmatpush1.bf16.msra.mxu0 0
  %2206 = vmatprep.subr.bf16.mxu0 0
  %2207 = vmatpush1.bf16.msra.mxu0 0
  %2208 = vmatprep.subr.bf16.mxu0 0
  %2209 = vmatpush1.bf16.msra.mxu0 0
  %2210 = vmatprep.subr.bf16.mxu0 0
  %2211 = vmatpush1.bf16.msra.mxu0 0
  %2212 = vmatprep.subr.bf16.mxu0 0
  %2213 = vmatpush1.bf16.msra.mxu0 0
  %2214 = vmatprep.subr.bf16.mxu0 0
  %2215 = vmatpush1.bf16.msra.mxu0 0
  %2216 = vmatprep.subr.bf16.mxu0 0
  %2217 = vmatpush1.bf16.msra.mxu0 0
  %2218 = vmatprep.subr.bf16.mxu0 0
  %2219 = vmatpush1.bf16.msra.mxu0 0
  %2220 = vmatprep.subr.bf16.mxu0 0
  %2221 = vmatpush1.bf16.msra.mxu0 0
  %2222 = vmatprep.subr.bf16.mxu0 0
  %2223 = vmatpush1.bf16.msra.mxu0 0
  %2224 = vmatprep.subr.bf16.mxu0 0
  %2225 = vmatpush1.bf16.msra.mxu0 0
  %2226 = vmatprep.subr.bf16.mxu0 0
  %2227 = vmatpush1.bf16.msra.mxu0 0
  %2228 = vmatprep.mubr.bf16.mxu0 0
  %2229 = vmatmul.mubr.bf16.gmra.mrb[0].mxu0 %v2121
  %v2230 = vpop.f32.mrb[0].mxu0
  %v2231 = vadd.f32 0.0, %v2230
  %v2232 = vpop.f32.mrb[0].mxu0
  %v2233 = vpop.f32.mrb[0].mxu0
  %v2234 = vpop.f32.mrb[0].mxu0
  %2235 = vdwg.mxu0
  %v2237 = vsel %vm100, %v2195, 0
  %2239 = vmatprep.subr.bf16.mxu0 0
  %2240 = vmatpush1.bf16.msra.mxu0 %v98
  %2241 = vmatprep.subr.bf16.mxu0 0
  %2242 = vmatpush1.bf16.msra.mxu0 0
  %2243 = vmatprep.subr.bf16.mxu0 0
  %2244 = vmatpush1.bf16.msra.mxu0 0
  %2245 = vmatprep.subr.bf16.mxu0 0
  %2246 = vmatpush1.bf16.msra.mxu0 0
  %2247 = vmatprep.subr.bf16.mxu0 0
  %2248 = vmatpush1.bf16.msra.mxu0 0
  %2249 = vmatprep.subr.bf16.mxu0 0
  %2250 = vmatpush1.bf16.msra.mxu0 0
  %2251 = vmatprep.subr.bf16.mxu0 0
  %2252 = vmatpush1.bf16.msra.mxu0 0
  %2253 = vmatprep.subr.bf16.mxu0 0
  %2254 = vmatpush1.bf16.msra.mxu0 0
  %2255 = vmatprep.subr.bf16.mxu0 0
  %2256 = vmatpush1.bf16.msra.mxu0 0
  %2257 = vmatprep.subr.bf16.mxu0 0
  %2258 = vmatpush1.bf16.msra.mxu0 0
  %2259 = vmatprep.subr.bf16.mxu0 0
  %2260 = vmatpush1.bf16.msra.mxu0 0
  %2261 = vmatprep.subr.bf16.mxu0 0
  %2262 = vmatpush1.bf16.msra.mxu0 0
  %2263 = vmatprep.subr.bf16.mxu0 0
  %2264 = vmatpush1.bf16.msra.mxu0 0
  %2265 = vmatprep.subr.bf16.mxu0 0
  %2266 = vmatpush1.bf16.msra.mxu0 0
  %2267 = vmatprep.subr.bf16.mxu0 0
  %2268 = vmatpush1.bf16.msra.mxu0 0
  %2269 = vmatprep.subr.bf16.mxu0 0
  %2270 = vmatpush1.bf16.msra.mxu0 0
  %2271 = vmatprep.mubr.bf16.mxu0 0
  %2272 = vmatmul.mubr.bf16.gmra.mrb[0].mxu0 %v2237
  %v2273 = vpop.f32.mrb[0].mxu0
  %v2274 = vadd.f32 %v2231, %v2273
  %v2275 = vpop.f32.mrb[0].mxu0
  %v2276 = vpop.f32.mrb[0].mxu0
  %v2277 = vpop.f32.mrb[0].mxu0
  %2278 = vdwg.mxu0
  %v2279 = vadd.f32 %v2274, %v147
  %v2280 = vxor.u32 %v2279, 2147483648
  %v2281 = vmul.f32 %v2280, 1.442695
  %v2282 = vpow.pop %v2281
  %v2283 = vadd.f32 %v2282, 1.0
  %v2284 = vrcp.pop %v2283
  %v2285 = vmul.f32 1.0, %v2284
  %v2286 = vtanh.pop %v2279
  %v2287 = vmul.f32 %v2285, %v2062
  %2289 = vrot.lane.b32.xlu0 %v2286, 110
  %v2290 = vpop.permute.xlu0 %2289
  %v2292 = vmul.f32 %v2285, %v2290
  %2294 = vrot.lane.b32.xlu0 %v2292, 9
  %v2295 = vpop.permute.xlu0 %2294
  %v2297 = vadd.f32 %v2287, %v2295
  %v2298 = vtanh.pop %v2297
  %2300 = vrot.lane.b32.xlu0 %v2298, 18
  %v2301 = vpop.permute.xlu0 %2300
  %v2303 = vmul.f32 %v2285, %v2301
  %v2304 = vpack.c.bf16 %v2303, %v2303
  %v2305 = vpack.c.bf16 %v2187, %v2187
  %2307 = vrot.lane.b32.xlu0 %v2305, 101
  %v2308 = vpop.permute.xlu0 %2307
  %v2310 = vsel %vm43, %v2308, 0
  %2312 = vmatprep.subr.bf16.mxu0 0
  %2313 = vmatpush1.bf16.msra.mxu0 %v180
  %2314 = vmatprep.subr.bf16.mxu0 0
  %2315 = vmatpush1.bf16.msra.mxu0 0
  %2316 = vmatprep.subr.bf16.mxu0 0
  %2317 = vmatpush1.bf16.msra.mxu0 0
  %2318 = vmatprep.subr.bf16.mxu0 0
  %2319 = vmatpush1.bf16.msra.mxu0 0
  %2320 = vmatprep.subr.bf16.mxu0 0
  %2321 = vmatpush1.bf16.msra.mxu0 0
  %2322 = vmatprep.subr.bf16.mxu0 0
  %2323 = vmatpush1.bf16.msra.mxu0 0
  %2324 = vmatprep.subr.bf16.mxu0 0
  %2325 = vmatpush1.bf16.msra.mxu0 0
  %2326 = vmatprep.subr.bf16.mxu0 0
  %2327 = vmatpush1.bf16.msra.mxu0 0
  %2328 = vmatprep.subr.bf16.mxu0 0
  %2329 = vmatpush1.bf16.msra.mxu0 0
  %2330 = vmatprep.subr.bf16.mxu0 0
  %2331 = vmatpush1.bf16.msra.mxu0 0
  %2332 = vmatprep.subr.bf16.mxu0 0
  %2333 = vmatpush1.bf16.msra.mxu0 0
  %2334 = vmatprep.subr.bf16.mxu0 0
  %2335 = vmatpush1.bf16.msra.mxu0 0
  %2336 = vmatprep.subr.bf16.mxu0 0
  %2337 = vmatpush1.bf16.msra.mxu0 0
  %2338 = vmatprep.subr.bf16.mxu0 0
  %2339 = vmatpush1.bf16.msra.mxu0 0
  %2340 = vmatprep.subr.bf16.mxu0 0
  %2341 = vmatpush1.bf16.msra.mxu0 0
  %2342 = vmatprep.subr.bf16.mxu0 0
  %2343 = vmatpush1.bf16.msra.mxu0 0
  %2344 = vmatprep.mubr.bf16.mxu0 0
  %2345 = vmatmul.mubr.bf16.gmra.mrb[0].mxu0 %v2310
  %v2346 = vpop.f32.mrb[0].mxu0
  %v2347 = vadd.f32 0.0, %v2346
  %v2348 = vpop.f32.mrb[0].mxu0
  %v2349 = vpop.f32.mrb[0].mxu0
  %v2350 = vpop.f32.mrb[0].mxu0
  %2351 = vdwg.mxu0
  %2353 = vrot.lane.b32.xlu0 %v2304, 101
  %v2354 = vpop.permute.xlu0 %2353
  %v2356 = vsel %vm43, %v2354, 0
  %2358 = vmatprep.subr.bf16.mxu0 0
  %2359 = vmatpush1.bf16.msra.mxu0 %v234
  %2360 = vmatprep.subr.bf16.mxu0 0
  %2361 = vmatpush1.bf16.msra.mxu0 0
  %2362 = vmatprep.subr.bf16.mxu0 0
  %2363 = vmatpush1.bf16.msra.mxu0 0
  %2364 = vmatprep.subr.bf16.mxu0 0
  %2365 = vmatpush1.bf16.msra.mxu0 0
  %2366 = vmatprep.subr.bf16.mxu0 0
  %2367 = vmatpush1.bf16.msra.mxu0 0
  %2368 = vmatprep.subr.bf16.mxu0 0
  %2369 = vmatpush1.bf16.msra.mxu0 0
  %2370 = vmatprep.subr.bf16.mxu0 0
  %2371 = vmatpush1.bf16.msra.mxu0 0
  %2372 = vmatprep.subr.bf16.mxu0 0
  %2373 = vmatpush1.bf16.msra.mxu0 0
  %2374 = vmatprep.subr.bf16.mxu0 0
  %2375 = vmatpush1.bf16.msra.mxu0 0
  %2376 = vmatprep.subr.bf16.mxu0 0
  %2377 = vmatpush1.bf16.msra.mxu0 0
  %2378 = vmatprep.subr.bf16.mxu0 0
  %2379 = vmatpush1.bf16.msra.mxu0 0
  %2380 = vmatprep.subr.bf16.mxu0 0
  %2381 = vmatpush1.bf16.msra.mxu0 0
  %2382 = vmatprep.subr.bf16.mxu0 0
  %2383 = vmatpush1.bf16.msra.mxu0 0
  %2384 = vmatprep.subr.bf16.mxu0 0
  %2385 = vmatpush1.bf16.msra.mxu0 0
  %2386 = vmatprep.subr.bf16.mxu0 0
  %2387 = vmatpush1.bf16.msra.mxu0 0
  %2388 = vmatprep.subr.bf16.mxu0 0
  %2389 = vmatpush1.bf16.msra.mxu0 0
  %2390 = vmatprep.mubr.bf16.mxu0 0
  %2391 = vmatmul.mubr.bf16.gmra.mrb[0].mxu0 %v2356
  %v2392 = vpop.f32.mrb[0].mxu0
  %v2393 = vadd.f32 %v2347, %v2392
  %v2394 = vpop.f32.mrb[0].mxu0
  %v2395 = vpop.f32.mrb[0].mxu0
  %v2396 = vpop.f32.mrb[0].mxu0
  %2397 = vdwg.mxu0
  %v2398 = vadd.f32 %v2393, %v279
  %v2399 = vxor.u32 %v2398, 2147483648
  %v2400 = vmul.f32 %v2399, 1.442695
  %v2401 = vpow.pop %v2400
  %v2402 = vadd.f32 %v2401, 1.0
  %v2403 = vrcp.pop %v2402
  %v2404 = vmul.f32 1.0, %v2403
  %v2405 = vtanh.pop %v2398
  %v2406 = vmul.f32 %v2404, %v2181
  %2408 = vrot.lane.b32.xlu0 %v2405, 110
  %v2409 = vpop.permute.xlu0 %2408
  %v2411 = vmul.f32 %v2404, %v2409
  %2413 = vrot.lane.b32.xlu0 %v2411, 9
  %v2414 = vpop.permute.xlu0 %2413
  %v2416 = vadd.f32 %v2406, %v2414
  %v2417 = vtanh.pop %v2416
  %2419 = vrot.lane.b32.xlu0 %v2417, 18
  %v2420 = vpop.permute.xlu0 %2419
  %v2422 = vmul.f32 %v2404, %v2420
  %2424 = vrot.lane.b32.xlu0 %v2422, 101
  %v2425 = vpop.permute.xlu0 %2424
  %2427 = vst.msk [vmem:[#allocation2 + $0x9] sm:$0x1] %vm309, %v2425
  %2428 = vst.msk [vmem:[%s311 + $0x8] sm:$0x2] %vm312, %v2425
  %v2429 = vld [vmem:[%s5] sm:$0xff]
  %v2430 = vld [vmem:[%s5 + $0x8] sm:$0xff]
  %v2431 = vld [vmem:[%s5 + $0x10] sm:$0xff]
  %v2432 = vld [vmem:[%s5 + $0x18] sm:$0xff]
  %v2433 = vld [vmem:[%s5 + $0x20] sm:$0xf]
  %v2434 = vld [vmem:[%s5 + $0x28] sm:$0xff]
  %v2435 = vld [vmem:[%s5 + $0x30] sm:$0xf]
  %v2436 = vld [vmem:[%s6] sm:$0x1]
  %v2437 = vld [vmem:[%s6 + $0x1] sm:$0x1]
  %v2438 = vld [vmem:[%s6 + $0x2] sm:$0x1]
  %v2439 = vld [vmem:[%s6 + $0x3] sm:$0x1]
  %v2440 = vld [vmem:[%s6 + $0x4] sm:$0x1]
  %v2441 = vld [vmem:[#allocation2] sm:$0xff]
  %v2442 = vld [vmem:[#allocation2 + $0x8] sm:$0x3]
  %v2443 = vsel %vm43, %v2441, -inf
  %2444 = vmax.xlane.f32.xlu0 %v2443
  %v2445 = vpop.xlane.xlu0 %2444
  %vm2446 = vcmask 66560
  %v2447 = vsel %vm2446, %v2442, -inf
  %2448 = vmax.xlane.f32.xlu0 %v2447
  %v2449 = vpop.xlane.xlu0 %2448
  %v2450 = vsub.f32 %v2441, %v2445
  %v2451 = vsub.f32 %v2442, %v2449
  %v2452 = vmul.f32 %v2450, 1.442695
  %v2453 = vpow.pop %v2452
  %v2454 = vmul.f32 %v2451, 1.442695
  %v2455 = vpow.pop %v2454
  %v2456 = vsel %vm43, %v2453, 0.0
  %2457 = vadd.xlane.f32.xlu0 %v2456
  %v2458 = vpop.xlane.xlu0 %2457
  %v2459 = vsel %vm2446, %v2455, 0.0
  %2460 = vadd.xlane.f32.xlu0 %v2459
  %v2461 = vpop.xlane.xlu0 %2460
  %v2462 = vrcp.pop %v2458
  %v2463 = vmul.f32 %v2453, %v2462
  %v2464 = vrcp.pop %v2461
  %v2465 = vmul.f32 %v2455, %v2464
  %v2466 = vld [vmem:[%s1] sm:$0xff]
  %v2467 = vld [vmem:[%s1 + $0x8] sm:$0x3]
  %2468 = vxpose.xlu0.b32.start [1/16] %v2463, 128
  %2469 = vxpose.xlu0.b32.cont [2/16] %v2465, 128
  %2470 = vxpose.xlu0.b32.cont [3/16] 0.0, 128
  %2471 = vxpose.xlu0.b32.cont [4/16] 0.0, 128
  %2472 = vxpose.xlu0.b32.cont [5/16] 0.0, 128
  %2473 = vxpose.xlu0.b32.cont [6/16] 0.0, 128
  %2474 = vxpose.xlu0.b32.cont [7/16] 0.0, 128
  %2475 = vxpose.xlu0.b32.cont [8/16] 0.0, 128
  %2476 = vxpose.xlu0.b32.cont [9/16] 0.0, 128
  %2477 = vxpose.xlu0.b32.cont [10/16] 0.0, 128
  %2478 = vxpose.xlu0.b32.cont [11/16] 0.0, 128
  %2479 = vxpose.xlu0.b32.cont [12/16] 0.0, 128
  %2480 = vxpose.xlu0.b32.cont [13/16] 0.0, 128
  %2481 = vxpose.xlu0.b32.cont [14/16] 0.0, 128
  %2482 = vxpose.xlu0.b32.cont [15/16] 0.0, 128
  %2483 = vxpose.xlu0.b32.end [16/16] 0.0, 128
  %v2484 = vpop.trf.xlu0
  %v2485 = vpop.trf.xlu0
  %v2486 = vpop.trf.xlu0
  %v2487 = vpop.trf.xlu0
  %v2488 = vpop.trf.xlu0
  %v2489 = vpop.trf.xlu0
  %v2490 = vpop.trf.xlu0
  %v2491 = vpop.trf.xlu0
  %v2492 = vpop.trf.xlu0
  %v2493 = vpop.trf.xlu0
  %v2494 = vpop.trf.xlu0
  %v2495 = vpop.trf.xlu0
  %v2496 = vpop.trf.xlu0
  %v2497 = vpop.trf.xlu0
  %v2498 = vpop.trf.xlu0
  %v2499 = vpop.trf.xlu0
  %vm2500 = vcmask 80896
  %v2502 = vsel %vm2500, %v2484, 0
  %vm2504 = vcmask 1041408
  %v2506 = vsel %vm2504, %v2467, 0
  %2508 = vmatprep.subr.mxu0 0.0
  %v2509 = vand.u32 %v2466, 4294901760
  %2510 = vmatpush1.msra.mxu0 %v2509
  %2511 = vmatprep.subr.mxu0 0.0
  %v2512 = vand.u32 %v2506, 4294901760
  %2513 = vmatpush1.msra.mxu0 %v2512
  %2514 = vmatprep.subr.mxu0 0.0
  %2515 = vmatpush1.msra.mxu0 0.0
  %2516 = vmatprep.subr.mxu0 0.0
  %2517 = vmatpush1.msra.mxu0 0.0
  %2518 = vmatprep.subr.mxu0 0.0
  %2519 = vmatpush1.msra.mxu0 0.0
  %2520 = vmatprep.subr.mxu0 0.0
  %2521 = vmatpush1.msra.mxu0 0.0
  %2522 = vmatprep.subr.mxu0 0.0
  %2523 = vmatpush1.msra.mxu0 0.0
  %2524 = vmatprep.subr.mxu0 0.0
  %2525 = vmatpush1.msra.mxu0 0.0
  %2526 = vmatprep.subr.mxu0 0.0
  %2527 = vmatpush1.msra.mxu0 0.0
  %2528 = vmatprep.subr.mxu0 0.0
  %2529 = vmatpush1.msra.mxu0 0.0
  %2530 = vmatprep.subr.mxu0 0.0
  %2531 = vmatpush1.msra.mxu0 0.0
  %2532 = vmatprep.subr.mxu0 0.0
  %2533 = vmatpush1.msra.mxu0 0.0
  %2534 = vmatprep.subr.mxu0 0.0
  %2535 = vmatpush1.msra.mxu0 0.0
  %2536 = vmatprep.subr.mxu0 0.0
  %2537 = vmatpush1.msra.mxu0 0.0
  %2538 = vmatprep.subr.mxu0 0.0
  %2539 = vmatpush1.msra.mxu0 0.0
  %2540 = vmatprep.subr.mxu0 0.0
  %2541 = vmatpush1.msra.mxu0 0.0
  %2542 = vmatprep.subr.mxu0 0.0
  %2543 = vmatpush1.msra.mxu0 0.0
  %2544 = vmatprep.subr.mxu0 0.0
  %2545 = vmatpush1.msra.mxu0 0.0
  %2546 = vmatprep.subr.mxu0 0.0
  %2547 = vmatpush1.msra.mxu0 0.0
  %2548 = vmatprep.subr.mxu0 0.0
  %2549 = vmatpush1.msra.mxu0 0.0
  %2550 = vmatprep.subr.mxu0 0.0
  %2551 = vmatpush1.msra.mxu0 0.0
  %2552 = vmatprep.subr.mxu0 0.0
  %2553 = vmatpush1.msra.mxu0 0.0
  %2554 = vmatprep.subr.mxu0 0.0
  %2555 = vmatpush1.msra.mxu0 0.0
  %2556 = vmatprep.subr.mxu0 0.0
  %2557 = vmatpush1.msra.mxu0 0.0
  %2558 = vmatprep.subr.mxu0 0.0
  %2559 = vmatpush1.msra.mxu0 0.0
  %2560 = vmatprep.subr.mxu0 0.0
  %2561 = vmatpush1.msra.mxu0 0.0
  %2562 = vmatprep.subr.mxu0 0.0
  %2563 = vmatpush1.msra.mxu0 0.0
  %2564 = vmatprep.subr.mxu0 0.0
  %2565 = vmatpush1.msra.mxu0 0.0
  %2566 = vmatprep.subr.mxu0 0.0
  %2567 = vmatpush1.msra.mxu0 0.0
  %2568 = vmatprep.subr.mxu0 0.0
  %2569 = vmatpush1.msra.mxu0 0.0
  %2570 = vmatprep.subr.mxu0 0.0
  %2571 = vmatpush1.msra.mxu0 0.0
  %2572 = vmatprep.subr.mxu0 0.0
  %2573 = vmatpush1.msra.mxu0 0.0
  %2574 = vmatprep.mubr.f32.mxu0 0.0
  %v2575 = vand.u32 %v2502, 4294901760
  %v2576 = vsub.f32 %v2502, %v2575
  %v2577 = vand.u32 %v2576, 4294901760
  %v2578 = vsub.f32 %v2576, %v2577
  %v2579 = vand.u32 %v2578, 4294901760
  %2580 = vmatmul.mubr.f32.gmra.mrb[0].mxu0 %v2579
  %v2581 = vpop.f32.mrb[0].mxu0
  %v2582 = vadd.f32 0.0, %v2581
  %v2583 = vpop.f32.mrb[0].mxu0
  %2584 = vdwg.mxu0
  %2585 = vmatprep.subr.mxu0 0.0
  %v2586 = vand.u32 %v2466, 4294901760
  %v2587 = vsub.f32 %v2466, %v2586
  %v2588 = vand.u32 %v2587, 4294901760
  %v2589 = vsub.f32 %v2587, %v2588
  %v2590 = vand.u32 %v2589, 4294901760
  %2591 = vmatpush1.msra.mxu0 %v2590
  %2592 = vmatprep.subr.mxu0 0.0
  %v2593 = vand.u32 %v2506, 4294901760
  %v2594 = vsub.f32 %v2506, %v2593
  %v2595 = vand.u32 %v2594, 4294901760
  %v2596 = vsub.f32 %v2594, %v2595
  %v2597 = vand.u32 %v2596, 4294901760
  %2598 = vmatpush1.msra.mxu0 %v2597
  %2599 = vmatprep.subr.mxu0 0.0
  %2600 = vmatpush1.msra.mxu0 0.0
  %2601 = vmatprep.subr.mxu0 0.0
  %2602 = vmatpush1.msra.mxu0 0.0
  %2603 = vmatprep.subr.mxu0 0.0
  %2604 = vmatpush1.msra.mxu0 0.0
  %2605 = vmatprep.subr.mxu0 0.0
  %2606 = vmatpush1.msra.mxu0 0.0
  %2607 = vmatprep.subr.mxu0 0.0
  %2608 = vmatpush1.msra.mxu0 0.0
  %2609 = vmatprep.subr.mxu0 0.0
  %2610 = vmatpush1.msra.mxu0 0.0
  %2611 = vmatprep.subr.mxu0 0.0
  %2612 = vmatpush1.msra.mxu0 0.0
  %2613 = vmatprep.subr.mxu0 0.0
  %2614 = vmatpush1.msra.mxu0 0.0
  %2615 = vmatprep.subr.mxu0 0.0
  %2616 = vmatpush1.msra.mxu0 0.0
  %2617 = vmatprep.subr.mxu0 0.0
  %2618 = vmatpush1.msra.mxu0 0.0
  %2619 = vmatprep.subr.mxu0 0.0
  %2620 = vmatpush1.msra.mxu0 0.0
  %2621 = vmatprep.subr.mxu0 0.0
  %2622 = vmatpush1.msra.mxu0 0.0
  %2623 = vmatprep.subr.mxu0 0.0
  %2624 = vmatpush1.msra.mxu0 0.0
  %2625 = vmatprep.subr.mxu0 0.0
  %2626 = vmatpush1.msra.mxu0 0.0
  %2627 = vmatprep.subr.mxu0 0.0
  %2628 = vmatpush1.msra.mxu0 0.0
  %2629 = vmatprep.subr.mxu0 0.0
  %2630 = vmatpush1.msra.mxu0 0.0
  %2631 = vmatprep.subr.mxu0 0.0
  %2632 = vmatpush1.msra.mxu0 0.0
  %2633 = vmatprep.subr.mxu0 0.0
  %2634 = vmatpush1.msra.mxu0 0.0
  %2635 = vmatprep.subr.mxu0 0.0
  %2636 = vmatpush1.msra.mxu0 0.0
  %2637 = vmatprep.subr.mxu0 0.0
  %2638 = vmatpush1.msra.mxu0 0.0
  %2639 = vmatprep.subr.mxu0 0.0
  %2640 = vmatpush1.msra.mxu0 0.0
  %2641 = vmatprep.subr.mxu0 0.0
  %2642 = vmatpush1.msra.mxu0 0.0
  %2643 = vmatprep.subr.mxu0 0.0
  %2644 = vmatpush1.msra.mxu0 0.0
  %2645 = vmatprep.subr.mxu0 0.0
  %2646 = vmatpush1.msra.mxu0 0.0
  %2647 = vmatprep.subr.mxu0 0.0
  %2648 = vmatpush1.msra.mxu0 0.0
  %2649 = vmatprep.subr.mxu0 0.0
  %2650 = vmatpush1.msra.mxu0 0.0
  %2651 = vmatprep.subr.mxu0 0.0
  %2652 = vmatpush1.msra.mxu0 0.0
  %2653 = vmatprep.subr.mxu0 0.0
  %2654 = vmatpush1.msra.mxu0 0.0
  %2655 = vmatprep.subr.mxu0 0.0
  %2656 = vmatpush1.msra.mxu0 0.0
  %2657 = vmatprep.subr.mxu0 0.0
  %2658 = vmatpush1.msra.mxu0 0.0
  %2659 = vmatprep.mubr.f32.mxu0 0.0
  %v2660 = vand.u32 %v2502, 4294901760
  %2661 = vmatmul.mubr.f32.gmra.mrb[0].mxu0 %v2660
  %v2662 = vpop.f32.mrb[0].mxu0
  %v2663 = vadd.f32 %v2582, %v2662
  %v2664 = vpop.f32.mrb[0].mxu0
  %2665 = vdwg.mxu0
  %2666 = vmatprep.subr.mxu0 0.0
  %v2667 = vand.u32 %v2466, 4294901760
  %v2668 = vsub.f32 %v2466, %v2667
  %2669 = vmatpush1.msra.mxu0 %v2668
  %2670 = vmatprep.subr.mxu0 0.0
  %v2671 = vand.u32 %v2506, 4294901760
  %v2672 = vsub.f32 %v2506, %v2671
  %2673 = vmatpush1.msra.mxu0 %v2672
  %2674 = vmatprep.subr.mxu0 0.0
  %2675 = vmatpush1.msra.mxu0 0.0
  %2676 = vmatprep.subr.mxu0 0.0
  %2677 = vmatpush1.msra.mxu0 0.0
  %2678 = vmatprep.subr.mxu0 0.0
  %2679 = vmatpush1.msra.mxu0 0.0
  %2680 = vmatprep.subr.mxu0 0.0
  %2681 = vmatpush1.msra.mxu0 0.0
  %2682 = vmatprep.subr.mxu0 0.0
  %2683 = vmatpush1.msra.mxu0 0.0
  %2684 = vmatprep.subr.mxu0 0.0
  %2685 = vmatpush1.msra.mxu0 0.0
  %2686 = vmatprep.subr.mxu0 0.0
  %2687 = vmatpush1.msra.mxu0 0.0
  %2688 = vmatprep.subr.mxu0 0.0
  %2689 = vmatpush1.msra.mxu0 0.0
  %2690 = vmatprep.subr.mxu0 0.0
  %2691 = vmatpush1.msra.mxu0 0.0
  %2692 = vmatprep.subr.mxu0 0.0
  %2693 = vmatpush1.msra.mxu0 0.0
  %2694 = vmatprep.subr.mxu0 0.0
  %2695 = vmatpush1.msra.mxu0 0.0
  %2696 = vmatprep.subr.mxu0 0.0
  %2697 = vmatpush1.msra.mxu0 0.0
  %2698 = vmatprep.subr.mxu0 0.0
  %2699 = vmatpush1.msra.mxu0 0.0
  %2700 = vmatprep.subr.mxu0 0.0
  %2701 = vmatpush1.msra.mxu0 0.0
  %2702 = vmatprep.subr.mxu0 0.0
  %2703 = vmatpush1.msra.mxu0 0.0
  %2704 = vmatprep.subr.mxu0 0.0
  %2705 = vmatpush1.msra.mxu0 0.0
  %2706 = vmatprep.subr.mxu0 0.0
  %2707 = vmatpush1.msra.mxu0 0.0
  %2708 = vmatprep.subr.mxu0 0.0
  %2709 = vmatpush1.msra.mxu0 0.0
  %2710 = vmatprep.subr.mxu0 0.0
  %2711 = vmatpush1.msra.mxu0 0.0
  %2712 = vmatprep.subr.mxu0 0.0
  %2713 = vmatpush1.msra.mxu0 0.0
  %2714 = vmatprep.subr.mxu0 0.0
  %2715 = vmatpush1.msra.mxu0 0.0
  %2716 = vmatprep.subr.mxu0 0.0
  %2717 = vmatpush1.msra.mxu0 0.0
  %2718 = vmatprep.subr.mxu0 0.0
  %2719 = vmatpush1.msra.mxu0 0.0
  %2720 = vmatprep.subr.mxu0 0.0
  %2721 = vmatpush1.msra.mxu0 0.0
  %2722 = vmatprep.subr.mxu0 0.0
  %2723 = vmatpush1.msra.mxu0 0.0
  %2724 = vmatprep.subr.mxu0 0.0
  %2725 = vmatpush1.msra.mxu0 0.0
  %2726 = vmatprep.subr.mxu0 0.0
  %2727 = vmatpush1.msra.mxu0 0.0
  %2728 = vmatprep.subr.mxu0 0.0
  %2729 = vmatpush1.msra.mxu0 0.0
  %2730 = vmatprep.subr.mxu0 0.0
  %2731 = vmatpush1.msra.mxu0 0.0
  %2732 = vmatprep.subr.mxu0 0.0
  %2733 = vmatpush1.msra.mxu0 0.0
  %2734 = vmatprep.mubr.f32.mxu0 0.0
  %v2735 = vand.u32 %v2502, 4294901760
  %v2736 = vsub.f32 %v2502, %v2735
  %2737 = vmatmul.mubr.f32.gmra.mrb[0].mxu0 %v2736
  %v2738 = vpop.f32.mrb[0].mxu0
  %v2739 = vadd.f32 %v2663, %v2738
  %v2740 = vpop.f32.mrb[0].mxu0
  %2741 = vdwg.mxu0
  %2742 = vmatprep.subr.mxu0 0.0
  %v2743 = vand.u32 %v2466, 4294901760
  %2744 = vmatpush1.msra.mxu0 %v2743
  %2745 = vmatprep.subr.mxu0 0.0
  %v2746 = vand.u32 %v2506, 4294901760
  %2747 = vmatpush1.msra.mxu0 %v2746
  %2748 = vmatprep.subr.mxu0 0.0
  %2749 = vmatpush1.msra.mxu0 0.0
  %2750 = vmatprep.subr.mxu0 0.0
  %2751 = vmatpush1.msra.mxu0 0.0
  %2752 = vmatprep.subr.mxu0 0.0
  %2753 = vmatpush1.msra.mxu0 0.0
  %2754 = vmatprep.subr.mxu0 0.0
  %2755 = vmatpush1.msra.mxu0 0.0
  %2756 = vmatprep.subr.mxu0 0.0
  %2757 = vmatpush1.msra.mxu0 0.0
  %2758 = vmatprep.subr.mxu0 0.0
  %2759 = vmatpush1.msra.mxu0 0.0
  %2760 = vmatprep.subr.mxu0 0.0
  %2761 = vmatpush1.msra.mxu0 0.0
  %2762 = vmatprep.subr.mxu0 0.0
  %2763 = vmatpush1.msra.mxu0 0.0
  %2764 = vmatprep.subr.mxu0 0.0
  %2765 = vmatpush1.msra.mxu0 0.0
  %2766 = vmatprep.subr.mxu0 0.0
  %2767 = vmatpush1.msra.mxu0 0.0
  %2768 = vmatprep.subr.mxu0 0.0
  %2769 = vmatpush1.msra.mxu0 0.0
  %2770 = vmatprep.subr.mxu0 0.0
  %2771 = vmatpush1.msra.mxu0 0.0
  %2772 = vmatprep.subr.mxu0 0.0
  %2773 = vmatpush1.msra.mxu0 0.0
  %2774 = vmatprep.subr.mxu0 0.0
  %2775 = vmatpush1.msra.mxu0 0.0
  %2776 = vmatprep.subr.mxu0 0.0
  %2777 = vmatpush1.msra.mxu0 0.0
  %2778 = vmatprep.subr.mxu0 0.0
  %2779 = vmatpush1.msra.mxu0 0.0
  %2780 = vmatprep.subr.mxu0 0.0
  %2781 = vmatpush1.msra.mxu0 0.0
  %2782 = vmatprep.subr.mxu0 0.0
  %2783 = vmatpush1.msra.mxu0 0.0
  %2784 = vmatprep.subr.mxu0 0.0
  %2785 = vmatpush1.msra.mxu0 0.0
  %2786 = vmatprep.subr.mxu0 0.0
  %2787 = vmatpush1.msra.mxu0 0.0
  %2788 = vmatprep.subr.mxu0 0.0
  %2789 = vmatpush1.msra.mxu0 0.0
  %2790 = vmatprep.subr.mxu0 0.0
  %2791 = vmatpush1.msra.mxu0 0.0
  %2792 = vmatprep.subr.mxu0 0.0
  %2793 = vmatpush1.msra.mxu0 0.0
  %2794 = vmatprep.subr.mxu0 0.0
  %2795 = vmatpush1.msra.mxu0 0.0
  %2796 = vmatprep.subr.mxu0 0.0
  %2797 = vmatpush1.msra.mxu0 0.0
  %2798 = vmatprep.subr.mxu0 0.0
  %2799 = vmatpush1.msra.mxu0 0.0
  %2800 = vmatprep.subr.mxu0 0.0
  %2801 = vmatpush1.msra.mxu0 0.0
  %2802 = vmatprep.subr.mxu0 0.0
  %2803 = vmatpush1.msra.mxu0 0.0
  %2804 = vmatprep.subr.mxu0 0.0
  %2805 = vmatpush1.msra.mxu0 0.0
  %2806 = vmatprep.subr.mxu0 0.0
  %2807 = vmatpush1.msra.mxu0 0.0
  %2808 = vmatprep.mubr.f32.mxu0 0.0
  %v2809 = vand.u32 %v2502, 4294901760
  %v2810 = vsub.f32 %v2502, %v2809
  %v2811 = vand.u32 %v2810, 4294901760
  %2812 = vmatmul.mubr.f32.gmra.mrb[0].mxu0 %v2811
  %v2813 = vpop.f32.mrb[0].mxu0
  %v2814 = vadd.f32 %v2739, %v2813
  %v2815 = vpop.f32.mrb[0].mxu0
  %2816 = vdwg.mxu0
  %2817 = vmatprep.subr.mxu0 0.0
  %v2818 = vand.u32 %v2466, 4294901760
  %v2819 = vsub.f32 %v2466, %v2818
  %v2820 = vand.u32 %v2819, 4294901760
  %2821 = vmatpush1.msra.mxu0 %v2820
  %2822 = vmatprep.subr.mxu0 0.0
  %v2823 = vand.u32 %v2506, 4294901760
  %v2824 = vsub.f32 %v2506, %v2823
  %v2825 = vand.u32 %v2824, 4294901760
  %2826 = vmatpush1.msra.mxu0 %v2825
  %2827 = vmatprep.subr.mxu0 0.0
  %2828 = vmatpush1.msra.mxu0 0.0
  %2829 = vmatprep.subr.mxu0 0.0
  %2830 = vmatpush1.msra.mxu0 0.0
  %2831 = vmatprep.subr.mxu0 0.0
  %2832 = vmatpush1.msra.mxu0 0.0
  %2833 = vmatprep.subr.mxu0 0.0
  %2834 = vmatpush1.msra.mxu0 0.0
  %2835 = vmatprep.subr.mxu0 0.0
  %2836 = vmatpush1.msra.mxu0 0.0
  %2837 = vmatprep.subr.mxu0 0.0
  %2838 = vmatpush1.msra.mxu0 0.0
  %2839 = vmatprep.subr.mxu0 0.0
  %2840 = vmatpush1.msra.mxu0 0.0
  %2841 = vmatprep.subr.mxu0 0.0
  %2842 = vmatpush1.msra.mxu0 0.0
  %2843 = vmatprep.subr.mxu0 0.0
  %2844 = vmatpush1.msra.mxu0 0.0
  %2845 = vmatprep.subr.mxu0 0.0
  %2846 = vmatpush1.msra.mxu0 0.0
  %2847 = vmatprep.subr.mxu0 0.0
  %2848 = vmatpush1.msra.mxu0 0.0
  %2849 = vmatprep.subr.mxu0 0.0
  %2850 = vmatpush1.msra.mxu0 0.0
  %2851 = vmatprep.subr.mxu0 0.0
  %2852 = vmatpush1.msra.mxu0 0.0
  %2853 = vmatprep.subr.mxu0 0.0
  %2854 = vmatpush1.msra.mxu0 0.0
  %2855 = vmatprep.subr.mxu0 0.0
  %2856 = vmatpush1.msra.mxu0 0.0
  %2857 = vmatprep.subr.mxu0 0.0
  %2858 = vmatpush1.msra.mxu0 0.0
  %2859 = vmatprep.subr.mxu0 0.0
  %2860 = vmatpush1.msra.mxu0 0.0
  %2861 = vmatprep.subr.mxu0 0.0
  %2862 = vmatpush1.msra.mxu0 0.0
  %2863 = vmatprep.subr.mxu0 0.0
  %2864 = vmatpush1.msra.mxu0 0.0
  %2865 = vmatprep.subr.mxu0 0.0
  %2866 = vmatpush1.msra.mxu0 0.0
  %2867 = vmatprep.subr.mxu0 0.0
  %2868 = vmatpush1.msra.mxu0 0.0
  %2869 = vmatprep.subr.mxu0 0.0
  %2870 = vmatpush1.msra.mxu0 0.0
  %2871 = vmatprep.subr.mxu0 0.0
  %2872 = vmatpush1.msra.mxu0 0.0
  %2873 = vmatprep.subr.mxu0 0.0
  %2874 = vmatpush1.msra.mxu0 0.0
  %2875 = vmatprep.subr.mxu0 0.0
  %2876 = vmatpush1.msra.mxu0 0.0
  %2877 = vmatprep.subr.mxu0 0.0
  %2878 = vmatpush1.msra.mxu0 0.0
  %2879 = vmatprep.subr.mxu0 0.0
  %2880 = vmatpush1.msra.mxu0 0.0
  %2881 = vmatprep.subr.mxu0 0.0
  %2882 = vmatpush1.msra.mxu0 0.0
  %2883 = vmatprep.subr.mxu0 0.0
  %2884 = vmatpush1.msra.mxu0 0.0
  %2885 = vmatprep.subr.mxu0 0.0
  %2886 = vmatpush1.msra.mxu0 0.0
  %2887 = vmatprep.mubr.f32.mxu0 0.0
  %v2888 = vand.u32 %v2502, 4294901760
  %2889 = vmatmul.mubr.f32.gmra.mrb[0].mxu0 %v2888
  %v2890 = vpop.f32.mrb[0].mxu0
  %v2891 = vadd.f32 %v2814, %v2890
  %v2892 = vpop.f32.mrb[0].mxu0
  %2893 = vdwg.mxu0
  %2894 = vmatprep.subr.mxu0 0.0
  %v2895 = vand.u32 %v2466, 4294901760
  %2896 = vmatpush1.msra.mxu0 %v2895
  %2897 = vmatprep.subr.mxu0 0.0
  %v2898 = vand.u32 %v2506, 4294901760
  %2899 = vmatpush1.msra.mxu0 %v2898
  %2900 = vmatprep.subr.mxu0 0.0
  %2901 = vmatpush1.msra.mxu0 0.0
  %2902 = vmatprep.subr.mxu0 0.0
  %2903 = vmatpush1.msra.mxu0 0.0
  %2904 = vmatprep.subr.mxu0 0.0
  %2905 = vmatpush1.msra.mxu0 0.0
  %2906 = vmatprep.subr.mxu0 0.0
  %2907 = vmatpush1.msra.mxu0 0.0
  %2908 = vmatprep.subr.mxu0 0.0
  %2909 = vmatpush1.msra.mxu0 0.0
  %2910 = vmatprep.subr.mxu0 0.0
  %2911 = vmatpush1.msra.mxu0 0.0
  %2912 = vmatprep.subr.mxu0 0.0
  %2913 = vmatpush1.msra.mxu0 0.0
  %2914 = vmatprep.subr.mxu0 0.0
  %2915 = vmatpush1.msra.mxu0 0.0
  %2916 = vmatprep.subr.mxu0 0.0
  %2917 = vmatpush1.msra.mxu0 0.0
  %2918 = vmatprep.subr.mxu0 0.0
  %2919 = vmatpush1.msra.mxu0 0.0
  %2920 = vmatprep.subr.mxu0 0.0
  %2921 = vmatpush1.msra.mxu0 0.0
  %2922 = vmatprep.subr.mxu0 0.0
  %2923 = vmatpush1.msra.mxu0 0.0
  %2924 = vmatprep.subr.mxu0 0.0
  %2925 = vmatpush1.msra.mxu0 0.0
  %2926 = vmatprep.subr.mxu0 0.0
  %2927 = vmatpush1.msra.mxu0 0.0
  %2928 = vmatprep.subr.mxu0 0.0
  %2929 = vmatpush1.msra.mxu0 0.0
  %2930 = vmatprep.subr.mxu0 0.0
  %2931 = vmatpush1.msra.mxu0 0.0
  %2932 = vmatprep.subr.mxu0 0.0
  %2933 = vmatpush1.msra.mxu0 0.0
  %2934 = vmatprep.subr.mxu0 0.0
  %2935 = vmatpush1.msra.mxu0 0.0
  %2936 = vmatprep.subr.mxu0 0.0
  %2937 = vmatpush1.msra.mxu0 0.0
  %2938 = vmatprep.subr.mxu0 0.0
  %2939 = vmatpush1.msra.mxu0 0.0
  %2940 = vmatprep.subr.mxu0 0.0
  %2941 = vmatpush1.msra.mxu0 0.0
  %2942 = vmatprep.subr.mxu0 0.0
  %2943 = vmatpush1.msra.mxu0 0.0
  %2944 = vmatprep.subr.mxu0 0.0
  %2945 = vmatpush1.msra.mxu0 0.0
  %2946 = vmatprep.subr.mxu0 0.0
  %2947 = vmatpush1.msra.mxu0 0.0
  %2948 = vmatprep.subr.mxu0 0.0
  %2949 = vmatpush1.msra.mxu0 0.0
  %2950 = vmatprep.subr.mxu0 0.0
  %2951 = vmatpush1.msra.mxu0 0.0
  %2952 = vmatprep.subr.mxu0 0.0
  %2953 = vmatpush1.msra.mxu0 0.0
  %2954 = vmatprep.subr.mxu0 0.0
  %2955 = vmatpush1.msra.mxu0 0.0
  %2956 = vmatprep.subr.mxu0 0.0
  %2957 = vmatpush1.msra.mxu0 0.0
  %2958 = vmatprep.subr.mxu0 0.0
  %2959 = vmatpush1.msra.mxu0 0.0
  %2960 = vmatprep.mubr.f32.mxu0 0.0
  %v2961 = vand.u32 %v2502, 4294901760
  %2962 = vmatmul.mubr.f32.gmra.mrb[0].mxu0 %v2961
  %v2963 = vpop.f32.mrb[0].mxu0
  %v2964 = vadd.f32 %v2891, %v2963
  %v2965 = vpop.f32.mrb[0].mxu0
  %2966 = vdwg.mxu0
  %v2967 = vlaneseq
  %v2968 = vshrl.u32 %v2967, 7
  %v2969 = vsub.s32 0, %v2968
  %v2970 = vrot.slane %v2436, %v2969
  %v2972 = vsel %vm100, %v2964, 0
  %2974 = vmatprep.subr.mxu0 0.0
  %v2975 = vand.u32 %v2429, 4294901760
  %2976 = vmatpush1.msra.mxu0 %v2975
  %2977 = vmatprep.subr.mxu0 0.0
  %v2978 = vand.u32 %v2430, 4294901760
  %2979 = vmatpush1.msra.mxu0 %v2978
  %2980 = vmatprep.subr.mxu0 0.0
  %2981 = vmatpush1.msra.mxu0 0.0
  %2982 = vmatprep.subr.mxu0 0.0
  %2983 = vmatpush1.msra.mxu0 0.0
  %2984 = vmatprep.subr.mxu0 0.0
  %2985 = vmatpush1.msra.mxu0 0.0
  %2986 = vmatprep.subr.mxu0 0.0
  %2987 = vmatpush1.msra.mxu0 0.0
  %2988 = vmatprep.subr.mxu0 0.0
  %2989 = vmatpush1.msra.mxu0 0.0
  %2990 = vmatprep.subr.mxu0 0.0
  %2991 = vmatpush1.msra.mxu0 0.0
  %2992 = vmatprep.subr.mxu0 0.0
  %2993 = vmatpush1.msra.mxu0 0.0
  %2994 = vmatprep.subr.mxu0 0.0
  %2995 = vmatpush1.msra.mxu0 0.0
  %2996 = vmatprep.subr.mxu0 0.0
  %2997 = vmatpush1.msra.mxu0 0.0
  %2998 = vmatprep.subr.mxu0 0.0
  %2999 = vmatpush1.msra.mxu0 0.0
  %3000 = vmatprep.subr.mxu0 0.0
  %3001 = vmatpush1.msra.mxu0 0.0
  %3002 = vmatprep.subr.mxu0 0.0
  %3003 = vmatpush1.msra.mxu0 0.0
  %3004 = vmatprep.subr.mxu0 0.0
  %3005 = vmatpush1.msra.mxu0 0.0
  %3006 = vmatprep.subr.mxu0 0.0
  %3007 = vmatpush1.msra.mxu0 0.0
  %3008 = vmatprep.subr.mxu0 0.0
  %3009 = vmatpush1.msra.mxu0 0.0
  %3010 = vmatprep.subr.mxu0 0.0
  %3011 = vmatpush1.msra.mxu0 0.0
  %3012 = vmatprep.subr.mxu0 0.0
  %3013 = vmatpush1.msra.mxu0 0.0
  %3014 = vmatprep.subr.mxu0 0.0
  %3015 = vmatpush1.msra.mxu0 0.0
  %3016 = vmatprep.subr.mxu0 0.0
  %3017 = vmatpush1.msra.mxu0 0.0
  %3018 = vmatprep.subr.mxu0 0.0
  %3019 = vmatpush1.msra.mxu0 0.0
  %3020 = vmatprep.subr.mxu0 0.0
  %3021 = vmatpush1.msra.mxu0 0.0
  %3022 = vmatprep.subr.mxu0 0.0
  %3023 = vmatpush1.msra.mxu0 0.0
  %3024 = vmatprep.subr.mxu0 0.0
  %3025 = vmatpush1.msra.mxu0 0.0
  %3026 = vmatprep.subr.mxu0 0.0
  %3027 = vmatpush1.msra.mxu0 0.0
  %3028 = vmatprep.subr.mxu0 0.0
  %3029 = vmatpush1.msra.mxu0 0.0
  %3030 = vmatprep.subr.mxu0 0.0
  %3031 = vmatpush1.msra.mxu0 0.0
  %3032 = vmatprep.subr.mxu0 0.0
  %3033 = vmatpush1.msra.mxu0 0.0
  %3034 = vmatprep.subr.mxu0 0.0
  %3035 = vmatpush1.msra.mxu0 0.0
  %3036 = vmatprep.subr.mxu0 0.0
  %3037 = vmatpush1.msra.mxu0 0.0
  %3038 = vmatprep.subr.mxu0 0.0
  %3039 = vmatpush1.msra.mxu0 0.0
  %3040 = vmatprep.mubr.f32.mxu0 0.0
  %v3041 = vand.u32 %v2972, 4294901760
  %v3042 = vsub.f32 %v2972, %v3041
  %v3043 = vand.u32 %v3042, 4294901760
  %v3044 = vsub.f32 %v3042, %v3043
  %v3045 = vand.u32 %v3044, 4294901760
  %3046 = vmatmul.mubr.f32.gmra.mrb[0].mxu0 %v3045
  %v3047 = vpop.f32.mrb[0].mxu0
  %v3048 = vadd.f32 %v2970, %v3047
  %v3049 = vpop.f32.mrb[0].mxu0
  %3050 = vdwg.mxu0
  %3051 = vmatprep.subr.mxu0 0.0
  %v3052 = vand.u32 %v2429, 4294901760
  %v3053 = vsub.f32 %v2429, %v3052
  %v3054 = vand.u32 %v3053, 4294901760
  %v3055 = vsub.f32 %v3053, %v3054
  %v3056 = vand.u32 %v3055, 4294901760
  %3057 = vmatpush1.msra.mxu0 %v3056
  %3058 = vmatprep.subr.mxu0 0.0
  %v3059 = vand.u32 %v2430, 4294901760
  %v3060 = vsub.f32 %v2430, %v3059
  %v3061 = vand.u32 %v3060, 4294901760
  %v3062 = vsub.f32 %v3060, %v3061
  %v3063 = vand.u32 %v3062, 4294901760
  %3064 = vmatpush1.msra.mxu0 %v3063
  %3065 = vmatprep.subr.mxu0 0.0
  %3066 = vmatpush1.msra.mxu0 0.0
  %3067 = vmatprep.subr.mxu0 0.0
  %3068 = vmatpush1.msra.mxu0 0.0
  %3069 = vmatprep.subr.mxu0 0.0
  %3070 = vmatpush1.msra.mxu0 0.0
  %3071 = vmatprep.subr.mxu0 0.0
  %3072 = vmatpush1.msra.mxu0 0.0
  %3073 = vmatprep.subr.mxu0 0.0
  %3074 = vmatpush1.msra.mxu0 0.0
  %3075 = vmatprep.subr.mxu0 0.0
  %3076 = vmatpush1.msra.mxu0 0.0
  %3077 = vmatprep.subr.mxu0 0.0
  %3078 = vmatpush1.msra.mxu0 0.0
  %3079 = vmatprep.subr.mxu0 0.0
  %3080 = vmatpush1.msra.mxu0 0.0
  %3081 = vmatprep.subr.mxu0 0.0
  %3082 = vmatpush1.msra.mxu0 0.0
  %3083 = vmatprep.subr.mxu0 0.0
  %3084 = vmatpush1.msra.mxu0 0.0
  %3085 = vmatprep.subr.mxu0 0.0
  %3086 = vmatpush1.msra.mxu0 0.0
  %3087 = vmatprep.subr.mxu0 0.0
  %3088 = vmatpush1.msra.mxu0 0.0
  %3089 = vmatprep.subr.mxu0 0.0
  %3090 = vmatpush1.msra.mxu0 0.0
  %3091 = vmatprep.subr.mxu0 0.0
  %3092 = vmatpush1.msra.mxu0 0.0
  %3093 = vmatprep.subr.mxu0 0.0
  %3094 = vmatpush1.msra.mxu0 0.0
  %3095 = vmatprep.subr.mxu0 0.0
  %3096 = vmatpush1.msra.mxu0 0.0
  %3097 = vmatprep.subr.mxu0 0.0
  %3098 = vmatpush1.msra.mxu0 0.0
  %3099 = vmatprep.subr.mxu0 0.0
  %3100 = vmatpush1.msra.mxu0 0.0
  %3101 = vmatprep.subr.mxu0 0.0
  %3102 = vmatpush1.msra.mxu0 0.0
  %3103 = vmatprep.subr.mxu0 0.0
  %3104 = vmatpush1.msra.mxu0 0.0
  %3105 = vmatprep.subr.mxu0 0.0
  %3106 = vmatpush1.msra.mxu0 0.0
  %3107 = vmatprep.subr.mxu0 0.0
  %3108 = vmatpush1.msra.mxu0 0.0
  %3109 = vmatprep.subr.mxu0 0.0
  %3110 = vmatpush1.msra.mxu0 0.0
  %3111 = vmatprep.subr.mxu0 0.0
  %3112 = vmatpush1.msra.mxu0 0.0
  %3113 = vmatprep.subr.mxu0 0.0
  %3114 = vmatpush1.msra.mxu0 0.0
  %3115 = vmatprep.subr.mxu0 0.0
  %3116 = vmatpush1.msra.mxu0 0.0
  %3117 = vmatprep.subr.mxu0 0.0
  %3118 = vmatpush1.msra.mxu0 0.0
  %3119 = vmatprep.subr.mxu0 0.0
  %3120 = vmatpush1.msra.mxu0 0.0
  %3121 = vmatprep.subr.mxu0 0.0
  %3122 = vmatpush1.msra.mxu0 0.0
  %3123 = vmatprep.subr.mxu0 0.0
  %3124 = vmatpush1.msra.mxu0 0.0
  %3125 = vmatprep.mubr.f32.mxu0 0.0
  %v3126 = vand.u32 %v2972, 4294901760
  %3127 = vmatmul.mubr.f32.gmra.mrb[0].mxu0 %v3126
  %v3128 = vpop.f32.mrb[0].mxu0
  %v3129 = vadd.f32 %v3048, %v3128
  %v3130 = vpop.f32.mrb[0].mxu0
  %3131 = vdwg.mxu0
  %3132 = vmatprep.subr.mxu0 0.0
  %v3133 = vand.u32 %v2429, 4294901760
  %v3134 = vsub.f32 %v2429, %v3133
  %3135 = vmatpush1.msra.mxu0 %v3134
  %3136 = vmatprep.subr.mxu0 0.0
  %v3137 = vand.u32 %v2430, 4294901760
  %v3138 = vsub.f32 %v2430, %v3137
  %3139 = vmatpush1.msra.mxu0 %v3138
  %3140 = vmatprep.subr.mxu0 0.0
  %3141 = vmatpush1.msra.mxu0 0.0
  %3142 = vmatprep.subr.mxu0 0.0
  %3143 = vmatpush1.msra.mxu0 0.0
  %3144 = vmatprep.subr.mxu0 0.0
  %3145 = vmatpush1.msra.mxu0 0.0
  %3146 = vmatprep.subr.mxu0 0.0
  %3147 = vmatpush1.msra.mxu0 0.0
  %3148 = vmatprep.subr.mxu0 0.0
  %3149 = vmatpush1.msra.mxu0 0.0
  %3150 = vmatprep.subr.mxu0 0.0
  %3151 = vmatpush1.msra.mxu0 0.0
  %3152 = vmatprep.subr.mxu0 0.0
  %3153 = vmatpush1.msra.mxu0 0.0
  %3154 = vmatprep.subr.mxu0 0.0
  %3155 = vmatpush1.msra.mxu0 0.0
  %3156 = vmatprep.subr.mxu0 0.0
  %3157 = vmatpush1.msra.mxu0 0.0
  %3158 = vmatprep.subr.mxu0 0.0
  %3159 = vmatpush1.msra.mxu0 0.0
  %3160 = vmatprep.subr.mxu0 0.0
  %3161 = vmatpush1.msra.mxu0 0.0
  %3162 = vmatprep.subr.mxu0 0.0
  %3163 = vmatpush1.msra.mxu0 0.0
  %3164 = vmatprep.subr.mxu0 0.0
  %3165 = vmatpush1.msra.mxu0 0.0
  %3166 = vmatprep.subr.mxu0 0.0
  %3167 = vmatpush1.msra.mxu0 0.0
  %3168 = vmatprep.subr.mxu0 0.0
  %3169 = vmatpush1.msra.mxu0 0.0
  %3170 = vmatprep.subr.mxu0 0.0
  %3171 = vmatpush1.msra.mxu0 0.0
  %3172 = vmatprep.subr.mxu0 0.0
  %3173 = vmatpush1.msra.mxu0 0.0
  %3174 = vmatprep.subr.mxu0 0.0
  %3175 = vmatpush1.msra.mxu0 0.0
  %3176 = vmatprep.subr.mxu0 0.0
  %3177 = vmatpush1.msra.mxu0 0.0
  %3178 = vmatprep.subr.mxu0 0.0
  %3179 = vmatpush1.msra.mxu0 0.0
  %3180 = vmatprep.subr.mxu0 0.0
  %3181 = vmatpush1.msra.mxu0 0.0
  %3182 = vmatprep.subr.mxu0 0.0
  %3183 = vmatpush1.msra.mxu0 0.0
  %3184 = vmatprep.subr.mxu0 0.0
  %3185 = vmatpush1.msra.mxu0 0.0
  %3186 = vmatprep.subr.mxu0 0.0
  %3187 = vmatpush1.msra.mxu0 0.0
  %3188 = vmatprep.subr.mxu0 0.0
  %3189 = vmatpush1.msra.mxu0 0.0
  %3190 = vmatprep.subr.mxu0 0.0
  %3191 = vmatpush1.msra.mxu0 0.0
  %3192 = vmatprep.subr.mxu0 0.0
  %3193 = vmatpush1.msra.mxu0 0.0
  %3194 = vmatprep.subr.mxu0 0.0
  %3195 = vmatpush1.msra.mxu0 0.0
  %3196 = vmatprep.subr.mxu0 0.0
  %3197 = vmatpush1.msra.mxu0 0.0
  %3198 = vmatprep.subr.mxu0 0.0
  %3199 = vmatpush1.msra.mxu0 0.0
  %3200 = vmatprep.mubr.f32.mxu0 0.0
  %v3201 = vand.u32 %v2972, 4294901760
  %v3202 = vsub.f32 %v2972, %v3201
  %3203 = vmatmul.mubr.f32.gmra.mrb[0].mxu0 %v3202
  %v3204 = vpop.f32.mrb[0].mxu0
  %v3205 = vadd.f32 %v3129, %v3204
  %v3206 = vpop.f32.mrb[0].mxu0
  %3207 = vdwg.mxu0
  %3208 = vmatprep.subr.mxu0 0.0
  %v3209 = vand.u32 %v2429, 4294901760
  %3210 = vmatpush1.msra.mxu0 %v3209
  %3211 = vmatprep.subr.mxu0 0.0
  %v3212 = vand.u32 %v2430, 4294901760
  %3213 = vmatpush1.msra.mxu0 %v3212
  %3214 = vmatprep.subr.mxu0 0.0
  %3215 = vmatpush1.msra.mxu0 0.0
  %3216 = vmatprep.subr.mxu0 0.0
  %3217 = vmatpush1.msra.mxu0 0.0
  %3218 = vmatprep.subr.mxu0 0.0
  %3219 = vmatpush1.msra.mxu0 0.0
  %3220 = vmatprep.subr.mxu0 0.0
  %3221 = vmatpush1.msra.mxu0 0.0
  %3222 = vmatprep.subr.mxu0 0.0
  %3223 = vmatpush1.msra.mxu0 0.0
  %3224 = vmatprep.subr.mxu0 0.0
  %3225 = vmatpush1.msra.mxu0 0.0
  %3226 = vmatprep.subr.mxu0 0.0
  %3227 = vmatpush1.msra.mxu0 0.0
  %3228 = vmatprep.subr.mxu0 0.0
  %3229 = vmatpush1.msra.mxu0 0.0
  %3230 = vmatprep.subr.mxu0 0.0
  %3231 = vmatpush1.msra.mxu0 0.0
  %3232 = vmatprep.subr.mxu0 0.0
  %3233 = vmatpush1.msra.mxu0 0.0
  %3234 = vmatprep.subr.mxu0 0.0
  %3235 = vmatpush1.msra.mxu0 0.0
  %3236 = vmatprep.subr.mxu0 0.0
  %3237 = vmatpush1.msra.mxu0 0.0
  %3238 = vmatprep.subr.mxu0 0.0
  %3239 = vmatpush1.msra.mxu0 0.0
  %3240 = vmatprep.subr.mxu0 0.0
  %3241 = vmatpush1.msra.mxu0 0.0
  %3242 = vmatprep.subr.mxu0 0.0
  %3243 = vmatpush1.msra.mxu0 0.0
  %3244 = vmatprep.subr.mxu0 0.0
  %3245 = vmatpush1.msra.mxu0 0.0
  %3246 = vmatprep.subr.mxu0 0.0
  %3247 = vmatpush1.msra.mxu0 0.0
  %3248 = vmatprep.subr.mxu0 0.0
  %3249 = vmatpush1.msra.mxu0 0.0
  %3250 = vmatprep.subr.mxu0 0.0
  %3251 = vmatpush1.msra.mxu0 0.0
  %3252 = vmatprep.subr.mxu0 0.0
  %3253 = vmatpush1.msra.mxu0 0.0
  %3254 = vmatprep.subr.mxu0 0.0
  %3255 = vmatpush1.msra.mxu0 0.0
  %3256 = vmatprep.subr.mxu0 0.0
  %3257 = vmatpush1.msra.mxu0 0.0
  %3258 = vmatprep.subr.mxu0 0.0
  %3259 = vmatpush1.msra.mxu0 0.0
  %3260 = vmatprep.subr.mxu0 0.0
  %3261 = vmatpush1.msra.mxu0 0.0
  %3262 = vmatprep.subr.mxu0 0.0
  %3263 = vmatpush1.msra.mxu0 0.0
  %3264 = vmatprep.subr.mxu0 0.0
  %3265 = vmatpush1.msra.mxu0 0.0
  %3266 = vmatprep.subr.mxu0 0.0
  %3267 = vmatpush1.msra.mxu0 0.0
  %3268 = vmatprep.subr.mxu0 0.0
  %3269 = vmatpush1.msra.mxu0 0.0
  %3270 = vmatprep.subr.mxu0 0.0
  %3271 = vmatpush1.msra.mxu0 0.0
  %3272 = vmatprep.subr.mxu0 0.0
  %3273 = vmatpush1.msra.mxu0 0.0
  %3274 = vmatprep.mubr.f32.mxu0 0.0
  %v3275 = vand.u32 %v2972, 4294901760
  %v3276 = vsub.f32 %v2972, %v3275
  %v3277 = vand.u32 %v3276, 4294901760
  %3278 = vmatmul.mubr.f32.gmra.mrb[0].mxu0 %v3277
  %v3279 = vpop.f32.mrb[0].mxu0
  %v3280 = vadd.f32 %v3205, %v3279
  %v3281 = vpop.f32.mrb[0].mxu0
  %3282 = vdwg.mxu0
  %3283 = vmatprep.subr.mxu0 0.0
  %v3284 = vand.u32 %v2429, 4294901760
  %v3285 = vsub.f32 %v2429, %v3284
  %v3286 = vand.u32 %v3285, 4294901760
  %3287 = vmatpush1.msra.mxu0 %v3286
  %3288 = vmatprep.subr.mxu0 0.0
  %v3289 = vand.u32 %v2430, 4294901760
  %v3290 = vsub.f32 %v2430, %v3289
  %v3291 = vand.u32 %v3290, 4294901760
  %3292 = vmatpush1.msra.mxu0 %v3291
  %3293 = vmatprep.subr.mxu0 0.0
  %3294 = vmatpush1.msra.mxu0 0.0
  %3295 = vmatprep.subr.mxu0 0.0
  %3296 = vmatpush1.msra.mxu0 0.0
  %3297 = vmatprep.subr.mxu0 0.0
  %3298 = vmatpush1.msra.mxu0 0.0
  %3299 = vmatprep.subr.mxu0 0.0
  %3300 = vmatpush1.msra.mxu0 0.0
  %3301 = vmatprep.subr.mxu0 0.0
  %3302 = vmatpush1.msra.mxu0 0.0
  %3303 = vmatprep.subr.mxu0 0.0
  %3304 = vmatpush1.msra.mxu0 0.0
  %3305 = vmatprep.subr.mxu0 0.0
  %3306 = vmatpush1.msra.mxu0 0.0
  %3307 = vmatprep.subr.mxu0 0.0
  %3308 = vmatpush1.msra.mxu0 0.0
  %3309 = vmatprep.subr.mxu0 0.0
  %3310 = vmatpush1.msra.mxu0 0.0
  %3311 = vmatprep.subr.mxu0 0.0
  %3312 = vmatpush1.msra.mxu0 0.0
  %3313 = vmatprep.subr.mxu0 0.0
  %3314 = vmatpush1.msra.mxu0 0.0
  %3315 = vmatprep.subr.mxu0 0.0
  %3316 = vmatpush1.msra.mxu0 0.0
  %3317 = vmatprep.subr.mxu0 0.0
  %3318 = vmatpush1.msra.mxu0 0.0
  %3319 = vmatprep.subr.mxu0 0.0
  %3320 = vmatpush1.msra.mxu0 0.0
  %3321 = vmatprep.subr.mxu0 0.0
  %3322 = vmatpush1.msra.mxu0 0.0
  %3323 = vmatprep.subr.mxu0 0.0
  %3324 = vmatpush1.msra.mxu0 0.0
  %3325 = vmatprep.subr.mxu0 0.0
  %3326 = vmatpush1.msra.mxu0 0.0
  %3327 = vmatprep.subr.mxu0 0.0
  %3328 = vmatpush1.msra.mxu0 0.0
  %3329 = vmatprep.subr.mxu0 0.0
  %3330 = vmatpush1.msra.mxu0 0.0
  %3331 = vmatprep.subr.mxu0 0.0
  %3332 = vmatpush1.msra.mxu0 0.0
  %3333 = vmatprep.subr.mxu0 0.0
  %3334 = vmatpush1.msra.mxu0 0.0
  %3335 = vmatprep.subr.mxu0 0.0
  %3336 = vmatpush1.msra.mxu0 0.0
  %3337 = vmatprep.subr.mxu0 0.0
  %3338 = vmatpush1.msra.mxu0 0.0
  %3339 = vmatprep.subr.mxu0 0.0
  %3340 = vmatpush1.msra.mxu0 0.0
  %3341 = vmatprep.subr.mxu0 0.0
  %3342 = vmatpush1.msra.mxu0 0.0
  %3343 = vmatprep.subr.mxu0 0.0
  %3344 = vmatpush1.msra.mxu0 0.0
  %3345 = vmatprep.subr.mxu0 0.0
  %3346 = vmatpush1.msra.mxu0 0.0
  %3347 = vmatprep.subr.mxu0 0.0
  %3348 = vmatpush1.msra.mxu0 0.0
  %3349 = vmatprep.subr.mxu0 0.0
  %3350 = vmatpush1.msra.mxu0 0.0
  %3351 = vmatprep.subr.mxu0 0.0
  %3352 = vmatpush1.msra.mxu0 0.0
  %3353 = vmatprep.mubr.f32.mxu0 0.0
  %v3354 = vand.u32 %v2972, 4294901760
  %3355 = vmatmul.mubr.f32.gmra.mrb[0].mxu0 %v3354
  %v3356 = vpop.f32.mrb[0].mxu0
  %v3357 = vadd.f32 %v3280, %v3356
  %v3358 = vpop.f32.mrb[0].mxu0
  %3359 = vdwg.mxu0
  %3360 = vmatprep.subr.mxu0 0.0
  %v3361 = vand.u32 %v2429, 4294901760
  %3362 = vmatpush1.msra.mxu0 %v3361
  %3363 = vmatprep.subr.mxu0 0.0
  %v3364 = vand.u32 %v2430, 4294901760
  %3365 = vmatpush1.msra.mxu0 %v3364
  %3366 = vmatprep.subr.mxu0 0.0
  %3367 = vmatpush1.msra.mxu0 0.0
  %3368 = vmatprep.subr.mxu0 0.0
  %3369 = vmatpush1.msra.mxu0 0.0
  %3370 = vmatprep.subr.mxu0 0.0
  %3371 = vmatpush1.msra.mxu0 0.0
  %3372 = vmatprep.subr.mxu0 0.0
  %3373 = vmatpush1.msra.mxu0 0.0
  %3374 = vmatprep.subr.mxu0 0.0
  %3375 = vmatpush1.msra.mxu0 0.0
  %3376 = vmatprep.subr.mxu0 0.0
  %3377 = vmatpush1.msra.mxu0 0.0
  %3378 = vmatprep.subr.mxu0 0.0
  %3379 = vmatpush1.msra.mxu0 0.0
  %3380 = vmatprep.subr.mxu0 0.0
  %3381 = vmatpush1.msra.mxu0 0.0
  %3382 = vmatprep.subr.mxu0 0.0
  %3383 = vmatpush1.msra.mxu0 0.0
  %3384 = vmatprep.subr.mxu0 0.0
  %3385 = vmatpush1.msra.mxu0 0.0
  %3386 = vmatprep.subr.mxu0 0.0
  %3387 = vmatpush1.msra.mxu0 0.0
  %3388 = vmatprep.subr.mxu0 0.0
  %3389 = vmatpush1.msra.mxu0 0.0
  %3390 = vmatprep.subr.mxu0 0.0
  %3391 = vmatpush1.msra.mxu0 0.0
  %3392 = vmatprep.subr.mxu0 0.0
  %3393 = vmatpush1.msra.mxu0 0.0
  %3394 = vmatprep.subr.mxu0 0.0
  %3395 = vmatpush1.msra.mxu0 0.0
  %3396 = vmatprep.subr.mxu0 0.0
  %3397 = vmatpush1.msra.mxu0 0.0
  %3398 = vmatprep.subr.mxu0 0.0
  %3399 = vmatpush1.msra.mxu0 0.0
  %3400 = vmatprep.subr.mxu0 0.0
  %3401 = vmatpush1.msra.mxu0 0.0
  %3402 = vmatprep.subr.mxu0 0.0
  %3403 = vmatpush1.msra.mxu0 0.0
  %3404 = vmatprep.subr.mxu0 0.0
  %3405 = vmatpush1.msra.mxu0 0.0
  %3406 = vmatprep.subr.mxu0 0.0
  %3407 = vmatpush1.msra.mxu0 0.0
  %3408 = vmatprep.subr.mxu0 0.0
  %3409 = vmatpush1.msra.mxu0 0.0
  %3410 = vmatprep.subr.mxu0 0.0
  %3411 = vmatpush1.msra.mxu0 0.0
  %3412 = vmatprep.subr.mxu0 0.0
  %3413 = vmatpush1.msra.mxu0 0.0
  %3414 = vmatprep.subr.mxu0 0.0
  %3415 = vmatpush1.msra.mxu0 0.0
  %3416 = vmatprep.subr.mxu0 0.0
  %3417 = vmatpush1.msra.mxu0 0.0
  %3418 = vmatprep.subr.mxu0 0.0
  %3419 = vmatpush1.msra.mxu0 0.0
  %3420 = vmatprep.subr.mxu0 0.0
  %3421 = vmatpush1.msra.mxu0 0.0
  %3422 = vmatprep.subr.mxu0 0.0
  %3423 = vmatpush1.msra.mxu0 0.0
  %3424 = vmatprep.subr.mxu0 0.0
  %3425 = vmatpush1.msra.mxu0 0.0
  %3426 = vmatprep.mubr.f32.mxu0 0.0
  %v3427 = vand.u32 %v2972, 4294901760
  %3428 = vmatmul.mubr.f32.gmra.mrb[0].mxu0 %v3427
  %v3429 = vpop.f32.mrb[0].mxu0
  %v3430 = vadd.f32 %v3357, %v3429
  %v3431 = vpop.f32.mrb[0].mxu0
  %3432 = vdwg.mxu0
  %v3433 = vmul.f32 %v3430, %v3430
  %vm3434 = vcmask 261120
  %v3435 = vsel %vm3434, %v3433, 0.0
  %3436 = vadd.xlane.f32.xlu0 %v3435
  %v3437 = vpop.xlane.xlu0 %3436
  %v3438 = vmax.f32 %v3437, 1e-12
  %v3439 = vrsqrt.pop %v3438
  %v3440 = vmul.f32 %v3430, %v3439
  %v3441 = vld [vmem:[%s2] sm:$0x3f]
  %v3442 = vlaneseq
  %v3443 = vshrl.u32 %v3442, 7
  %v3444 = vsub.s32 0, %v3443
  %v3445 = vrot.slane %v2437, %v3444
  %vm3446 = vcmask 162816
  %v3448 = vsel %vm3446, %v3441, 0
  %v3451 = vsel %vm47, %v2433, 0
  %3453 = vmatprep.subr.mxu0 0.0
  %v3454 = vand.u32 %v2431, 4294901760
  %3455 = vmatpush1.msra.mxu0 %v3454
  %3456 = vmatprep.subr.mxu0 0.0
  %v3457 = vand.u32 %v2432, 4294901760
  %3458 = vmatpush1.msra.mxu0 %v3457
  %3459 = vmatprep.subr.mxu0 0.0
  %v3460 = vand.u32 %v3451, 4294901760
  %3461 = vmatpush1.msra.mxu0 %v3460
  %3462 = vmatprep.subr.mxu0 0.0
  %3463 = vmatpush1.msra.mxu0 0.0
  %3464 = vmatprep.subr.mxu0 0.0
  %3465 = vmatpush1.msra.mxu0 0.0
  %3466 = vmatprep.subr.mxu0 0.0
  %3467 = vmatpush1.msra.mxu0 0.0
  %3468 = vmatprep.subr.mxu0 0.0
  %3469 = vmatpush1.msra.mxu0 0.0
  %3470 = vmatprep.subr.mxu0 0.0
  %3471 = vmatpush1.msra.mxu0 0.0
  %3472 = vmatprep.subr.mxu0 0.0
  %3473 = vmatpush1.msra.mxu0 0.0
  %3474 = vmatprep.subr.mxu0 0.0
  %3475 = vmatpush1.msra.mxu0 0.0
  %3476 = vmatprep.subr.mxu0 0.0
  %3477 = vmatpush1.msra.mxu0 0.0
  %3478 = vmatprep.subr.mxu0 0.0
  %3479 = vmatpush1.msra.mxu0 0.0
  %3480 = vmatprep.subr.mxu0 0.0
  %3481 = vmatpush1.msra.mxu0 0.0
  %3482 = vmatprep.subr.mxu0 0.0
  %3483 = vmatpush1.msra.mxu0 0.0
  %3484 = vmatprep.subr.mxu0 0.0
  %3485 = vmatpush1.msra.mxu0 0.0
  %3486 = vmatprep.subr.mxu0 0.0
  %3487 = vmatpush1.msra.mxu0 0.0
  %3488 = vmatprep.subr.mxu0 0.0
  %3489 = vmatpush1.msra.mxu0 0.0
  %3490 = vmatprep.subr.mxu0 0.0
  %3491 = vmatpush1.msra.mxu0 0.0
  %3492 = vmatprep.subr.mxu0 0.0
  %3493 = vmatpush1.msra.mxu0 0.0
  %3494 = vmatprep.subr.mxu0 0.0
  %3495 = vmatpush1.msra.mxu0 0.0
  %3496 = vmatprep.subr.mxu0 0.0
  %3497 = vmatpush1.msra.mxu0 0.0
  %3498 = vmatprep.subr.mxu0 0.0
  %3499 = vmatpush1.msra.mxu0 0.0
  %3500 = vmatprep.subr.mxu0 0.0
  %3501 = vmatpush1.msra.mxu0 0.0
  %3502 = vmatprep.subr.mxu0 0.0
  %3503 = vmatpush1.msra.mxu0 0.0
  %3504 = vmatprep.subr.mxu0 0.0
  %3505 = vmatpush1.msra.mxu0 0.0
  %3506 = vmatprep.subr.mxu0 0.0
  %3507 = vmatpush1.msra.mxu0 0.0
  %3508 = vmatprep.subr.mxu0 0.0
  %3509 = vmatpush1.msra.mxu0 0.0
  %3510 = vmatprep.subr.mxu0 0.0
  %3511 = vmatpush1.msra.mxu0 0.0
  %3512 = vmatprep.subr.mxu0 0.0
  %3513 = vmatpush1.msra.mxu0 0.0
  %3514 = vmatprep.subr.mxu0 0.0
  %3515 = vmatpush1.msra.mxu0 0.0
  %3516 = vmatprep.subr.mxu0 0.0
  %3517 = vmatpush1.msra.mxu0 0.0
  %3518 = vmatprep.subr.mxu0 0.0
  %3519 = vmatpush1.msra.mxu0 0.0
  %3520 = vmatprep.mubr.f32.mxu0 0.0
  %v3521 = vand.u32 %v3448, 4294901760
  %v3522 = vsub.f32 %v3448, %v3521
  %v3523 = vand.u32 %v3522, 4294901760
  %v3524 = vsub.f32 %v3522, %v3523
  %v3525 = vand.u32 %v3524, 4294901760
  %3526 = vmatmul.mubr.f32.gmra.mrb[0].mxu0 %v3525
  %v3527 = vpop.f32.mrb[0].mxu0
  %v3528 = vadd.f32 %v3445, %v3527
  %v3529 = vpop.f32.mrb[0].mxu0
  %3530 = vdwg.mxu0
  %3531 = vmatprep.subr.mxu0 0.0
  %v3532 = vand.u32 %v2431, 4294901760
  %v3533 = vsub.f32 %v2431, %v3532
  %v3534 = vand.u32 %v3533, 4294901760
  %v3535 = vsub.f32 %v3533, %v3534
  %v3536 = vand.u32 %v3535, 4294901760
  %3537 = vmatpush1.msra.mxu0 %v3536
  %3538 = vmatprep.subr.mxu0 0.0
  %v3539 = vand.u32 %v2432, 4294901760
  %v3540 = vsub.f32 %v2432, %v3539
  %v3541 = vand.u32 %v3540, 4294901760
  %v3542 = vsub.f32 %v3540, %v3541
  %v3543 = vand.u32 %v3542, 4294901760
  %3544 = vmatpush1.msra.mxu0 %v3543
  %3545 = vmatprep.subr.mxu0 0.0
  %v3546 = vand.u32 %v3451, 4294901760
  %v3547 = vsub.f32 %v3451, %v3546
  %v3548 = vand.u32 %v3547, 4294901760
  %v3549 = vsub.f32 %v3547, %v3548
  %v3550 = vand.u32 %v3549, 4294901760
  %3551 = vmatpush1.msra.mxu0 %v3550
  %3552 = vmatprep.subr.mxu0 0.0
  %3553 = vmatpush1.msra.mxu0 0.0
  %3554 = vmatprep.subr.mxu0 0.0
  %3555 = vmatpush1.msra.mxu0 0.0
  %3556 = vmatprep.subr.mxu0 0.0
  %3557 = vmatpush1.msra.mxu0 0.0
  %3558 = vmatprep.subr.mxu0 0.0
  %3559 = vmatpush1.msra.mxu0 0.0
  %3560 = vmatprep.subr.mxu0 0.0
  %3561 = vmatpush1.msra.mxu0 0.0
  %3562 = vmatprep.subr.mxu0 0.0
  %3563 = vmatpush1.msra.mxu0 0.0
  %3564 = vmatprep.subr.mxu0 0.0
  %3565 = vmatpush1.msra.mxu0 0.0
  %3566 = vmatprep.subr.mxu0 0.0
  %3567 = vmatpush1.msra.mxu0 0.0
  %3568 = vmatprep.subr.mxu0 0.0
  %3569 = vmatpush1.msra.mxu0 0.0
  %3570 = vmatprep.subr.mxu0 0.0
  %3571 = vmatpush1.msra.mxu0 0.0
  %3572 = vmatprep.subr.mxu0 0.0
  %3573 = vmatpush1.msra.mxu0 0.0
  %3574 = vmatprep.subr.mxu0 0.0
  %3575 = vmatpush1.msra.mxu0 0.0
  %3576 = vmatprep.subr.mxu0 0.0
  %3577 = vmatpush1.msra.mxu0 0.0
  %3578 = vmatprep.subr.mxu0 0.0
  %3579 = vmatpush1.msra.mxu0 0.0
  %3580 = vmatprep.subr.mxu0 0.0
  %3581 = vmatpush1.msra.mxu0 0.0
  %3582 = vmatprep.subr.mxu0 0.0
  %3583 = vmatpush1.msra.mxu0 0.0
  %3584 = vmatprep.subr.mxu0 0.0
  %3585 = vmatpush1.msra.mxu0 0.0
  %3586 = vmatprep.subr.mxu0 0.0
  %3587 = vmatpush1.msra.mxu0 0.0
  %3588 = vmatprep.subr.mxu0 0.0
  %3589 = vmatpush1.msra.mxu0 0.0
  %3590 = vmatprep.subr.mxu0 0.0
  %3591 = vmatpush1.msra.mxu0 0.0
  %3592 = vmatprep.subr.mxu0 0.0
  %3593 = vmatpush1.msra.mxu0 0.0
  %3594 = vmatprep.subr.mxu0 0.0
  %3595 = vmatpush1.msra.mxu0 0.0
  %3596 = vmatprep.subr.mxu0 0.0
  %3597 = vmatpush1.msra.mxu0 0.0
  %3598 = vmatprep.subr.mxu0 0.0
  %3599 = vmatpush1.msra.mxu0 0.0
  %3600 = vmatprep.subr.mxu0 0.0
  %3601 = vmatpush1.msra.mxu0 0.0
  %3602 = vmatprep.subr.mxu0 0.0
  %3603 = vmatpush1.msra.mxu0 0.0
  %3604 = vmatprep.subr.mxu0 0.0
  %3605 = vmatpush1.msra.mxu0 0.0
  %3606 = vmatprep.subr.mxu0 0.0
  %3607 = vmatpush1.msra.mxu0 0.0
  %3608 = vmatprep.subr.mxu0 0.0
  %3609 = vmatpush1.msra.mxu0 0.0
  %3610 = vmatprep.mubr.f32.mxu0 0.0
  %v3611 = vand.u32 %v3448, 4294901760
  %3612 = vmatmul.mubr.f32.gmra.mrb[0].mxu0 %v3611
  %v3613 = vpop.f32.mrb[0].mxu0
  %v3614 = vadd.f32 %v3528, %v3613
  %v3615 = vpop.f32.mrb[0].mxu0
  %3616 = vdwg.mxu0
  %3617 = vmatprep.subr.mxu0 0.0
  %v3618 = vand.u32 %v2431, 4294901760
  %v3619 = vsub.f32 %v2431, %v3618
  %3620 = vmatpush1.msra.mxu0 %v3619
  %3621 = vmatprep.subr.mxu0 0.0
  %v3622 = vand.u32 %v2432, 4294901760
  %v3623 = vsub.f32 %v2432, %v3622
  %3624 = vmatpush1.msra.mxu0 %v3623
  %3625 = vmatprep.subr.mxu0 0.0
  %v3626 = vand.u32 %v3451, 4294901760
  %v3627 = vsub.f32 %v3451, %v3626
  %3628 = vmatpush1.msra.mxu0 %v3627
  %3629 = vmatprep.subr.mxu0 0.0
  %3630 = vmatpush1.msra.mxu0 0.0
  %3631 = vmatprep.subr.mxu0 0.0
  %3632 = vmatpush1.msra.mxu0 0.0
  %3633 = vmatprep.subr.mxu0 0.0
  %3634 = vmatpush1.msra.mxu0 0.0
  %3635 = vmatprep.subr.mxu0 0.0
  %3636 = vmatpush1.msra.mxu0 0.0
  %3637 = vmatprep.subr.mxu0 0.0
  %3638 = vmatpush1.msra.mxu0 0.0
  %3639 = vmatprep.subr.mxu0 0.0
  %3640 = vmatpush1.msra.mxu0 0.0
  %3641 = vmatprep.subr.mxu0 0.0
  %3642 = vmatpush1.msra.mxu0 0.0
  %3643 = vmatprep.subr.mxu0 0.0
  %3644 = vmatpush1.msra.mxu0 0.0
  %3645 = vmatprep.subr.mxu0 0.0
  %3646 = vmatpush1.msra.mxu0 0.0
  %3647 = vmatprep.subr.mxu0 0.0
  %3648 = vmatpush1.msra.mxu0 0.0
  %3649 = vmatprep.subr.mxu0 0.0
  %3650 = vmatpush1.msra.mxu0 0.0
  %3651 = vmatprep.subr.mxu0 0.0
  %3652 = vmatpush1.msra.mxu0 0.0
  %3653 = vmatprep.subr.mxu0 0.0
  %3654 = vmatpush1.msra.mxu0 0.0
  %3655 = vmatprep.subr.mxu0 0.0
  %3656 = vmatpush1.msra.mxu0 0.0
  %3657 = vmatprep.subr.mxu0 0.0
  %3658 = vmatpush1.msra.mxu0 0.0
  %3659 = vmatprep.subr.mxu0 0.0
  %3660 = vmatpush1.msra.mxu0 0.0
  %3661 = vmatprep.subr.mxu0 0.0
  %3662 = vmatpush1.msra.mxu0 0.0
  %3663 = vmatprep.subr.mxu0 0.0
  %3664 = vmatpush1.msra.mxu0 0.0
  %3665 = vmatprep.subr.mxu0 0.0
  %3666 = vmatpush1.msra.mxu0 0.0
  %3667 = vmatprep.subr.mxu0 0.0
  %3668 = vmatpush1.msra.mxu0 0.0
  %3669 = vmatprep.subr.mxu0 0.0
  %3670 = vmatpush1.msra.mxu0 0.0
  %3671 = vmatprep.subr.mxu0 0.0
  %3672 = vmatpush1.msra.mxu0 0.0
  %3673 = vmatprep.subr.mxu0 0.0
  %3674 = vmatpush1.msra.mxu0 0.0
  %3675 = vmatprep.subr.mxu0 0.0
  %3676 = vmatpush1.msra.mxu0 0.0
  %3677 = vmatprep.subr.mxu0 0.0
  %3678 = vmatpush1.msra.mxu0 0.0
  %3679 = vmatprep.subr.mxu0 0.0
  %3680 = vmatpush1.msra.mxu0 0.0
  %3681 = vmatprep.subr.mxu0 0.0
  %3682 = vmatpush1.msra.mxu0 0.0
  %3683 = vmatprep.subr.mxu0 0.0
  %3684 = vmatpush1.msra.mxu0 0.0
  %3685 = vmatprep.subr.mxu0 0.0
  %3686 = vmatpush1.msra.mxu0 0.0
  %3687 = vmatprep.mubr.f32.mxu0 0.0
  %v3688 = vand.u32 %v3448, 4294901760
  %v3689 = vsub.f32 %v3448, %v3688
  %3690 = vmatmul.mubr.f32.gmra.mrb[0].mxu0 %v3689
  %v3691 = vpop.f32.mrb[0].mxu0
  %v3692 = vadd.f32 %v3614, %v3691
  %v3693 = vpop.f32.mrb[0].mxu0
  %3694 = vdwg.mxu0
  %3695 = vmatprep.subr.mxu0 0.0
  %v3696 = vand.u32 %v2431, 4294901760
  %3697 = vmatpush1.msra.mxu0 %v3696
  %3698 = vmatprep.subr.mxu0 0.0
  %v3699 = vand.u32 %v2432, 4294901760
  %3700 = vmatpush1.msra.mxu0 %v3699
  %3701 = vmatprep.subr.mxu0 0.0
  %v3702 = vand.u32 %v3451, 4294901760
  %3703 = vmatpush1.msra.mxu0 %v3702
  %3704 = vmatprep.subr.mxu0 0.0
  %3705 = vmatpush1.msra.mxu0 0.0
  %3706 = vmatprep.subr.mxu0 0.0
  %3707 = vmatpush1.msra.mxu0 0.0
  %3708 = vmatprep.subr.mxu0 0.0
  %3709 = vmatpush1.msra.mxu0 0.0
  %3710 = vmatprep.subr.mxu0 0.0
  %3711 = vmatpush1.msra.mxu0 0.0
  %3712 = vmatprep.subr.mxu0 0.0
  %3713 = vmatpush1.msra.mxu0 0.0
  %3714 = vmatprep.subr.mxu0 0.0
  %3715 = vmatpush1.msra.mxu0 0.0
  %3716 = vmatprep.subr.mxu0 0.0
  %3717 = vmatpush1.msra.mxu0 0.0
  %3718 = vmatprep.subr.mxu0 0.0
  %3719 = vmatpush1.msra.mxu0 0.0
  %3720 = vmatprep.subr.mxu0 0.0
  %3721 = vmatpush1.msra.mxu0 0.0
  %3722 = vmatprep.subr.mxu0 0.0
  %3723 = vmatpush1.msra.mxu0 0.0
  %3724 = vmatprep.subr.mxu0 0.0
  %3725 = vmatpush1.msra.mxu0 0.0
  %3726 = vmatprep.subr.mxu0 0.0
  %3727 = vmatpush1.msra.mxu0 0.0
  %3728 = vmatprep.subr.mxu0 0.0
  %3729 = vmatpush1.msra.mxu0 0.0
  %3730 = vmatprep.subr.mxu0 0.0
  %3731 = vmatpush1.msra.mxu0 0.0
  %3732 = vmatprep.subr.mxu0 0.0
  %3733 = vmatpush1.msra.mxu0 0.0
  %3734 = vmatprep.subr.mxu0 0.0
  %3735 = vmatpush1.msra.mxu0 0.0
  %3736 = vmatprep.subr.mxu0 0.0
  %3737 = vmatpush1.msra.mxu0 0.0
  %3738 = vmatprep.subr.mxu0 0.0
  %3739 = vmatpush1.msra.mxu0 0.0
  %3740 = vmatprep.subr.mxu0 0.0
  %3741 = vmatpush1.msra.mxu0 0.0
  %3742 = vmatprep.subr.mxu0 0.0
  %3743 = vmatpush1.msra.mxu0 0.0
  %3744 = vmatprep.subr.mxu0 0.0
  %3745 = vmatpush1.msra.mxu0 0.0
  %3746 = vmatprep.subr.mxu0 0.0
  %3747 = vmatpush1.msra.mxu0 0.0
  %3748 = vmatprep.subr.mxu0 0.0
  %3749 = vmatpush1.msra.mxu0 0.0
  %3750 = vmatprep.subr.mxu0 0.0
  %3751 = vmatpush1.msra.mxu0 0.0
  %3752 = vmatprep.subr.mxu0 0.0
  %3753 = vmatpush1.msra.mxu0 0.0
  %3754 = vmatprep.subr.mxu0 0.0
  %3755 = vmatpush1.msra.mxu0 0.0
  %3756 = vmatprep.subr.mxu0 0.0
  %3757 = vmatpush1.msra.mxu0 0.0
  %3758 = vmatprep.subr.mxu0 0.0
  %3759 = vmatpush1.msra.mxu0 0.0
  %3760 = vmatprep.subr.mxu0 0.0
  %3761 = vmatpush1.msra.mxu0 0.0
  %3762 = vmatprep.mubr.f32.mxu0 0.0
  %v3763 = vand.u32 %v3448, 4294901760
  %v3764 = vsub.f32 %v3448, %v3763
  %v3765 = vand.u32 %v3764, 4294901760
  %3766 = vmatmul.mubr.f32.gmra.mrb[0].mxu0 %v3765
  %v3767 = vpop.f32.mrb[0].mxu0
  %v3768 = vadd.f32 %v3692, %v3767
  %v3769 = vpop.f32.mrb[0].mxu0
  %3770 = vdwg.mxu0
  %3771 = vmatprep.subr.mxu0 0.0
  %v3772 = vand.u32 %v2431, 4294901760
  %v3773 = vsub.f32 %v2431, %v3772
  %v3774 = vand.u32 %v3773, 4294901760
  %3775 = vmatpush1.msra.mxu0 %v3774
  %3776 = vmatprep.subr.mxu0 0.0
  %v3777 = vand.u32 %v2432, 4294901760
  %v3778 = vsub.f32 %v2432, %v3777
  %v3779 = vand.u32 %v3778, 4294901760
  %3780 = vmatpush1.msra.mxu0 %v3779
  %3781 = vmatprep.subr.mxu0 0.0
  %v3782 = vand.u32 %v3451, 4294901760
  %v3783 = vsub.f32 %v3451, %v3782
  %v3784 = vand.u32 %v3783, 4294901760
  %3785 = vmatpush1.msra.mxu0 %v3784
  %3786 = vmatprep.subr.mxu0 0.0
  %3787 = vmatpush1.msra.mxu0 0.0
  %3788 = vmatprep.subr.mxu0 0.0
  %3789 = vmatpush1.msra.mxu0 0.0
  %3790 = vmatprep.subr.mxu0 0.0
  %3791 = vmatpush1.msra.mxu0 0.0
  %3792 = vmatprep.subr.mxu0 0.0
  %3793 = vmatpush1.msra.mxu0 0.0
  %3794 = vmatprep.subr.mxu0 0.0
  %3795 = vmatpush1.msra.mxu0 0.0
  %3796 = vmatprep.subr.mxu0 0.0
  %3797 = vmatpush1.msra.mxu0 0.0
  %3798 = vmatprep.subr.mxu0 0.0
  %3799 = vmatpush1.msra.mxu0 0.0
  %3800 = vmatprep.subr.mxu0 0.0
  %3801 = vmatpush1.msra.mxu0 0.0
  %3802 = vmatprep.subr.mxu0 0.0
  %3803 = vmatpush1.msra.mxu0 0.0
  %3804 = vmatprep.subr.mxu0 0.0
  %3805 = vmatpush1.msra.mxu0 0.0
  %3806 = vmatprep.subr.mxu0 0.0
  %3807 = vmatpush1.msra.mxu0 0.0
  %3808 = vmatprep.subr.mxu0 0.0
  %3809 = vmatpush1.msra.mxu0 0.0
  %3810 = vmatprep.subr.mxu0 0.0
  %3811 = vmatpush1.msra.mxu0 0.0
  %3812 = vmatprep.subr.mxu0 0.0
  %3813 = vmatpush1.msra.mxu0 0.0
  %3814 = vmatprep.subr.mxu0 0.0
  %3815 = vmatpush1.msra.mxu0 0.0
  %3816 = vmatprep.subr.mxu0 0.0
  %3817 = vmatpush1.msra.mxu0 0.0
  %3818 = vmatprep.subr.mxu0 0.0
  %3819 = vmatpush1.msra.mxu0 0.0
  %3820 = vmatprep.subr.mxu0 0.0
  %3821 = vmatpush1.msra.mxu0 0.0
  %3822 = vmatprep.subr.mxu0 0.0
  %3823 = vmatpush1.msra.mxu0 0.0
  %3824 = vmatprep.subr.mxu0 0.0
  %3825 = vmatpush1.msra.mxu0 0.0
  %3826 = vmatprep.subr.mxu0 0.0
  %3827 = vmatpush1.msra.mxu0 0.0
  %3828 = vmatprep.subr.mxu0 0.0
  %3829 = vmatpush1.msra.mxu0 0.0
  %3830 = vmatprep.subr.mxu0 0.0
  %3831 = vmatpush1.msra.mxu0 0.0
  %3832 = vmatprep.subr.mxu0 0.0
  %3833 = vmatpush1.msra.mxu0 0.0
  %3834 = vmatprep.subr.mxu0 0.0
  %3835 = vmatpush1.msra.mxu0 0.0
  %3836 = vmatprep.subr.mxu0 0.0
  %3837 = vmatpush1.msra.mxu0 0.0
  %3838 = vmatprep.subr.mxu0 0.0
  %3839 = vmatpush1.msra.mxu0 0.0
  %3840 = vmatprep.subr.mxu0 0.0
  %3841 = vmatpush1.msra.mxu0 0.0
  %3842 = vmatprep.subr.mxu0 0.0
  %3843 = vmatpush1.msra.mxu0 0.0
  %3844 = vmatprep.mubr.f32.mxu0 0.0
  %v3845 = vand.u32 %v3448, 4294901760
  %3846 = vmatmul.mubr.f32.gmra.mrb[0].mxu0 %v3845
  %v3847 = vpop.f32.mrb[0].mxu0
  %v3848 = vadd.f32 %v3768, %v3847
  %v3849 = vpop.f32.mrb[0].mxu0
  %3850 = vdwg.mxu0
  %3851 = vmatprep.subr.mxu0 0.0
  %v3852 = vand.u32 %v2431, 4294901760
  %3853 = vmatpush1.msra.mxu0 %v3852
  %3854 = vmatprep.subr.mxu0 0.0
  %v3855 = vand.u32 %v2432, 4294901760
  %3856 = vmatpush1.msra.mxu0 %v3855
  %3857 = vmatprep.subr.mxu0 0.0
  %v3858 = vand.u32 %v3451, 4294901760
  %3859 = vmatpush1.msra.mxu0 %v3858
  %3860 = vmatprep.subr.mxu0 0.0
  %3861 = vmatpush1.msra.mxu0 0.0
  %3862 = vmatprep.subr.mxu0 0.0
  %3863 = vmatpush1.msra.mxu0 0.0
  %3864 = vmatprep.subr.mxu0 0.0
  %3865 = vmatpush1.msra.mxu0 0.0
  %3866 = vmatprep.subr.mxu0 0.0
  %3867 = vmatpush1.msra.mxu0 0.0
  %3868 = vmatprep.subr.mxu0 0.0
  %3869 = vmatpush1.msra.mxu0 0.0
  %3870 = vmatprep.subr.mxu0 0.0
  %3871 = vmatpush1.msra.mxu0 0.0
  %3872 = vmatprep.subr.mxu0 0.0
  %3873 = vmatpush1.msra.mxu0 0.0
  %3874 = vmatprep.subr.mxu0 0.0
  %3875 = vmatpush1.msra.mxu0 0.0
  %3876 = vmatprep.subr.mxu0 0.0
  %3877 = vmatpush1.msra.mxu0 0.0
  %3878 = vmatprep.subr.mxu0 0.0
  %3879 = vmatpush1.msra.mxu0 0.0
  %3880 = vmatprep.subr.mxu0 0.0
  %3881 = vmatpush1.msra.mxu0 0.0
  %3882 = vmatprep.subr.mxu0 0.0
  %3883 = vmatpush1.msra.mxu0 0.0
  %3884 = vmatprep.subr.mxu0 0.0
  %3885 = vmatpush1.msra.mxu0 0.0
  %3886 = vmatprep.subr.mxu0 0.0
  %3887 = vmatpush1.msra.mxu0 0.0
  %3888 = vmatprep.subr.mxu0 0.0
  %3889 = vmatpush1.msra.mxu0 0.0
  %3890 = vmatprep.subr.mxu0 0.0
  %3891 = vmatpush1.msra.mxu0 0.0
  %3892 = vmatprep.subr.mxu0 0.0
  %3893 = vmatpush1.msra.mxu0 0.0
  %3894 = vmatprep.subr.mxu0 0.0
  %3895 = vmatpush1.msra.mxu0 0.0
  %3896 = vmatprep.subr.mxu0 0.0
  %3897 = vmatpush1.msra.mxu0 0.0
  %3898 = vmatprep.subr.mxu0 0.0
  %3899 = vmatpush1.msra.mxu0 0.0
  %3900 = vmatprep.subr.mxu0 0.0
  %3901 = vmatpush1.msra.mxu0 0.0
  %3902 = vmatprep.subr.mxu0 0.0
  %3903 = vmatpush1.msra.mxu0 0.0
  %3904 = vmatprep.subr.mxu0 0.0
  %3905 = vmatpush1.msra.mxu0 0.0
  %3906 = vmatprep.subr.mxu0 0.0
  %3907 = vmatpush1.msra.mxu0 0.0
  %3908 = vmatprep.subr.mxu0 0.0
  %3909 = vmatpush1.msra.mxu0 0.0
  %3910 = vmatprep.subr.mxu0 0.0
  %3911 = vmatpush1.msra.mxu0 0.0
  %3912 = vmatprep.subr.mxu0 0.0
  %3913 = vmatpush1.msra.mxu0 0.0
  %3914 = vmatprep.subr.mxu0 0.0
  %3915 = vmatpush1.msra.mxu0 0.0
  %3916 = vmatprep.subr.mxu0 0.0
  %3917 = vmatpush1.msra.mxu0 0.0
  %3918 = vmatprep.mubr.f32.mxu0 0.0
  %v3919 = vand.u32 %v3448, 4294901760
  %3920 = vmatmul.mubr.f32.gmra.mrb[0].mxu0 %v3919
  %v3921 = vpop.f32.mrb[0].mxu0
  %v3922 = vadd.f32 %v3848, %v3921
  %v3923 = vpop.f32.mrb[0].mxu0
  %3924 = vdwg.mxu0
  %v3925 = vmul.f32 %v3922, %v3922
  %vm3926 = vcmask 259072
  %v3927 = vsel %vm3926, %v3925, 0.0
  %3928 = vadd.xlane.f32.xlu0 %v3927
  %v3929 = vpop.xlane.xlu0 %3928
  %v3930 = vmax.f32 %v3929, 1e-12
  %v3931 = vrsqrt.pop %v3930
  %v3932 = vmul.f32 %v3922, %v3931
  %v3934 = vsel %vm3434, %v3932, 0
  %v3937 = vsel %vm3434, %v3440, 0
  %3939 = vmatprep.subr.mxu0 0.0
  %v3940 = vand.u32 %v3937, 4294901760
  %3941 = vmatpush1.xpose.msra.mxu0 %v3940
  %3942 = vmatprep.subr.mxu0 0.0
  %3943 = vmatpush1.xpose.msra.mxu0 0.0
  %3944 = vmatprep.subr.mxu0 0.0
  %3945 = vmatpush1.xpose.msra.mxu0 0.0
  %3946 = vmatprep.subr.mxu0 0.0
  %3947 = vmatpush1.xpose.msra.mxu0 0.0
  %3948 = vmatprep.subr.mxu0 0.0
  %3949 = vmatpush1.xpose.msra.mxu0 0.0
  %3950 = vmatprep.subr.mxu0 0.0
  %3951 = vmatpush1.xpose.msra.mxu0 0.0
  %3952 = vmatprep.subr.mxu0 0.0
  %3953 = vmatpush1.xpose.msra.mxu0 0.0
  %3954 = vmatprep.subr.mxu0 0.0
  %3955 = vmatpush1.xpose.msra.mxu0 0.0
  %3956 = vmatprep.subr.mxu0 0.0
  %3957 = vmatpush1.xpose.msra.mxu0 0.0
  %3958 = vmatprep.subr.mxu0 0.0
  %3959 = vmatpush1.xpose.msra.mxu0 0.0
  %3960 = vmatprep.subr.mxu0 0.0
  %3961 = vmatpush1.xpose.msra.mxu0 0.0
  %3962 = vmatprep.subr.mxu0 0.0
  %3963 = vmatpush1.xpose.msra.mxu0 0.0
  %3964 = vmatprep.subr.mxu0 0.0
  %3965 = vmatpush1.xpose.msra.mxu0 0.0
  %3966 = vmatprep.subr.mxu0 0.0
  %3967 = vmatpush1.xpose.msra.mxu0 0.0
  %3968 = vmatprep.subr.mxu0 0.0
  %3969 = vmatpush1.xpose.msra.mxu0 0.0
  %3970 = vmatprep.subr.mxu0 0.0
  %3971 = vmatpush1.xpose.msra.mxu0 0.0
  %3972 = vmatprep.subr.mxu0 0.0
  %3973 = vmatpush1.xpose.msra.mxu0 0.0
  %3974 = vmatprep.subr.mxu0 0.0
  %3975 = vmatpush1.xpose.msra.mxu0 0.0
  %3976 = vmatprep.subr.mxu0 0.0
  %3977 = vmatpush1.xpose.msra.mxu0 0.0
  %3978 = vmatprep.subr.mxu0 0.0
  %3979 = vmatpush1.xpose.msra.mxu0 0.0
  %3980 = vmatprep.subr.mxu0 0.0
  %3981 = vmatpush1.xpose.msra.mxu0 0.0
  %3982 = vmatprep.subr.mxu0 0.0
  %3983 = vmatpush1.xpose.msra.mxu0 0.0
  %3984 = vmatprep.subr.mxu0 0.0
  %3985 = vmatpush1.xpose.msra.mxu0 0.0
  %3986 = vmatprep.subr.mxu0 0.0
  %3987 = vmatpush1.xpose.msra.mxu0 0.0
  %3988 = vmatprep.subr.mxu0 0.0
  %3989 = vmatpush1.xpose.msra.mxu0 0.0
  %3990 = vmatprep.subr.mxu0 0.0
  %3991 = vmatpush1.xpose.msra.mxu0 0.0
  %3992 = vmatprep.subr.mxu0 0.0
  %3993 = vmatpush1.xpose.msra.mxu0 0.0
  %3994 = vmatprep.subr.mxu0 0.0
  %3995 = vmatpush1.xpose.msra.mxu0 0.0
  %3996 = vmatprep.subr.mxu0 0.0
  %3997 = vmatpush1.xpose.msra.mxu0 0.0
  %3998 = vmatprep.subr.mxu0 0.0
  %3999 = vmatpush1.xpose.msra.mxu0 0.0
  %4000 = vmatprep.subr.mxu0 0.0
  %4001 = vmatpush1.xpose.msra.mxu0 0.0
  %4002 = vmatprep.subr.mxu0 0.0
  %4003 = vmatpush1.xpose.msra.mxu0 0.0
  %4004 = vmatprep.mubr.f32.mxu0 0.0
  %v4005 = vand.u32 %v3934, 4294901760
  %v4006 = vsub.f32 %v3934, %v4005
  %v4007 = vand.u32 %v4006, 4294901760
  %v4008 = vsub.f32 %v4006, %v4007
  %v4009 = vand.u32 %v4008, 4294901760
  %4010 = vmatmul.mubr.f32.gmra.mrb[0].mxu0 %v4009
  %v4011 = vpop.f32.mrb[0].mxu0
  %v4012 = vadd.f32 0.0, %v4011
  %v4013 = vpop.f32.mrb[0].mxu0
  %4014 = vdwg.mxu0
  %4015 = vmatprep.subr.mxu0 0.0
  %v4016 = vand.u32 %v3937, 4294901760
  %v4017 = vsub.f32 %v3937, %v4016
  %v4018 = vand.u32 %v4017, 4294901760
  %v4019 = vsub.f32 %v4017, %v4018
  %v4020 = vand.u32 %v4019, 4294901760
  %4021 = vmatpush1.xpose.msra.mxu0 %v4020
  %4022 = vmatprep.subr.mxu0 0.0
  %4023 = vmatpush1.xpose.msra.mxu0 0.0
  %4024 = vmatprep.subr.mxu0 0.0
  %4025 = vmatpush1.xpose.msra.mxu0 0.0
  %4026 = vmatprep.subr.mxu0 0.0
  %4027 = vmatpush1.xpose.msra.mxu0 0.0
  %4028 = vmatprep.subr.mxu0 0.0
  %4029 = vmatpush1.xpose.msra.mxu0 0.0
  %4030 = vmatprep.subr.mxu0 0.0
  %4031 = vmatpush1.xpose.msra.mxu0 0.0
  %4032 = vmatprep.subr.mxu0 0.0
  %4033 = vmatpush1.xpose.msra.mxu0 0.0
  %4034 = vmatprep.subr.mxu0 0.0
  %4035 = vmatpush1.xpose.msra.mxu0 0.0
  %4036 = vmatprep.subr.mxu0 0.0
  %4037 = vmatpush1.xpose.msra.mxu0 0.0
  %4038 = vmatprep.subr.mxu0 0.0
  %4039 = vmatpush1.xpose.msra.mxu0 0.0
  %4040 = vmatprep.subr.mxu0 0.0
  %4041 = vmatpush1.xpose.msra.mxu0 0.0
  %4042 = vmatprep.subr.mxu0 0.0
  %4043 = vmatpush1.xpose.msra.mxu0 0.0
  %4044 = vmatprep.subr.mxu0 0.0
  %4045 = vmatpush1.xpose.msra.mxu0 0.0
  %4046 = vmatprep.subr.mxu0 0.0
  %4047 = vmatpush1.xpose.msra.mxu0 0.0
  %4048 = vmatprep.subr.mxu0 0.0
  %4049 = vmatpush1.xpose.msra.mxu0 0.0
  %4050 = vmatprep.subr.mxu0 0.0
  %4051 = vmatpush1.xpose.msra.mxu0 0.0
  %4052 = vmatprep.subr.mxu0 0.0
  %4053 = vmatpush1.xpose.msra.mxu0 0.0
  %4054 = vmatprep.subr.mxu0 0.0
  %4055 = vmatpush1.xpose.msra.mxu0 0.0
  %4056 = vmatprep.subr.mxu0 0.0
  %4057 = vmatpush1.xpose.msra.mxu0 0.0
  %4058 = vmatprep.subr.mxu0 0.0
  %4059 = vmatpush1.xpose.msra.mxu0 0.0
  %4060 = vmatprep.subr.mxu0 0.0
  %4061 = vmatpush1.xpose.msra.mxu0 0.0
  %4062 = vmatprep.subr.mxu0 0.0
  %4063 = vmatpush1.xpose.msra.mxu0 0.0
  %4064 = vmatprep.subr.mxu0 0.0
  %4065 = vmatpush1.xpose.msra.mxu0 0.0
  %4066 = vmatprep.subr.mxu0 0.0
  %4067 = vmatpush1.xpose.msra.mxu0 0.0
  %4068 = vmatprep.subr.mxu0 0.0
  %4069 = vmatpush1.xpose.msra.mxu0 0.0
  %4070 = vmatprep.subr.mxu0 0.0
  %4071 = vmatpush1.xpose.msra.mxu0 0.0
  %4072 = vmatprep.subr.mxu0 0.0
  %4073 = vmatpush1.xpose.msra.mxu0 0.0
  %4074 = vmatprep.subr.mxu0 0.0
  %4075 = vmatpush1.xpose.msra.mxu0 0.0
  %4076 = vmatprep.subr.mxu0 0.0
  %4077 = vmatpush1.xpose.msra.mxu0 0.0
  %4078 = vmatprep.subr.mxu0 0.0
  %4079 = vmatpush1.xpose.msra.mxu0 0.0
  %4080 = vmatprep.subr.mxu0 0.0
  %4081 = vmatpush1.xpose.msra.mxu0 0.0
  %4082 = vmatprep.subr.mxu0 0.0
  %4083 = vmatpush1.xpose.msra.mxu0 0.0
  %4084 = vmatprep.mubr.f32.mxu0 0.0
  %v4085 = vand.u32 %v3934, 4294901760
  %4086 = vmatmul.mubr.f32.gmra.mrb[0].mxu0 %v4085
  %v4087 = vpop.f32.mrb[0].mxu0
  %v4088 = vadd.f32 %v4012, %v4087
  %v4089 = vpop.f32.mrb[0].mxu0
  %4090 = vdwg.mxu0
  %4091 = vmatprep.subr.mxu0 0.0
  %v4092 = vand.u32 %v3937, 4294901760
  %v4093 = vsub.f32 %v3937, %v4092
  %4094 = vmatpush1.xpose.msra.mxu0 %v4093
  %4095 = vmatprep.subr.mxu0 0.0
  %4096 = vmatpush1.xpose.msra.mxu0 0.0
  %4097 = vmatprep.subr.mxu0 0.0
  %4098 = vmatpush1.xpose.msra.mxu0 0.0
  %4099 = vmatprep.subr.mxu0 0.0
  %4100 = vmatpush1.xpose.msra.mxu0 0.0
  %4101 = vmatprep.subr.mxu0 0.0
  %4102 = vmatpush1.xpose.msra.mxu0 0.0
  %4103 = vmatprep.subr.mxu0 0.0
  %4104 = vmatpush1.xpose.msra.mxu0 0.0
  %4105 = vmatprep.subr.mxu0 0.0
  %4106 = vmatpush1.xpose.msra.mxu0 0.0
  %4107 = vmatprep.subr.mxu0 0.0
  %4108 = vmatpush1.xpose.msra.mxu0 0.0
  %4109 = vmatprep.subr.mxu0 0.0
  %4110 = vmatpush1.xpose.msra.mxu0 0.0
  %4111 = vmatprep.subr.mxu0 0.0
  %4112 = vmatpush1.xpose.msra.mxu0 0.0
  %4113 = vmatprep.subr.mxu0 0.0
  %4114 = vmatpush1.xpose.msra.mxu0 0.0
  %4115 = vmatprep.subr.mxu0 0.0
  %4116 = vmatpush1.xpose.msra.mxu0 0.0
  %4117 = vmatprep.subr.mxu0 0.0
  %4118 = vmatpush1.xpose.msra.mxu0 0.0
  %4119 = vmatprep.subr.mxu0 0.0
  %4120 = vmatpush1.xpose.msra.mxu0 0.0
  %4121 = vmatprep.subr.mxu0 0.0
  %4122 = vmatpush1.xpose.msra.mxu0 0.0
  %4123 = vmatprep.subr.mxu0 0.0
  %4124 = vmatpush1.xpose.msra.mxu0 0.0
  %4125 = vmatprep.subr.mxu0 0.0
  %4126 = vmatpush1.xpose.msra.mxu0 0.0
  %4127 = vmatprep.subr.mxu0 0.0
  %4128 = vmatpush1.xpose.msra.mxu0 0.0
  %4129 = vmatprep.subr.mxu0 0.0
  %4130 = vmatpush1.xpose.msra.mxu0 0.0
  %4131 = vmatprep.subr.mxu0 0.0
  %4132 = vmatpush1.xpose.msra.mxu0 0.0
  %4133 = vmatprep.subr.mxu0 0.0
  %4134 = vmatpush1.xpose.msra.mxu0 0.0
  %4135 = vmatprep.subr.mxu0 0.0
  %4136 = vmatpush1.xpose.msra.mxu0 0.0
  %4137 = vmatprep.subr.mxu0 0.0
  %4138 = vmatpush1.xpose.msra.mxu0 0.0
  %4139 = vmatprep.subr.mxu0 0.0
  %4140 = vmatpush1.xpose.msra.mxu0 0.0
  %4141 = vmatprep.subr.mxu0 0.0
  %4142 = vmatpush1.xpose.msra.mxu0 0.0
  %4143 = vmatprep.subr.mxu0 0.0
  %4144 = vmatpush1.xpose.msra.mxu0 0.0
  %4145 = vmatprep.subr.mxu0 0.0
  %4146 = vmatpush1.xpose.msra.mxu0 0.0
  %4147 = vmatprep.subr.mxu0 0.0
  %4148 = vmatpush1.xpose.msra.mxu0 0.0
  %4149 = vmatprep.subr.mxu0 0.0
  %4150 = vmatpush1.xpose.msra.mxu0 0.0
  %4151 = vmatprep.subr.mxu0 0.0
  %4152 = vmatpush1.xpose.msra.mxu0 0.0
  %4153 = vmatprep.subr.mxu0 0.0
  %4154 = vmatpush1.xpose.msra.mxu0 0.0
  %4155 = vmatprep.subr.mxu0 0.0
  %4156 = vmatpush1.xpose.msra.mxu0 0.0
  %4157 = vmatprep.mubr.f32.mxu0 0.0
  %v4158 = vand.u32 %v3934, 4294901760
  %v4159 = vsub.f32 %v3934, %v4158
  %4160 = vmatmul.mubr.f32.gmra.mrb[0].mxu0 %v4159
  %v4161 = vpop.f32.mrb[0].mxu0
  %v4162 = vadd.f32 %v4088, %v4161
  %v4163 = vpop.f32.mrb[0].mxu0
  %4164 = vdwg.mxu0
  %4165 = vmatprep.subr.mxu0 0.0
  %v4166 = vand.u32 %v3937, 4294901760
  %4167 = vmatpush1.xpose.msra.mxu0 %v4166
  %4168 = vmatprep.subr.mxu0 0.0
  %4169 = vmatpush1.xpose.msra.mxu0 0.0
  %4170 = vmatprep.subr.mxu0 0.0
  %4171 = vmatpush1.xpose.msra.mxu0 0.0
  %4172 = vmatprep.subr.mxu0 0.0
  %4173 = vmatpush1.xpose.msra.mxu0 0.0
  %4174 = vmatprep.subr.mxu0 0.0
  %4175 = vmatpush1.xpose.msra.mxu0 0.0
  %4176 = vmatprep.subr.mxu0 0.0
  %4177 = vmatpush1.xpose.msra.mxu0 0.0
  %4178 = vmatprep.subr.mxu0 0.0
  %4179 = vmatpush1.xpose.msra.mxu0 0.0
  %4180 = vmatprep.subr.mxu0 0.0
  %4181 = vmatpush1.xpose.msra.mxu0 0.0
  %4182 = vmatprep.subr.mxu0 0.0
  %4183 = vmatpush1.xpose.msra.mxu0 0.0
  %4184 = vmatprep.subr.mxu0 0.0
  %4185 = vmatpush1.xpose.msra.mxu0 0.0
  %4186 = vmatprep.subr.mxu0 0.0
  %4187 = vmatpush1.xpose.msra.mxu0 0.0
  %4188 = vmatprep.subr.mxu0 0.0
  %4189 = vmatpush1.xpose.msra.mxu0 0.0
  %4190 = vmatprep.subr.mxu0 0.0
  %4191 = vmatpush1.xpose.msra.mxu0 0.0
  %4192 = vmatprep.subr.mxu0 0.0
  %4193 = vmatpush1.xpose.msra.mxu0 0.0
  %4194 = vmatprep.subr.mxu0 0.0
  %4195 = vmatpush1.xpose.msra.mxu0 0.0
  %4196 = vmatprep.subr.mxu0 0.0
  %4197 = vmatpush1.xpose.msra.mxu0 0.0
  %4198 = vmatprep.subr.mxu0 0.0
  %4199 = vmatpush1.xpose.msra.mxu0 0.0
  %4200 = vmatprep.subr.mxu0 0.0
  %4201 = vmatpush1.xpose.msra.mxu0 0.0
  %4202 = vmatprep.subr.mxu0 0.0
  %4203 = vmatpush1.xpose.msra.mxu0 0.0
  %4204 = vmatprep.subr.mxu0 0.0
  %4205 = vmatpush1.xpose.msra.mxu0 0.0
  %4206 = vmatprep.subr.mxu0 0.0
  %4207 = vmatpush1.xpose.msra.mxu0 0.0
  %4208 = vmatprep.subr.mxu0 0.0
  %4209 = vmatpush1.xpose.msra.mxu0 0.0
  %4210 = vmatprep.subr.mxu0 0.0
  %4211 = vmatpush1.xpose.msra.mxu0 0.0
  %4212 = vmatprep.subr.mxu0 0.0
  %4213 = vmatpush1.xpose.msra.mxu0 0.0
  %4214 = vmatprep.subr.mxu0 0.0
  %4215 = vmatpush1.xpose.msra.mxu0 0.0
  %4216 = vmatprep.subr.mxu0 0.0
  %4217 = vmatpush1.xpose.msra.mxu0 0.0
  %4218 = vmatprep.subr.mxu0 0.0
  %4219 = vmatpush1.xpose.msra.mxu0 0.0
  %4220 = vmatprep.subr.mxu0 0.0
  %4221 = vmatpush1.xpose.msra.mxu0 0.0
  %4222 = vmatprep.subr.mxu0 0.0
  %4223 = vmatpush1.xpose.msra.mxu0 0.0
  %4224 = vmatprep.subr.mxu0 0.0
  %4225 = vmatpush1.xpose.msra.mxu0 0.0
  %4226 = vmatprep.subr.mxu0 0.0
  %4227 = vmatpush1.xpose.msra.mxu0 0.0
  %4228 = vmatprep.subr.mxu0 0.0
  %4229 = vmatpush1.xpose.msra.mxu0 0.0
  %4230 = vmatprep.mubr.f32.mxu0 0.0
  %v4231 = vand.u32 %v3934, 4294901760
  %v4232 = vsub.f32 %v3934, %v4231
  %v4233 = vand.u32 %v4232, 4294901760
  %4234 = vmatmul.mubr.f32.gmra.mrb[0].mxu0 %v4233
  %v4235 = vpop.f32.mrb[0].mxu0
  %v4236 = vadd.f32 %v4162, %v4235
  %v4237 = vpop.f32.mrb[0].mxu0
  %4238 = vdwg.mxu0
  %4239 = vmatprep.subr.mxu0 0.0
  %v4240 = vand.u32 %v3937, 4294901760
  %v4241 = vsub.f32 %v3937, %v4240
  %v4242 = vand.u32 %v4241, 4294901760
  %4243 = vmatpush1.xpose.msra.mxu0 %v4242
  %4244 = vmatprep.subr.mxu0 0.0
  %4245 = vmatpush1.xpose.msra.mxu0 0.0
  %4246 = vmatprep.subr.mxu0 0.0
  %4247 = vmatpush1.xpose.msra.mxu0 0.0
  %4248 = vmatprep.subr.mxu0 0.0
  %4249 = vmatpush1.xpose.msra.mxu0 0.0
  %4250 = vmatprep.subr.mxu0 0.0
  %4251 = vmatpush1.xpose.msra.mxu0 0.0
  %4252 = vmatprep.subr.mxu0 0.0
  %4253 = vmatpush1.xpose.msra.mxu0 0.0
  %4254 = vmatprep.subr.mxu0 0.0
  %4255 = vmatpush1.xpose.msra.mxu0 0.0
  %4256 = vmatprep.subr.mxu0 0.0
  %4257 = vmatpush1.xpose.msra.mxu0 0.0
  %4258 = vmatprep.subr.mxu0 0.0
  %4259 = vmatpush1.xpose.msra.mxu0 0.0
  %4260 = vmatprep.subr.mxu0 0.0
  %4261 = vmatpush1.xpose.msra.mxu0 0.0
  %4262 = vmatprep.subr.mxu0 0.0
  %4263 = vmatpush1.xpose.msra.mxu0 0.0
  %4264 = vmatprep.subr.mxu0 0.0
  %4265 = vmatpush1.xpose.msra.mxu0 0.0
  %4266 = vmatprep.subr.mxu0 0.0
  %4267 = vmatpush1.xpose.msra.mxu0 0.0
  %4268 = vmatprep.subr.mxu0 0.0
  %4269 = vmatpush1.xpose.msra.mxu0 0.0
  %4270 = vmatprep.subr.mxu0 0.0
  %4271 = vmatpush1.xpose.msra.mxu0 0.0
  %4272 = vmatprep.subr.mxu0 0.0
  %4273 = vmatpush1.xpose.msra.mxu0 0.0
  %4274 = vmatprep.subr.mxu0 0.0
  %4275 = vmatpush1.xpose.msra.mxu0 0.0
  %4276 = vmatprep.subr.mxu0 0.0
  %4277 = vmatpush1.xpose.msra.mxu0 0.0
  %4278 = vmatprep.subr.mxu0 0.0
  %4279 = vmatpush1.xpose.msra.mxu0 0.0
  %4280 = vmatprep.subr.mxu0 0.0
  %4281 = vmatpush1.xpose.msra.mxu0 0.0
  %4282 = vmatprep.subr.mxu0 0.0
  %4283 = vmatpush1.xpose.msra.mxu0 0.0
  %4284 = vmatprep.subr.mxu0 0.0
  %4285 = vmatpush1.xpose.msra.mxu0 0.0
  %4286 = vmatprep.subr.mxu0 0.0
  %4287 = vmatpush1.xpose.msra.mxu0 0.0
  %4288 = vmatprep.subr.mxu0 0.0
  %4289 = vmatpush1.xpose.msra.mxu0 0.0
  %4290 = vmatprep.subr.mxu0 0.0
  %4291 = vmatpush1.xpose.msra.mxu0 0.0
  %4292 = vmatprep.subr.mxu0 0.0
  %4293 = vmatpush1.xpose.msra.mxu0 0.0
  %4294 = vmatprep.subr.mxu0 0.0
  %4295 = vmatpush1.xpose.msra.mxu0 0.0
  %4296 = vmatprep.subr.mxu0 0.0
  %4297 = vmatpush1.xpose.msra.mxu0 0.0
  %4298 = vmatprep.subr.mxu0 0.0
  %4299 = vmatpush1.xpose.msra.mxu0 0.0
  %4300 = vmatprep.subr.mxu0 0.0
  %4301 = vmatpush1.xpose.msra.mxu0 0.0
  %4302 = vmatprep.subr.mxu0 0.0
  %4303 = vmatpush1.xpose.msra.mxu0 0.0
  %4304 = vmatprep.subr.mxu0 0.0
  %4305 = vmatpush1.xpose.msra.mxu0 0.0
  %4306 = vmatprep.mubr.f32.mxu0 0.0
  %v4307 = vand.u32 %v3934, 4294901760
  %4308 = vmatmul.mubr.f32.gmra.mrb[0].mxu0 %v4307
  %v4309 = vpop.f32.mrb[0].mxu0
  %v4310 = vadd.f32 %v4236, %v4309
  %v4311 = vpop.f32.mrb[0].mxu0
  %4312 = vdwg.mxu0
  %4313 = vmatprep.subr.mxu0 0.0
  %v4314 = vand.u32 %v3937, 4294901760
  %4315 = vmatpush1.xpose.msra.mxu0 %v4314
  %4316 = vmatprep.subr.mxu0 0.0
  %4317 = vmatpush1.xpose.msra.mxu0 0.0
  %4318 = vmatprep.subr.mxu0 0.0
  %4319 = vmatpush1.xpose.msra.mxu0 0.0
  %4320 = vmatprep.subr.mxu0 0.0
  %4321 = vmatpush1.xpose.msra.mxu0 0.0
  %4322 = vmatprep.subr.mxu0 0.0
  %4323 = vmatpush1.xpose.msra.mxu0 0.0
  %4324 = vmatprep.subr.mxu0 0.0
  %4325 = vmatpush1.xpose.msra.mxu0 0.0
  %4326 = vmatprep.subr.mxu0 0.0
  %4327 = vmatpush1.xpose.msra.mxu0 0.0
  %4328 = vmatprep.subr.mxu0 0.0
  %4329 = vmatpush1.xpose.msra.mxu0 0.0
  %4330 = vmatprep.subr.mxu0 0.0
  %4331 = vmatpush1.xpose.msra.mxu0 0.0
  %4332 = vmatprep.subr.mxu0 0.0
  %4333 = vmatpush1.xpose.msra.mxu0 0.0
  %4334 = vmatprep.subr.mxu0 0.0
  %4335 = vmatpush1.xpose.msra.mxu0 0.0
  %4336 = vmatprep.subr.mxu0 0.0
  %4337 = vmatpush1.xpose.msra.mxu0 0.0
  %4338 = vmatprep.subr.mxu0 0.0
  %4339 = vmatpush1.xpose.msra.mxu0 0.0
  %4340 = vmatprep.subr.mxu0 0.0
  %4341 = vmatpush1.xpose.msra.mxu0 0.0
  %4342 = vmatprep.subr.mxu0 0.0
  %4343 = vmatpush1.xpose.msra.mxu0 0.0
  %4344 = vmatprep.subr.mxu0 0.0
  %4345 = vmatpush1.xpose.msra.mxu0 0.0
  %4346 = vmatprep.subr.mxu0 0.0
  %4347 = vmatpush1.xpose.msra.mxu0 0.0
  %4348 = vmatprep.subr.mxu0 0.0
  %4349 = vmatpush1.xpose.msra.mxu0 0.0
  %4350 = vmatprep.subr.mxu0 0.0
  %4351 = vmatpush1.xpose.msra.mxu0 0.0
  %4352 = vmatprep.subr.mxu0 0.0
  %4353 = vmatpush1.xpose.msra.mxu0 0.0
  %4354 = vmatprep.subr.mxu0 0.0
  %4355 = vmatpush1.xpose.msra.mxu0 0.0
  %4356 = vmatprep.subr.mxu0 0.0
  %4357 = vmatpush1.xpose.msra.mxu0 0.0
  %4358 = vmatprep.subr.mxu0 0.0
  %4359 = vmatpush1.xpose.msra.mxu0 0.0
  %4360 = vmatprep.subr.mxu0 0.0
  %4361 = vmatpush1.xpose.msra.mxu0 0.0
  %4362 = vmatprep.subr.mxu0 0.0
  %4363 = vmatpush1.xpose.msra.mxu0 0.0
  %4364 = vmatprep.subr.mxu0 0.0
  %4365 = vmatpush1.xpose.msra.mxu0 0.0
  %4366 = vmatprep.subr.mxu0 0.0
  %4367 = vmatpush1.xpose.msra.mxu0 0.0
  %4368 = vmatprep.subr.mxu0 0.0
  %4369 = vmatpush1.xpose.msra.mxu0 0.0
  %4370 = vmatprep.subr.mxu0 0.0
  %4371 = vmatpush1.xpose.msra.mxu0 0.0
  %4372 = vmatprep.subr.mxu0 0.0
  %4373 = vmatpush1.xpose.msra.mxu0 0.0
  %4374 = vmatprep.subr.mxu0 0.0
  %4375 = vmatpush1.xpose.msra.mxu0 0.0
  %4376 = vmatprep.subr.mxu0 0.0
  %4377 = vmatpush1.xpose.msra.mxu0 0.0
  %4378 = vmatprep.mubr.f32.mxu0 0.0
  %v4379 = vand.u32 %v3934, 4294901760
  %4380 = vmatmul.mubr.f32.gmra.mrb[0].mxu0 %v4379
  %v4381 = vpop.f32.mrb[0].mxu0
  %v4382 = vadd.f32 %v4310, %v4381
  %v4383 = vpop.f32.mrb[0].mxu0
  %4384 = vdwg.mxu0
  %s4386 = vtos %v2440
  %v4387 = vstv %s4386
  %v4389 = vmul.f32 %v4387, %v4382
  %vm4390 = vcmask 62464
  %v4391 = vsel %vm4390, %v4389, -inf
  %4392 = vmax.xlane.f32.xlu0 %v4391
  %v4393 = vpop.xlane.xlu0 %4392
  %v4394 = vsub.f32 %v4389, %v4393
  %v4395 = vmul.f32 %v4394, 1.442695
  %v4396 = vpow.pop %v4395
  %v4397 = vsel %vm4390, %v4396, 0.0
  %4398 = vadd.xlane.f32.xlu0 %v4397
  %v4399 = vpop.xlane.xlu0 %4398
  %v4400 = vrcp.pop %v4399
  %v4401 = vmul.f32 %v4396, %v4400
  %v4402 = vlaneseq
  %v4403 = vshrl.u32 %v4402, 7
  %v4404 = vsub.s32 0, %v4403
  %v4405 = vrot.slane %v2438, %v4404
  %vm4406 = vcmask 64512
  %v4408 = vsel %vm4406, %v4401, 0
  %4410 = vmatprep.subr.mxu0 0.0
  %v4411 = vand.u32 %v2434, 4294901760
  %4412 = vmatpush1.msra.mxu0 %v4411
  %4413 = vmatprep.subr.mxu0 0.0
  %4414 = vmatpush1.msra.mxu0 0.0
  %4415 = vmatprep.subr.mxu0 0.0
  %4416 = vmatpush1.msra.mxu0 0.0
  %4417 = vmatprep.subr.mxu0 0.0
  %4418 = vmatpush1.msra.mxu0 0.0
  %4419 = vmatprep.subr.mxu0 0.0
  %4420 = vmatpush1.msra.mxu0 0.0
  %4421 = vmatprep.subr.mxu0 0.0
  %4422 = vmatpush1.msra.mxu0 0.0
  %4423 = vmatprep.subr.mxu0 0.0
  %4424 = vmatpush1.msra.mxu0 0.0
  %4425 = vmatprep.subr.mxu0 0.0
  %4426 = vmatpush1.msra.mxu0 0.0
  %4427 = vmatprep.subr.mxu0 0.0
  %4428 = vmatpush1.msra.mxu0 0.0
  %4429 = vmatprep.subr.mxu0 0.0
  %4430 = vmatpush1.msra.mxu0 0.0
  %4431 = vmatprep.subr.mxu0 0.0
  %4432 = vmatpush1.msra.mxu0 0.0
  %4433 = vmatprep.subr.mxu0 0.0
  %4434 = vmatpush1.msra.mxu0 0.0
  %4435 = vmatprep.subr.mxu0 0.0
  %4436 = vmatpush1.msra.mxu0 0.0
  %4437 = vmatprep.subr.mxu0 0.0
  %4438 = vmatpush1.msra.mxu0 0.0
  %4439 = vmatprep.subr.mxu0 0.0
  %4440 = vmatpush1.msra.mxu0 0.0
  %4441 = vmatprep.subr.mxu0 0.0
  %4442 = vmatpush1.msra.mxu0 0.0
  %4443 = vmatprep.subr.mxu0 0.0
  %4444 = vmatpush1.msra.mxu0 0.0
  %4445 = vmatprep.subr.mxu0 0.0
  %4446 = vmatpush1.msra.mxu0 0.0
  %4447 = vmatprep.subr.mxu0 0.0
  %4448 = vmatpush1.msra.mxu0 0.0
  %4449 = vmatprep.subr.mxu0 0.0
  %4450 = vmatpush1.msra.mxu0 0.0
  %4451 = vmatprep.subr.mxu0 0.0
  %4452 = vmatpush1.msra.mxu0 0.0
  %4453 = vmatprep.subr.mxu0 0.0
  %4454 = vmatpush1.msra.mxu0 0.0
  %4455 = vmatprep.subr.mxu0 0.0
  %4456 = vmatpush1.msra.mxu0 0.0
  %4457 = vmatprep.subr.mxu0 0.0
  %4458 = vmatpush1.msra.mxu0 0.0
  %4459 = vmatprep.subr.mxu0 0.0
  %4460 = vmatpush1.msra.mxu0 0.0
  %4461 = vmatprep.subr.mxu0 0.0
  %4462 = vmatpush1.msra.mxu0 0.0
  %4463 = vmatprep.subr.mxu0 0.0
  %4464 = vmatpush1.msra.mxu0 0.0
  %4465 = vmatprep.subr.mxu0 0.0
  %4466 = vmatpush1.msra.mxu0 0.0
  %4467 = vmatprep.subr.mxu0 0.0
  %4468 = vmatpush1.msra.mxu0 0.0
  %4469 = vmatprep.subr.mxu0 0.0
  %4470 = vmatpush1.msra.mxu0 0.0
  %4471 = vmatprep.subr.mxu0 0.0
  %4472 = vmatpush1.msra.mxu0 0.0
  %4473 = vmatprep.subr.mxu0 0.0
  %4474 = vmatpush1.msra.mxu0 0.0
  %4475 = vmatprep.mubr.f32.mxu0 0.0
  %v4476 = vand.u32 %v4408, 4294901760
  %v4477 = vsub.f32 %v4408, %v4476
  %v4478 = vand.u32 %v4477, 4294901760
  %v4479 = vsub.f32 %v4477, %v4478
  %v4480 = vand.u32 %v4479, 4294901760
  %4481 = vmatmul.mubr.f32.gmra.mrb[0].mxu0 %v4480
  %v4482 = vpop.f32.mrb[0].mxu0
  %v4483 = vadd.f32 %v4405, %v4482
  %v4484 = vpop.f32.mrb[0].mxu0
  %4485 = vdwg.mxu0
  %4486 = vmatprep.subr.mxu0 0.0
  %v4487 = vand.u32 %v2434, 4294901760
  %v4488 = vsub.f32 %v2434, %v4487
  %v4489 = vand.u32 %v4488, 4294901760
  %v4490 = vsub.f32 %v4488, %v4489
  %v4491 = vand.u32 %v4490, 4294901760
  %4492 = vmatpush1.msra.mxu0 %v4491
  %4493 = vmatprep.subr.mxu0 0.0
  %4494 = vmatpush1.msra.mxu0 0.0
  %4495 = vmatprep.subr.mxu0 0.0
  %4496 = vmatpush1.msra.mxu0 0.0
  %4497 = vmatprep.subr.mxu0 0.0
  %4498 = vmatpush1.msra.mxu0 0.0
  %4499 = vmatprep.subr.mxu0 0.0
  %4500 = vmatpush1.msra.mxu0 0.0
  %4501 = vmatprep.subr.mxu0 0.0
  %4502 = vmatpush1.msra.mxu0 0.0
  %4503 = vmatprep.subr.mxu0 0.0
  %4504 = vmatpush1.msra.mxu0 0.0
  %4505 = vmatprep.subr.mxu0 0.0
  %4506 = vmatpush1.msra.mxu0 0.0
  %4507 = vmatprep.subr.mxu0 0.0
  %4508 = vmatpush1.msra.mxu0 0.0
  %4509 = vmatprep.subr.mxu0 0.0
  %4510 = vmatpush1.msra.mxu0 0.0
  %4511 = vmatprep.subr.mxu0 0.0
  %4512 = vmatpush1.msra.mxu0 0.0
  %4513 = vmatprep.subr.mxu0 0.0
  %4514 = vmatpush1.msra.mxu0 0.0
  %4515 = vmatprep.subr.mxu0 0.0
  %4516 = vmatpush1.msra.mxu0 0.0
  %4517 = vmatprep.subr.mxu0 0.0
  %4518 = vmatpush1.msra.mxu0 0.0
  %4519 = vmatprep.subr.mxu0 0.0
  %4520 = vmatpush1.msra.mxu0 0.0
  %4521 = vmatprep.subr.mxu0 0.0
  %4522 = vmatpush1.msra.mxu0 0.0
  %4523 = vmatprep.subr.mxu0 0.0
  %4524 = vmatpush1.msra.mxu0 0.0
  %4525 = vmatprep.subr.mxu0 0.0
  %4526 = vmatpush1.msra.mxu0 0.0
  %4527 = vmatprep.subr.mxu0 0.0
  %4528 = vmatpush1.msra.mxu0 0.0
  %4529 = vmatprep.subr.mxu0 0.0
  %4530 = vmatpush1.msra.mxu0 0.0
  %4531 = vmatprep.subr.mxu0 0.0
  %4532 = vmatpush1.msra.mxu0 0.0
  %4533 = vmatprep.subr.mxu0 0.0
  %4534 = vmatpush1.msra.mxu0 0.0
  %4535 = vmatprep.subr.mxu0 0.0
  %4536 = vmatpush1.msra.mxu0 0.0
  %4537 = vmatprep.subr.mxu0 0.0
  %4538 = vmatpush1.msra.mxu0 0.0
  %4539 = vmatprep.subr.mxu0 0.0
  %4540 = vmatpush1.msra.mxu0 0.0
  %4541 = vmatprep.subr.mxu0 0.0
  %4542 = vmatpush1.msra.mxu0 0.0
  %4543 = vmatprep.subr.mxu0 0.0
  %4544 = vmatpush1.msra.mxu0 0.0
  %4545 = vmatprep.subr.mxu0 0.0
  %4546 = vmatpush1.msra.mxu0 0.0
  %4547 = vmatprep.subr.mxu0 0.0
  %4548 = vmatpush1.msra.mxu0 0.0
  %4549 = vmatprep.subr.mxu0 0.0
  %4550 = vmatpush1.msra.mxu0 0.0
  %4551 = vmatprep.subr.mxu0 0.0
  %4552 = vmatpush1.msra.mxu0 0.0
  %4553 = vmatprep.subr.mxu0 0.0
  %4554 = vmatpush1.msra.mxu0 0.0
  %4555 = vmatprep.mubr.f32.mxu0 0.0
  %v4556 = vand.u32 %v4408, 4294901760
  %4557 = vmatmul.mubr.f32.gmra.mrb[0].mxu0 %v4556
  %v4558 = vpop.f32.mrb[0].mxu0
  %v4559 = vadd.f32 %v4483, %v4558
  %v4560 = vpop.f32.mrb[0].mxu0
  %4561 = vdwg.mxu0
  %4562 = vmatprep.subr.mxu0 0.0
  %v4563 = vand.u32 %v2434, 4294901760
  %v4564 = vsub.f32 %v2434, %v4563
  %4565 = vmatpush1.msra.mxu0 %v4564
  %4566 = vmatprep.subr.mxu0 0.0
  %4567 = vmatpush1.msra.mxu0 0.0
  %4568 = vmatprep.subr.mxu0 0.0
  %4569 = vmatpush1.msra.mxu0 0.0
  %4570 = vmatprep.subr.mxu0 0.0
  %4571 = vmatpush1.msra.mxu0 0.0
  %4572 = vmatprep.subr.mxu0 0.0
  %4573 = vmatpush1.msra.mxu0 0.0
  %4574 = vmatprep.subr.mxu0 0.0
  %4575 = vmatpush1.msra.mxu0 0.0
  %4576 = vmatprep.subr.mxu0 0.0
  %4577 = vmatpush1.msra.mxu0 0.0
  %4578 = vmatprep.subr.mxu0 0.0
  %4579 = vmatpush1.msra.mxu0 0.0
  %4580 = vmatprep.subr.mxu0 0.0
  %4581 = vmatpush1.msra.mxu0 0.0
  %4582 = vmatprep.subr.mxu0 0.0
  %4583 = vmatpush1.msra.mxu0 0.0
  %4584 = vmatprep.subr.mxu0 0.0
  %4585 = vmatpush1.msra.mxu0 0.0
  %4586 = vmatprep.subr.mxu0 0.0
  %4587 = vmatpush1.msra.mxu0 0.0
  %4588 = vmatprep.subr.mxu0 0.0
  %4589 = vmatpush1.msra.mxu0 0.0
  %4590 = vmatprep.subr.mxu0 0.0
  %4591 = vmatpush1.msra.mxu0 0.0
  %4592 = vmatprep.subr.mxu0 0.0
  %4593 = vmatpush1.msra.mxu0 0.0
  %4594 = vmatprep.subr.mxu0 0.0
  %4595 = vmatpush1.msra.mxu0 0.0
  %4596 = vmatprep.subr.mxu0 0.0
  %4597 = vmatpush1.msra.mxu0 0.0
  %4598 = vmatprep.subr.mxu0 0.0
  %4599 = vmatpush1.msra.mxu0 0.0
  %4600 = vmatprep.subr.mxu0 0.0
  %4601 = vmatpush1.msra.mxu0 0.0
  %4602 = vmatprep.subr.mxu0 0.0
  %4603 = vmatpush1.msra.mxu0 0.0
  %4604 = vmatprep.subr.mxu0 0.0
  %4605 = vmatpush1.msra.mxu0 0.0
  %4606 = vmatprep.subr.mxu0 0.0
  %4607 = vmatpush1.msra.mxu0 0.0
  %4608 = vmatprep.subr.mxu0 0.0
  %4609 = vmatpush1.msra.mxu0 0.0
  %4610 = vmatprep.subr.mxu0 0.0
  %4611 = vmatpush1.msra.mxu0 0.0
  %4612 = vmatprep.subr.mxu0 0.0
  %4613 = vmatpush1.msra.mxu0 0.0
  %4614 = vmatprep.subr.mxu0 0.0
  %4615 = vmatpush1.msra.mxu0 0.0
  %4616 = vmatprep.subr.mxu0 0.0
  %4617 = vmatpush1.msra.mxu0 0.0
  %4618 = vmatprep.subr.mxu0 0.0
  %4619 = vmatpush1.msra.mxu0 0.0
  %4620 = vmatprep.subr.mxu0 0.0
  %4621 = vmatpush1.msra.mxu0 0.0
  %4622 = vmatprep.subr.mxu0 0.0
  %4623 = vmatpush1.msra.mxu0 0.0
  %4624 = vmatprep.subr.mxu0 0.0
  %4625 = vmatpush1.msra.mxu0 0.0
  %4626 = vmatprep.subr.mxu0 0.0
  %4627 = vmatpush1.msra.mxu0 0.0
  %4628 = vmatprep.mubr.f32.mxu0 0.0
  %v4629 = vand.u32 %v4408, 4294901760
  %v4630 = vsub.f32 %v4408, %v4629
  %4631 = vmatmul.mubr.f32.gmra.mrb[0].mxu0 %v4630
  %v4632 = vpop.f32.mrb[0].mxu0
  %v4633 = vadd.f32 %v4559, %v4632
  %v4634 = vpop.f32.mrb[0].mxu0
  %4635 = vdwg.mxu0
  %4636 = vmatprep.subr.mxu0 0.0
  %v4637 = vand.u32 %v2434, 4294901760
  %4638 = vmatpush1.msra.mxu0 %v4637
  %4639 = vmatprep.subr.mxu0 0.0
  %4640 = vmatpush1.msra.mxu0 0.0
  %4641 = vmatprep.subr.mxu0 0.0
  %4642 = vmatpush1.msra.mxu0 0.0
  %4643 = vmatprep.subr.mxu0 0.0
  %4644 = vmatpush1.msra.mxu0 0.0
  %4645 = vmatprep.subr.mxu0 0.0
  %4646 = vmatpush1.msra.mxu0 0.0
  %4647 = vmatprep.subr.mxu0 0.0
  %4648 = vmatpush1.msra.mxu0 0.0
  %4649 = vmatprep.subr.mxu0 0.0
  %4650 = vmatpush1.msra.mxu0 0.0
  %4651 = vmatprep.subr.mxu0 0.0
  %4652 = vmatpush1.msra.mxu0 0.0
  %4653 = vmatprep.subr.mxu0 0.0
  %4654 = vmatpush1.msra.mxu0 0.0
  %4655 = vmatprep.subr.mxu0 0.0
  %4656 = vmatpush1.msra.mxu0 0.0
  %4657 = vmatprep.subr.mxu0 0.0
  %4658 = vmatpush1.msra.mxu0 0.0
  %4659 = vmatprep.subr.mxu0 0.0
  %4660 = vmatpush1.msra.mxu0 0.0
  %4661 = vmatprep.subr.mxu0 0.0
  %4662 = vmatpush1.msra.mxu0 0.0
  %4663 = vmatprep.subr.mxu0 0.0
  %4664 = vmatpush1.msra.mxu0 0.0
  %4665 = vmatprep.subr.mxu0 0.0
  %4666 = vmatpush1.msra.mxu0 0.0
  %4667 = vmatprep.subr.mxu0 0.0
  %4668 = vmatpush1.msra.mxu0 0.0
  %4669 = vmatprep.subr.mxu0 0.0
  %4670 = vmatpush1.msra.mxu0 0.0
  %4671 = vmatprep.subr.mxu0 0.0
  %4672 = vmatpush1.msra.mxu0 0.0
  %4673 = vmatprep.subr.mxu0 0.0
  %4674 = vmatpush1.msra.mxu0 0.0
  %4675 = vmatprep.subr.mxu0 0.0
  %4676 = vmatpush1.msra.mxu0 0.0
  %4677 = vmatprep.subr.mxu0 0.0
  %4678 = vmatpush1.msra.mxu0 0.0
  %4679 = vmatprep.subr.mxu0 0.0
  %4680 = vmatpush1.msra.mxu0 0.0
  %4681 = vmatprep.subr.mxu0 0.0
  %4682 = vmatpush1.msra.mxu0 0.0
  %4683 = vmatprep.subr.mxu0 0.0
  %4684 = vmatpush1.msra.mxu0 0.0
  %4685 = vmatprep.subr.mxu0 0.0
  %4686 = vmatpush1.msra.mxu0 0.0
  %4687 = vmatprep.subr.mxu0 0.0
  %4688 = vmatpush1.msra.mxu0 0.0
  %4689 = vmatprep.subr.mxu0 0.0
  %4690 = vmatpush1.msra.mxu0 0.0
  %4691 = vmatprep.subr.mxu0 0.0
  %4692 = vmatpush1.msra.mxu0 0.0
  %4693 = vmatprep.subr.mxu0 0.0
  %4694 = vmatpush1.msra.mxu0 0.0
  %4695 = vmatprep.subr.mxu0 0.0
  %4696 = vmatpush1.msra.mxu0 0.0
  %4697 = vmatprep.subr.mxu0 0.0
  %4698 = vmatpush1.msra.mxu0 0.0
  %4699 = vmatprep.subr.mxu0 0.0
  %4700 = vmatpush1.msra.mxu0 0.0
  %4701 = vmatprep.mubr.f32.mxu0 0.0
  %v4702 = vand.u32 %v4408, 4294901760
  %v4703 = vsub.f32 %v4408, %v4702
  %v4704 = vand.u32 %v4703, 4294901760
  %4705 = vmatmul.mubr.f32.gmra.mrb[0].mxu0 %v4704
  %v4706 = vpop.f32.mrb[0].mxu0
  %v4707 = vadd.f32 %v4633, %v4706
  %v4708 = vpop.f32.mrb[0].mxu0
  %4709 = vdwg.mxu0
  %4710 = vmatprep.subr.mxu0 0.0
  %v4711 = vand.u32 %v2434, 4294901760
  %v4712 = vsub.f32 %v2434, %v4711
  %v4713 = vand.u32 %v4712, 4294901760
  %4714 = vmatpush1.msra.mxu0 %v4713
  %4715 = vmatprep.subr.mxu0 0.0
  %4716 = vmatpush1.msra.mxu0 0.0
  %4717 = vmatprep.subr.mxu0 0.0
  %4718 = vmatpush1.msra.mxu0 0.0
  %4719 = vmatprep.subr.mxu0 0.0
  %4720 = vmatpush1.msra.mxu0 0.0
  %4721 = vmatprep.subr.mxu0 0.0
  %4722 = vmatpush1.msra.mxu0 0.0
  %4723 = vmatprep.subr.mxu0 0.0
  %4724 = vmatpush1.msra.mxu0 0.0
  %4725 = vmatprep.subr.mxu0 0.0
  %4726 = vmatpush1.msra.mxu0 0.0
  %4727 = vmatprep.subr.mxu0 0.0
  %4728 = vmatpush1.msra.mxu0 0.0
  %4729 = vmatprep.subr.mxu0 0.0
  %4730 = vmatpush1.msra.mxu0 0.0
  %4731 = vmatprep.subr.mxu0 0.0
  %4732 = vmatpush1.msra.mxu0 0.0
  %4733 = vmatprep.subr.mxu0 0.0
  %4734 = vmatpush1.msra.mxu0 0.0
  %4735 = vmatprep.subr.mxu0 0.0
  %4736 = vmatpush1.msra.mxu0 0.0
  %4737 = vmatprep.subr.mxu0 0.0
  %4738 = vmatpush1.msra.mxu0 0.0
  %4739 = vmatprep.subr.mxu0 0.0
  %4740 = vmatpush1.msra.mxu0 0.0
  %4741 = vmatprep.subr.mxu0 0.0
  %4742 = vmatpush1.msra.mxu0 0.0
  %4743 = vmatprep.subr.mxu0 0.0
  %4744 = vmatpush1.msra.mxu0 0.0
  %4745 = vmatprep.subr.mxu0 0.0
  %4746 = vmatpush1.msra.mxu0 0.0
  %4747 = vmatprep.subr.mxu0 0.0
  %4748 = vmatpush1.msra.mxu0 0.0
  %4749 = vmatprep.subr.mxu0 0.0
  %4750 = vmatpush1.msra.mxu0 0.0
  %4751 = vmatprep.subr.mxu0 0.0
  %4752 = vmatpush1.msra.mxu0 0.0
  %4753 = vmatprep.subr.mxu0 0.0
  %4754 = vmatpush1.msra.mxu0 0.0
  %4755 = vmatprep.subr.mxu0 0.0
  %4756 = vmatpush1.msra.mxu0 0.0
  %4757 = vmatprep.subr.mxu0 0.0
  %4758 = vmatpush1.msra.mxu0 0.0
  %4759 = vmatprep.subr.mxu0 0.0
  %4760 = vmatpush1.msra.mxu0 0.0
  %4761 = vmatprep.subr.mxu0 0.0
  %4762 = vmatpush1.msra.mxu0 0.0
  %4763 = vmatprep.subr.mxu0 0.0
  %4764 = vmatpush1.msra.mxu0 0.0
  %4765 = vmatprep.subr.mxu0 0.0
  %4766 = vmatpush1.msra.mxu0 0.0
  %4767 = vmatprep.subr.mxu0 0.0
  %4768 = vmatpush1.msra.mxu0 0.0
  %4769 = vmatprep.subr.mxu0 0.0
  %4770 = vmatpush1.msra.mxu0 0.0
  %4771 = vmatprep.subr.mxu0 0.0
  %4772 = vmatpush1.msra.mxu0 0.0
  %4773 = vmatprep.subr.mxu0 0.0
  %4774 = vmatpush1.msra.mxu0 0.0
  %4775 = vmatprep.subr.mxu0 0.0
  %4776 = vmatpush1.msra.mxu0 0.0
  %4777 = vmatprep.mubr.f32.mxu0 0.0
  %v4778 = vand.u32 %v4408, 4294901760
  %4779 = vmatmul.mubr.f32.gmra.mrb[0].mxu0 %v4778
  %v4780 = vpop.f32.mrb[0].mxu0
  %v4781 = vadd.f32 %v4707, %v4780
  %v4782 = vpop.f32.mrb[0].mxu0
  %4783 = vdwg.mxu0
  %4784 = vmatprep.subr.mxu0 0.0
  %v4785 = vand.u32 %v2434, 4294901760
  %4786 = vmatpush1.msra.mxu0 %v4785
  %4787 = vmatprep.subr.mxu0 0.0
  %4788 = vmatpush1.msra.mxu0 0.0
  %4789 = vmatprep.subr.mxu0 0.0
  %4790 = vmatpush1.msra.mxu0 0.0
  %4791 = vmatprep.subr.mxu0 0.0
  %4792 = vmatpush1.msra.mxu0 0.0
  %4793 = vmatprep.subr.mxu0 0.0
  %4794 = vmatpush1.msra.mxu0 0.0
  %4795 = vmatprep.subr.mxu0 0.0
  %4796 = vmatpush1.msra.mxu0 0.0
  %4797 = vmatprep.subr.mxu0 0.0
  %4798 = vmatpush1.msra.mxu0 0.0
  %4799 = vmatprep.subr.mxu0 0.0
  %4800 = vmatpush1.msra.mxu0 0.0
  %4801 = vmatprep.subr.mxu0 0.0
  %4802 = vmatpush1.msra.mxu0 0.0
  %4803 = vmatprep.subr.mxu0 0.0
  %4804 = vmatpush1.msra.mxu0 0.0
  %4805 = vmatprep.subr.mxu0 0.0
  %4806 = vmatpush1.msra.mxu0 0.0
  %4807 = vmatprep.subr.mxu0 0.0
  %4808 = vmatpush1.msra.mxu0 0.0
  %4809 = vmatprep.subr.mxu0 0.0
  %4810 = vmatpush1.msra.mxu0 0.0
  %4811 = vmatprep.subr.mxu0 0.0
  %4812 = vmatpush1.msra.mxu0 0.0
  %4813 = vmatprep.subr.mxu0 0.0
  %4814 = vmatpush1.msra.mxu0 0.0
  %4815 = vmatprep.subr.mxu0 0.0
  %4816 = vmatpush1.msra.mxu0 0.0
  %4817 = vmatprep.subr.mxu0 0.0
  %4818 = vmatpush1.msra.mxu0 0.0
  %4819 = vmatprep.subr.mxu0 0.0
  %4820 = vmatpush1.msra.mxu0 0.0
  %4821 = vmatprep.subr.mxu0 0.0
  %4822 = vmatpush1.msra.mxu0 0.0
  %4823 = vmatprep.subr.mxu0 0.0
  %4824 = vmatpush1.msra.mxu0 0.0
  %4825 = vmatprep.subr.mxu0 0.0
  %4826 = vmatpush1.msra.mxu0 0.0
  %4827 = vmatprep.subr.mxu0 0.0
  %4828 = vmatpush1.msra.mxu0 0.0
  %4829 = vmatprep.subr.mxu0 0.0
  %4830 = vmatpush1.msra.mxu0 0.0
  %4831 = vmatprep.subr.mxu0 0.0
  %4832 = vmatpush1.msra.mxu0 0.0
  %4833 = vmatprep.subr.mxu0 0.0
  %4834 = vmatpush1.msra.mxu0 0.0
  %4835 = vmatprep.subr.mxu0 0.0
  %4836 = vmatpush1.msra.mxu0 0.0
  %4837 = vmatprep.subr.mxu0 0.0
  %4838 = vmatpush1.msra.mxu0 0.0
  %4839 = vmatprep.subr.mxu0 0.0
  %4840 = vmatpush1.msra.mxu0 0.0
  %4841 = vmatprep.subr.mxu0 0.0
  %4842 = vmatpush1.msra.mxu0 0.0
  %4843 = vmatprep.subr.mxu0 0.0
  %4844 = vmatpush1.msra.mxu0 0.0
  %4845 = vmatprep.subr.mxu0 0.0
  %4846 = vmatpush1.msra.mxu0 0.0
  %4847 = vmatprep.subr.mxu0 0.0
  %4848 = vmatpush1.msra.mxu0 0.0
  %4849 = vmatprep.mubr.f32.mxu0 0.0
  %v4850 = vand.u32 %v4408, 4294901760
  %4851 = vmatmul.mubr.f32.gmra.mrb[0].mxu0 %v4850
  %v4852 = vpop.f32.mrb[0].mxu0
  %v4853 = vadd.f32 %v4781, %v4852
  %v4854 = vpop.f32.mrb[0].mxu0
  %4855 = vdwg.mxu0
  %v4856 = vmax.f32 %v4853, 0.0
  %v4857 = vlaneseq
  %v4858 = vshrl.u32 %v4857, 7
  %v4859 = vsub.s32 0, %v4858
  %v4860 = vrot.slane %v2439, %v4859
  %vm4861 = vcmask 31744
  %v4863 = vsel %vm4861, %v4856, 0
  %v4866 = vsel %vm47, %v2435, 0
  %4868 = vmatprep.subr.mxu0 0.0
  %v4869 = vand.u32 %v4866, 4294901760
  %4870 = vmatpush1.msra.mxu0 %v4869
  %4871 = vmatprep.subr.mxu0 0.0
  %4872 = vmatpush1.msra.mxu0 0.0
  %4873 = vmatprep.subr.mxu0 0.0
  %4874 = vmatpush1.msra.mxu0 0.0
  %4875 = vmatprep.subr.mxu0 0.0
  %4876 = vmatpush1.msra.mxu0 0.0
  %4877 = vmatprep.subr.mxu0 0.0
  %4878 = vmatpush1.msra.mxu0 0.0
  %4879 = vmatprep.subr.mxu0 0.0
  %4880 = vmatpush1.msra.mxu0 0.0
  %4881 = vmatprep.subr.mxu0 0.0
  %4882 = vmatpush1.msra.mxu0 0.0
  %4883 = vmatprep.subr.mxu0 0.0
  %4884 = vmatpush1.msra.mxu0 0.0
  %4885 = vmatprep.subr.mxu0 0.0
  %4886 = vmatpush1.msra.mxu0 0.0
  %4887 = vmatprep.subr.mxu0 0.0
  %4888 = vmatpush1.msra.mxu0 0.0
  %4889 = vmatprep.subr.mxu0 0.0
  %4890 = vmatpush1.msra.mxu0 0.0
  %4891 = vmatprep.subr.mxu0 0.0
  %4892 = vmatpush1.msra.mxu0 0.0
  %4893 = vmatprep.subr.mxu0 0.0
  %4894 = vmatpush1.msra.mxu0 0.0
  %4895 = vmatprep.subr.mxu0 0.0
  %4896 = vmatpush1.msra.mxu0 0.0
  %4897 = vmatprep.subr.mxu0 0.0
  %4898 = vmatpush1.msra.mxu0 0.0
  %4899 = vmatprep.subr.mxu0 0.0
  %4900 = vmatpush1.msra.mxu0 0.0
  %4901 = vmatprep.subr.mxu0 0.0
  %4902 = vmatpush1.msra.mxu0 0.0
  %4903 = vmatprep.subr.mxu0 0.0
  %4904 = vmatpush1.msra.mxu0 0.0
  %4905 = vmatprep.subr.mxu0 0.0
  %4906 = vmatpush1.msra.mxu0 0.0
  %4907 = vmatprep.subr.mxu0 0.0
  %4908 = vmatpush1.msra.mxu0 0.0
  %4909 = vmatprep.subr.mxu0 0.0
  %4910 = vmatpush1.msra.mxu0 0.0
  %4911 = vmatprep.subr.mxu0 0.0
  %4912 = vmatpush1.msra.mxu0 0.0
  %4913 = vmatprep.subr.mxu0 0.0
  %4914 = vmatpush1.msra.mxu0 0.0
  %4915 = vmatprep.subr.mxu0 0.0
  %4916 = vmatpush1.msra.mxu0 0.0
  %4917 = vmatprep.subr.mxu0 0.0
  %4918 = vmatpush1.msra.mxu0 0.0
  %4919 = vmatprep.subr.mxu0 0.0
  %4920 = vmatpush1.msra.mxu0 0.0
  %4921 = vmatprep.subr.mxu0 0.0
  %4922 = vmatpush1.msra.mxu0 0.0
  %4923 = vmatprep.subr.mxu0 0.0
  %4924 = vmatpush1.msra.mxu0 0.0
  %4925 = vmatprep.subr.mxu0 0.0
  %4926 = vmatpush1.msra.mxu0 0.0
  %4927 = vmatprep.subr.mxu0 0.0
  %4928 = vmatpush1.msra.mxu0 0.0
  %4929 = vmatprep.subr.mxu0 0.0
  %4930 = vmatpush1.msra.mxu0 0.0
  %4931 = vmatprep.subr.mxu0 0.0
  %4932 = vmatpush1.msra.mxu0 0.0
  %4933 = vmatprep.mubr.f32.mxu0 0.0
  %v4934 = vand.u32 %v4863, 4294901760
  %v4935 = vsub.f32 %v4863, %v4934
  %v4936 = vand.u32 %v4935, 4294901760
  %v4937 = vsub.f32 %v4935, %v4936
  %v4938 = vand.u32 %v4937, 4294901760
  %4939 = vmatmul.mubr.f32.gmra.mrb[0].mxu0 %v4938
  %v4940 = vpop.f32.mrb[0].mxu0
  %v4941 = vadd.f32 %v4860, %v4940
  %v4942 = vpop.f32.mrb[0].mxu0
  %4943 = vdwg.mxu0
  %4944 = vmatprep.subr.mxu0 0.0
  %v4945 = vand.u32 %v4866, 4294901760
  %v4946 = vsub.f32 %v4866, %v4945
  %v4947 = vand.u32 %v4946, 4294901760
  %v4948 = vsub.f32 %v4946, %v4947
  %v4949 = vand.u32 %v4948, 4294901760
  %4950 = vmatpush1.msra.mxu0 %v4949
  %4951 = vmatprep.subr.mxu0 0.0
  %4952 = vmatpush1.msra.mxu0 0.0
  %4953 = vmatprep.subr.mxu0 0.0
  %4954 = vmatpush1.msra.mxu0 0.0
  %4955 = vmatprep.subr.mxu0 0.0
  %4956 = vmatpush1.msra.mxu0 0.0
  %4957 = vmatprep.subr.mxu0 0.0
  %4958 = vmatpush1.msra.mxu0 0.0
  %4959 = vmatprep.subr.mxu0 0.0
  %4960 = vmatpush1.msra.mxu0 0.0
  %4961 = vmatprep.subr.mxu0 0.0
  %4962 = vmatpush1.msra.mxu0 0.0
  %4963 = vmatprep.subr.mxu0 0.0
  %4964 = vmatpush1.msra.mxu0 0.0
  %4965 = vmatprep.subr.mxu0 0.0
  %4966 = vmatpush1.msra.mxu0 0.0
  %4967 = vmatprep.subr.mxu0 0.0
  %4968 = vmatpush1.msra.mxu0 0.0
  %4969 = vmatprep.subr.mxu0 0.0
  %4970 = vmatpush1.msra.mxu0 0.0
  %4971 = vmatprep.subr.mxu0 0.0
  %4972 = vmatpush1.msra.mxu0 0.0
  %4973 = vmatprep.subr.mxu0 0.0
  %4974 = vmatpush1.msra.mxu0 0.0
  %4975 = vmatprep.subr.mxu0 0.0
  %4976 = vmatpush1.msra.mxu0 0.0
  %4977 = vmatprep.subr.mxu0 0.0
  %4978 = vmatpush1.msra.mxu0 0.0
  %4979 = vmatprep.subr.mxu0 0.0
  %4980 = vmatpush1.msra.mxu0 0.0
  %4981 = vmatprep.subr.mxu0 0.0
  %4982 = vmatpush1.msra.mxu0 0.0
  %4983 = vmatprep.subr.mxu0 0.0
  %4984 = vmatpush1.msra.mxu0 0.0
  %4985 = vmatprep.subr.mxu0 0.0
  %4986 = vmatpush1.msra.mxu0 0.0
  %4987 = vmatprep.subr.mxu0 0.0
  %4988 = vmatpush1.msra.mxu0 0.0
  %4989 = vmatprep.subr.mxu0 0.0
  %4990 = vmatpush1.msra.mxu0 0.0
  %4991 = vmatprep.subr.mxu0 0.0
  %4992 = vmatpush1.msra.mxu0 0.0
  %4993 = vmatprep.subr.mxu0 0.0
  %4994 = vmatpush1.msra.mxu0 0.0
  %4995 = vmatprep.subr.mxu0 0.0
  %4996 = vmatpush1.msra.mxu0 0.0
  %4997 = vmatprep.subr.mxu0 0.0
  %4998 = vmatpush1.msra.mxu0 0.0
  %4999 = vmatprep.subr.mxu0 0.0
  %5000 = vmatpush1.msra.mxu0 0.0
  %5001 = vmatprep.subr.mxu0 0.0
  %5002 = vmatpush1.msra.mxu0 0.0
  %5003 = vmatprep.subr.mxu0 0.0
  %5004 = vmatpush1.msra.mxu0 0.0
  %5005 = vmatprep.subr.mxu0 0.0
  %5006 = vmatpush1.msra.mxu0 0.0
  %5007 = vmatprep.subr.mxu0 0.0
  %5008 = vmatpush1.msra.mxu0 0.0
  %5009 = vmatprep.subr.mxu0 0.0
  %5010 = vmatpush1.msra.mxu0 0.0
  %5011 = vmatprep.subr.mxu0 0.0
  %5012 = vmatpush1.msra.mxu0 0.0
  %5013 = vmatprep.mubr.f32.mxu0 0.0
  %v5014 = vand.u32 %v4863, 4294901760
  %5015 = vmatmul.mubr.f32.gmra.mrb[0].mxu0 %v5014
  %v5016 = vpop.f32.mrb[0].mxu0
  %v5017 = vadd.f32 %v4941, %v5016
  %v5018 = vpop.f32.mrb[0].mxu0
  %5019 = vdwg.mxu0
  %5020 = vmatprep.subr.mxu0 0.0
  %v5021 = vand.u32 %v4866, 4294901760
  %v5022 = vsub.f32 %v4866, %v5021
  %5023 = vmatpush1.msra.mxu0 %v5022
  %5024 = vmatprep.subr.mxu0 0.0
  %5025 = vmatpush1.msra.mxu0 0.0
  %5026 = vmatprep.subr.mxu0 0.0
  %5027 = vmatpush1.msra.mxu0 0.0
  %5028 = vmatprep.subr.mxu0 0.0
  %5029 = vmatpush1.msra.mxu0 0.0
  %5030 = vmatprep.subr.mxu0 0.0
  %5031 = vmatpush1.msra.mxu0 0.0
  %5032 = vmatprep.subr.mxu0 0.0
  %5033 = vmatpush1.msra.mxu0 0.0
  %5034 = vmatprep.subr.mxu0 0.0
  %5035 = vmatpush1.msra.mxu0 0.0
  %5036 = vmatprep.subr.mxu0 0.0
  %5037 = vmatpush1.msra.mxu0 0.0
  %5038 = vmatprep.subr.mxu0 0.0
  %5039 = vmatpush1.msra.mxu0 0.0
  %5040 = vmatprep.subr.mxu0 0.0
  %5041 = vmatpush1.msra.mxu0 0.0
  %5042 = vmatprep.subr.mxu0 0.0
  %5043 = vmatpush1.msra.mxu0 0.0
  %5044 = vmatprep.subr.mxu0 0.0
  %5045 = vmatpush1.msra.mxu0 0.0
  %5046 = vmatprep.subr.mxu0 0.0
  %5047 = vmatpush1.msra.mxu0 0.0
  %5048 = vmatprep.subr.mxu0 0.0
  %5049 = vmatpush1.msra.mxu0 0.0
  %5050 = vmatprep.subr.mxu0 0.0
  %5051 = vmatpush1.msra.mxu0 0.0
  %5052 = vmatprep.subr.mxu0 0.0
  %5053 = vmatpush1.msra.mxu0 0.0
  %5054 = vmatprep.subr.mxu0 0.0
  %5055 = vmatpush1.msra.mxu0 0.0
  %5056 = vmatprep.subr.mxu0 0.0
  %5057 = vmatpush1.msra.mxu0 0.0
  %5058 = vmatprep.subr.mxu0 0.0
  %5059 = vmatpush1.msra.mxu0 0.0
  %5060 = vmatprep.subr.mxu0 0.0
  %5061 = vmatpush1.msra.mxu0 0.0
  %5062 = vmatprep.subr.mxu0 0.0
  %5063 = vmatpush1.msra.mxu0 0.0
  %5064 = vmatprep.subr.mxu0 0.0
  %5065 = vmatpush1.msra.mxu0 0.0
  %5066 = vmatprep.subr.mxu0 0.0
  %5067 = vmatpush1.msra.mxu0 0.0
  %5068 = vmatprep.subr.mxu0 0.0
  %5069 = vmatpush1.msra.mxu0 0.0
  %5070 = vmatprep.subr.mxu0 0.0
  %5071 = vmatpush1.msra.mxu0 0.0
  %5072 = vmatprep.subr.mxu0 0.0
  %5073 = vmatpush1.msra.mxu0 0.0
  %5074 = vmatprep.subr.mxu0 0.0
  %5075 = vmatpush1.msra.mxu0 0.0
  %5076 = vmatprep.subr.mxu0 0.0
  %5077 = vmatpush1.msra.mxu0 0.0
  %5078 = vmatprep.subr.mxu0 0.0
  %5079 = vmatpush1.msra.mxu0 0.0
  %5080 = vmatprep.subr.mxu0 0.0
  %5081 = vmatpush1.msra.mxu0 0.0
  %5082 = vmatprep.subr.mxu0 0.0
  %5083 = vmatpush1.msra.mxu0 0.0
  %5084 = vmatprep.subr.mxu0 0.0
  %5085 = vmatpush1.msra.mxu0 0.0
  %5086 = vmatprep.mubr.f32.mxu0 0.0
  %v5087 = vand.u32 %v4863, 4294901760
  %v5088 = vsub.f32 %v4863, %v5087
  %5089 = vmatmul.mubr.f32.gmra.mrb[0].mxu0 %v5088
  %v5090 = vpop.f32.mrb[0].mxu0
  %v5091 = vadd.f32 %v5017, %v5090
  %v5092 = vpop.f32.mrb[0].mxu0
  %5093 = vdwg.mxu0
  %5094 = vmatprep.subr.mxu0 0.0
  %v5095 = vand.u32 %v4866, 4294901760
  %5096 = vmatpush1.msra.mxu0 %v5095
  %5097 = vmatprep.subr.mxu0 0.0
  %5098 = vmatpush1.msra.mxu0 0.0
  %5099 = vmatprep.subr.mxu0 0.0
  %5100 = vmatpush1.msra.mxu0 0.0
  %5101 = vmatprep.subr.mxu0 0.0
  %5102 = vmatpush1.msra.mxu0 0.0
  %5103 = vmatprep.subr.mxu0 0.0
  %5104 = vmatpush1.msra.mxu0 0.0
  %5105 = vmatprep.subr.mxu0 0.0
  %5106 = vmatpush1.msra.mxu0 0.0
  %5107 = vmatprep.subr.mxu0 0.0
  %5108 = vmatpush1.msra.mxu0 0.0
  %5109 = vmatprep.subr.mxu0 0.0
  %5110 = vmatpush1.msra.mxu0 0.0
  %5111 = vmatprep.subr.mxu0 0.0
  %5112 = vmatpush1.msra.mxu0 0.0
  %5113 = vmatprep.subr.mxu0 0.0
  %5114 = vmatpush1.msra.mxu0 0.0
  %5115 = vmatprep.subr.mxu0 0.0
  %5116 = vmatpush1.msra.mxu0 0.0
  %5117 = vmatprep.subr.mxu0 0.0
  %5118 = vmatpush1.msra.mxu0 0.0
  %5119 = vmatprep.subr.mxu0 0.0
  %5120 = vmatpush1.msra.mxu0 0.0
  %5121 = vmatprep.subr.mxu0 0.0
  %5122 = vmatpush1.msra.mxu0 0.0
  %5123 = vmatprep.subr.mxu0 0.0
  %5124 = vmatpush1.msra.mxu0 0.0
  %5125 = vmatprep.subr.mxu0 0.0
  %5126 = vmatpush1.msra.mxu0 0.0
  %5127 = vmatprep.subr.mxu0 0.0
  %5128 = vmatpush1.msra.mxu0 0.0
  %5129 = vmatprep.subr.mxu0 0.0
  %5130 = vmatpush1.msra.mxu0 0.0
  %5131 = vmatprep.subr.mxu0 0.0
  %5132 = vmatpush1.msra.mxu0 0.0
  %5133 = vmatprep.subr.mxu0 0.0
  %5134 = vmatpush1.msra.mxu0 0.0
  %5135 = vmatprep.subr.mxu0 0.0
  %5136 = vmatpush1.msra.mxu0 0.0
  %5137 = vmatprep.subr.mxu0 0.0
  %5138 = vmatpush1.msra.mxu0 0.0
  %5139 = vmatprep.subr.mxu0 0.0
  %5140 = vmatpush1.msra.mxu0 0.0
  %5141 = vmatprep.subr.mxu0 0.0
  %5142 = vmatpush1.msra.mxu0 0.0
  %5143 = vmatprep.subr.mxu0 0.0
  %5144 = vmatpush1.msra.mxu0 0.0
  %5145 = vmatprep.subr.mxu0 0.0
  %5146 = vmatpush1.msra.mxu0 0.0
  %5147 = vmatprep.subr.mxu0 0.0
  %5148 = vmatpush1.msra.mxu0 0.0
  %5149 = vmatprep.subr.mxu0 0.0
  %5150 = vmatpush1.msra.mxu0 0.0
  %5151 = vmatprep.subr.mxu0 0.0
  %5152 = vmatpush1.msra.mxu0 0.0
  %5153 = vmatprep.subr.mxu0 0.0
  %5154 = vmatpush1.msra.mxu0 0.0
  %5155 = vmatprep.subr.mxu0 0.0
  %5156 = vmatpush1.msra.mxu0 0.0
  %5157 = vmatprep.subr.mxu0 0.0
  %5158 = vmatpush1.msra.mxu0 0.0
  %5159 = vmatprep.mubr.f32.mxu0 0.0
  %v5160 = vand.u32 %v4863, 4294901760
  %v5161 = vsub.f32 %v4863, %v5160
  %v5162 = vand.u32 %v5161, 4294901760
  %5163 = vmatmul.mubr.f32.gmra.mrb[0].mxu0 %v5162
  %v5164 = vpop.f32.mrb[0].mxu0
  %v5165 = vadd.f32 %v5091, %v5164
  %v5166 = vpop.f32.mrb[0].mxu0
  %5167 = vdwg.mxu0
  %5168 = vmatprep.subr.mxu0 0.0
  %v5169 = vand.u32 %v4866, 4294901760
  %v5170 = vsub.f32 %v4866, %v5169
  %v5171 = vand.u32 %v5170, 4294901760
  %5172 = vmatpush1.msra.mxu0 %v5171
  %5173 = vmatprep.subr.mxu0 0.0
  %5174 = vmatpush1.msra.mxu0 0.0
  %5175 = vmatprep.subr.mxu0 0.0
  %5176 = vmatpush1.msra.mxu0 0.0
  %5177 = vmatprep.subr.mxu0 0.0
  %5178 = vmatpush1.msra.mxu0 0.0
  %5179 = vmatprep.subr.mxu0 0.0
  %5180 = vmatpush1.msra.mxu0 0.0
  %5181 = vmatprep.subr.mxu0 0.0
  %5182 = vmatpush1.msra.mxu0 0.0
  %5183 = vmatprep.subr.mxu0 0.0
  %5184 = vmatpush1.msra.mxu0 0.0
  %5185 = vmatprep.subr.mxu0 0.0
  %5186 = vmatpush1.msra.mxu0 0.0
  %5187 = vmatprep.subr.mxu0 0.0
  %5188 = vmatpush1.msra.mxu0 0.0
  %5189 = vmatprep.subr.mxu0 0.0
  %5190 = vmatpush1.msra.mxu0 0.0
  %5191 = vmatprep.subr.mxu0 0.0
  %5192 = vmatpush1.msra.mxu0 0.0
  %5193 = vmatprep.subr.mxu0 0.0
  %5194 = vmatpush1.msra.mxu0 0.0
  %5195 = vmatprep.subr.mxu0 0.0
  %5196 = vmatpush1.msra.mxu0 0.0
  %5197 = vmatprep.subr.mxu0 0.0
  %5198 = vmatpush1.msra.mxu0 0.0
  %5199 = vmatprep.subr.mxu0 0.0
  %5200 = vmatpush1.msra.mxu0 0.0
  %5201 = vmatprep.subr.mxu0 0.0
  %5202 = vmatpush1.msra.mxu0 0.0
  %5203 = vmatprep.subr.mxu0 0.0
  %5204 = vmatpush1.msra.mxu0 0.0
  %5205 = vmatprep.subr.mxu0 0.0
  %5206 = vmatpush1.msra.mxu0 0.0
  %5207 = vmatprep.subr.mxu0 0.0
  %5208 = vmatpush1.msra.mxu0 0.0
  %5209 = vmatprep.subr.mxu0 0.0
  %5210 = vmatpush1.msra.mxu0 0.0
  %5211 = vmatprep.subr.mxu0 0.0
  %5212 = vmatpush1.msra.mxu0 0.0
  %5213 = vmatprep.subr.mxu0 0.0
  %5214 = vmatpush1.msra.mxu0 0.0
  %5215 = vmatprep.subr.mxu0 0.0
  %5216 = vmatpush1.msra.mxu0 0.0
  %5217 = vmatprep.subr.mxu0 0.0
  %5218 = vmatpush1.msra.mxu0 0.0
  %5219 = vmatprep.subr.mxu0 0.0
  %5220 = vmatpush1.msra.mxu0 0.0
  %5221 = vmatprep.subr.mxu0 0.0
  %5222 = vmatpush1.msra.mxu0 0.0
  %5223 = vmatprep.subr.mxu0 0.0
  %5224 = vmatpush1.msra.mxu0 0.0
  %5225 = vmatprep.subr.mxu0 0.0
  %5226 = vmatpush1.msra.mxu0 0.0
  %5227 = vmatprep.subr.mxu0 0.0
  %5228 = vmatpush1.msra.mxu0 0.0
  %5229 = vmatprep.subr.mxu0 0.0
  %5230 = vmatpush1.msra.mxu0 0.0
  %5231 = vmatprep.subr.mxu0 0.0
  %5232 = vmatpush1.msra.mxu0 0.0
  %5233 = vmatprep.subr.mxu0 0.0
  %5234 = vmatpush1.msra.mxu0 0.0
  %5235 = vmatprep.mubr.f32.mxu0 0.0
  %v5236 = vand.u32 %v4863, 4294901760
  %5237 = vmatmul.mubr.f32.gmra.mrb[0].mxu0 %v5236
  %v5238 = vpop.f32.mrb[0].mxu0
  %v5239 = vadd.f32 %v5165, %v5238
  %v5240 = vpop.f32.mrb[0].mxu0
  %5241 = vdwg.mxu0
  %5242 = vmatprep.subr.mxu0 0.0
  %v5243 = vand.u32 %v4866, 4294901760
  %5244 = vmatpush1.msra.mxu0 %v5243
  %5245 = vmatprep.subr.mxu0 0.0
  %5246 = vmatpush1.msra.mxu0 0.0
  %5247 = vmatprep.subr.mxu0 0.0
  %5248 = vmatpush1.msra.mxu0 0.0
  %5249 = vmatprep.subr.mxu0 0.0
  %5250 = vmatpush1.msra.mxu0 0.0
  %5251 = vmatprep.subr.mxu0 0.0
  %5252 = vmatpush1.msra.mxu0 0.0
  %5253 = vmatprep.subr.mxu0 0.0
  %5254 = vmatpush1.msra.mxu0 0.0
  %5255 = vmatprep.subr.mxu0 0.0
  %5256 = vmatpush1.msra.mxu0 0.0
  %5257 = vmatprep.subr.mxu0 0.0
  %5258 = vmatpush1.msra.mxu0 0.0
  %5259 = vmatprep.subr.mxu0 0.0
  %5260 = vmatpush1.msra.mxu0 0.0
  %5261 = vmatprep.subr.mxu0 0.0
  %5262 = vmatpush1.msra.mxu0 0.0
  %5263 = vmatprep.subr.mxu0 0.0
  %5264 = vmatpush1.msra.mxu0 0.0
  %5265 = vmatprep.subr.mxu0 0.0
  %5266 = vmatpush1.msra.mxu0 0.0
  %5267 = vmatprep.subr.mxu0 0.0
  %5268 = vmatpush1.msra.mxu0 0.0
  %5269 = vmatprep.subr.mxu0 0.0
  %5270 = vmatpush1.msra.mxu0 0.0
  %5271 = vmatprep.subr.mxu0 0.0
  %5272 = vmatpush1.msra.mxu0 0.0
  %5273 = vmatprep.subr.mxu0 0.0
  %5274 = vmatpush1.msra.mxu0 0.0
  %5275 = vmatprep.subr.mxu0 0.0
  %5276 = vmatpush1.msra.mxu0 0.0
  %5277 = vmatprep.subr.mxu0 0.0
  %5278 = vmatpush1.msra.mxu0 0.0
  %5279 = vmatprep.subr.mxu0 0.0
  %5280 = vmatpush1.msra.mxu0 0.0
  %5281 = vmatprep.subr.mxu0 0.0
  %5282 = vmatpush1.msra.mxu0 0.0
  %5283 = vmatprep.subr.mxu0 0.0
  %5284 = vmatpush1.msra.mxu0 0.0
  %5285 = vmatprep.subr.mxu0 0.0
  %5286 = vmatpush1.msra.mxu0 0.0
  %5287 = vmatprep.subr.mxu0 0.0
  %5288 = vmatpush1.msra.mxu0 0.0
  %5289 = vmatprep.subr.mxu0 0.0
  %5290 = vmatpush1.msra.mxu0 0.0
  %5291 = vmatprep.subr.mxu0 0.0
  %5292 = vmatpush1.msra.mxu0 0.0
  %5293 = vmatprep.subr.mxu0 0.0
  %5294 = vmatpush1.msra.mxu0 0.0
  %5295 = vmatprep.subr.mxu0 0.0
  %5296 = vmatpush1.msra.mxu0 0.0
  %5297 = vmatprep.subr.mxu0 0.0
  %5298 = vmatpush1.msra.mxu0 0.0
  %5299 = vmatprep.subr.mxu0 0.0
  %5300 = vmatpush1.msra.mxu0 0.0
  %5301 = vmatprep.subr.mxu0 0.0
  %5302 = vmatpush1.msra.mxu0 0.0
  %5303 = vmatprep.subr.mxu0 0.0
  %5304 = vmatpush1.msra.mxu0 0.0
  %5305 = vmatprep.subr.mxu0 0.0
  %5306 = vmatpush1.msra.mxu0 0.0
  %5307 = vmatprep.mubr.f32.mxu0 0.0
  %v5308 = vand.u32 %v4863, 4294901760
  %5309 = vmatmul.mubr.f32.gmra.mrb[0].mxu0 %v5308
  %v5310 = vpop.f32.mrb[0].mxu0
  %v5311 = vadd.f32 %v5239, %v5310
  %v5312 = vpop.f32.mrb[0].mxu0
  %5313 = vdwg.mxu0
  %v5314 = vxor.u32 %v5311, 2147483648
  %v5315 = vmul.f32 %v5314, 1.442695
  %v5316 = vpow.pop %v5315
  %v5317 = vadd.f32 %v5316, 1.0
  %v5318 = vrcp.pop %v5317
  %v5319 = vmul.f32 1.0, %v5318
  %v5321 = vsel %vm4406, %v5319, 0
  %5323 = vmatprep.subr.mxu0 0.0
  %v5324 = vand.u32 %v2964, 4294901760
  %5325 = vmatpush1.msra.mxu0 %v5324
  %5326 = vmatprep.subr.mxu0 0.0
  %5327 = vmatpush1.msra.mxu0 0.0
  %5328 = vmatprep.subr.mxu0 0.0
  %5329 = vmatpush1.msra.mxu0 0.0
  %5330 = vmatprep.subr.mxu0 0.0
  %5331 = vmatpush1.msra.mxu0 0.0
  %5332 = vmatprep.subr.mxu0 0.0
  %5333 = vmatpush1.msra.mxu0 0.0
  %5334 = vmatprep.subr.mxu0 0.0
  %5335 = vmatpush1.msra.mxu0 0.0
  %5336 = vmatprep.subr.mxu0 0.0
  %5337 = vmatpush1.msra.mxu0 0.0
  %5338 = vmatprep.subr.mxu0 0.0
  %5339 = vmatpush1.msra.mxu0 0.0
  %5340 = vmatprep.subr.mxu0 0.0
  %5341 = vmatpush1.msra.mxu0 0.0
  %5342 = vmatprep.subr.mxu0 0.0
  %5343 = vmatpush1.msra.mxu0 0.0
  %5344 = vmatprep.subr.mxu0 0.0
  %5345 = vmatpush1.msra.mxu0 0.0
  %5346 = vmatprep.subr.mxu0 0.0
  %5347 = vmatpush1.msra.mxu0 0.0
  %5348 = vmatprep.subr.mxu0 0.0
  %5349 = vmatpush1.msra.mxu0 0.0
  %5350 = vmatprep.subr.mxu0 0.0
  %5351 = vmatpush1.msra.mxu0 0.0
  %5352 = vmatprep.subr.mxu0 0.0
  %5353 = vmatpush1.msra.mxu0 0.0
  %5354 = vmatprep.subr.mxu0 0.0
  %5355 = vmatpush1.msra.mxu0 0.0
  %5356 = vmatprep.subr.mxu0 0.0
  %5357 = vmatpush1.msra.mxu0 0.0
  %5358 = vmatprep.subr.mxu0 0.0
  %5359 = vmatpush1.msra.mxu0 0.0
  %5360 = vmatprep.subr.mxu0 0.0
  %5361 = vmatpush1.msra.mxu0 0.0
  %5362 = vmatprep.subr.mxu0 0.0
  %5363 = vmatpush1.msra.mxu0 0.0
  %5364 = vmatprep.subr.mxu0 0.0
  %5365 = vmatpush1.msra.mxu0 0.0
  %5366 = vmatprep.subr.mxu0 0.0
  %5367 = vmatpush1.msra.mxu0 0.0
  %5368 = vmatprep.subr.mxu0 0.0
  %5369 = vmatpush1.msra.mxu0 0.0
  %5370 = vmatprep.subr.mxu0 0.0
  %5371 = vmatpush1.msra.mxu0 0.0
  %5372 = vmatprep.subr.mxu0 0.0
  %5373 = vmatpush1.msra.mxu0 0.0
  %5374 = vmatprep.subr.mxu0 0.0
  %5375 = vmatpush1.msra.mxu0 0.0
  %5376 = vmatprep.subr.mxu0 0.0
  %5377 = vmatpush1.msra.mxu0 0.0
  %5378 = vmatprep.subr.mxu0 0.0
  %5379 = vmatpush1.msra.mxu0 0.0
  %5380 = vmatprep.subr.mxu0 0.0
  %5381 = vmatpush1.msra.mxu0 0.0
  %5382 = vmatprep.subr.mxu0 0.0
  %5383 = vmatpush1.msra.mxu0 0.0
  %5384 = vmatprep.subr.mxu0 0.0
  %5385 = vmatpush1.msra.mxu0 0.0
  %5386 = vmatprep.subr.mxu0 0.0
  %5387 = vmatpush1.msra.mxu0 0.0
  %5388 = vmatprep.mubr.f32.mxu0 0.0
  %v5389 = vand.u32 %v5321, 4294901760
  %v5390 = vsub.f32 %v5321, %v5389
  %v5391 = vand.u32 %v5390, 4294901760
  %v5392 = vsub.f32 %v5390, %v5391
  %v5393 = vand.u32 %v5392, 4294901760
  %5394 = vmatmul.mubr.f32.gmra.mrb[0].mxu0 %v5393
  %v5395 = vpop.f32.mrb[0].mxu0
  %v5396 = vadd.f32 0.0, %v5395
  %v5397 = vpop.f32.mrb[0].mxu0
  %5398 = vdwg.mxu0
  %5399 = vmatprep.subr.mxu0 0.0
  %v5400 = vand.u32 %v2964, 4294901760
  %v5401 = vsub.f32 %v2964, %v5400
  %v5402 = vand.u32 %v5401, 4294901760
  %v5403 = vsub.f32 %v5401, %v5402
  %v5404 = vand.u32 %v5403, 4294901760
  %5405 = vmatpush1.msra.mxu0 %v5404
  %5406 = vmatprep.subr.mxu0 0.0
  %5407 = vmatpush1.msra.mxu0 0.0
  %5408 = vmatprep.subr.mxu0 0.0
  %5409 = vmatpush1.msra.mxu0 0.0
  %5410 = vmatprep.subr.mxu0 0.0
  %5411 = vmatpush1.msra.mxu0 0.0
  %5412 = vmatprep.subr.mxu0 0.0
  %5413 = vmatpush1.msra.mxu0 0.0
  %5414 = vmatprep.subr.mxu0 0.0
  %5415 = vmatpush1.msra.mxu0 0.0
  %5416 = vmatprep.subr.mxu0 0.0
  %5417 = vmatpush1.msra.mxu0 0.0
  %5418 = vmatprep.subr.mxu0 0.0
  %5419 = vmatpush1.msra.mxu0 0.0
  %5420 = vmatprep.subr.mxu0 0.0
  %5421 = vmatpush1.msra.mxu0 0.0
  %5422 = vmatprep.subr.mxu0 0.0
  %5423 = vmatpush1.msra.mxu0 0.0
  %5424 = vmatprep.subr.mxu0 0.0
  %5425 = vmatpush1.msra.mxu0 0.0
  %5426 = vmatprep.subr.mxu0 0.0
  %5427 = vmatpush1.msra.mxu0 0.0
  %5428 = vmatprep.subr.mxu0 0.0
  %5429 = vmatpush1.msra.mxu0 0.0
  %5430 = vmatprep.subr.mxu0 0.0
  %5431 = vmatpush1.msra.mxu0 0.0
  %5432 = vmatprep.subr.mxu0 0.0
  %5433 = vmatpush1.msra.mxu0 0.0
  %5434 = vmatprep.subr.mxu0 0.0
  %5435 = vmatpush1.msra.mxu0 0.0
  %5436 = vmatprep.subr.mxu0 0.0
  %5437 = vmatpush1.msra.mxu0 0.0
  %5438 = vmatprep.subr.mxu0 0.0
  %5439 = vmatpush1.msra.mxu0 0.0
  %5440 = vmatprep.subr.mxu0 0.0
  %5441 = vmatpush1.msra.mxu0 0.0
  %5442 = vmatprep.subr.mxu0 0.0
  %5443 = vmatpush1.msra.mxu0 0.0
  %5444 = vmatprep.subr.mxu0 0.0
  %5445 = vmatpush1.msra.mxu0 0.0
  %5446 = vmatprep.subr.mxu0 0.0
  %5447 = vmatpush1.msra.mxu0 0.0
  %5448 = vmatprep.subr.mxu0 0.0
  %5449 = vmatpush1.msra.mxu0 0.0
  %5450 = vmatprep.subr.mxu0 0.0
  %5451 = vmatpush1.msra.mxu0 0.0
  %5452 = vmatprep.subr.mxu0 0.0
  %5453 = vmatpush1.msra.mxu0 0.0
  %5454 = vmatprep.subr.mxu0 0.0
  %5455 = vmatpush1.msra.mxu0 0.0
  %5456 = vmatprep.subr.mxu0 0.0
  %5457 = vmatpush1.msra.mxu0 0.0
  %5458 = vmatprep.subr.mxu0 0.0
  %5459 = vmatpush1.msra.mxu0 0.0
  %5460 = vmatprep.subr.mxu0 0.0
  %5461 = vmatpush1.msra.mxu0 0.0
  %5462 = vmatprep.subr.mxu0 0.0
  %5463 = vmatpush1.msra.mxu0 0.0
  %5464 = vmatprep.subr.mxu0 0.0
  %5465 = vmatpush1.msra.mxu0 0.0
  %5466 = vmatprep.subr.mxu0 0.0
  %5467 = vmatpush1.msra.mxu0 0.0
  %5468 = vmatprep.mubr.f32.mxu0 0.0
  %v5469 = vand.u32 %v5321, 4294901760
  %5470 = vmatmul.mubr.f32.gmra.mrb[0].mxu0 %v5469
  %v5471 = vpop.f32.mrb[0].mxu0
  %v5472 = vadd.f32 %v5396, %v5471
  %v5473 = vpop.f32.mrb[0].mxu0
  %5474 = vdwg.mxu0
  %5475 = vmatprep.subr.mxu0 0.0
  %v5476 = vand.u32 %v2964, 4294901760
  %v5477 = vsub.f32 %v2964, %v5476
  %5478 = vmatpush1.msra.mxu0 %v5477
  %5479 = vmatprep.subr.mxu0 0.0
  %5480 = vmatpush1.msra.mxu0 0.0
  %5481 = vmatprep.subr.mxu0 0.0
  %5482 = vmatpush1.msra.mxu0 0.0
  %5483 = vmatprep.subr.mxu0 0.0
  %5484 = vmatpush1.msra.mxu0 0.0
  %5485 = vmatprep.subr.mxu0 0.0
  %5486 = vmatpush1.msra.mxu0 0.0
  %5487 = vmatprep.subr.mxu0 0.0
  %5488 = vmatpush1.msra.mxu0 0.0
  %5489 = vmatprep.subr.mxu0 0.0
  %5490 = vmatpush1.msra.mxu0 0.0
  %5491 = vmatprep.subr.mxu0 0.0
  %5492 = vmatpush1.msra.mxu0 0.0
  %5493 = vmatprep.subr.mxu0 0.0
  %5494 = vmatpush1.msra.mxu0 0.0
  %5495 = vmatprep.subr.mxu0 0.0
  %5496 = vmatpush1.msra.mxu0 0.0
  %5497 = vmatprep.subr.mxu0 0.0
  %5498 = vmatpush1.msra.mxu0 0.0
  %5499 = vmatprep.subr.mxu0 0.0
  %5500 = vmatpush1.msra.mxu0 0.0
  %5501 = vmatprep.subr.mxu0 0.0
  %5502 = vmatpush1.msra.mxu0 0.0
  %5503 = vmatprep.subr.mxu0 0.0
  %5504 = vmatpush1.msra.mxu0 0.0
  %5505 = vmatprep.subr.mxu0 0.0
  %5506 = vmatpush1.msra.mxu0 0.0
  %5507 = vmatprep.subr.mxu0 0.0
  %5508 = vmatpush1.msra.mxu0 0.0
  %5509 = vmatprep.subr.mxu0 0.0
  %5510 = vmatpush1.msra.mxu0 0.0
  %5511 = vmatprep.subr.mxu0 0.0
  %5512 = vmatpush1.msra.mxu0 0.0
  %5513 = vmatprep.subr.mxu0 0.0
  %5514 = vmatpush1.msra.mxu0 0.0
  %5515 = vmatprep.subr.mxu0 0.0
  %5516 = vmatpush1.msra.mxu0 0.0
  %5517 = vmatprep.subr.mxu0 0.0
  %5518 = vmatpush1.msra.mxu0 0.0
  %5519 = vmatprep.subr.mxu0 0.0
  %5520 = vmatpush1.msra.mxu0 0.0
  %5521 = vmatprep.subr.mxu0 0.0
  %5522 = vmatpush1.msra.mxu0 0.0
  %5523 = vmatprep.subr.mxu0 0.0
  %5524 = vmatpush1.msra.mxu0 0.0
  %5525 = vmatprep.subr.mxu0 0.0
  %5526 = vmatpush1.msra.mxu0 0.0
  %5527 = vmatprep.subr.mxu0 0.0
  %5528 = vmatpush1.msra.mxu0 0.0
  %5529 = vmatprep.subr.mxu0 0.0
  %5530 = vmatpush1.msra.mxu0 0.0
  %5531 = vmatprep.subr.mxu0 0.0
  %5532 = vmatpush1.msra.mxu0 0.0
  %5533 = vmatprep.subr.mxu0 0.0
  %5534 = vmatpush1.msra.mxu0 0.0
  %5535 = vmatprep.subr.mxu0 0.0
  %5536 = vmatpush1.msra.mxu0 0.0
  %5537 = vmatprep.subr.mxu0 0.0
  %5538 = vmatpush1.msra.mxu0 0.0
  %5539 = vmatprep.subr.mxu0 0.0
  %5540 = vmatpush1.msra.mxu0 0.0
  %5541 = vmatprep.mubr.f32.mxu0 0.0
  %v5542 = vand.u32 %v5321, 4294901760
  %v5543 = vsub.f32 %v5321, %v5542
  %5544 = vmatmul.mubr.f32.gmra.mrb[0].mxu0 %v5543
  %v5545 = vpop.f32.mrb[0].mxu0
  %v5546 = vadd.f32 %v5472, %v5545
  %v5547 = vpop.f32.mrb[0].mxu0
  %5548 = vdwg.mxu0
  %5549 = vmatprep.subr.mxu0 0.0
  %v5550 = vand.u32 %v2964, 4294901760
  %5551 = vmatpush1.msra.mxu0 %v5550
  %5552 = vmatprep.subr.mxu0 0.0
  %5553 = vmatpush1.msra.mxu0 0.0
  %5554 = vmatprep.subr.mxu0 0.0
  %5555 = vmatpush1.msra.mxu0 0.0
  %5556 = vmatprep.subr.mxu0 0.0
  %5557 = vmatpush1.msra.mxu0 0.0
  %5558 = vmatprep.subr.mxu0 0.0
  %5559 = vmatpush1.msra.mxu0 0.0
  %5560 = vmatprep.subr.mxu0 0.0
  %5561 = vmatpush1.msra.mxu0 0.0
  %5562 = vmatprep.subr.mxu0 0.0
  %5563 = vmatpush1.msra.mxu0 0.0
  %5564 = vmatprep.subr.mxu0 0.0
  %5565 = vmatpush1.msra.mxu0 0.0
  %5566 = vmatprep.subr.mxu0 0.0
  %5567 = vmatpush1.msra.mxu0 0.0
  %5568 = vmatprep.subr.mxu0 0.0
  %5569 = vmatpush1.msra.mxu0 0.0
  %5570 = vmatprep.subr.mxu0 0.0
  %5571 = vmatpush1.msra.mxu0 0.0
  %5572 = vmatprep.subr.mxu0 0.0
  %5573 = vmatpush1.msra.mxu0 0.0
  %5574 = vmatprep.subr.mxu0 0.0
  %5575 = vmatpush1.msra.mxu0 0.0
  %5576 = vmatprep.subr.mxu0 0.0
  %5577 = vmatpush1.msra.mxu0 0.0
  %5578 = vmatprep.subr.mxu0 0.0
  %5579 = vmatpush1.msra.mxu0 0.0
  %5580 = vmatprep.subr.mxu0 0.0
  %5581 = vmatpush1.msra.mxu0 0.0
  %5582 = vmatprep.subr.mxu0 0.0
  %5583 = vmatpush1.msra.mxu0 0.0
  %5584 = vmatprep.subr.mxu0 0.0
  %5585 = vmatpush1.msra.mxu0 0.0
  %5586 = vmatprep.subr.mxu0 0.0
  %5587 = vmatpush1.msra.mxu0 0.0
  %5588 = vmatprep.subr.mxu0 0.0
  %5589 = vmatpush1.msra.mxu0 0.0
  %5590 = vmatprep.subr.mxu0 0.0
  %5591 = vmatpush1.msra.mxu0 0.0
  %5592 = vmatprep.subr.mxu0 0.0
  %5593 = vmatpush1.msra.mxu0 0.0
  %5594 = vmatprep.subr.mxu0 0.0
  %5595 = vmatpush1.msra.mxu0 0.0
  %5596 = vmatprep.subr.mxu0 0.0
  %5597 = vmatpush1.msra.mxu0 0.0
  %5598 = vmatprep.subr.mxu0 0.0
  %5599 = vmatpush1.msra.mxu0 0.0
  %5600 = vmatprep.subr.mxu0 0.0
  %5601 = vmatpush1.msra.mxu0 0.0
  %5602 = vmatprep.subr.mxu0 0.0
  %5603 = vmatpush1.msra.mxu0 0.0
  %5604 = vmatprep.subr.mxu0 0.0
  %5605 = vmatpush1.msra.mxu0 0.0
  %5606 = vmatprep.subr.mxu0 0.0
  %5607 = vmatpush1.msra.mxu0 0.0
  %5608 = vmatprep.subr.mxu0 0.0
  %5609 = vmatpush1.msra.mxu0 0.0
  %5610 = vmatprep.subr.mxu0 0.0
  %5611 = vmatpush1.msra.mxu0 0.0
  %5612 = vmatprep.subr.mxu0 0.0
  %5613 = vmatpush1.msra.mxu0 0.0
  %5614 = vmatprep.mubr.f32.mxu0 0.0
  %v5615 = vand.u32 %v5321, 4294901760
  %v5616 = vsub.f32 %v5321, %v5615
  %v5617 = vand.u32 %v5616, 4294901760
  %5618 = vmatmul.mubr.f32.gmra.mrb[0].mxu0 %v5617
  %v5619 = vpop.f32.mrb[0].mxu0
  %v5620 = vadd.f32 %v5546, %v5619
  %v5621 = vpop.f32.mrb[0].mxu0
  %5622 = vdwg.mxu0
  %5623 = vmatprep.subr.mxu0 0.0
  %v5624 = vand.u32 %v2964, 4294901760
  %v5625 = vsub.f32 %v2964, %v5624
  %v5626 = vand.u32 %v5625, 4294901760
  %5627 = vmatpush1.msra.mxu0 %v5626
  %5628 = vmatprep.subr.mxu0 0.0
  %5629 = vmatpush1.msra.mxu0 0.0
  %5630 = vmatprep.subr.mxu0 0.0
  %5631 = vmatpush1.msra.mxu0 0.0
  %5632 = vmatprep.subr.mxu0 0.0
  %5633 = vmatpush1.msra.mxu0 0.0
  %5634 = vmatprep.subr.mxu0 0.0
  %5635 = vmatpush1.msra.mxu0 0.0
  %5636 = vmatprep.subr.mxu0 0.0
  %5637 = vmatpush1.msra.mxu0 0.0
  %5638 = vmatprep.subr.mxu0 0.0
  %5639 = vmatpush1.msra.mxu0 0.0
  %5640 = vmatprep.subr.mxu0 0.0
  %5641 = vmatpush1.msra.mxu0 0.0
  %5642 = vmatprep.subr.mxu0 0.0
  %5643 = vmatpush1.msra.mxu0 0.0
  %5644 = vmatprep.subr.mxu0 0.0
  %5645 = vmatpush1.msra.mxu0 0.0
  %5646 = vmatprep.subr.mxu0 0.0
  %5647 = vmatpush1.msra.mxu0 0.0
  %5648 = vmatprep.subr.mxu0 0.0
  %5649 = vmatpush1.msra.mxu0 0.0
  %5650 = vmatprep.subr.mxu0 0.0
  %5651 = vmatpush1.msra.mxu0 0.0
  %5652 = vmatprep.subr.mxu0 0.0
  %5653 = vmatpush1.msra.mxu0 0.0
  %5654 = vmatprep.subr.mxu0 0.0
  %5655 = vmatpush1.msra.mxu0 0.0
  %5656 = vmatprep.subr.mxu0 0.0
  %5657 = vmatpush1.msra.mxu0 0.0
  %5658 = vmatprep.subr.mxu0 0.0
  %5659 = vmatpush1.msra.mxu0 0.0
  %5660 = vmatprep.subr.mxu0 0.0
  %5661 = vmatpush1.msra.mxu0 0.0
  %5662 = vmatprep.subr.mxu0 0.0
  %5663 = vmatpush1.msra.mxu0 0.0
  %5664 = vmatprep.subr.mxu0 0.0
  %5665 = vmatpush1.msra.mxu0 0.0
  %5666 = vmatprep.subr.mxu0 0.0
  %5667 = vmatpush1.msra.mxu0 0.0
  %5668 = vmatprep.subr.mxu0 0.0
  %5669 = vmatpush1.msra.mxu0 0.0
  %5670 = vmatprep.subr.mxu0 0.0
  %5671 = vmatpush1.msra.mxu0 0.0
  %5672 = vmatprep.subr.mxu0 0.0
  %5673 = vmatpush1.msra.mxu0 0.0
  %5674 = vmatprep.subr.mxu0 0.0
  %5675 = vmatpush1.msra.mxu0 0.0
  %5676 = vmatprep.subr.mxu0 0.0
  %5677 = vmatpush1.msra.mxu0 0.0
  %5678 = vmatprep.subr.mxu0 0.0
  %5679 = vmatpush1.msra.mxu0 0.0
  %5680 = vmatprep.subr.mxu0 0.0
  %5681 = vmatpush1.msra.mxu0 0.0
  %5682 = vmatprep.subr.mxu0 0.0
  %5683 = vmatpush1.msra.mxu0 0.0
  %5684 = vmatprep.subr.mxu0 0.0
  %5685 = vmatpush1.msra.mxu0 0.0
  %5686 = vmatprep.subr.mxu0 0.0
  %5687 = vmatpush1.msra.mxu0 0.0
  %5688 = vmatprep.subr.mxu0 0.0
  %5689 = vmatpush1.msra.mxu0 0.0
  %5690 = vmatprep.mubr.f32.mxu0 0.0
  %v5691 = vand.u32 %v5321, 4294901760
  %5692 = vmatmul.mubr.f32.gmra.mrb[0].mxu0 %v5691
  %v5693 = vpop.f32.mrb[0].mxu0
  %v5694 = vadd.f32 %v5620, %v5693
  %v5695 = vpop.f32.mrb[0].mxu0
  %5696 = vdwg.mxu0
  %5697 = vmatprep.subr.mxu0 0.0
  %v5698 = vand.u32 %v2964, 4294901760
  %5699 = vmatpush1.msra.mxu0 %v5698
  %5700 = vmatprep.subr.mxu0 0.0
  %5701 = vmatpush1.msra.mxu0 0.0
  %5702 = vmatprep.subr.mxu0 0.0
  %5703 = vmatpush1.msra.mxu0 0.0
  %5704 = vmatprep.subr.mxu0 0.0
  %5705 = vmatpush1.msra.mxu0 0.0
  %5706 = vmatprep.subr.mxu0 0.0
  %5707 = vmatpush1.msra.mxu0 0.0
  %5708 = vmatprep.subr.mxu0 0.0
  %5709 = vmatpush1.msra.mxu0 0.0
  %5710 = vmatprep.subr.mxu0 0.0
  %5711 = vmatpush1.msra.mxu0 0.0
  %5712 = vmatprep.subr.mxu0 0.0
  %5713 = vmatpush1.msra.mxu0 0.0
  %5714 = vmatprep.subr.mxu0 0.0
  %5715 = vmatpush1.msra.mxu0 0.0
  %5716 = vmatprep.subr.mxu0 0.0
  %5717 = vmatpush1.msra.mxu0 0.0
  %5718 = vmatprep.subr.mxu0 0.0
  %5719 = vmatpush1.msra.mxu0 0.0
  %5720 = vmatprep.subr.mxu0 0.0
  %5721 = vmatpush1.msra.mxu0 0.0
  %5722 = vmatprep.subr.mxu0 0.0
  %5723 = vmatpush1.msra.mxu0 0.0
  %5724 = vmatprep.subr.mxu0 0.0
  %5725 = vmatpush1.msra.mxu0 0.0
  %5726 = vmatprep.subr.mxu0 0.0
  %5727 = vmatpush1.msra.mxu0 0.0
  %5728 = vmatprep.subr.mxu0 0.0
  %5729 = vmatpush1.msra.mxu0 0.0
  %5730 = vmatprep.subr.mxu0 0.0
  %5731 = vmatpush1.msra.mxu0 0.0
  %5732 = vmatprep.subr.mxu0 0.0
  %5733 = vmatpush1.msra.mxu0 0.0
  %5734 = vmatprep.subr.mxu0 0.0
  %5735 = vmatpush1.msra.mxu0 0.0
  %5736 = vmatprep.subr.mxu0 0.0
  %5737 = vmatpush1.msra.mxu0 0.0
  %5738 = vmatprep.subr.mxu0 0.0
  %5739 = vmatpush1.msra.mxu0 0.0
  %5740 = vmatprep.subr.mxu0 0.0
  %5741 = vmatpush1.msra.mxu0 0.0
  %5742 = vmatprep.subr.mxu0 0.0
  %5743 = vmatpush1.msra.mxu0 0.0
  %5744 = vmatprep.subr.mxu0 0.0
  %5745 = vmatpush1.msra.mxu0 0.0
  %5746 = vmatprep.subr.mxu0 0.0
  %5747 = vmatpush1.msra.mxu0 0.0
  %5748 = vmatprep.subr.mxu0 0.0
  %5749 = vmatpush1.msra.mxu0 0.0
  %5750 = vmatprep.subr.mxu0 0.0
  %5751 = vmatpush1.msra.mxu0 0.0
  %5752 = vmatprep.subr.mxu0 0.0
  %5753 = vmatpush1.msra.mxu0 0.0
  %5754 = vmatprep.subr.mxu0 0.0
  %5755 = vmatpush1.msra.mxu0 0.0
  %5756 = vmatprep.subr.mxu0 0.0
  %5757 = vmatpush1.msra.mxu0 0.0
  %5758 = vmatprep.subr.mxu0 0.0
  %5759 = vmatpush1.msra.mxu0 0.0
  %5760 = vmatprep.subr.mxu0 0.0
  %5761 = vmatpush1.msra.mxu0 0.0
  %5762 = vmatprep.mubr.f32.mxu0 0.0
  %v5763 = vand.u32 %v5321, 4294901760
  %5764 = vmatmul.mubr.f32.gmra.mrb[0].mxu0 %v5763
  %v5765 = vpop.f32.mrb[0].mxu0
  %v5766 = vadd.f32 %v5694, %v5765
  %v5767 = vpop.f32.mrb[0].mxu0
  %5768 = vdwg.mxu0
  %vm5769 = vcmask 128000
  %5770 = vst.msk [vmem:[%s7] sm:$0x3f] %vm5769, %v5766
  %v5771 = vld [vmem:[%s311] sm:$0xff]
  %v5772 = vld [vmem:[%s311 + $0x8] sm:$0x3]
  %v5773 = vsel %vm43, %v5771, -inf
  %5774 = vmax.xlane.f32.xlu0 %v5773
  %v5775 = vpop.xlane.xlu0 %5774
  %v5776 = vsel %vm2446, %v5772, -inf
  %5777 = vmax.xlane.f32.xlu0 %v5776
  %v5778 = vpop.xlane.xlu0 %5777
  %v5779 = vsub.f32 %v5771, %v5775
  %v5780 = vsub.f32 %v5772, %v5778
  %v5781 = vmul.f32 %v5779, 1.442695
  %v5782 = vpow.pop %v5781
  %v5783 = vmul.f32 %v5780, 1.442695
  %v5784 = vpow.pop %v5783
  %v5785 = vsel %vm43, %v5782, 0.0
  %5786 = vadd.xlane.f32.xlu0 %v5785
  %v5787 = vpop.xlane.xlu0 %5786
  %v5788 = vsel %vm2446, %v5784, 0.0
  %5789 = vadd.xlane.f32.xlu0 %v5788
  %v5790 = vpop.xlane.xlu0 %5789
  %v5791 = vrcp.pop %v5787
  %v5792 = vmul.f32 %v5782, %v5791
  %v5793 = vrcp.pop %v5790
  %v5794 = vmul.f32 %v5784, %v5793
  %s5795 = scalar_lea.vmem %s1, 16
  %v5796 = vld [vmem:[%s5795] sm:$0xff]
  %v5797 = vld [vmem:[%s5795 + $0x8] sm:$0x3]
  %5798 = vxpose.xlu0.b32.start [1/16] %v5792, 128
  %5799 = vxpose.xlu0.b32.cont [2/16] %v5794, 128
  %5800 = vxpose.xlu0.b32.cont [3/16] 0.0, 128
  %5801 = vxpose.xlu0.b32.cont [4/16] 0.0, 128
  %5802 = vxpose.xlu0.b32.cont [5/16] 0.0, 128
  %5803 = vxpose.xlu0.b32.cont [6/16] 0.0, 128
  %5804 = vxpose.xlu0.b32.cont [7/16] 0.0, 128
  %5805 = vxpose.xlu0.b32.cont [8/16] 0.0, 128
  %5806 = vxpose.xlu0.b32.cont [9/16] 0.0, 128
  %5807 = vxpose.xlu0.b32.cont [10/16] 0.0, 128
  %5808 = vxpose.xlu0.b32.cont [11/16] 0.0, 128
  %5809 = vxpose.xlu0.b32.cont [12/16] 0.0, 128
  %5810 = vxpose.xlu0.b32.cont [13/16] 0.0, 128
  %5811 = vxpose.xlu0.b32.cont [14/16] 0.0, 128
  %5812 = vxpose.xlu0.b32.cont [15/16] 0.0, 128
  %5813 = vxpose.xlu0.b32.end [16/16] 0.0, 128
  %v5814 = vpop.trf.xlu0
  %v5815 = vpop.trf.xlu0
  %v5816 = vpop.trf.xlu0
  %v5817 = vpop.trf.xlu0
  %v5818 = vpop.trf.xlu0
  %v5819 = vpop.trf.xlu0
  %v5820 = vpop.trf.xlu0
  %v5821 = vpop.trf.xlu0
  %v5822 = vpop.trf.xlu0
  %v5823 = vpop.trf.xlu0
  %v5824 = vpop.trf.xlu0
  %v5825 = vpop.trf.xlu0
  %v5826 = vpop.trf.xlu0
  %v5827 = vpop.trf.xlu0
  %v5828 = vpop.trf.xlu0
  %v5829 = vpop.trf.xlu0
  %v5831 = vsel %vm2500, %v5814, 0
  %v5834 = vsel %vm2504, %v5797, 0
  %5836 = vmatprep.subr.mxu0 0.0
  %v5837 = vand.u32 %v5796, 4294901760
  %5838 = vmatpush1.msra.mxu0 %v5837
  %5839 = vmatprep.subr.mxu0 0.0
  %v5840 = vand.u32 %v5834, 4294901760
  %5841 = vmatpush1.msra.mxu0 %v5840
  %5842 = vmatprep.subr.mxu0 0.0
  %5843 = vmatpush1.msra.mxu0 0.0
  %5844 = vmatprep.subr.mxu0 0.0
  %5845 = vmatpush1.msra.mxu0 0.0
  %5846 = vmatprep.subr.mxu0 0.0
  %5847 = vmatpush1.msra.mxu0 0.0
  %5848 = vmatprep.subr.mxu0 0.0
  %5849 = vmatpush1.msra.mxu0 0.0
  %5850 = vmatprep.subr.mxu0 0.0
  %5851 = vmatpush1.msra.mxu0 0.0
  %5852 = vmatprep.subr.mxu0 0.0
  %5853 = vmatpush1.msra.mxu0 0.0
  %5854 = vmatprep.subr.mxu0 0.0
  %5855 = vmatpush1.msra.mxu0 0.0
  %5856 = vmatprep.subr.mxu0 0.0
  %5857 = vmatpush1.msra.mxu0 0.0
  %5858 = vmatprep.subr.mxu0 0.0
  %5859 = vmatpush1.msra.mxu0 0.0
  %5860 = vmatprep.subr.mxu0 0.0
  %5861 = vmatpush1.msra.mxu0 0.0
  %5862 = vmatprep.subr.mxu0 0.0
  %5863 = vmatpush1.msra.mxu0 0.0
  %5864 = vmatprep.subr.mxu0 0.0
  %5865 = vmatpush1.msra.mxu0 0.0
  %5866 = vmatprep.subr.mxu0 0.0
  %5867 = vmatpush1.msra.mxu0 0.0
  %5868 = vmatprep.subr.mxu0 0.0
  %5869 = vmatpush1.msra.mxu0 0.0
  %5870 = vmatprep.subr.mxu0 0.0
  %5871 = vmatpush1.msra.mxu0 0.0
  %5872 = vmatprep.subr.mxu0 0.0
  %5873 = vmatpush1.msra.mxu0 0.0
  %5874 = vmatprep.subr.mxu0 0.0
  %5875 = vmatpush1.msra.mxu0 0.0
  %5876 = vmatprep.subr.mxu0 0.0
  %5877 = vmatpush1.msra.mxu0 0.0
  %5878 = vmatprep.subr.mxu0 0.0
  %5879 = vmatpush1.msra.mxu0 0.0
  %5880 = vmatprep.subr.mxu0 0.0
  %5881 = vmatpush1.msra.mxu0 0.0
  %5882 = vmatprep.subr.mxu0 0.0
  %5883 = vmatpush1.msra.mxu0 0.0
  %5884 = vmatprep.subr.mxu0 0.0
  %5885 = vmatpush1.msra.mxu0 0.0
  %5886 = vmatprep.subr.mxu0 0.0
  %5887 = vmatpush1.msra.mxu0 0.0
  %5888 = vmatprep.subr.mxu0 0.0
  %5889 = vmatpush1.msra.mxu0 0.0
  %5890 = vmatprep.subr.mxu0 0.0
  %5891 = vmatpush1.msra.mxu0 0.0
  %5892 = vmatprep.subr.mxu0 0.0
  %5893 = vmatpush1.msra.mxu0 0.0
  %5894 = vmatprep.subr.mxu0 0.0
  %5895 = vmatpush1.msra.mxu0 0.0
  %5896 = vmatprep.subr.mxu0 0.0
  %5897 = vmatpush1.msra.mxu0 0.0
  %5898 = vmatprep.subr.mxu0 0.0
  %5899 = vmatpush1.msra.mxu0 0.0
  %5900 = vmatprep.subr.mxu0 0.0
  %5901 = vmatpush1.msra.mxu0 0.0
  %5902 = vmatprep.mubr.f32.mxu0 0.0
  %v5903 = vand.u32 %v5831, 4294901760
  %v5904 = vsub.f32 %v5831, %v5903
  %v5905 = vand.u32 %v5904, 4294901760
  %v5906 = vsub.f32 %v5904, %v5905
  %v5907 = vand.u32 %v5906, 4294901760
  %5908 = vmatmul.mubr.f32.gmra.mrb[0].mxu0 %v5907
  %v5909 = vpop.f32.mrb[0].mxu0
  %v5910 = vadd.f32 0.0, %v5909
  %v5911 = vpop.f32.mrb[0].mxu0
  %5912 = vdwg.mxu0
  %5913 = vmatprep.subr.mxu0 0.0
  %v5914 = vand.u32 %v5796, 4294901760
  %v5915 = vsub.f32 %v5796, %v5914
  %v5916 = vand.u32 %v5915, 4294901760
  %v5917 = vsub.f32 %v5915, %v5916
  %v5918 = vand.u32 %v5917, 4294901760
  %5919 = vmatpush1.msra.mxu0 %v5918
  %5920 = vmatprep.subr.mxu0 0.0
  %v5921 = vand.u32 %v5834, 4294901760
  %v5922 = vsub.f32 %v5834, %v5921
  %v5923 = vand.u32 %v5922, 4294901760
  %v5924 = vsub.f32 %v5922, %v5923
  %v5925 = vand.u32 %v5924, 4294901760
  %5926 = vmatpush1.msra.mxu0 %v5925
  %5927 = vmatprep.subr.mxu0 0.0
  %5928 = vmatpush1.msra.mxu0 0.0
  %5929 = vmatprep.subr.mxu0 0.0
  %5930 = vmatpush1.msra.mxu0 0.0
  %5931 = vmatprep.subr.mxu0 0.0
  %5932 = vmatpush1.msra.mxu0 0.0
  %5933 = vmatprep.subr.mxu0 0.0
  %5934 = vmatpush1.msra.mxu0 0.0
  %5935 = vmatprep.subr.mxu0 0.0
  %5936 = vmatpush1.msra.mxu0 0.0
  %5937 = vmatprep.subr.mxu0 0.0
  %5938 = vmatpush1.msra.mxu0 0.0
  %5939 = vmatprep.subr.mxu0 0.0
  %5940 = vmatpush1.msra.mxu0 0.0
  %5941 = vmatprep.subr.mxu0 0.0
  %5942 = vmatpush1.msra.mxu0 0.0
  %5943 = vmatprep.subr.mxu0 0.0
  %5944 = vmatpush1.msra.mxu0 0.0
  %5945 = vmatprep.subr.mxu0 0.0
  %5946 = vmatpush1.msra.mxu0 0.0
  %5947 = vmatprep.subr.mxu0 0.0
  %5948 = vmatpush1.msra.mxu0 0.0
  %5949 = vmatprep.subr.mxu0 0.0
  %5950 = vmatpush1.msra.mxu0 0.0
  %5951 = vmatprep.subr.mxu0 0.0
  %5952 = vmatpush1.msra.mxu0 0.0
  %5953 = vmatprep.subr.mxu0 0.0
  %5954 = vmatpush1.msra.mxu0 0.0
  %5955 = vmatprep.subr.mxu0 0.0
  %5956 = vmatpush1.msra.mxu0 0.0
  %5957 = vmatprep.subr.mxu0 0.0
  %5958 = vmatpush1.msra.mxu0 0.0
  %5959 = vmatprep.subr.mxu0 0.0
  %5960 = vmatpush1.msra.mxu0 0.0
  %5961 = vmatprep.subr.mxu0 0.0
  %5962 = vmatpush1.msra.mxu0 0.0
  %5963 = vmatprep.subr.mxu0 0.0
  %5964 = vmatpush1.msra.mxu0 0.0
  %5965 = vmatprep.subr.mxu0 0.0
  %5966 = vmatpush1.msra.mxu0 0.0
  %5967 = vmatprep.subr.mxu0 0.0
  %5968 = vmatpush1.msra.mxu0 0.0
  %5969 = vmatprep.subr.mxu0 0.0
  %5970 = vmatpush1.msra.mxu0 0.0
  %5971 = vmatprep.subr.mxu0 0.0
  %5972 = vmatpush1.msra.mxu0 0.0
  %5973 = vmatprep.subr.mxu0 0.0
  %5974 = vmatpush1.msra.mxu0 0.0
  %5975 = vmatprep.subr.mxu0 0.0
  %5976 = vmatpush1.msra.mxu0 0.0
  %5977 = vmatprep.subr.mxu0 0.0
  %5978 = vmatpush1.msra.mxu0 0.0
  %5979 = vmatprep.subr.mxu0 0.0
  %5980 = vmatpush1.msra.mxu0 0.0
  %5981 = vmatprep.subr.mxu0 0.0
  %5982 = vmatpush1.msra.mxu0 0.0
  %5983 = vmatprep.subr.mxu0 0.0
  %5984 = vmatpush1.msra.mxu0 0.0
  %5985 = vmatprep.subr.mxu0 0.0
  %5986 = vmatpush1.msra.mxu0 0.0
  %5987 = vmatprep.mubr.f32.mxu0 0.0
  %v5988 = vand.u32 %v5831, 4294901760
  %5989 = vmatmul.mubr.f32.gmra.mrb[0].mxu0 %v5988
  %v5990 = vpop.f32.mrb[0].mxu0
  %v5991 = vadd.f32 %v5910, %v5990
  %v5992 = vpop.f32.mrb[0].mxu0
  %5993 = vdwg.mxu0
  %5994 = vmatprep.subr.mxu0 0.0
  %v5995 = vand.u32 %v5796, 4294901760
  %v5996 = vsub.f32 %v5796, %v5995
  %5997 = vmatpush1.msra.mxu0 %v5996
  %5998 = vmatprep.subr.mxu0 0.0
  %v5999 = vand.u32 %v5834, 4294901760
  %v6000 = vsub.f32 %v5834, %v5999
  %6001 = vmatpush1.msra.mxu0 %v6000
  %6002 = vmatprep.subr.mxu0 0.0
  %6003 = vmatpush1.msra.mxu0 0.0
  %6004 = vmatprep.subr.mxu0 0.0
  %6005 = vmatpush1.msra.mxu0 0.0
  %6006 = vmatprep.subr.mxu0 0.0
  %6007 = vmatpush1.msra.mxu0 0.0
  %6008 = vmatprep.subr.mxu0 0.0
  %6009 = vmatpush1.msra.mxu0 0.0
  %6010 = vmatprep.subr.mxu0 0.0
  %6011 = vmatpush1.msra.mxu0 0.0
  %6012 = vmatprep.subr.mxu0 0.0
  %6013 = vmatpush1.msra.mxu0 0.0
  %6014 = vmatprep.subr.mxu0 0.0
  %6015 = vmatpush1.msra.mxu0 0.0
  %6016 = vmatprep.subr.mxu0 0.0
  %6017 = vmatpush1.msra.mxu0 0.0
  %6018 = vmatprep.subr.mxu0 0.0
  %6019 = vmatpush1.msra.mxu0 0.0
  %6020 = vmatprep.subr.mxu0 0.0
  %6021 = vmatpush1.msra.mxu0 0.0
  %6022 = vmatprep.subr.mxu0 0.0
  %6023 = vmatpush1.msra.mxu0 0.0
  %6024 = vmatprep.subr.mxu0 0.0
  %6025 = vmatpush1.msra.mxu0 0.0
  %6026 = vmatprep.subr.mxu0 0.0
  %6027 = vmatpush1.msra.mxu0 0.0
  %6028 = vmatprep.subr.mxu0 0.0
  %6029 = vmatpush1.msra.mxu0 0.0
  %6030 = vmatprep.subr.mxu0 0.0
  %6031 = vmatpush1.msra.mxu0 0.0
  %6032 = vmatprep.subr.mxu0 0.0
  %6033 = vmatpush1.msra.mxu0 0.0
  %6034 = vmatprep.subr.mxu0 0.0
  %6035 = vmatpush1.msra.mxu0 0.0
  %6036 = vmatprep.subr.mxu0 0.0
  %6037 = vmatpush1.msra.mxu0 0.0
  %6038 = vmatprep.subr.mxu0 0.0
  %6039 = vmatpush1.msra.mxu0 0.0
  %6040 = vmatprep.subr.mxu0 0.0
  %6041 = vmatpush1.msra.mxu0 0.0
  %6042 = vmatprep.subr.mxu0 0.0
  %6043 = vmatpush1.msra.mxu0 0.0
  %6044 = vmatprep.subr.mxu0 0.0
  %6045 = vmatpush1.msra.mxu0 0.0
  %6046 = vmatprep.subr.mxu0 0.0
  %6047 = vmatpush1.msra.mxu0 0.0
  %6048 = vmatprep.subr.mxu0 0.0
  %6049 = vmatpush1.msra.mxu0 0.0
  %6050 = vmatprep.subr.mxu0 0.0
  %6051 = vmatpush1.msra.mxu0 0.0
  %6052 = vmatprep.subr.mxu0 0.0
  %6053 = vmatpush1.msra.mxu0 0.0
  %6054 = vmatprep.subr.mxu0 0.0
  %6055 = vmatpush1.msra.mxu0 0.0
  %6056 = vmatprep.subr.mxu0 0.0
  %6057 = vmatpush1.msra.mxu0 0.0
  %6058 = vmatprep.subr.mxu0 0.0
  %6059 = vmatpush1.msra.mxu0 0.0
  %6060 = vmatprep.subr.mxu0 0.0
  %6061 = vmatpush1.msra.mxu0 0.0
  %6062 = vmatprep.mubr.f32.mxu0 0.0
  %v6063 = vand.u32 %v5831, 4294901760
  %v6064 = vsub.f32 %v5831, %v6063
  %6065 = vmatmul.mubr.f32.gmra.mrb[0].mxu0 %v6064
  %v6066 = vpop.f32.mrb[0].mxu0
  %v6067 = vadd.f32 %v5991, %v6066
  %v6068 = vpop.f32.mrb[0].mxu0
  %6069 = vdwg.mxu0
  %6070 = vmatprep.subr.mxu0 0.0
  %v6071 = vand.u32 %v5796, 4294901760
  %6072 = vmatpush1.msra.mxu0 %v6071
  %6073 = vmatprep.subr.mxu0 0.0
  %v6074 = vand.u32 %v5834, 4294901760
  %6075 = vmatpush1.msra.mxu0 %v6074
  %6076 = vmatprep.subr.mxu0 0.0
  %6077 = vmatpush1.msra.mxu0 0.0
  %6078 = vmatprep.subr.mxu0 0.0
  %6079 = vmatpush1.msra.mxu0 0.0
  %6080 = vmatprep.subr.mxu0 0.0
  %6081 = vmatpush1.msra.mxu0 0.0
  %6082 = vmatprep.subr.mxu0 0.0
  %6083 = vmatpush1.msra.mxu0 0.0
  %6084 = vmatprep.subr.mxu0 0.0
  %6085 = vmatpush1.msra.mxu0 0.0
  %6086 = vmatprep.subr.mxu0 0.0
  %6087 = vmatpush1.msra.mxu0 0.0
  %6088 = vmatprep.subr.mxu0 0.0
  %6089 = vmatpush1.msra.mxu0 0.0
  %6090 = vmatprep.subr.mxu0 0.0
  %6091 = vmatpush1.msra.mxu0 0.0
  %6092 = vmatprep.subr.mxu0 0.0
  %6093 = vmatpush1.msra.mxu0 0.0
  %6094 = vmatprep.subr.mxu0 0.0
  %6095 = vmatpush1.msra.mxu0 0.0
  %6096 = vmatprep.subr.mxu0 0.0
  %6097 = vmatpush1.msra.mxu0 0.0
  %6098 = vmatprep.subr.mxu0 0.0
  %6099 = vmatpush1.msra.mxu0 0.0
  %6100 = vmatprep.subr.mxu0 0.0
  %6101 = vmatpush1.msra.mxu0 0.0
  %6102 = vmatprep.subr.mxu0 0.0
  %6103 = vmatpush1.msra.mxu0 0.0
  %6104 = vmatprep.subr.mxu0 0.0
  %6105 = vmatpush1.msra.mxu0 0.0
  %6106 = vmatprep.subr.mxu0 0.0
  %6107 = vmatpush1.msra.mxu0 0.0
  %6108 = vmatprep.subr.mxu0 0.0
  %6109 = vmatpush1.msra.mxu0 0.0
  %6110 = vmatprep.subr.mxu0 0.0
  %6111 = vmatpush1.msra.mxu0 0.0
  %6112 = vmatprep.subr.mxu0 0.0
  %6113 = vmatpush1.msra.mxu0 0.0
  %6114 = vmatprep.subr.mxu0 0.0
  %6115 = vmatpush1.msra.mxu0 0.0
  %6116 = vmatprep.subr.mxu0 0.0
  %6117 = vmatpush1.msra.mxu0 0.0
  %6118 = vmatprep.subr.mxu0 0.0
  %6119 = vmatpush1.msra.mxu0 0.0
  %6120 = vmatprep.subr.mxu0 0.0
  %6121 = vmatpush1.msra.mxu0 0.0
  %6122 = vmatprep.subr.mxu0 0.0
  %6123 = vmatpush1.msra.mxu0 0.0
  %6124 = vmatprep.subr.mxu0 0.0
  %6125 = vmatpush1.msra.mxu0 0.0
  %6126 = vmatprep.subr.mxu0 0.0
  %6127 = vmatpush1.msra.mxu0 0.0
  %6128 = vmatprep.subr.mxu0 0.0
  %6129 = vmatpush1.msra.mxu0 0.0
  %6130 = vmatprep.subr.mxu0 0.0
  %6131 = vmatpush1.msra.mxu0 0.0
  %6132 = vmatprep.subr.mxu0 0.0
  %6133 = vmatpush1.msra.mxu0 0.0
  %6134 = vmatprep.subr.mxu0 0.0
  %6135 = vmatpush1.msra.mxu0 0.0
  %6136 = vmatprep.mubr.f32.mxu0 0.0
  %v6137 = vand.u32 %v5831, 4294901760
  %v6138 = vsub.f32 %v5831, %v6137
  %v6139 = vand.u32 %v6138, 4294901760
  %6140 = vmatmul.mubr.f32.gmra.mrb[0].mxu0 %v6139
  %v6141 = vpop.f32.mrb[0].mxu0
  %v6142 = vadd.f32 %v6067, %v6141
  %v6143 = vpop.f32.mrb[0].mxu0
  %6144 = vdwg.mxu0
  %6145 = vmatprep.subr.mxu0 0.0
  %v6146 = vand.u32 %v5796, 4294901760
  %v6147 = vsub.f32 %v5796, %v6146
  %v6148 = vand.u32 %v6147, 4294901760
  %6149 = vmatpush1.msra.mxu0 %v6148
  %6150 = vmatprep.subr.mxu0 0.0
  %v6151 = vand.u32 %v5834, 4294901760
  %v6152 = vsub.f32 %v5834, %v6151
  %v6153 = vand.u32 %v6152, 4294901760
  %6154 = vmatpush1.msra.mxu0 %v6153
  %6155 = vmatprep.subr.mxu0 0.0
  %6156 = vmatpush1.msra.mxu0 0.0
  %6157 = vmatprep.subr.mxu0 0.0
  %6158 = vmatpush1.msra.mxu0 0.0
  %6159 = vmatprep.subr.mxu0 0.0
  %6160 = vmatpush1.msra.mxu0 0.0
  %6161 = vmatprep.subr.mxu0 0.0
  %6162 = vmatpush1.msra.mxu0 0.0
  %6163 = vmatprep.subr.mxu0 0.0
  %6164 = vmatpush1.msra.mxu0 0.0
  %6165 = vmatprep.subr.mxu0 0.0
  %6166 = vmatpush1.msra.mxu0 0.0
  %6167 = vmatprep.subr.mxu0 0.0
  %6168 = vmatpush1.msra.mxu0 0.0
  %6169 = vmatprep.subr.mxu0 0.0
  %6170 = vmatpush1.msra.mxu0 0.0
  %6171 = vmatprep.subr.mxu0 0.0
  %6172 = vmatpush1.msra.mxu0 0.0
  %6173 = vmatprep.subr.mxu0 0.0
  %6174 = vmatpush1.msra.mxu0 0.0
  %6175 = vmatprep.subr.mxu0 0.0
  %6176 = vmatpush1.msra.mxu0 0.0
  %6177 = vmatprep.subr.mxu0 0.0
  %6178 = vmatpush1.msra.mxu0 0.0
  %6179 = vmatprep.subr.mxu0 0.0
  %6180 = vmatpush1.msra.mxu0 0.0
  %6181 = vmatprep.subr.mxu0 0.0
  %6182 = vmatpush1.msra.mxu0 0.0
  %6183 = vmatprep.subr.mxu0 0.0
  %6184 = vmatpush1.msra.mxu0 0.0
  %6185 = vmatprep.subr.mxu0 0.0
  %6186 = vmatpush1.msra.mxu0 0.0
  %6187 = vmatprep.subr.mxu0 0.0
  %6188 = vmatpush1.msra.mxu0 0.0
  %6189 = vmatprep.subr.mxu0 0.0
  %6190 = vmatpush1.msra.mxu0 0.0
  %6191 = vmatprep.subr.mxu0 0.0
  %6192 = vmatpush1.msra.mxu0 0.0
  %6193 = vmatprep.subr.mxu0 0.0
  %6194 = vmatpush1.msra.mxu0 0.0
  %6195 = vmatprep.subr.mxu0 0.0
  %6196 = vmatpush1.msra.mxu0 0.0
  %6197 = vmatprep.subr.mxu0 0.0
  %6198 = vmatpush1.msra.mxu0 0.0
  %6199 = vmatprep.subr.mxu0 0.0
  %6200 = vmatpush1.msra.mxu0 0.0
  %6201 = vmatprep.subr.mxu0 0.0
  %6202 = vmatpush1.msra.mxu0 0.0
  %6203 = vmatprep.subr.mxu0 0.0
  %6204 = vmatpush1.msra.mxu0 0.0
  %6205 = vmatprep.subr.mxu0 0.0
  %6206 = vmatpush1.msra.mxu0 0.0
  %6207 = vmatprep.subr.mxu0 0.0
  %6208 = vmatpush1.msra.mxu0 0.0
  %6209 = vmatprep.subr.mxu0 0.0
  %6210 = vmatpush1.msra.mxu0 0.0
  %6211 = vmatprep.subr.mxu0 0.0
  %6212 = vmatpush1.msra.mxu0 0.0
  %6213 = vmatprep.subr.mxu0 0.0
  %6214 = vmatpush1.msra.mxu0 0.0
  %6215 = vmatprep.mubr.f32.mxu0 0.0
  %v6216 = vand.u32 %v5831, 4294901760
  %6217 = vmatmul.mubr.f32.gmra.mrb[0].mxu0 %v6216
  %v6218 = vpop.f32.mrb[0].mxu0
  %v6219 = vadd.f32 %v6142, %v6218
  %v6220 = vpop.f32.mrb[0].mxu0
  %6221 = vdwg.mxu0
  %6222 = vmatprep.subr.mxu0 0.0
  %v6223 = vand.u32 %v5796, 4294901760
  %6224 = vmatpush1.msra.mxu0 %v6223
  %6225 = vmatprep.subr.mxu0 0.0
  %v6226 = vand.u32 %v5834, 4294901760
  %6227 = vmatpush1.msra.mxu0 %v6226
  %6228 = vmatprep.subr.mxu0 0.0
  %6229 = vmatpush1.msra.mxu0 0.0
  %6230 = vmatprep.subr.mxu0 0.0
  %6231 = vmatpush1.msra.mxu0 0.0
  %6232 = vmatprep.subr.mxu0 0.0
  %6233 = vmatpush1.msra.mxu0 0.0
  %6234 = vmatprep.subr.mxu0 0.0
  %6235 = vmatpush1.msra.mxu0 0.0
  %6236 = vmatprep.subr.mxu0 0.0
  %6237 = vmatpush1.msra.mxu0 0.0
  %6238 = vmatprep.subr.mxu0 0.0
  %6239 = vmatpush1.msra.mxu0 0.0
  %6240 = vmatprep.subr.mxu0 0.0
  %6241 = vmatpush1.msra.mxu0 0.0
  %6242 = vmatprep.subr.mxu0 0.0
  %6243 = vmatpush1.msra.mxu0 0.0
  %6244 = vmatprep.subr.mxu0 0.0
  %6245 = vmatpush1.msra.mxu0 0.0
  %6246 = vmatprep.subr.mxu0 0.0
  %6247 = vmatpush1.msra.mxu0 0.0
  %6248 = vmatprep.subr.mxu0 0.0
  %6249 = vmatpush1.msra.mxu0 0.0
  %6250 = vmatprep.subr.mxu0 0.0
  %6251 = vmatpush1.msra.mxu0 0.0
  %6252 = vmatprep.subr.mxu0 0.0
  %6253 = vmatpush1.msra.mxu0 0.0
  %6254 = vmatprep.subr.mxu0 0.0
  %6255 = vmatpush1.msra.mxu0 0.0
  %6256 = vmatprep.subr.mxu0 0.0
  %6257 = vmatpush1.msra.mxu0 0.0
  %6258 = vmatprep.subr.mxu0 0.0
  %6259 = vmatpush1.msra.mxu0 0.0
  %6260 = vmatprep.subr.mxu0 0.0
  %6261 = vmatpush1.msra.mxu0 0.0
  %6262 = vmatprep.subr.mxu0 0.0
  %6263 = vmatpush1.msra.mxu0 0.0
  %6264 = vmatprep.subr.mxu0 0.0
  %6265 = vmatpush1.msra.mxu0 0.0
  %6266 = vmatprep.subr.mxu0 0.0
  %6267 = vmatpush1.msra.mxu0 0.0
  %6268 = vmatprep.subr.mxu0 0.0
  %6269 = vmatpush1.msra.mxu0 0.0
  %6270 = vmatprep.subr.mxu0 0.0
  %6271 = vmatpush1.msra.mxu0 0.0
  %6272 = vmatprep.subr.mxu0 0.0
  %6273 = vmatpush1.msra.mxu0 0.0
  %6274 = vmatprep.subr.mxu0 0.0
  %6275 = vmatpush1.msra.mxu0 0.0
  %6276 = vmatprep.subr.mxu0 0.0
  %6277 = vmatpush1.msra.mxu0 0.0
  %6278 = vmatprep.subr.mxu0 0.0
  %6279 = vmatpush1.msra.mxu0 0.0
  %6280 = vmatprep.subr.mxu0 0.0
  %6281 = vmatpush1.msra.mxu0 0.0
  %6282 = vmatprep.subr.mxu0 0.0
  %6283 = vmatpush1.msra.mxu0 0.0
  %6284 = vmatprep.subr.mxu0 0.0
  %6285 = vmatpush1.msra.mxu0 0.0
  %6286 = vmatprep.subr.mxu0 0.0
  %6287 = vmatpush1.msra.mxu0 0.0
  %6288 = vmatprep.mubr.f32.mxu0 0.0
  %v6289 = vand.u32 %v5831, 4294901760
  %6290 = vmatmul.mubr.f32.gmra.mrb[0].mxu0 %v6289
  %v6291 = vpop.f32.mrb[0].mxu0
  %v6292 = vadd.f32 %v6219, %v6291
  %v6293 = vpop.f32.mrb[0].mxu0
  %6294 = vdwg.mxu0
  %v6296 = vsel %vm100, %v6292, 0
  %6298 = vmatprep.subr.mxu0 0.0
  %v6299 = vand.u32 %v2429, 4294901760
  %6300 = vmatpush1.msra.mxu0 %v6299
  %6301 = vmatprep.subr.mxu0 0.0
  %v6302 = vand.u32 %v2430, 4294901760
  %6303 = vmatpush1.msra.mxu0 %v6302
  %6304 = vmatprep.subr.mxu0 0.0
  %6305 = vmatpush1.msra.mxu0 0.0
  %6306 = vmatprep.subr.mxu0 0.0
  %6307 = vmatpush1.msra.mxu0 0.0
  %6308 = vmatprep.subr.mxu0 0.0
  %6309 = vmatpush1.msra.mxu0 0.0
  %6310 = vmatprep.subr.mxu0 0.0
  %6311 = vmatpush1.msra.mxu0 0.0
  %6312 = vmatprep.subr.mxu0 0.0
  %6313 = vmatpush1.msra.mxu0 0.0
  %6314 = vmatprep.subr.mxu0 0.0
  %6315 = vmatpush1.msra.mxu0 0.0
  %6316 = vmatprep.subr.mxu0 0.0
  %6317 = vmatpush1.msra.mxu0 0.0
  %6318 = vmatprep.subr.mxu0 0.0
  %6319 = vmatpush1.msra.mxu0 0.0
  %6320 = vmatprep.subr.mxu0 0.0
  %6321 = vmatpush1.msra.mxu0 0.0
  %6322 = vmatprep.subr.mxu0 0.0
  %6323 = vmatpush1.msra.mxu0 0.0
  %6324 = vmatprep.subr.mxu0 0.0
  %6325 = vmatpush1.msra.mxu0 0.0
  %6326 = vmatprep.subr.mxu0 0.0
  %6327 = vmatpush1.msra.mxu0 0.0
  %6328 = vmatprep.subr.mxu0 0.0
  %6329 = vmatpush1.msra.mxu0 0.0
  %6330 = vmatprep.subr.mxu0 0.0
  %6331 = vmatpush1.msra.mxu0 0.0
  %6332 = vmatprep.subr.mxu0 0.0
  %6333 = vmatpush1.msra.mxu0 0.0
  %6334 = vmatprep.subr.mxu0 0.0
  %6335 = vmatpush1.msra.mxu0 0.0
  %6336 = vmatprep.subr.mxu0 0.0
  %6337 = vmatpush1.msra.mxu0 0.0
  %6338 = vmatprep.subr.mxu0 0.0
  %6339 = vmatpush1.msra.mxu0 0.0
  %6340 = vmatprep.subr.mxu0 0.0
  %6341 = vmatpush1.msra.mxu0 0.0
  %6342 = vmatprep.subr.mxu0 0.0
  %6343 = vmatpush1.msra.mxu0 0.0
  %6344 = vmatprep.subr.mxu0 0.0
  %6345 = vmatpush1.msra.mxu0 0.0
  %6346 = vmatprep.subr.mxu0 0.0
  %6347 = vmatpush1.msra.mxu0 0.0
  %6348 = vmatprep.subr.mxu0 0.0
  %6349 = vmatpush1.msra.mxu0 0.0
  %6350 = vmatprep.subr.mxu0 0.0
  %6351 = vmatpush1.msra.mxu0 0.0
  %6352 = vmatprep.subr.mxu0 0.0
  %6353 = vmatpush1.msra.mxu0 0.0
  %6354 = vmatprep.subr.mxu0 0.0
  %6355 = vmatpush1.msra.mxu0 0.0
  %6356 = vmatprep.subr.mxu0 0.0
  %6357 = vmatpush1.msra.mxu0 0.0
  %6358 = vmatprep.subr.mxu0 0.0
  %6359 = vmatpush1.msra.mxu0 0.0
  %6360 = vmatprep.subr.mxu0 0.0
  %6361 = vmatpush1.msra.mxu0 0.0
  %6362 = vmatprep.subr.mxu0 0.0
  %6363 = vmatpush1.msra.mxu0 0.0
  %6364 = vmatprep.mubr.f32.mxu0 0.0
  %v6365 = vand.u32 %v6296, 4294901760
  %v6366 = vsub.f32 %v6296, %v6365
  %v6367 = vand.u32 %v6366, 4294901760
  %v6368 = vsub.f32 %v6366, %v6367
  %v6369 = vand.u32 %v6368, 4294901760
  %6370 = vmatmul.mubr.f32.gmra.mrb[0].mxu0 %v6369
  %v6371 = vpop.f32.mrb[0].mxu0
  %v6372 = vadd.f32 %v2970, %v6371
  %v6373 = vpop.f32.mrb[0].mxu0
  %6374 = vdwg.mxu0
  %6375 = vmatprep.subr.mxu0 0.0
  %v6376 = vand.u32 %v2429, 4294901760
  %v6377 = vsub.f32 %v2429, %v6376
  %v6378 = vand.u32 %v6377, 4294901760
  %v6379 = vsub.f32 %v6377, %v6378
  %v6380 = vand.u32 %v6379, 4294901760
  %6381 = vmatpush1.msra.mxu0 %v6380
  %6382 = vmatprep.subr.mxu0 0.0
  %v6383 = vand.u32 %v2430, 4294901760
  %v6384 = vsub.f32 %v2430, %v6383
  %v6385 = vand.u32 %v6384, 4294901760
  %v6386 = vsub.f32 %v6384, %v6385
  %v6387 = vand.u32 %v6386, 4294901760
  %6388 = vmatpush1.msra.mxu0 %v6387
  %6389 = vmatprep.subr.mxu0 0.0
  %6390 = vmatpush1.msra.mxu0 0.0
  %6391 = vmatprep.subr.mxu0 0.0
  %6392 = vmatpush1.msra.mxu0 0.0
  %6393 = vmatprep.subr.mxu0 0.0
  %6394 = vmatpush1.msra.mxu0 0.0
  %6395 = vmatprep.subr.mxu0 0.0
  %6396 = vmatpush1.msra.mxu0 0.0
  %6397 = vmatprep.subr.mxu0 0.0
  %6398 = vmatpush1.msra.mxu0 0.0
  %6399 = vmatprep.subr.mxu0 0.0
  %6400 = vmatpush1.msra.mxu0 0.0
  %6401 = vmatprep.subr.mxu0 0.0
  %6402 = vmatpush1.msra.mxu0 0.0
  %6403 = vmatprep.subr.mxu0 0.0
  %6404 = vmatpush1.msra.mxu0 0.0
  %6405 = vmatprep.subr.mxu0 0.0
  %6406 = vmatpush1.msra.mxu0 0.0
  %6407 = vmatprep.subr.mxu0 0.0
  %6408 = vmatpush1.msra.mxu0 0.0
  %6409 = vmatprep.subr.mxu0 0.0
  %6410 = vmatpush1.msra.mxu0 0.0
  %6411 = vmatprep.subr.mxu0 0.0
  %6412 = vmatpush1.msra.mxu0 0.0
  %6413 = vmatprep.subr.mxu0 0.0
  %6414 = vmatpush1.msra.mxu0 0.0
  %6415 = vmatprep.subr.mxu0 0.0
  %6416 = vmatpush1.msra.mxu0 0.0
  %6417 = vmatprep.subr.mxu0 0.0
  %6418 = vmatpush1.msra.mxu0 0.0
  %6419 = vmatprep.subr.mxu0 0.0
  %6420 = vmatpush1.msra.mxu0 0.0
  %6421 = vmatprep.subr.mxu0 0.0
  %6422 = vmatpush1.msra.mxu0 0.0
  %6423 = vmatprep.subr.mxu0 0.0
  %6424 = vmatpush1.msra.mxu0 0.0
  %6425 = vmatprep.subr.mxu0 0.0
  %6426 = vmatpush1.msra.mxu0 0.0
  %6427 = vmatprep.subr.mxu0 0.0
  %6428 = vmatpush1.msra.mxu0 0.0
  %6429 = vmatprep.subr.mxu0 0.0
  %6430 = vmatpush1.msra.mxu0 0.0
  %6431 = vmatprep.subr.mxu0 0.0
  %6432 = vmatpush1.msra.mxu0 0.0
  %6433 = vmatprep.subr.mxu0 0.0
  %6434 = vmatpush1.msra.mxu0 0.0
  %6435 = vmatprep.subr.mxu0 0.0
  %6436 = vmatpush1.msra.mxu0 0.0
  %6437 = vmatprep.subr.mxu0 0.0
  %6438 = vmatpush1.msra.mxu0 0.0
  %6439 = vmatprep.subr.mxu0 0.0
  %6440 = vmatpush1.msra.mxu0 0.0
  %6441 = vmatprep.subr.mxu0 0.0
  %6442 = vmatpush1.msra.mxu0 0.0
  %6443 = vmatprep.subr.mxu0 0.0
  %6444 = vmatpush1.msra.mxu0 0.0
  %6445 = vmatprep.subr.mxu0 0.0
  %6446 = vmatpush1.msra.mxu0 0.0
  %6447 = vmatprep.subr.mxu0 0.0
  %6448 = vmatpush1.msra.mxu0 0.0
  %6449 = vmatprep.mubr.f32.mxu0 0.0
  %v6450 = vand.u32 %v6296, 4294901760
  %6451 = vmatmul.mubr.f32.gmra.mrb[0].mxu0 %v6450
  %v6452 = vpop.f32.mrb[0].mxu0
  %v6453 = vadd.f32 %v6372, %v6452
  %v6454 = vpop.f32.mrb[0].mxu0
  %6455 = vdwg.mxu0
  %6456 = vmatprep.subr.mxu0 0.0
  %v6457 = vand.u32 %v2429, 4294901760
  %v6458 = vsub.f32 %v2429, %v6457
  %6459 = vmatpush1.msra.mxu0 %v6458
  %6460 = vmatprep.subr.mxu0 0.0
  %v6461 = vand.u32 %v2430, 4294901760
  %v6462 = vsub.f32 %v2430, %v6461
  %6463 = vmatpush1.msra.mxu0 %v6462
  %6464 = vmatprep.subr.mxu0 0.0
  %6465 = vmatpush1.msra.mxu0 0.0
  %6466 = vmatprep.subr.mxu0 0.0
  %6467 = vmatpush1.msra.mxu0 0.0
  %6468 = vmatprep.subr.mxu0 0.0
  %6469 = vmatpush1.msra.mxu0 0.0
  %6470 = vmatprep.subr.mxu0 0.0
  %6471 = vmatpush1.msra.mxu0 0.0
  %6472 = vmatprep.subr.mxu0 0.0
  %6473 = vmatpush1.msra.mxu0 0.0
  %6474 = vmatprep.subr.mxu0 0.0
  %6475 = vmatpush1.msra.mxu0 0.0
  %6476 = vmatprep.subr.mxu0 0.0
  %6477 = vmatpush1.msra.mxu0 0.0
  %6478 = vmatprep.subr.mxu0 0.0
  %6479 = vmatpush1.msra.mxu0 0.0
  %6480 = vmatprep.subr.mxu0 0.0
  %6481 = vmatpush1.msra.mxu0 0.0
  %6482 = vmatprep.subr.mxu0 0.0
  %6483 = vmatpush1.msra.mxu0 0.0
  %6484 = vmatprep.subr.mxu0 0.0
  %6485 = vmatpush1.msra.mxu0 0.0
  %6486 = vmatprep.subr.mxu0 0.0
  %6487 = vmatpush1.msra.mxu0 0.0
  %6488 = vmatprep.subr.mxu0 0.0
  %6489 = vmatpush1.msra.mxu0 0.0
  %6490 = vmatprep.subr.mxu0 0.0
  %6491 = vmatpush1.msra.mxu0 0.0
  %6492 = vmatprep.subr.mxu0 0.0
  %6493 = vmatpush1.msra.mxu0 0.0
  %6494 = vmatprep.subr.mxu0 0.0
  %6495 = vmatpush1.msra.mxu0 0.0
  %6496 = vmatprep.subr.mxu0 0.0
  %6497 = vmatpush1.msra.mxu0 0.0
  %6498 = vmatprep.subr.mxu0 0.0
  %6499 = vmatpush1.msra.mxu0 0.0
  %6500 = vmatprep.subr.mxu0 0.0
  %6501 = vmatpush1.msra.mxu0 0.0
  %6502 = vmatprep.subr.mxu0 0.0
  %6503 = vmatpush1.msra.mxu0 0.0
  %6504 = vmatprep.subr.mxu0 0.0
  %6505 = vmatpush1.msra.mxu0 0.0
  %6506 = vmatprep.subr.mxu0 0.0
  %6507 = vmatpush1.msra.mxu0 0.0
  %6508 = vmatprep.subr.mxu0 0.0
  %6509 = vmatpush1.msra.mxu0 0.0
  %6510 = vmatprep.subr.mxu0 0.0
  %6511 = vmatpush1.msra.mxu0 0.0
  %6512 = vmatprep.subr.mxu0 0.0
  %6513 = vmatpush1.msra.mxu0 0.0
  %6514 = vmatprep.subr.mxu0 0.0
  %6515 = vmatpush1.msra.mxu0 0.0
  %6516 = vmatprep.subr.mxu0 0.0
  %6517 = vmatpush1.msra.mxu0 0.0
  %6518 = vmatprep.subr.mxu0 0.0
  %6519 = vmatpush1.msra.mxu0 0.0
  %6520 = vmatprep.subr.mxu0 0.0
  %6521 = vmatpush1.msra.mxu0 0.0
  %6522 = vmatprep.subr.mxu0 0.0
  %6523 = vmatpush1.msra.mxu0 0.0
  %6524 = vmatprep.mubr.f32.mxu0 0.0
  %v6525 = vand.u32 %v6296, 4294901760
  %v6526 = vsub.f32 %v6296, %v6525
  %6527 = vmatmul.mubr.f32.gmra.mrb[0].mxu0 %v6526
  %v6528 = vpop.f32.mrb[0].mxu0
  %v6529 = vadd.f32 %v6453, %v6528
  %v6530 = vpop.f32.mrb[0].mxu0
  %6531 = vdwg.mxu0
  %6532 = vmatprep.subr.mxu0 0.0
  %v6533 = vand.u32 %v2429, 4294901760
  %6534 = vmatpush1.msra.mxu0 %v6533
  %6535 = vmatprep.subr.mxu0 0.0
  %v6536 = vand.u32 %v2430, 4294901760
  %6537 = vmatpush1.msra.mxu0 %v6536
  %6538 = vmatprep.subr.mxu0 0.0
  %6539 = vmatpush1.msra.mxu0 0.0
  %6540 = vmatprep.subr.mxu0 0.0
  %6541 = vmatpush1.msra.mxu0 0.0
  %6542 = vmatprep.subr.mxu0 0.0
  %6543 = vmatpush1.msra.mxu0 0.0
  %6544 = vmatprep.subr.mxu0 0.0
  %6545 = vmatpush1.msra.mxu0 0.0
  %6546 = vmatprep.subr.mxu0 0.0
  %6547 = vmatpush1.msra.mxu0 0.0
  %6548 = vmatprep.subr.mxu0 0.0
  %6549 = vmatpush1.msra.mxu0 0.0
  %6550 = vmatprep.subr.mxu0 0.0
  %6551 = vmatpush1.msra.mxu0 0.0
  %6552 = vmatprep.subr.mxu0 0.0
  %6553 = vmatpush1.msra.mxu0 0.0
  %6554 = vmatprep.subr.mxu0 0.0
  %6555 = vmatpush1.msra.mxu0 0.0
  %6556 = vmatprep.subr.mxu0 0.0
  %6557 = vmatpush1.msra.mxu0 0.0
  %6558 = vmatprep.subr.mxu0 0.0
  %6559 = vmatpush1.msra.mxu0 0.0
  %6560 = vmatprep.subr.mxu0 0.0
  %6561 = vmatpush1.msra.mxu0 0.0
  %6562 = vmatprep.subr.mxu0 0.0
  %6563 = vmatpush1.msra.mxu0 0.0
  %6564 = vmatprep.subr.mxu0 0.0
  %6565 = vmatpush1.msra.mxu0 0.0
  %6566 = vmatprep.subr.mxu0 0.0
  %6567 = vmatpush1.msra.mxu0 0.0
  %6568 = vmatprep.subr.mxu0 0.0
  %6569 = vmatpush1.msra.mxu0 0.0
  %6570 = vmatprep.subr.mxu0 0.0
  %6571 = vmatpush1.msra.mxu0 0.0
  %6572 = vmatprep.subr.mxu0 0.0
  %6573 = vmatpush1.msra.mxu0 0.0
  %6574 = vmatprep.subr.mxu0 0.0
  %6575 = vmatpush1.msra.mxu0 0.0
  %6576 = vmatprep.subr.mxu0 0.0
  %6577 = vmatpush1.msra.mxu0 0.0
  %6578 = vmatprep.subr.mxu0 0.0
  %6579 = vmatpush1.msra.mxu0 0.0
  %6580 = vmatprep.subr.mxu0 0.0
  %6581 = vmatpush1.msra.mxu0 0.0
  %6582 = vmatprep.subr.mxu0 0.0
  %6583 = vmatpush1.msra.mxu0 0.0
  %6584 = vmatprep.subr.mxu0 0.0
  %6585 = vmatpush1.msra.mxu0 0.0
  %6586 = vmatprep.subr.mxu0 0.0
  %6587 = vmatpush1.msra.mxu0 0.0
  %6588 = vmatprep.subr.mxu0 0.0
  %6589 = vmatpush1.msra.mxu0 0.0
  %6590 = vmatprep.subr.mxu0 0.0
  %6591 = vmatpush1.msra.mxu0 0.0
  %6592 = vmatprep.subr.mxu0 0.0
  %6593 = vmatpush1.msra.mxu0 0.0
  %6594 = vmatprep.subr.mxu0 0.0
  %6595 = vmatpush1.msra.mxu0 0.0
  %6596 = vmatprep.subr.mxu0 0.0
  %6597 = vmatpush1.msra.mxu0 0.0
  %6598 = vmatprep.mubr.f32.mxu0 0.0
  %v6599 = vand.u32 %v6296, 4294901760
  %v6600 = vsub.f32 %v6296, %v6599
  %v6601 = vand.u32 %v6600, 4294901760
  %6602 = vmatmul.mubr.f32.gmra.mrb[0].mxu0 %v6601
  %v6603 = vpop.f32.mrb[0].mxu0
  %v6604 = vadd.f32 %v6529, %v6603
  %v6605 = vpop.f32.mrb[0].mxu0
  %6606 = vdwg.mxu0
  %6607 = vmatprep.subr.mxu0 0.0
  %v6608 = vand.u32 %v2429, 4294901760
  %v6609 = vsub.f32 %v2429, %v6608
  %v6610 = vand.u32 %v6609, 4294901760
  %6611 = vmatpush1.msra.mxu0 %v6610
  %6612 = vmatprep.subr.mxu0 0.0
  %v6613 = vand.u32 %v2430, 4294901760
  %v6614 = vsub.f32 %v2430, %v6613
  %v6615 = vand.u32 %v6614, 4294901760
  %6616 = vmatpush1.msra.mxu0 %v6615
  %6617 = vmatprep.subr.mxu0 0.0
  %6618 = vmatpush1.msra.mxu0 0.0
  %6619 = vmatprep.subr.mxu0 0.0
  %6620 = vmatpush1.msra.mxu0 0.0
  %6621 = vmatprep.subr.mxu0 0.0
  %6622 = vmatpush1.msra.mxu0 0.0
  %6623 = vmatprep.subr.mxu0 0.0
  %6624 = vmatpush1.msra.mxu0 0.0
  %6625 = vmatprep.subr.mxu0 0.0
  %6626 = vmatpush1.msra.mxu0 0.0
  %6627 = vmatprep.subr.mxu0 0.0
  %6628 = vmatpush1.msra.mxu0 0.0
  %6629 = vmatprep.subr.mxu0 0.0
  %6630 = vmatpush1.msra.mxu0 0.0
  %6631 = vmatprep.subr.mxu0 0.0
  %6632 = vmatpush1.msra.mxu0 0.0
  %6633 = vmatprep.subr.mxu0 0.0
  %6634 = vmatpush1.msra.mxu0 0.0
  %6635 = vmatprep.subr.mxu0 0.0
  %6636 = vmatpush1.msra.mxu0 0.0
  %6637 = vmatprep.subr.mxu0 0.0
  %6638 = vmatpush1.msra.mxu0 0.0
  %6639 = vmatprep.subr.mxu0 0.0
  %6640 = vmatpush1.msra.mxu0 0.0
  %6641 = vmatprep.subr.mxu0 0.0
  %6642 = vmatpush1.msra.mxu0 0.0
  %6643 = vmatprep.subr.mxu0 0.0
  %6644 = vmatpush1.msra.mxu0 0.0
  %6645 = vmatprep.subr.mxu0 0.0
  %6646 = vmatpush1.msra.mxu0 0.0
  %6647 = vmatprep.subr.mxu0 0.0
  %6648 = vmatpush1.msra.mxu0 0.0
  %6649 = vmatprep.subr.mxu0 0.0
  %6650 = vmatpush1.msra.mxu0 0.0
  %6651 = vmatprep.subr.mxu0 0.0
  %6652 = vmatpush1.msra.mxu0 0.0
  %6653 = vmatprep.subr.mxu0 0.0
  %6654 = vmatpush1.msra.mxu0 0.0
  %6655 = vmatprep.subr.mxu0 0.0
  %6656 = vmatpush1.msra.mxu0 0.0
  %6657 = vmatprep.subr.mxu0 0.0
  %6658 = vmatpush1.msra.mxu0 0.0
  %6659 = vmatprep.subr.mxu0 0.0
  %6660 = vmatpush1.msra.mxu0 0.0
  %6661 = vmatprep.subr.mxu0 0.0
  %6662 = vmatpush1.msra.mxu0 0.0
  %6663 = vmatprep.subr.mxu0 0.0
  %6664 = vmatpush1.msra.mxu0 0.0
  %6665 = vmatprep.subr.mxu0 0.0
  %6666 = vmatpush1.msra.mxu0 0.0
  %6667 = vmatprep.subr.mxu0 0.0
  %6668 = vmatpush1.msra.mxu0 0.0
  %6669 = vmatprep.subr.mxu0 0.0
  %6670 = vmatpush1.msra.mxu0 0.0
  %6671 = vmatprep.subr.mxu0 0.0
  %6672 = vmatpush1.msra.mxu0 0.0
  %6673 = vmatprep.subr.mxu0 0.0
  %6674 = vmatpush1.msra.mxu0 0.0
  %6675 = vmatprep.subr.mxu0 0.0
  %6676 = vmatpush1.msra.mxu0 0.0
  %6677 = vmatprep.mubr.f32.mxu0 0.0
  %v6678 = vand.u32 %v6296, 4294901760
  %6679 = vmatmul.mubr.f32.gmra.mrb[0].mxu0 %v6678
  %v6680 = vpop.f32.mrb[0].mxu0
  %v6681 = vadd.f32 %v6604, %v6680
  %v6682 = vpop.f32.mrb[0].mxu0
  %6683 = vdwg.mxu0
  %6684 = vmatprep.subr.mxu0 0.0
  %v6685 = vand.u32 %v2429, 4294901760
  %6686 = vmatpush1.msra.mxu0 %v6685
  %6687 = vmatprep.subr.mxu0 0.0
  %v6688 = vand.u32 %v2430, 4294901760
  %6689 = vmatpush1.msra.mxu0 %v6688
  %6690 = vmatprep.subr.mxu0 0.0
  %6691 = vmatpush1.msra.mxu0 0.0
  %6692 = vmatprep.subr.mxu0 0.0
  %6693 = vmatpush1.msra.mxu0 0.0
  %6694 = vmatprep.subr.mxu0 0.0
  %6695 = vmatpush1.msra.mxu0 0.0
  %6696 = vmatprep.subr.mxu0 0.0
  %6697 = vmatpush1.msra.mxu0 0.0
  %6698 = vmatprep.subr.mxu0 0.0
  %6699 = vmatpush1.msra.mxu0 0.0
  %6700 = vmatprep.subr.mxu0 0.0
  %6701 = vmatpush1.msra.mxu0 0.0
  %6702 = vmatprep.subr.mxu0 0.0
  %6703 = vmatpush1.msra.mxu0 0.0
  %6704 = vmatprep.subr.mxu0 0.0
  %6705 = vmatpush1.msra.mxu0 0.0
  %6706 = vmatprep.subr.mxu0 0.0
  %6707 = vmatpush1.msra.mxu0 0.0
  %6708 = vmatprep.subr.mxu0 0.0
  %6709 = vmatpush1.msra.mxu0 0.0
  %6710 = vmatprep.subr.mxu0 0.0
  %6711 = vmatpush1.msra.mxu0 0.0
  %6712 = vmatprep.subr.mxu0 0.0
  %6713 = vmatpush1.msra.mxu0 0.0
  %6714 = vmatprep.subr.mxu0 0.0
  %6715 = vmatpush1.msra.mxu0 0.0
  %6716 = vmatprep.subr.mxu0 0.0
  %6717 = vmatpush1.msra.mxu0 0.0
  %6718 = vmatprep.subr.mxu0 0.0
  %6719 = vmatpush1.msra.mxu0 0.0
  %6720 = vmatprep.subr.mxu0 0.0
  %6721 = vmatpush1.msra.mxu0 0.0
  %6722 = vmatprep.subr.mxu0 0.0
  %6723 = vmatpush1.msra.mxu0 0.0
  %6724 = vmatprep.subr.mxu0 0.0
  %6725 = vmatpush1.msra.mxu0 0.0
  %6726 = vmatprep.subr.mxu0 0.0
  %6727 = vmatpush1.msra.mxu0 0.0
  %6728 = vmatprep.subr.mxu0 0.0
  %6729 = vmatpush1.msra.mxu0 0.0
  %6730 = vmatprep.subr.mxu0 0.0
  %6731 = vmatpush1.msra.mxu0 0.0
  %6732 = vmatprep.subr.mxu0 0.0
  %6733 = vmatpush1.msra.mxu0 0.0
  %6734 = vmatprep.subr.mxu0 0.0
  %6735 = vmatpush1.msra.mxu0 0.0
  %6736 = vmatprep.subr.mxu0 0.0
  %6737 = vmatpush1.msra.mxu0 0.0
  %6738 = vmatprep.subr.mxu0 0.0
  %6739 = vmatpush1.msra.mxu0 0.0
  %6740 = vmatprep.subr.mxu0 0.0
  %6741 = vmatpush1.msra.mxu0 0.0
  %6742 = vmatprep.subr.mxu0 0.0
  %6743 = vmatpush1.msra.mxu0 0.0
  %6744 = vmatprep.subr.mxu0 0.0
  %6745 = vmatpush1.msra.mxu0 0.0
  %6746 = vmatprep.subr.mxu0 0.0
  %6747 = vmatpush1.msra.mxu0 0.0
  %6748 = vmatprep.subr.mxu0 0.0
  %6749 = vmatpush1.msra.mxu0 0.0
  %6750 = vmatprep.mubr.f32.mxu0 0.0
  %v6751 = vand.u32 %v6296, 4294901760
  %6752 = vmatmul.mubr.f32.gmra.mrb[0].mxu0 %v6751
  %v6753 = vpop.f32.mrb[0].mxu0
  %v6754 = vadd.f32 %v6681, %v6753
  %v6755 = vpop.f32.mrb[0].mxu0
  %6756 = vdwg.mxu0
  %v6757 = vmul.f32 %v6754, %v6754
  %v6758 = vsel %vm3434, %v6757, 0.0
  %6759 = vadd.xlane.f32.xlu0 %v6758
  %v6760 = vpop.xlane.xlu0 %6759
  %v6761 = vmax.f32 %v6760, 1e-12
  %v6762 = vrsqrt.pop %v6761
  %v6763 = vmul.f32 %v6754, %v6762
  %s6764 = scalar_lea.vmem %s2, 8
  %v6765 = vld [vmem:[%s6764] sm:$0x3f]
  %v6767 = vsel %vm3446, %v6765, 0
  %6769 = vmatprep.subr.mxu0 0.0
  %v6770 = vand.u32 %v2431, 4294901760
  %6771 = vmatpush1.msra.mxu0 %v6770
  %6772 = vmatprep.subr.mxu0 0.0
  %v6773 = vand.u32 %v2432, 4294901760
  %6774 = vmatpush1.msra.mxu0 %v6773
  %6775 = vmatprep.subr.mxu0 0.0
  %v6776 = vand.u32 %v3451, 4294901760
  %6777 = vmatpush1.msra.mxu0 %v6776
  %6778 = vmatprep.subr.mxu0 0.0
  %6779 = vmatpush1.msra.mxu0 0.0
  %6780 = vmatprep.subr.mxu0 0.0
  %6781 = vmatpush1.msra.mxu0 0.0
  %6782 = vmatprep.subr.mxu0 0.0
  %6783 = vmatpush1.msra.mxu0 0.0
  %6784 = vmatprep.subr.mxu0 0.0
  %6785 = vmatpush1.msra.mxu0 0.0
  %6786 = vmatprep.subr.mxu0 0.0
  %6787 = vmatpush1.msra.mxu0 0.0
  %6788 = vmatprep.subr.mxu0 0.0
  %6789 = vmatpush1.msra.mxu0 0.0
  %6790 = vmatprep.subr.mxu0 0.0
  %6791 = vmatpush1.msra.mxu0 0.0
  %6792 = vmatprep.subr.mxu0 0.0
  %6793 = vmatpush1.msra.mxu0 0.0
  %6794 = vmatprep.subr.mxu0 0.0
  %6795 = vmatpush1.msra.mxu0 0.0
  %6796 = vmatprep.subr.mxu0 0.0
  %6797 = vmatpush1.msra.mxu0 0.0
  %6798 = vmatprep.subr.mxu0 0.0
  %6799 = vmatpush1.msra.mxu0 0.0
  %6800 = vmatprep.subr.mxu0 0.0
  %6801 = vmatpush1.msra.mxu0 0.0
  %6802 = vmatprep.subr.mxu0 0.0
  %6803 = vmatpush1.msra.mxu0 0.0
  %6804 = vmatprep.subr.mxu0 0.0
  %6805 = vmatpush1.msra.mxu0 0.0
  %6806 = vmatprep.subr.mxu0 0.0
  %6807 = vmatpush1.msra.mxu0 0.0
  %6808 = vmatprep.subr.mxu0 0.0
  %6809 = vmatpush1.msra.mxu0 0.0
  %6810 = vmatprep.subr.mxu0 0.0
  %6811 = vmatpush1.msra.mxu0 0.0
  %6812 = vmatprep.subr.mxu0 0.0
  %6813 = vmatpush1.msra.mxu0 0.0
  %6814 = vmatprep.subr.mxu0 0.0
  %6815 = vmatpush1.msra.mxu0 0.0
  %6816 = vmatprep.subr.mxu0 0.0
  %6817 = vmatpush1.msra.mxu0 0.0
  %6818 = vmatprep.subr.mxu0 0.0
  %6819 = vmatpush1.msra.mxu0 0.0
  %6820 = vmatprep.subr.mxu0 0.0
  %6821 = vmatpush1.msra.mxu0 0.0
  %6822 = vmatprep.subr.mxu0 0.0
  %6823 = vmatpush1.msra.mxu0 0.0
  %6824 = vmatprep.subr.mxu0 0.0
  %6825 = vmatpush1.msra.mxu0 0.0
  %6826 = vmatprep.subr.mxu0 0.0
  %6827 = vmatpush1.msra.mxu0 0.0
  %6828 = vmatprep.subr.mxu0 0.0
  %6829 = vmatpush1.msra.mxu0 0.0
  %6830 = vmatprep.subr.mxu0 0.0
  %6831 = vmatpush1.msra.mxu0 0.0
  %6832 = vmatprep.subr.mxu0 0.0
  %6833 = vmatpush1.msra.mxu0 0.0
  %6834 = vmatprep.subr.mxu0 0.0
  %6835 = vmatpush1.msra.mxu0 0.0
  %6836 = vmatprep.mubr.f32.mxu0 0.0
  %v6837 = vand.u32 %v6767, 4294901760
  %v6838 = vsub.f32 %v6767, %v6837
  %v6839 = vand.u32 %v6838, 4294901760
  %v6840 = vsub.f32 %v6838, %v6839
  %v6841 = vand.u32 %v6840, 4294901760
  %6842 = vmatmul.mubr.f32.gmra.mrb[0].mxu0 %v6841
  %v6843 = vpop.f32.mrb[0].mxu0
  %v6844 = vadd.f32 %v3445, %v6843
  %v6845 = vpop.f32.mrb[0].mxu0
  %6846 = vdwg.mxu0
  %6847 = vmatprep.subr.mxu0 0.0
  %v6848 = vand.u32 %v2431, 4294901760
  %v6849 = vsub.f32 %v2431, %v6848
  %v6850 = vand.u32 %v6849, 4294901760
  %v6851 = vsub.f32 %v6849, %v6850
  %v6852 = vand.u32 %v6851, 4294901760
  %6853 = vmatpush1.msra.mxu0 %v6852
  %6854 = vmatprep.subr.mxu0 0.0
  %v6855 = vand.u32 %v2432, 4294901760
  %v6856 = vsub.f32 %v2432, %v6855
  %v6857 = vand.u32 %v6856, 4294901760
  %v6858 = vsub.f32 %v6856, %v6857
  %v6859 = vand.u32 %v6858, 4294901760
  %6860 = vmatpush1.msra.mxu0 %v6859
  %6861 = vmatprep.subr.mxu0 0.0
  %v6862 = vand.u32 %v3451, 4294901760
  %v6863 = vsub.f32 %v3451, %v6862
  %v6864 = vand.u32 %v6863, 4294901760
  %v6865 = vsub.f32 %v6863, %v6864
  %v6866 = vand.u32 %v6865, 4294901760
  %6867 = vmatpush1.msra.mxu0 %v6866
  %6868 = vmatprep.subr.mxu0 0.0
  %6869 = vmatpush1.msra.mxu0 0.0
  %6870 = vmatprep.subr.mxu0 0.0
  %6871 = vmatpush1.msra.mxu0 0.0
  %6872 = vmatprep.subr.mxu0 0.0
  %6873 = vmatpush1.msra.mxu0 0.0
  %6874 = vmatprep.subr.mxu0 0.0
  %6875 = vmatpush1.msra.mxu0 0.0
  %6876 = vmatprep.subr.mxu0 0.0
  %6877 = vmatpush1.msra.mxu0 0.0
  %6878 = vmatprep.subr.mxu0 0.0
  %6879 = vmatpush1.msra.mxu0 0.0
  %6880 = vmatprep.subr.mxu0 0.0
  %6881 = vmatpush1.msra.mxu0 0.0
  %6882 = vmatprep.subr.mxu0 0.0
  %6883 = vmatpush1.msra.mxu0 0.0
  %6884 = vmatprep.subr.mxu0 0.0
  %6885 = vmatpush1.msra.mxu0 0.0
  %6886 = vmatprep.subr.mxu0 0.0
  %6887 = vmatpush1.msra.mxu0 0.0
  %6888 = vmatprep.subr.mxu0 0.0
  %6889 = vmatpush1.msra.mxu0 0.0
  %6890 = vmatprep.subr.mxu0 0.0
  %6891 = vmatpush1.msra.mxu0 0.0
  %6892 = vmatprep.subr.mxu0 0.0
  %6893 = vmatpush1.msra.mxu0 0.0
  %6894 = vmatprep.subr.mxu0 0.0
  %6895 = vmatpush1.msra.mxu0 0.0
  %6896 = vmatprep.subr.mxu0 0.0
  %6897 = vmatpush1.msra.mxu0 0.0
  %6898 = vmatprep.subr.mxu0 0.0
  %6899 = vmatpush1.msra.mxu0 0.0
  %6900 = vmatprep.subr.mxu0 0.0
  %6901 = vmatpush1.msra.mxu0 0.0
  %6902 = vmatprep.subr.mxu0 0.0
  %6903 = vmatpush1.msra.mxu0 0.0
  %6904 = vmatprep.subr.mxu0 0.0
  %6905 = vmatpush1.msra.mxu0 0.0
  %6906 = vmatprep.subr.mxu0 0.0
  %6907 = vmatpush1.msra.mxu0 0.0
  %6908 = vmatprep.subr.mxu0 0.0
  %6909 = vmatpush1.msra.mxu0 0.0
  %6910 = vmatprep.subr.mxu0 0.0
  %6911 = vmatpush1.msra.mxu0 0.0
  %6912 = vmatprep.subr.mxu0 0.0
  %6913 = vmatpush1.msra.mxu0 0.0
  %6914 = vmatprep.subr.mxu0 0.0
  %6915 = vmatpush1.msra.mxu0 0.0
  %6916 = vmatprep.subr.mxu0 0.0
  %6917 = vmatpush1.msra.mxu0 0.0
  %6918 = vmatprep.subr.mxu0 0.0
  %6919 = vmatpush1.msra.mxu0 0.0
  %6920 = vmatprep.subr.mxu0 0.0
  %6921 = vmatpush1.msra.mxu0 0.0
  %6922 = vmatprep.subr.mxu0 0.0
  %6923 = vmatpush1.msra.mxu0 0.0
  %6924 = vmatprep.subr.mxu0 0.0
  %6925 = vmatpush1.msra.mxu0 0.0
  %6926 = vmatprep.mubr.f32.mxu0 0.0
  %v6927 = vand.u32 %v6767, 4294901760
  %6928 = vmatmul.mubr.f32.gmra.mrb[0].mxu0 %v6927
  %v6929 = vpop.f32.mrb[0].mxu0
  %v6930 = vadd.f32 %v6844, %v6929
  %v6931 = vpop.f32.mrb[0].mxu0
  %6932 = vdwg.mxu0
  %6933 = vmatprep.subr.mxu0 0.0
  %v6934 = vand.u32 %v2431, 4294901760
  %v6935 = vsub.f32 %v2431, %v6934
  %6936 = vmatpush1.msra.mxu0 %v6935
  %6937 = vmatprep.subr.mxu0 0.0
  %v6938 = vand.u32 %v2432, 4294901760
  %v6939 = vsub.f32 %v2432, %v6938
  %6940 = vmatpush1.msra.mxu0 %v6939
  %6941 = vmatprep.subr.mxu0 0.0
  %v6942 = vand.u32 %v3451, 4294901760
  %v6943 = vsub.f32 %v3451, %v6942
  %6944 = vmatpush1.msra.mxu0 %v6943
  %6945 = vmatprep.subr.mxu0 0.0
  %6946 = vmatpush1.msra.mxu0 0.0
  %6947 = vmatprep.subr.mxu0 0.0
  %6948 = vmatpush1.msra.mxu0 0.0
  %6949 = vmatprep.subr.mxu0 0.0
  %6950 = vmatpush1.msra.mxu0 0.0
  %6951 = vmatprep.subr.mxu0 0.0
  %6952 = vmatpush1.msra.mxu0 0.0
  %6953 = vmatprep.subr.mxu0 0.0
  %6954 = vmatpush1.msra.mxu0 0.0
  %6955 = vmatprep.subr.mxu0 0.0
  %6956 = vmatpush1.msra.mxu0 0.0
  %6957 = vmatprep.subr.mxu0 0.0
  %6958 = vmatpush1.msra.mxu0 0.0
  %6959 = vmatprep.subr.mxu0 0.0
  %6960 = vmatpush1.msra.mxu0 0.0
  %6961 = vmatprep.subr.mxu0 0.0
  %6962 = vmatpush1.msra.mxu0 0.0
  %6963 = vmatprep.subr.mxu0 0.0
  %6964 = vmatpush1.msra.mxu0 0.0
  %6965 = vmatprep.subr.mxu0 0.0
  %6966 = vmatpush1.msra.mxu0 0.0
  %6967 = vmatprep.subr.mxu0 0.0
  %6968 = vmatpush1.msra.mxu0 0.0
  %6969 = vmatprep.subr.mxu0 0.0
  %6970 = vmatpush1.msra.mxu0 0.0
  %6971 = vmatprep.subr.mxu0 0.0
  %6972 = vmatpush1.msra.mxu0 0.0
  %6973 = vmatprep.subr.mxu0 0.0
  %6974 = vmatpush1.msra.mxu0 0.0
  %6975 = vmatprep.subr.mxu0 0.0
  %6976 = vmatpush1.msra.mxu0 0.0
  %6977 = vmatprep.subr.mxu0 0.0
  %6978 = vmatpush1.msra.mxu0 0.0
  %6979 = vmatprep.subr.mxu0 0.0
  %6980 = vmatpush1.msra.mxu0 0.0
  %6981 = vmatprep.subr.mxu0 0.0
  %6982 = vmatpush1.msra.mxu0 0.0
  %6983 = vmatprep.subr.mxu0 0.0
  %6984 = vmatpush1.msra.mxu0 0.0
  %6985 = vmatprep.subr.mxu0 0.0
  %6986 = vmatpush1.msra.mxu0 0.0
  %6987 = vmatprep.subr.mxu0 0.0
  %6988 = vmatpush1.msra.mxu0 0.0
  %6989 = vmatprep.subr.mxu0 0.0
  %6990 = vmatpush1.msra.mxu0 0.0
  %6991 = vmatprep.subr.mxu0 0.0
  %6992 = vmatpush1.msra.mxu0 0.0
  %6993 = vmatprep.subr.mxu0 0.0
  %6994 = vmatpush1.msra.mxu0 0.0
  %6995 = vmatprep.subr.mxu0 0.0
  %6996 = vmatpush1.msra.mxu0 0.0
  %6997 = vmatprep.subr.mxu0 0.0
  %6998 = vmatpush1.msra.mxu0 0.0
  %6999 = vmatprep.subr.mxu0 0.0
  %7000 = vmatpush1.msra.mxu0 0.0
  %7001 = vmatprep.subr.mxu0 0.0
  %7002 = vmatpush1.msra.mxu0 0.0
  %7003 = vmatprep.mubr.f32.mxu0 0.0
  %v7004 = vand.u32 %v6767, 4294901760
  %v7005 = vsub.f32 %v6767, %v7004
  %7006 = vmatmul.mubr.f32.gmra.mrb[0].mxu0 %v7005
  %v7007 = vpop.f32.mrb[0].mxu0
  %v7008 = vadd.f32 %v6930, %v7007
  %v7009 = vpop.f32.mrb[0].mxu0
  %7010 = vdwg.mxu0
  %7011 = vmatprep.subr.mxu0 0.0
  %v7012 = vand.u32 %v2431, 4294901760
  %7013 = vmatpush1.msra.mxu0 %v7012
  %7014 = vmatprep.subr.mxu0 0.0
  %v7015 = vand.u32 %v2432, 4294901760
  %7016 = vmatpush1.msra.mxu0 %v7015
  %7017 = vmatprep.subr.mxu0 0.0
  %v7018 = vand.u32 %v3451, 4294901760
  %7019 = vmatpush1.msra.mxu0 %v7018
  %7020 = vmatprep.subr.mxu0 0.0
  %7021 = vmatpush1.msra.mxu0 0.0
  %7022 = vmatprep.subr.mxu0 0.0
  %7023 = vmatpush1.msra.mxu0 0.0
  %7024 = vmatprep.subr.mxu0 0.0
  %7025 = vmatpush1.msra.mxu0 0.0
  %7026 = vmatprep.subr.mxu0 0.0
  %7027 = vmatpush1.msra.mxu0 0.0
  %7028 = vmatprep.subr.mxu0 0.0
  %7029 = vmatpush1.msra.mxu0 0.0
  %7030 = vmatprep.subr.mxu0 0.0
  %7031 = vmatpush1.msra.mxu0 0.0
  %7032 = vmatprep.subr.mxu0 0.0
  %7033 = vmatpush1.msra.mxu0 0.0
  %7034 = vmatprep.subr.mxu0 0.0
  %7035 = vmatpush1.msra.mxu0 0.0
  %7036 = vmatprep.subr.mxu0 0.0
  %7037 = vmatpush1.msra.mxu0 0.0
  %7038 = vmatprep.subr.mxu0 0.0
  %7039 = vmatpush1.msra.mxu0 0.0
  %7040 = vmatprep.subr.mxu0 0.0
  %7041 = vmatpush1.msra.mxu0 0.0
  %7042 = vmatprep.subr.mxu0 0.0
  %7043 = vmatpush1.msra.mxu0 0.0
  %7044 = vmatprep.subr.mxu0 0.0
  %7045 = vmatpush1.msra.mxu0 0.0
  %7046 = vmatprep.subr.mxu0 0.0
  %7047 = vmatpush1.msra.mxu0 0.0
  %7048 = vmatprep.subr.mxu0 0.0
  %7049 = vmatpush1.msra.mxu0 0.0
  %7050 = vmatprep.subr.mxu0 0.0
  %7051 = vmatpush1.msra.mxu0 0.0
  %7052 = vmatprep.subr.mxu0 0.0
  %7053 = vmatpush1.msra.mxu0 0.0
  %7054 = vmatprep.subr.mxu0 0.0
  %7055 = vmatpush1.msra.mxu0 0.0
  %7056 = vmatprep.subr.mxu0 0.0
  %7057 = vmatpush1.msra.mxu0 0.0
  %7058 = vmatprep.subr.mxu0 0.0
  %7059 = vmatpush1.msra.mxu0 0.0
  %7060 = vmatprep.subr.mxu0 0.0
  %7061 = vmatpush1.msra.mxu0 0.0
  %7062 = vmatprep.subr.mxu0 0.0
  %7063 = vmatpush1.msra.mxu0 0.0
  %7064 = vmatprep.subr.mxu0 0.0
  %7065 = vmatpush1.msra.mxu0 0.0
  %7066 = vmatprep.subr.mxu0 0.0
  %7067 = vmatpush1.msra.mxu0 0.0
  %7068 = vmatprep.subr.mxu0 0.0
  %7069 = vmatpush1.msra.mxu0 0.0
  %7070 = vmatprep.subr.mxu0 0.0
  %7071 = vmatpush1.msra.mxu0 0.0
  %7072 = vmatprep.subr.mxu0 0.0
  %7073 = vmatpush1.msra.mxu0 0.0
  %7074 = vmatprep.subr.mxu0 0.0
  %7075 = vmatpush1.msra.mxu0 0.0
  %7076 = vmatprep.subr.mxu0 0.0
  %7077 = vmatpush1.msra.mxu0 0.0
  %7078 = vmatprep.mubr.f32.mxu0 0.0
  %v7079 = vand.u32 %v6767, 4294901760
  %v7080 = vsub.f32 %v6767, %v7079
  %v7081 = vand.u32 %v7080, 4294901760
  %7082 = vmatmul.mubr.f32.gmra.mrb[0].mxu0 %v7081
  %v7083 = vpop.f32.mrb[0].mxu0
  %v7084 = vadd.f32 %v7008, %v7083
  %v7085 = vpop.f32.mrb[0].mxu0
  %7086 = vdwg.mxu0
  %7087 = vmatprep.subr.mxu0 0.0
  %v7088 = vand.u32 %v2431, 4294901760
  %v7089 = vsub.f32 %v2431, %v7088
  %v7090 = vand.u32 %v7089, 4294901760
  %7091 = vmatpush1.msra.mxu0 %v7090
  %7092 = vmatprep.subr.mxu0 0.0
  %v7093 = vand.u32 %v2432, 4294901760
  %v7094 = vsub.f32 %v2432, %v7093
  %v7095 = vand.u32 %v7094, 4294901760
  %7096 = vmatpush1.msra.mxu0 %v7095
  %7097 = vmatprep.subr.mxu0 0.0
  %v7098 = vand.u32 %v3451, 4294901760
  %v7099 = vsub.f32 %v3451, %v7098
  %v7100 = vand.u32 %v7099, 4294901760
  %7101 = vmatpush1.msra.mxu0 %v7100
  %7102 = vmatprep.subr.mxu0 0.0
  %7103 = vmatpush1.msra.mxu0 0.0
  %7104 = vmatprep.subr.mxu0 0.0
  %7105 = vmatpush1.msra.mxu0 0.0
  %7106 = vmatprep.subr.mxu0 0.0
  %7107 = vmatpush1.msra.mxu0 0.0
  %7108 = vmatprep.subr.mxu0 0.0
  %7109 = vmatpush1.msra.mxu0 0.0
  %7110 = vmatprep.subr.mxu0 0.0
  %7111 = vmatpush1.msra.mxu0 0.0
  %7112 = vmatprep.subr.mxu0 0.0
  %7113 = vmatpush1.msra.mxu0 0.0
  %7114 = vmatprep.subr.mxu0 0.0
  %7115 = vmatpush1.msra.mxu0 0.0
  %7116 = vmatprep.subr.mxu0 0.0
  %7117 = vmatpush1.msra.mxu0 0.0
  %7118 = vmatprep.subr.mxu0 0.0
  %7119 = vmatpush1.msra.mxu0 0.0
  %7120 = vmatprep.subr.mxu0 0.0
  %7121 = vmatpush1.msra.mxu0 0.0
  %7122 = vmatprep.subr.mxu0 0.0
  %7123 = vmatpush1.msra.mxu0 0.0
  %7124 = vmatprep.subr.mxu0 0.0
  %7125 = vmatpush1.msra.mxu0 0.0
  %7126 = vmatprep.subr.mxu0 0.0
  %7127 = vmatpush1.msra.mxu0 0.0
  %7128 = vmatprep.subr.mxu0 0.0
  %7129 = vmatpush1.msra.mxu0 0.0
  %7130 = vmatprep.subr.mxu0 0.0
  %7131 = vmatpush1.msra.mxu0 0.0
  %7132 = vmatprep.subr.mxu0 0.0
  %7133 = vmatpush1.msra.mxu0 0.0
  %7134 = vmatprep.subr.mxu0 0.0
  %7135 = vmatpush1.msra.mxu0 0.0
  %7136 = vmatprep.subr.mxu0 0.0
  %7137 = vmatpush1.msra.mxu0 0.0
  %7138 = vmatprep.subr.mxu0 0.0
  %7139 = vmatpush1.msra.mxu0 0.0
  %7140 = vmatprep.subr.mxu0 0.0
  %7141 = vmatpush1.msra.mxu0 0.0
  %7142 = vmatprep.subr.mxu0 0.0
  %7143 = vmatpush1.msra.mxu0 0.0
  %7144 = vmatprep.subr.mxu0 0.0
  %7145 = vmatpush1.msra.mxu0 0.0
  %7146 = vmatprep.subr.mxu0 0.0
  %7147 = vmatpush1.msra.mxu0 0.0
  %7148 = vmatprep.subr.mxu0 0.0
  %7149 = vmatpush1.msra.mxu0 0.0
  %7150 = vmatprep.subr.mxu0 0.0
  %7151 = vmatpush1.msra.mxu0 0.0
  %7152 = vmatprep.subr.mxu0 0.0
  %7153 = vmatpush1.msra.mxu0 0.0
  %7154 = vmatprep.subr.mxu0 0.0
  %7155 = vmatpush1.msra.mxu0 0.0
  %7156 = vmatprep.subr.mxu0 0.0
  %7157 = vmatpush1.msra.mxu0 0.0
  %7158 = vmatprep.subr.mxu0 0.0
  %7159 = vmatpush1.msra.mxu0 0.0
  %7160 = vmatprep.mubr.f32.mxu0 0.0
  %v7161 = vand.u32 %v6767, 4294901760
  %7162 = vmatmul.mubr.f32.gmra.mrb[0].mxu0 %v7161
  %v7163 = vpop.f32.mrb[0].mxu0
  %v7164 = vadd.f32 %v7084, %v7163
  %v7165 = vpop.f32.mrb[0].mxu0
  %7166 = vdwg.mxu0
  %7167 = vmatprep.subr.mxu0 0.0
  %v7168 = vand.u32 %v2431, 4294901760
  %7169 = vmatpush1.msra.mxu0 %v7168
  %7170 = vmatprep.subr.mxu0 0.0
  %v7171 = vand.u32 %v2432, 4294901760
  %7172 = vmatpush1.msra.mxu0 %v7171
  %7173 = vmatprep.subr.mxu0 0.0
  %v7174 = vand.u32 %v3451, 4294901760
  %7175 = vmatpush1.msra.mxu0 %v7174
  %7176 = vmatprep.subr.mxu0 0.0
  %7177 = vmatpush1.msra.mxu0 0.0
  %7178 = vmatprep.subr.mxu0 0.0
  %7179 = vmatpush1.msra.mxu0 0.0
  %7180 = vmatprep.subr.mxu0 0.0
  %7181 = vmatpush1.msra.mxu0 0.0
  %7182 = vmatprep.subr.mxu0 0.0
  %7183 = vmatpush1.msra.mxu0 0.0
  %7184 = vmatprep.subr.mxu0 0.0
  %7185 = vmatpush1.msra.mxu0 0.0
  %7186 = vmatprep.subr.mxu0 0.0
  %7187 = vmatpush1.msra.mxu0 0.0
  %7188 = vmatprep.subr.mxu0 0.0
  %7189 = vmatpush1.msra.mxu0 0.0
  %7190 = vmatprep.subr.mxu0 0.0
  %7191 = vmatpush1.msra.mxu0 0.0
  %7192 = vmatprep.subr.mxu0 0.0
  %7193 = vmatpush1.msra.mxu0 0.0
  %7194 = vmatprep.subr.mxu0 0.0
  %7195 = vmatpush1.msra.mxu0 0.0
  %7196 = vmatprep.subr.mxu0 0.0
  %7197 = vmatpush1.msra.mxu0 0.0
  %7198 = vmatprep.subr.mxu0 0.0
  %7199 = vmatpush1.msra.mxu0 0.0
  %7200 = vmatprep.subr.mxu0 0.0
  %7201 = vmatpush1.msra.mxu0 0.0
  %7202 = vmatprep.subr.mxu0 0.0
  %7203 = vmatpush1.msra.mxu0 0.0
  %7204 = vmatprep.subr.mxu0 0.0
  %7205 = vmatpush1.msra.mxu0 0.0
  %7206 = vmatprep.subr.mxu0 0.0
  %7207 = vmatpush1.msra.mxu0 0.0
  %7208 = vmatprep.subr.mxu0 0.0
  %7209 = vmatpush1.msra.mxu0 0.0
  %7210 = vmatprep.subr.mxu0 0.0
  %7211 = vmatpush1.msra.mxu0 0.0
  %7212 = vmatprep.subr.mxu0 0.0
  %7213 = vmatpush1.msra.mxu0 0.0
  %7214 = vmatprep.subr.mxu0 0.0
  %7215 = vmatpush1.msra.mxu0 0.0
  %7216 = vmatprep.subr.mxu0 0.0
  %7217 = vmatpush1.msra.mxu0 0.0
  %7218 = vmatprep.subr.mxu0 0.0
  %7219 = vmatpush1.msra.mxu0 0.0
  %7220 = vmatprep.subr.mxu0 0.0
  %7221 = vmatpush1.msra.mxu0 0.0
  %7222 = vmatprep.subr.mxu0 0.0
  %7223 = vmatpush1.msra.mxu0 0.0
  %7224 = vmatprep.subr.mxu0 0.0
  %7225 = vmatpush1.msra.mxu0 0.0
  %7226 = vmatprep.subr.mxu0 0.0
  %7227 = vmatpush1.msra.mxu0 0.0
  %7228 = vmatprep.subr.mxu0 0.0
  %7229 = vmatpush1.msra.mxu0 0.0
  %7230 = vmatprep.subr.mxu0 0.0
  %7231 = vmatpush1.msra.mxu0 0.0
  %7232 = vmatprep.subr.mxu0 0.0
  %7233 = vmatpush1.msra.mxu0 0.0
  %7234 = vmatprep.mubr.f32.mxu0 0.0
  %v7235 = vand.u32 %v6767, 4294901760
  %7236 = vmatmul.mubr.f32.gmra.mrb[0].mxu0 %v7235
  %v7237 = vpop.f32.mrb[0].mxu0
  %v7238 = vadd.f32 %v7164, %v7237
  %v7239 = vpop.f32.mrb[0].mxu0
  %7240 = vdwg.mxu0
  %v7241 = vmul.f32 %v7238, %v7238
  %v7242 = vsel %vm3926, %v7241, 0.0
  %7243 = vadd.xlane.f32.xlu0 %v7242
  %v7244 = vpop.xlane.xlu0 %7243
  %v7245 = vmax.f32 %v7244, 1e-12
  %v7246 = vrsqrt.pop %v7245
  %v7247 = vmul.f32 %v7238, %v7246
  %v7249 = vsel %vm3434, %v7247, 0
  %v7252 = vsel %vm3434, %v6763, 0
  %7254 = vmatprep.subr.mxu0 0.0
  %v7255 = vand.u32 %v7252, 4294901760
  %7256 = vmatpush1.xpose.msra.mxu0 %v7255
  %7257 = vmatprep.subr.mxu0 0.0
  %7258 = vmatpush1.xpose.msra.mxu0 0.0
  %7259 = vmatprep.subr.mxu0 0.0
  %7260 = vmatpush1.xpose.msra.mxu0 0.0
  %7261 = vmatprep.subr.mxu0 0.0
  %7262 = vmatpush1.xpose.msra.mxu0 0.0
  %7263 = vmatprep.subr.mxu0 0.0
  %7264 = vmatpush1.xpose.msra.mxu0 0.0
  %7265 = vmatprep.subr.mxu0 0.0
  %7266 = vmatpush1.xpose.msra.mxu0 0.0
  %7267 = vmatprep.subr.mxu0 0.0
  %7268 = vmatpush1.xpose.msra.mxu0 0.0
  %7269 = vmatprep.subr.mxu0 0.0
  %7270 = vmatpush1.xpose.msra.mxu0 0.0
  %7271 = vmatprep.subr.mxu0 0.0
  %7272 = vmatpush1.xpose.msra.mxu0 0.0
  %7273 = vmatprep.subr.mxu0 0.0
  %7274 = vmatpush1.xpose.msra.mxu0 0.0
  %7275 = vmatprep.subr.mxu0 0.0
  %7276 = vmatpush1.xpose.msra.mxu0 0.0
  %7277 = vmatprep.subr.mxu0 0.0
  %7278 = vmatpush1.xpose.msra.mxu0 0.0
  %7279 = vmatprep.subr.mxu0 0.0
  %7280 = vmatpush1.xpose.msra.mxu0 0.0
  %7281 = vmatprep.subr.mxu0 0.0
  %7282 = vmatpush1.xpose.msra.mxu0 0.0
  %7283 = vmatprep.subr.mxu0 0.0
  %7284 = vmatpush1.xpose.msra.mxu0 0.0
  %7285 = vmatprep.subr.mxu0 0.0
  %7286 = vmatpush1.xpose.msra.mxu0 0.0
  %7287 = vmatprep.subr.mxu0 0.0
  %7288 = vmatpush1.xpose.msra.mxu0 0.0
  %7289 = vmatprep.subr.mxu0 0.0
  %7290 = vmatpush1.xpose.msra.mxu0 0.0
  %7291 = vmatprep.subr.mxu0 0.0
  %7292 = vmatpush1.xpose.msra.mxu0 0.0
  %7293 = vmatprep.subr.mxu0 0.0
  %7294 = vmatpush1.xpose.msra.mxu0 0.0
  %7295 = vmatprep.subr.mxu0 0.0
  %7296 = vmatpush1.xpose.msra.mxu0 0.0
  %7297 = vmatprep.subr.mxu0 0.0
  %7298 = vmatpush1.xpose.msra.mxu0 0.0
  %7299 = vmatprep.subr.mxu0 0.0
  %7300 = vmatpush1.xpose.msra.mxu0 0.0
  %7301 = vmatprep.subr.mxu0 0.0
  %7302 = vmatpush1.xpose.msra.mxu0 0.0
  %7303 = vmatprep.subr.mxu0 0.0
  %7304 = vmatpush1.xpose.msra.mxu0 0.0
  %7305 = vmatprep.subr.mxu0 0.0
  %7306 = vmatpush1.xpose.msra.mxu0 0.0
  %7307 = vmatprep.subr.mxu0 0.0
  %7308 = vmatpush1.xpose.msra.mxu0 0.0
  %7309 = vmatprep.subr.mxu0 0.0
  %7310 = vmatpush1.xpose.msra.mxu0 0.0
  %7311 = vmatprep.subr.mxu0 0.0
  %7312 = vmatpush1.xpose.msra.mxu0 0.0
  %7313 = vmatprep.subr.mxu0 0.0
  %7314 = vmatpush1.xpose.msra.mxu0 0.0
  %7315 = vmatprep.subr.mxu0 0.0
  %7316 = vmatpush1.xpose.msra.mxu0 0.0
  %7317 = vmatprep.subr.mxu0 0.0
  %7318 = vmatpush1.xpose.msra.mxu0 0.0
  %7319 = vmatprep.mubr.f32.mxu0 0.0
  %v7320 = vand.u32 %v7249, 4294901760
  %v7321 = vsub.f32 %v7249, %v7320
  %v7322 = vand.u32 %v7321, 4294901760
  %v7323 = vsub.f32 %v7321, %v7322
  %v7324 = vand.u32 %v7323, 4294901760
  %7325 = vmatmul.mubr.f32.gmra.mrb[0].mxu0 %v7324
  %v7326 = vpop.f32.mrb[0].mxu0
  %v7327 = vadd.f32 0.0, %v7326
  %v7328 = vpop.f32.mrb[0].mxu0
  %7329 = vdwg.mxu0
  %7330 = vmatprep.subr.mxu0 0.0
  %v7331 = vand.u32 %v7252, 4294901760
  %v7332 = vsub.f32 %v7252, %v7331
  %v7333 = vand.u32 %v7332, 4294901760
  %v7334 = vsub.f32 %v7332, %v7333
  %v7335 = vand.u32 %v7334, 4294901760
  %7336 = vmatpush1.xpose.msra.mxu0 %v7335
  %7337 = vmatprep.subr.mxu0 0.0
  %7338 = vmatpush1.xpose.msra.mxu0 0.0
  %7339 = vmatprep.subr.mxu0 0.0
  %7340 = vmatpush1.xpose.msra.mxu0 0.0
  %7341 = vmatprep.subr.mxu0 0.0
  %7342 = vmatpush1.xpose.msra.mxu0 0.0
  %7343 = vmatprep.subr.mxu0 0.0
  %7344 = vmatpush1.xpose.msra.mxu0 0.0
  %7345 = vmatprep.subr.mxu0 0.0
  %7346 = vmatpush1.xpose.msra.mxu0 0.0
  %7347 = vmatprep.subr.mxu0 0.0
  %7348 = vmatpush1.xpose.msra.mxu0 0.0
  %7349 = vmatprep.subr.mxu0 0.0
  %7350 = vmatpush1.xpose.msra.mxu0 0.0
  %7351 = vmatprep.subr.mxu0 0.0
  %7352 = vmatpush1.xpose.msra.mxu0 0.0
  %7353 = vmatprep.subr.mxu0 0.0
  %7354 = vmatpush1.xpose.msra.mxu0 0.0
  %7355 = vmatprep.subr.mxu0 0.0
  %7356 = vmatpush1.xpose.msra.mxu0 0.0
  %7357 = vmatprep.subr.mxu0 0.0
  %7358 = vmatpush1.xpose.msra.mxu0 0.0
  %7359 = vmatprep.subr.mxu0 0.0
  %7360 = vmatpush1.xpose.msra.mxu0 0.0
  %7361 = vmatprep.subr.mxu0 0.0
  %7362 = vmatpush1.xpose.msra.mxu0 0.0
  %7363 = vmatprep.subr.mxu0 0.0
  %7364 = vmatpush1.xpose.msra.mxu0 0.0
  %7365 = vmatprep.subr.mxu0 0.0
  %7366 = vmatpush1.xpose.msra.mxu0 0.0
  %7367 = vmatprep.subr.mxu0 0.0
  %7368 = vmatpush1.xpose.msra.mxu0 0.0
  %7369 = vmatprep.subr.mxu0 0.0
  %7370 = vmatpush1.xpose.msra.mxu0 0.0
  %7371 = vmatprep.subr.mxu0 0.0
  %7372 = vmatpush1.xpose.msra.mxu0 0.0
  %7373 = vmatprep.subr.mxu0 0.0
  %7374 = vmatpush1.xpose.msra.mxu0 0.0
  %7375 = vmatprep.subr.mxu0 0.0
  %7376 = vmatpush1.xpose.msra.mxu0 0.0
  %7377 = vmatprep.subr.mxu0 0.0
  %7378 = vmatpush1.xpose.msra.mxu0 0.0
  %7379 = vmatprep.subr.mxu0 0.0
  %7380 = vmatpush1.xpose.msra.mxu0 0.0
  %7381 = vmatprep.subr.mxu0 0.0
  %7382 = vmatpush1.xpose.msra.mxu0 0.0
  %7383 = vmatprep.subr.mxu0 0.0
  %7384 = vmatpush1.xpose.msra.mxu0 0.0
  %7385 = vmatprep.subr.mxu0 0.0
  %7386 = vmatpush1.xpose.msra.mxu0 0.0
  %7387 = vmatprep.subr.mxu0 0.0
  %7388 = vmatpush1.xpose.msra.mxu0 0.0
  %7389 = vmatprep.subr.mxu0 0.0
  %7390 = vmatpush1.xpose.msra.mxu0 0.0
  %7391 = vmatprep.subr.mxu0 0.0
  %7392 = vmatpush1.xpose.msra.mxu0 0.0
  %7393 = vmatprep.subr.mxu0 0.0
  %7394 = vmatpush1.xpose.msra.mxu0 0.0
  %7395 = vmatprep.subr.mxu0 0.0
  %7396 = vmatpush1.xpose.msra.mxu0 0.0
  %7397 = vmatprep.subr.mxu0 0.0
  %7398 = vmatpush1.xpose.msra.mxu0 0.0
  %7399 = vmatprep.mubr.f32.mxu0 0.0
  %v7400 = vand.u32 %v7249, 4294901760
  %7401 = vmatmul.mubr.f32.gmra.mrb[0].mxu0 %v7400
  %v7402 = vpop.f32.mrb[0].mxu0
  %v7403 = vadd.f32 %v7327, %v7402
  %v7404 = vpop.f32.mrb[0].mxu0
  %7405 = vdwg.mxu0
  %7406 = vmatprep.subr.mxu0 0.0
  %v7407 = vand.u32 %v7252, 4294901760
  %v7408 = vsub.f32 %v7252, %v7407
  %7409 = vmatpush1.xpose.msra.mxu0 %v7408
  %7410 = vmatprep.subr.mxu0 0.0
  %7411 = vmatpush1.xpose.msra.mxu0 0.0
  %7412 = vmatprep.subr.mxu0 0.0
  %7413 = vmatpush1.xpose.msra.mxu0 0.0
  %7414 = vmatprep.subr.mxu0 0.0
  %7415 = vmatpush1.xpose.msra.mxu0 0.0
  %7416 = vmatprep.subr.mxu0 0.0
  %7417 = vmatpush1.xpose.msra.mxu0 0.0
  %7418 = vmatprep.subr.mxu0 0.0
  %7419 = vmatpush1.xpose.msra.mxu0 0.0
  %7420 = vmatprep.subr.mxu0 0.0
  %7421 = vmatpush1.xpose.msra.mxu0 0.0
  %7422 = vmatprep.subr.mxu0 0.0
  %7423 = vmatpush1.xpose.msra.mxu0 0.0
  %7424 = vmatprep.subr.mxu0 0.0
  %7425 = vmatpush1.xpose.msra.mxu0 0.0
  %7426 = vmatprep.subr.mxu0 0.0
  %7427 = vmatpush1.xpose.msra.mxu0 0.0
  %7428 = vmatprep.subr.mxu0 0.0
  %7429 = vmatpush1.xpose.msra.mxu0 0.0
  %7430 = vmatprep.subr.mxu0 0.0
  %7431 = vmatpush1.xpose.msra.mxu0 0.0
  %7432 = vmatprep.subr.mxu0 0.0
  %7433 = vmatpush1.xpose.msra.mxu0 0.0
  %7434 = vmatprep.subr.mxu0 0.0
  %7435 = vmatpush1.xpose.msra.mxu0 0.0
  %7436 = vmatprep.subr.mxu0 0.0
  %7437 = vmatpush1.xpose.msra.mxu0 0.0
  %7438 = vmatprep.subr.mxu0 0.0
  %7439 = vmatpush1.xpose.msra.mxu0 0.0
  %7440 = vmatprep.subr.mxu0 0.0
  %7441 = vmatpush1.xpose.msra.mxu0 0.0
  %7442 = vmatprep.subr.mxu0 0.0
  %7443 = vmatpush1.xpose.msra.mxu0 0.0
  %7444 = vmatprep.subr.mxu0 0.0
  %7445 = vmatpush1.xpose.msra.mxu0 0.0
  %7446 = vmatprep.subr.mxu0 0.0
  %7447 = vmatpush1.xpose.msra.mxu0 0.0
  %7448 = vmatprep.subr.mxu0 0.0
  %7449 = vmatpush1.xpose.msra.mxu0 0.0
  %7450 = vmatprep.subr.mxu0 0.0
  %7451 = vmatpush1.xpose.msra.mxu0 0.0
  %7452 = vmatprep.subr.mxu0 0.0
  %7453 = vmatpush1.xpose.msra.mxu0 0.0
  %7454 = vmatprep.subr.mxu0 0.0
  %7455 = vmatpush1.xpose.msra.mxu0 0.0
  %7456 = vmatprep.subr.mxu0 0.0
  %7457 = vmatpush1.xpose.msra.mxu0 0.0
  %7458 = vmatprep.subr.mxu0 0.0
  %7459 = vmatpush1.xpose.msra.mxu0 0.0
  %7460 = vmatprep.subr.mxu0 0.0
  %7461 = vmatpush1.xpose.msra.mxu0 0.0
  %7462 = vmatprep.subr.mxu0 0.0
  %7463 = vmatpush1.xpose.msra.mxu0 0.0
  %7464 = vmatprep.subr.mxu0 0.0
  %7465 = vmatpush1.xpose.msra.mxu0 0.0
  %7466 = vmatprep.subr.mxu0 0.0
  %7467 = vmatpush1.xpose.msra.mxu0 0.0
  %7468 = vmatprep.subr.mxu0 0.0
  %7469 = vmatpush1.xpose.msra.mxu0 0.0
  %7470 = vmatprep.subr.mxu0 0.0
  %7471 = vmatpush1.xpose.msra.mxu0 0.0
  %7472 = vmatprep.mubr.f32.mxu0 0.0
  %v7473 = vand.u32 %v7249, 4294901760
  %v7474 = vsub.f32 %v7249, %v7473
  %7475 = vmatmul.mubr.f32.gmra.mrb[0].mxu0 %v7474
  %v7476 = vpop.f32.mrb[0].mxu0
  %v7477 = vadd.f32 %v7403, %v7476
  %v7478 = vpop.f32.mrb[0].mxu0
  %7479 = vdwg.mxu0
  %7480 = vmatprep.subr.mxu0 0.0
  %v7481 = vand.u32 %v7252, 4294901760
  %7482 = vmatpush1.xpose.msra.mxu0 %v7481
  %7483 = vmatprep.subr.mxu0 0.0
  %7484 = vmatpush1.xpose.msra.mxu0 0.0
  %7485 = vmatprep.subr.mxu0 0.0
  %7486 = vmatpush1.xpose.msra.mxu0 0.0
  %7487 = vmatprep.subr.mxu0 0.0
  %7488 = vmatpush1.xpose.msra.mxu0 0.0
  %7489 = vmatprep.subr.mxu0 0.0
  %7490 = vmatpush1.xpose.msra.mxu0 0.0
  %7491 = vmatprep.subr.mxu0 0.0
  %7492 = vmatpush1.xpose.msra.mxu0 0.0
  %7493 = vmatprep.subr.mxu0 0.0
  %7494 = vmatpush1.xpose.msra.mxu0 0.0
  %7495 = vmatprep.subr.mxu0 0.0
  %7496 = vmatpush1.xpose.msra.mxu0 0.0
  %7497 = vmatprep.subr.mxu0 0.0
  %7498 = vmatpush1.xpose.msra.mxu0 0.0
  %7499 = vmatprep.subr.mxu0 0.0
  %7500 = vmatpush1.xpose.msra.mxu0 0.0
  %7501 = vmatprep.subr.mxu0 0.0
  %7502 = vmatpush1.xpose.msra.mxu0 0.0
  %7503 = vmatprep.subr.mxu0 0.0
  %7504 = vmatpush1.xpose.msra.mxu0 0.0
  %7505 = vmatprep.subr.mxu0 0.0
  %7506 = vmatpush1.xpose.msra.mxu0 0.0
  %7507 = vmatprep.subr.mxu0 0.0
  %7508 = vmatpush1.xpose.msra.mxu0 0.0
  %7509 = vmatprep.subr.mxu0 0.0
  %7510 = vmatpush1.xpose.msra.mxu0 0.0
  %7511 = vmatprep.subr.mxu0 0.0
  %7512 = vmatpush1.xpose.msra.mxu0 0.0
  %7513 = vmatprep.subr.mxu0 0.0
  %7514 = vmatpush1.xpose.msra.mxu0 0.0
  %7515 = vmatprep.subr.mxu0 0.0
  %7516 = vmatpush1.xpose.msra.mxu0 0.0
  %7517 = vmatprep.subr.mxu0 0.0
  %7518 = vmatpush1.xpose.msra.mxu0 0.0
  %7519 = vmatprep.subr.mxu0 0.0
  %7520 = vmatpush1.xpose.msra.mxu0 0.0
  %7521 = vmatprep.subr.mxu0 0.0
  %7522 = vmatpush1.xpose.msra.mxu0 0.0
  %7523 = vmatprep.subr.mxu0 0.0
  %7524 = vmatpush1.xpose.msra.mxu0 0.0
  %7525 = vmatprep.subr.mxu0 0.0
  %7526 = vmatpush1.xpose.msra.mxu0 0.0
  %7527 = vmatprep.subr.mxu0 0.0
  %7528 = vmatpush1.xpose.msra.mxu0 0.0
  %7529 = vmatprep.subr.mxu0 0.0
  %7530 = vmatpush1.xpose.msra.mxu0 0.0
  %7531 = vmatprep.subr.mxu0 0.0
  %7532 = vmatpush1.xpose.msra.mxu0 0.0
  %7533 = vmatprep.subr.mxu0 0.0
  %7534 = vmatpush1.xpose.msra.mxu0 0.0
  %7535 = vmatprep.subr.mxu0 0.0
  %7536 = vmatpush1.xpose.msra.mxu0 0.0
  %7537 = vmatprep.subr.mxu0 0.0
  %7538 = vmatpush1.xpose.msra.mxu0 0.0
  %7539 = vmatprep.subr.mxu0 0.0
  %7540 = vmatpush1.xpose.msra.mxu0 0.0
  %7541 = vmatprep.subr.mxu0 0.0
  %7542 = vmatpush1.xpose.msra.mxu0 0.0
  %7543 = vmatprep.subr.mxu0 0.0
  %7544 = vmatpush1.xpose.msra.mxu0 0.0
  %7545 = vmatprep.mubr.f32.mxu0 0.0
  %v7546 = vand.u32 %v7249, 4294901760
  %v7547 = vsub.f32 %v7249, %v7546
  %v7548 = vand.u32 %v7547, 4294901760
  %7549 = vmatmul.mubr.f32.gmra.mrb[0].mxu0 %v7548
  %v7550 = vpop.f32.mrb[0].mxu0
  %v7551 = vadd.f32 %v7477, %v7550
  %v7552 = vpop.f32.mrb[0].mxu0
  %7553 = vdwg.mxu0
  %7554 = vmatprep.subr.mxu0 0.0
  %v7555 = vand.u32 %v7252, 4294901760
  %v7556 = vsub.f32 %v7252, %v7555
  %v7557 = vand.u32 %v7556, 4294901760
  %7558 = vmatpush1.xpose.msra.mxu0 %v7557
  %7559 = vmatprep.subr.mxu0 0.0
  %7560 = vmatpush1.xpose.msra.mxu0 0.0
  %7561 = vmatprep.subr.mxu0 0.0
  %7562 = vmatpush1.xpose.msra.mxu0 0.0
  %7563 = vmatprep.subr.mxu0 0.0
  %7564 = vmatpush1.xpose.msra.mxu0 0.0
  %7565 = vmatprep.subr.mxu0 0.0
  %7566 = vmatpush1.xpose.msra.mxu0 0.0
  %7567 = vmatprep.subr.mxu0 0.0
  %7568 = vmatpush1.xpose.msra.mxu0 0.0
  %7569 = vmatprep.subr.mxu0 0.0
  %7570 = vmatpush1.xpose.msra.mxu0 0.0
  %7571 = vmatprep.subr.mxu0 0.0
  %7572 = vmatpush1.xpose.msra.mxu0 0.0
  %7573 = vmatprep.subr.mxu0 0.0
  %7574 = vmatpush1.xpose.msra.mxu0 0.0
  %7575 = vmatprep.subr.mxu0 0.0
  %7576 = vmatpush1.xpose.msra.mxu0 0.0
  %7577 = vmatprep.subr.mxu0 0.0
  %7578 = vmatpush1.xpose.msra.mxu0 0.0
  %7579 = vmatprep.subr.mxu0 0.0
  %7580 = vmatpush1.xpose.msra.mxu0 0.0
  %7581 = vmatprep.subr.mxu0 0.0
  %7582 = vmatpush1.xpose.msra.mxu0 0.0
  %7583 = vmatprep.subr.mxu0 0.0
  %7584 = vmatpush1.xpose.msra.mxu0 0.0
  %7585 = vmatprep.subr.mxu0 0.0
  %7586 = vmatpush1.xpose.msra.mxu0 0.0
  %7587 = vmatprep.subr.mxu0 0.0
  %7588 = vmatpush1.xpose.msra.mxu0 0.0
  %7589 = vmatprep.subr.mxu0 0.0
  %7590 = vmatpush1.xpose.msra.mxu0 0.0
  %7591 = vmatprep.subr.mxu0 0.0
  %7592 = vmatpush1.xpose.msra.mxu0 0.0
  %7593 = vmatprep.subr.mxu0 0.0
  %7594 = vmatpush1.xpose.msra.mxu0 0.0
  %7595 = vmatprep.subr.mxu0 0.0
  %7596 = vmatpush1.xpose.msra.mxu0 0.0
  %7597 = vmatprep.subr.mxu0 0.0
  %7598 = vmatpush1.xpose.msra.mxu0 0.0
  %7599 = vmatprep.subr.mxu0 0.0
  %7600 = vmatpush1.xpose.msra.mxu0 0.0
  %7601 = vmatprep.subr.mxu0 0.0
  %7602 = vmatpush1.xpose.msra.mxu0 0.0
  %7603 = vmatprep.subr.mxu0 0.0
  %7604 = vmatpush1.xpose.msra.mxu0 0.0
  %7605 = vmatprep.subr.mxu0 0.0
  %7606 = vmatpush1.xpose.msra.mxu0 0.0
  %7607 = vmatprep.subr.mxu0 0.0
  %7608 = vmatpush1.xpose.msra.mxu0 0.0
  %7609 = vmatprep.subr.mxu0 0.0
  %7610 = vmatpush1.xpose.msra.mxu0 0.0
  %7611 = vmatprep.subr.mxu0 0.0
  %7612 = vmatpush1.xpose.msra.mxu0 0.0
  %7613 = vmatprep.subr.mxu0 0.0
  %7614 = vmatpush1.xpose.msra.mxu0 0.0
  %7615 = vmatprep.subr.mxu0 0.0
  %7616 = vmatpush1.xpose.msra.mxu0 0.0
  %7617 = vmatprep.subr.mxu0 0.0
  %7618 = vmatpush1.xpose.msra.mxu0 0.0
  %7619 = vmatprep.subr.mxu0 0.0
  %7620 = vmatpush1.xpose.msra.mxu0 0.0
  %7621 = vmatprep.mubr.f32.mxu0 0.0
  %v7622 = vand.u32 %v7249, 4294901760
  %7623 = vmatmul.mubr.f32.gmra.mrb[0].mxu0 %v7622
  %v7624 = vpop.f32.mrb[0].mxu0
  %v7625 = vadd.f32 %v7551, %v7624
  %v7626 = vpop.f32.mrb[0].mxu0
  %7627 = vdwg.mxu0
  %7628 = vmatprep.subr.mxu0 0.0
  %v7629 = vand.u32 %v7252, 4294901760
  %7630 = vmatpush1.xpose.msra.mxu0 %v7629
  %7631 = vmatprep.subr.mxu0 0.0
  %7632 = vmatpush1.xpose.msra.mxu0 0.0
  %7633 = vmatprep.subr.mxu0 0.0
  %7634 = vmatpush1.xpose.msra.mxu0 0.0
  %7635 = vmatprep.subr.mxu0 0.0
  %7636 = vmatpush1.xpose.msra.mxu0 0.0
  %7637 = vmatprep.subr.mxu0 0.0
  %7638 = vmatpush1.xpose.msra.mxu0 0.0
  %7639 = vmatprep.subr.mxu0 0.0
  %7640 = vmatpush1.xpose.msra.mxu0 0.0
  %7641 = vmatprep.subr.mxu0 0.0
  %7642 = vmatpush1.xpose.msra.mxu0 0.0
  %7643 = vmatprep.subr.mxu0 0.0
  %7644 = vmatpush1.xpose.msra.mxu0 0.0
  %7645 = vmatprep.subr.mxu0 0.0
  %7646 = vmatpush1.xpose.msra.mxu0 0.0
  %7647 = vmatprep.subr.mxu0 0.0
  %7648 = vmatpush1.xpose.msra.mxu0 0.0
  %7649 = vmatprep.subr.mxu0 0.0
  %7650 = vmatpush1.xpose.msra.mxu0 0.0
  %7651 = vmatprep.subr.mxu0 0.0
  %7652 = vmatpush1.xpose.msra.mxu0 0.0
  %7653 = vmatprep.subr.mxu0 0.0
  %7654 = vmatpush1.xpose.msra.mxu0 0.0
  %7655 = vmatprep.subr.mxu0 0.0
  %7656 = vmatpush1.xpose.msra.mxu0 0.0
  %7657 = vmatprep.subr.mxu0 0.0
  %7658 = vmatpush1.xpose.msra.mxu0 0.0
  %7659 = vmatprep.subr.mxu0 0.0
  %7660 = vmatpush1.xpose.msra.mxu0 0.0
  %7661 = vmatprep.subr.mxu0 0.0
  %7662 = vmatpush1.xpose.msra.mxu0 0.0
  %7663 = vmatprep.subr.mxu0 0.0
  %7664 = vmatpush1.xpose.msra.mxu0 0.0
  %7665 = vmatprep.subr.mxu0 0.0
  %7666 = vmatpush1.xpose.msra.mxu0 0.0
  %7667 = vmatprep.subr.mxu0 0.0
  %7668 = vmatpush1.xpose.msra.mxu0 0.0
  %7669 = vmatprep.subr.mxu0 0.0
  %7670 = vmatpush1.xpose.msra.mxu0 0.0
  %7671 = vmatprep.subr.mxu0 0.0
  %7672 = vmatpush1.xpose.msra.mxu0 0.0
  %7673 = vmatprep.subr.mxu0 0.0
  %7674 = vmatpush1.xpose.msra.mxu0 0.0
  %7675 = vmatprep.subr.mxu0 0.0
  %7676 = vmatpush1.xpose.msra.mxu0 0.0
  %7677 = vmatprep.subr.mxu0 0.0
  %7678 = vmatpush1.xpose.msra.mxu0 0.0
  %7679 = vmatprep.subr.mxu0 0.0
  %7680 = vmatpush1.xpose.msra.mxu0 0.0
  %7681 = vmatprep.subr.mxu0 0.0
  %7682 = vmatpush1.xpose.msra.mxu0 0.0
  %7683 = vmatprep.subr.mxu0 0.0
  %7684 = vmatpush1.xpose.msra.mxu0 0.0
  %7685 = vmatprep.subr.mxu0 0.0
  %7686 = vmatpush1.xpose.msra.mxu0 0.0
  %7687 = vmatprep.subr.mxu0 0.0
  %7688 = vmatpush1.xpose.msra.mxu0 0.0
  %7689 = vmatprep.subr.mxu0 0.0
  %7690 = vmatpush1.xpose.msra.mxu0 0.0
  %7691 = vmatprep.subr.mxu0 0.0
  %7692 = vmatpush1.xpose.msra.mxu0 0.0
  %7693 = vmatprep.mubr.f32.mxu0 0.0
  %v7694 = vand.u32 %v7249, 4294901760
  %7695 = vmatmul.mubr.f32.gmra.mrb[0].mxu0 %v7694
  %v7696 = vpop.f32.mrb[0].mxu0
  %v7697 = vadd.f32 %v7625, %v7696
  %v7698 = vpop.f32.mrb[0].mxu0
  %7699 = vdwg.mxu0
  %v7700 = vmul.f32 %v4387, %v7697
  %v7701 = vsel %vm4390, %v7700, -inf
  %7702 = vmax.xlane.f32.xlu0 %v7701
  %v7703 = vpop.xlane.xlu0 %7702
  %v7704 = vsub.f32 %v7700, %v7703
  %v7705 = vmul.f32 %v7704, 1.442695
  %v7706 = vpow.pop %v7705
  %v7707 = vsel %vm4390, %v7706, 0.0
  %7708 = vadd.xlane.f32.xlu0 %v7707
  %v7709 = vpop.xlane.xlu0 %7708
  %v7710 = vrcp.pop %v7709
  %v7711 = vmul.f32 %v7706, %v7710
  %v7713 = vsel %vm4406, %v7711, 0
  %7715 = vmatprep.subr.mxu0 0.0
  %v7716 = vand.u32 %v2434, 4294901760
  %7717 = vmatpush1.msra.mxu0 %v7716
  %7718 = vmatprep.subr.mxu0 0.0
  %7719 = vmatpush1.msra.mxu0 0.0
  %7720 = vmatprep.subr.mxu0 0.0
  %7721 = vmatpush1.msra.mxu0 0.0
  %7722 = vmatprep.subr.mxu0 0.0
  %7723 = vmatpush1.msra.mxu0 0.0
  %7724 = vmatprep.subr.mxu0 0.0
  %7725 = vmatpush1.msra.mxu0 0.0
  %7726 = vmatprep.subr.mxu0 0.0
  %7727 = vmatpush1.msra.mxu0 0.0
  %7728 = vmatprep.subr.mxu0 0.0
  %7729 = vmatpush1.msra.mxu0 0.0
  %7730 = vmatprep.subr.mxu0 0.0
  %7731 = vmatpush1.msra.mxu0 0.0
  %7732 = vmatprep.subr.mxu0 0.0
  %7733 = vmatpush1.msra.mxu0 0.0
  %7734 = vmatprep.subr.mxu0 0.0
  %7735 = vmatpush1.msra.mxu0 0.0
  %7736 = vmatprep.subr.mxu0 0.0
  %7737 = vmatpush1.msra.mxu0 0.0
  %7738 = vmatprep.subr.mxu0 0.0
  %7739 = vmatpush1.msra.mxu0 0.0
  %7740 = vmatprep.subr.mxu0 0.0
  %7741 = vmatpush1.msra.mxu0 0.0
  %7742 = vmatprep.subr.mxu0 0.0
  %7743 = vmatpush1.msra.mxu0 0.0
  %7744 = vmatprep.subr.mxu0 0.0
  %7745 = vmatpush1.msra.mxu0 0.0
  %7746 = vmatprep.subr.mxu0 0.0
  %7747 = vmatpush1.msra.mxu0 0.0
  %7748 = vmatprep.subr.mxu0 0.0
  %7749 = vmatpush1.msra.mxu0 0.0
  %7750 = vmatprep.subr.mxu0 0.0
  %7751 = vmatpush1.msra.mxu0 0.0
  %7752 = vmatprep.subr.mxu0 0.0
  %7753 = vmatpush1.msra.mxu0 0.0
  %7754 = vmatprep.subr.mxu0 0.0
  %7755 = vmatpush1.msra.mxu0 0.0
  %7756 = vmatprep.subr.mxu0 0.0
  %7757 = vmatpush1.msra.mxu0 0.0
  %7758 = vmatprep.subr.mxu0 0.0
  %7759 = vmatpush1.msra.mxu0 0.0
  %7760 = vmatprep.subr.mxu0 0.0
  %7761 = vmatpush1.msra.mxu0 0.0
  %7762 = vmatprep.subr.mxu0 0.0
  %7763 = vmatpush1.msra.mxu0 0.0
  %7764 = vmatprep.subr.mxu0 0.0
  %7765 = vmatpush1.msra.mxu0 0.0
  %7766 = vmatprep.subr.mxu0 0.0
  %7767 = vmatpush1.msra.mxu0 0.0
  %7768 = vmatprep.subr.mxu0 0.0
  %7769 = vmatpush1.msra.mxu0 0.0
  %7770 = vmatprep.subr.mxu0 0.0
  %7771 = vmatpush1.msra.mxu0 0.0
  %7772 = vmatprep.subr.mxu0 0.0
  %7773 = vmatpush1.msra.mxu0 0.0
  %7774 = vmatprep.subr.mxu0 0.0
  %7775 = vmatpush1.msra.mxu0 0.0
  %7776 = vmatprep.subr.mxu0 0.0
  %7777 = vmatpush1.msra.mxu0 0.0
  %7778 = vmatprep.subr.mxu0 0.0
  %7779 = vmatpush1.msra.mxu0 0.0
  %7780 = vmatprep.mubr.f32.mxu0 0.0
  %v7781 = vand.u32 %v7713, 4294901760
  %v7782 = vsub.f32 %v7713, %v7781
  %v7783 = vand.u32 %v7782, 4294901760
  %v7784 = vsub.f32 %v7782, %v7783
  %v7785 = vand.u32 %v7784, 4294901760
  %7786 = vmatmul.mubr.f32.gmra.mrb[0].mxu0 %v7785
  %v7787 = vpop.f32.mrb[0].mxu0
  %v7788 = vadd.f32 %v4405, %v7787
  %v7789 = vpop.f32.mrb[0].mxu0
  %7790 = vdwg.mxu0
  %7791 = vmatprep.subr.mxu0 0.0
  %v7792 = vand.u32 %v2434, 4294901760
  %v7793 = vsub.f32 %v2434, %v7792
  %v7794 = vand.u32 %v7793, 4294901760
  %v7795 = vsub.f32 %v7793, %v7794
  %v7796 = vand.u32 %v7795, 4294901760
  %7797 = vmatpush1.msra.mxu0 %v7796
  %7798 = vmatprep.subr.mxu0 0.0
  %7799 = vmatpush1.msra.mxu0 0.0
  %7800 = vmatprep.subr.mxu0 0.0
  %7801 = vmatpush1.msra.mxu0 0.0
  %7802 = vmatprep.subr.mxu0 0.0
  %7803 = vmatpush1.msra.mxu0 0.0
  %7804 = vmatprep.subr.mxu0 0.0
  %7805 = vmatpush1.msra.mxu0 0.0
  %7806 = vmatprep.subr.mxu0 0.0
  %7807 = vmatpush1.msra.mxu0 0.0
  %7808 = vmatprep.subr.mxu0 0.0
  %7809 = vmatpush1.msra.mxu0 0.0
  %7810 = vmatprep.subr.mxu0 0.0
  %7811 = vmatpush1.msra.mxu0 0.0
  %7812 = vmatprep.subr.mxu0 0.0
  %7813 = vmatpush1.msra.mxu0 0.0
  %7814 = vmatprep.subr.mxu0 0.0
  %7815 = vmatpush1.msra.mxu0 0.0
  %7816 = vmatprep.subr.mxu0 0.0
  %7817 = vmatpush1.msra.mxu0 0.0
  %7818 = vmatprep.subr.mxu0 0.0
  %7819 = vmatpush1.msra.mxu0 0.0
  %7820 = vmatprep.subr.mxu0 0.0
  %7821 = vmatpush1.msra.mxu0 0.0
  %7822 = vmatprep.subr.mxu0 0.0
  %7823 = vmatpush1.msra.mxu0 0.0
  %7824 = vmatprep.subr.mxu0 0.0
  %7825 = vmatpush1.msra.mxu0 0.0
  %7826 = vmatprep.subr.mxu0 0.0
  %7827 = vmatpush1.msra.mxu0 0.0
  %7828 = vmatprep.subr.mxu0 0.0
  %7829 = vmatpush1.msra.mxu0 0.0
  %7830 = vmatprep.subr.mxu0 0.0
  %7831 = vmatpush1.msra.mxu0 0.0
  %7832 = vmatprep.subr.mxu0 0.0
  %7833 = vmatpush1.msra.mxu0 0.0
  %7834 = vmatprep.subr.mxu0 0.0
  %7835 = vmatpush1.msra.mxu0 0.0
  %7836 = vmatprep.subr.mxu0 0.0
  %7837 = vmatpush1.msra.mxu0 0.0
  %7838 = vmatprep.subr.mxu0 0.0
  %7839 = vmatpush1.msra.mxu0 0.0
  %7840 = vmatprep.subr.mxu0 0.0
  %7841 = vmatpush1.msra.mxu0 0.0
  %7842 = vmatprep.subr.mxu0 0.0
  %7843 = vmatpush1.msra.mxu0 0.0
  %7844 = vmatprep.subr.mxu0 0.0
  %7845 = vmatpush1.msra.mxu0 0.0
  %7846 = vmatprep.subr.mxu0 0.0
  %7847 = vmatpush1.msra.mxu0 0.0
  %7848 = vmatprep.subr.mxu0 0.0
  %7849 = vmatpush1.msra.mxu0 0.0
  %7850 = vmatprep.subr.mxu0 0.0
  %7851 = vmatpush1.msra.mxu0 0.0
  %7852 = vmatprep.subr.mxu0 0.0
  %7853 = vmatpush1.msra.mxu0 0.0
  %7854 = vmatprep.subr.mxu0 0.0
  %7855 = vmatpush1.msra.mxu0 0.0
  %7856 = vmatprep.subr.mxu0 0.0
  %7857 = vmatpush1.msra.mxu0 0.0
  %7858 = vmatprep.subr.mxu0 0.0
  %7859 = vmatpush1.msra.mxu0 0.0
  %7860 = vmatprep.mubr.f32.mxu0 0.0
  %v7861 = vand.u32 %v7713, 4294901760
  %7862 = vmatmul.mubr.f32.gmra.mrb[0].mxu0 %v7861
  %v7863 = vpop.f32.mrb[0].mxu0
  %v7864 = vadd.f32 %v7788, %v7863
  %v7865 = vpop.f32.mrb[0].mxu0
  %7866 = vdwg.mxu0
  %7867 = vmatprep.subr.mxu0 0.0
  %v7868 = vand.u32 %v2434, 4294901760
  %v7869 = vsub.f32 %v2434, %v7868
  %7870 = vmatpush1.msra.mxu0 %v7869
  %7871 = vmatprep.subr.mxu0 0.0
  %7872 = vmatpush1.msra.mxu0 0.0
  %7873 = vmatprep.subr.mxu0 0.0
  %7874 = vmatpush1.msra.mxu0 0.0
  %7875 = vmatprep.subr.mxu0 0.0
  %7876 = vmatpush1.msra.mxu0 0.0
  %7877 = vmatprep.subr.mxu0 0.0
  %7878 = vmatpush1.msra.mxu0 0.0
  %7879 = vmatprep.subr.mxu0 0.0
  %7880 = vmatpush1.msra.mxu0 0.0
  %7881 = vmatprep.subr.mxu0 0.0
  %7882 = vmatpush1.msra.mxu0 0.0
  %7883 = vmatprep.subr.mxu0 0.0
  %7884 = vmatpush1.msra.mxu0 0.0
  %7885 = vmatprep.subr.mxu0 0.0
  %7886 = vmatpush1.msra.mxu0 0.0
  %7887 = vmatprep.subr.mxu0 0.0
  %7888 = vmatpush1.msra.mxu0 0.0
  %7889 = vmatprep.subr.mxu0 0.0
  %7890 = vmatpush1.msra.mxu0 0.0
  %7891 = vmatprep.subr.mxu0 0.0
  %7892 = vmatpush1.msra.mxu0 0.0
  %7893 = vmatprep.subr.mxu0 0.0
  %7894 = vmatpush1.msra.mxu0 0.0
  %7895 = vmatprep.subr.mxu0 0.0
  %7896 = vmatpush1.msra.mxu0 0.0
  %7897 = vmatprep.subr.mxu0 0.0
  %7898 = vmatpush1.msra.mxu0 0.0
  %7899 = vmatprep.subr.mxu0 0.0
  %7900 = vmatpush1.msra.mxu0 0.0
  %7901 = vmatprep.subr.mxu0 0.0
  %7902 = vmatpush1.msra.mxu0 0.0
  %7903 = vmatprep.subr.mxu0 0.0
  %7904 = vmatpush1.msra.mxu0 0.0
  %7905 = vmatprep.subr.mxu0 0.0
  %7906 = vmatpush1.msra.mxu0 0.0
  %7907 = vmatprep.subr.mxu0 0.0
  %7908 = vmatpush1.msra.mxu0 0.0
  %7909 = vmatprep.subr.mxu0 0.0
  %7910 = vmatpush1.msra.mxu0 0.0
  %7911 = vmatprep.subr.mxu0 0.0
  %7912 = vmatpush1.msra.mxu0 0.0
  %7913 = vmatprep.subr.mxu0 0.0
  %7914 = vmatpush1.msra.mxu0 0.0
  %7915 = vmatprep.subr.mxu0 0.0
  %7916 = vmatpush1.msra.mxu0 0.0
  %7917 = vmatprep.subr.mxu0 0.0
  %7918 = vmatpush1.msra.mxu0 0.0
  %7919 = vmatprep.subr.mxu0 0.0
  %7920 = vmatpush1.msra.mxu0 0.0
  %7921 = vmatprep.subr.mxu0 0.0
  %7922 = vmatpush1.msra.mxu0 0.0
  %7923 = vmatprep.subr.mxu0 0.0
  %7924 = vmatpush1.msra.mxu0 0.0
  %7925 = vmatprep.subr.mxu0 0.0
  %7926 = vmatpush1.msra.mxu0 0.0
  %7927 = vmatprep.subr.mxu0 0.0
  %7928 = vmatpush1.msra.mxu0 0.0
  %7929 = vmatprep.subr.mxu0 0.0
  %7930 = vmatpush1.msra.mxu0 0.0
  %7931 = vmatprep.subr.mxu0 0.0
  %7932 = vmatpush1.msra.mxu0 0.0
  %7933 = vmatprep.mubr.f32.mxu0 0.0
  %v7934 = vand.u32 %v7713, 4294901760
  %v7935 = vsub.f32 %v7713, %v7934
  %7936 = vmatmul.mubr.f32.gmra.mrb[0].mxu0 %v7935
  %v7937 = vpop.f32.mrb[0].mxu0
  %v7938 = vadd.f32 %v7864, %v7937
  %v7939 = vpop.f32.mrb[0].mxu0
  %7940 = vdwg.mxu0
  %7941 = vmatprep.subr.mxu0 0.0
  %v7942 = vand.u32 %v2434, 4294901760
  %7943 = vmatpush1.msra.mxu0 %v7942
  %7944 = vmatprep.subr.mxu0 0.0
  %7945 = vmatpush1.msra.mxu0 0.0
  %7946 = vmatprep.subr.mxu0 0.0
  %7947 = vmatpush1.msra.mxu0 0.0
  %7948 = vmatprep.subr.mxu0 0.0
  %7949 = vmatpush1.msra.mxu0 0.0
  %7950 = vmatprep.subr.mxu0 0.0
  %7951 = vmatpush1.msra.mxu0 0.0
  %7952 = vmatprep.subr.mxu0 0.0
  %7953 = vmatpush1.msra.mxu0 0.0
  %7954 = vmatprep.subr.mxu0 0.0
  %7955 = vmatpush1.msra.mxu0 0.0
  %7956 = vmatprep.subr.mxu0 0.0
  %7957 = vmatpush1.msra.mxu0 0.0
  %7958 = vmatprep.subr.mxu0 0.0
  %7959 = vmatpush1.msra.mxu0 0.0
  %7960 = vmatprep.subr.mxu0 0.0
  %7961 = vmatpush1.msra.mxu0 0.0
  %7962 = vmatprep.subr.mxu0 0.0
  %7963 = vmatpush1.msra.mxu0 0.0
  %7964 = vmatprep.subr.mxu0 0.0
  %7965 = vmatpush1.msra.mxu0 0.0
  %7966 = vmatprep.subr.mxu0 0.0
  %7967 = vmatpush1.msra.mxu0 0.0
  %7968 = vmatprep.subr.mxu0 0.0
  %7969 = vmatpush1.msra.mxu0 0.0
  %7970 = vmatprep.subr.mxu0 0.0
  %7971 = vmatpush1.msra.mxu0 0.0
  %7972 = vmatprep.subr.mxu0 0.0
  %7973 = vmatpush1.msra.mxu0 0.0
  %7974 = vmatprep.subr.mxu0 0.0
  %7975 = vmatpush1.msra.mxu0 0.0
  %7976 = vmatprep.subr.mxu0 0.0
  %7977 = vmatpush1.msra.mxu0 0.0
  %7978 = vmatprep.subr.mxu0 0.0
  %7979 = vmatpush1.msra.mxu0 0.0
  %7980 = vmatprep.subr.mxu0 0.0
  %7981 = vmatpush1.msra.mxu0 0.0
  %7982 = vmatprep.subr.mxu0 0.0
  %7983 = vmatpush1.msra.mxu0 0.0
  %7984 = vmatprep.subr.mxu0 0.0
  %7985 = vmatpush1.msra.mxu0 0.0
  %7986 = vmatprep.subr.mxu0 0.0
  %7987 = vmatpush1.msra.mxu0 0.0
  %7988 = vmatprep.subr.mxu0 0.0
  %7989 = vmatpush1.msra.mxu0 0.0
  %7990 = vmatprep.subr.mxu0 0.0
  %7991 = vmatpush1.msra.mxu0 0.0
  %7992 = vmatprep.subr.mxu0 0.0
  %7993 = vmatpush1.msra.mxu0 0.0
  %7994 = vmatprep.subr.mxu0 0.0
  %7995 = vmatpush1.msra.mxu0 0.0
  %7996 = vmatprep.subr.mxu0 0.0
  %7997 = vmatpush1.msra.mxu0 0.0
  %7998 = vmatprep.subr.mxu0 0.0
  %7999 = vmatpush1.msra.mxu0 0.0
  %8000 = vmatprep.subr.mxu0 0.0
  %8001 = vmatpush1.msra.mxu0 0.0
  %8002 = vmatprep.subr.mxu0 0.0
  %8003 = vmatpush1.msra.mxu0 0.0
  %8004 = vmatprep.subr.mxu0 0.0
  %8005 = vmatpush1.msra.mxu0 0.0
  %8006 = vmatprep.mubr.f32.mxu0 0.0
  %v8007 = vand.u32 %v7713, 4294901760
  %v8008 = vsub.f32 %v7713, %v8007
  %v8009 = vand.u32 %v8008, 4294901760
  %8010 = vmatmul.mubr.f32.gmra.mrb[0].mxu0 %v8009
  %v8011 = vpop.f32.mrb[0].mxu0
  %v8012 = vadd.f32 %v7938, %v8011
  %v8013 = vpop.f32.mrb[0].mxu0
  %8014 = vdwg.mxu0
  %8015 = vmatprep.subr.mxu0 0.0
  %v8016 = vand.u32 %v2434, 4294901760
  %v8017 = vsub.f32 %v2434, %v8016
  %v8018 = vand.u32 %v8017, 4294901760
  %8019 = vmatpush1.msra.mxu0 %v8018
  %8020 = vmatprep.subr.mxu0 0.0
  %8021 = vmatpush1.msra.mxu0 0.0
  %8022 = vmatprep.subr.mxu0 0.0
  %8023 = vmatpush1.msra.mxu0 0.0
  %8024 = vmatprep.subr.mxu0 0.0
  %8025 = vmatpush1.msra.mxu0 0.0
  %8026 = vmatprep.subr.mxu0 0.0
  %8027 = vmatpush1.msra.mxu0 0.0
  %8028 = vmatprep.subr.mxu0 0.0
  %8029 = vmatpush1.msra.mxu0 0.0
  %8030 = vmatprep.subr.mxu0 0.0
  %8031 = vmatpush1.msra.mxu0 0.0
  %8032 = vmatprep.subr.mxu0 0.0
  %8033 = vmatpush1.msra.mxu0 0.0
  %8034 = vmatprep.subr.mxu0 0.0
  %8035 = vmatpush1.msra.mxu0 0.0
  %8036 = vmatprep.subr.mxu0 0.0
  %8037 = vmatpush1.msra.mxu0 0.0
  %8038 = vmatprep.subr.mxu0 0.0
  %8039 = vmatpush1.msra.mxu0 0.0
  %8040 = vmatprep.subr.mxu0 0.0
  %8041 = vmatpush1.msra.mxu0 0.0
  %8042 = vmatprep.subr.mxu0 0.0
  %8043 = vmatpush1.msra.mxu0 0.0
  %8044 = vmatprep.subr.mxu0 0.0
  %8045 = vmatpush1.msra.mxu0 0.0
  %8046 = vmatprep.subr.mxu0 0.0
  %8047 = vmatpush1.msra.mxu0 0.0
  %8048 = vmatprep.subr.mxu0 0.0
  %8049 = vmatpush1.msra.mxu0 0.0
  %8050 = vmatprep.subr.mxu0 0.0
  %8051 = vmatpush1.msra.mxu0 0.0
  %8052 = vmatprep.subr.mxu0 0.0
  %8053 = vmatpush1.msra.mxu0 0.0
  %8054 = vmatprep.subr.mxu0 0.0
  %8055 = vmatpush1.msra.mxu0 0.0
  %8056 = vmatprep.subr.mxu0 0.0
  %8057 = vmatpush1.msra.mxu0 0.0
  %8058 = vmatprep.subr.mxu0 0.0
  %8059 = vmatpush1.msra.mxu0 0.0
  %8060 = vmatprep.subr.mxu0 0.0
  %8061 = vmatpush1.msra.mxu0 0.0
  %8062 = vmatprep.subr.mxu0 0.0
  %8063 = vmatpush1.msra.mxu0 0.0
  %8064 = vmatprep.subr.mxu0 0.0
  %8065 = vmatpush1.msra.mxu0 0.0
  %8066 = vmatprep.subr.mxu0 0.0
  %8067 = vmatpush1.msra.mxu0 0.0
  %8068 = vmatprep.subr.mxu0 0.0
  %8069 = vmatpush1.msra.mxu0 0.0
  %8070 = vmatprep.subr.mxu0 0.0
  %8071 = vmatpush1.msra.mxu0 0.0
  %8072 = vmatprep.subr.mxu0 0.0
  %8073 = vmatpush1.msra.mxu0 0.0
  %8074 = vmatprep.subr.mxu0 0.0
  %8075 = vmatpush1.msra.mxu0 0.0
  %8076 = vmatprep.subr.mxu0 0.0
  %8077 = vmatpush1.msra.mxu0 0.0
  %8078 = vmatprep.subr.mxu0 0.0
  %8079 = vmatpush1.msra.mxu0 0.0
  %8080 = vmatprep.subr.mxu0 0.0
  %8081 = vmatpush1.msra.mxu0 0.0
  %8082 = vmatprep.mubr.f32.mxu0 0.0
  %v8083 = vand.u32 %v7713, 4294901760
  %8084 = vmatmul.mubr.f32.gmra.mrb[0].mxu0 %v8083
  %v8085 = vpop.f32.mrb[0].mxu0
  %v8086 = vadd.f32 %v8012, %v8085
  %v8087 = vpop.f32.mrb[0].mxu0
  %8088 = vdwg.mxu0
  %8089 = vmatprep.subr.mxu0 0.0
  %v8090 = vand.u32 %v2434, 4294901760
  %8091 = vmatpush1.msra.mxu0 %v8090
  %8092 = vmatprep.subr.mxu0 0.0
  %8093 = vmatpush1.msra.mxu0 0.0
  %8094 = vmatprep.subr.mxu0 0.0
  %8095 = vmatpush1.msra.mxu0 0.0
  %8096 = vmatprep.subr.mxu0 0.0
  %8097 = vmatpush1.msra.mxu0 0.0
  %8098 = vmatprep.subr.mxu0 0.0
  %8099 = vmatpush1.msra.mxu0 0.0
  %8100 = vmatprep.subr.mxu0 0.0
  %8101 = vmatpush1.msra.mxu0 0.0
  %8102 = vmatprep.subr.mxu0 0.0
  %8103 = vmatpush1.msra.mxu0 0.0
  %8104 = vmatprep.subr.mxu0 0.0
  %8105 = vmatpush1.msra.mxu0 0.0
  %8106 = vmatprep.subr.mxu0 0.0
  %8107 = vmatpush1.msra.mxu0 0.0
  %8108 = vmatprep.subr.mxu0 0.0
  %8109 = vmatpush1.msra.mxu0 0.0
  %8110 = vmatprep.subr.mxu0 0.0
  %8111 = vmatpush1.msra.mxu0 0.0
  %8112 = vmatprep.subr.mxu0 0.0
  %8113 = vmatpush1.msra.mxu0 0.0
  %8114 = vmatprep.subr.mxu0 0.0
  %8115 = vmatpush1.msra.mxu0 0.0
  %8116 = vmatprep.subr.mxu0 0.0
  %8117 = vmatpush1.msra.mxu0 0.0
  %8118 = vmatprep.subr.mxu0 0.0
  %8119 = vmatpush1.msra.mxu0 0.0
  %8120 = vmatprep.subr.mxu0 0.0
  %8121 = vmatpush1.msra.mxu0 0.0
  %8122 = vmatprep.subr.mxu0 0.0
  %8123 = vmatpush1.msra.mxu0 0.0
  %8124 = vmatprep.subr.mxu0 0.0
  %8125 = vmatpush1.msra.mxu0 0.0
  %8126 = vmatprep.subr.mxu0 0.0
  %8127 = vmatpush1.msra.mxu0 0.0
  %8128 = vmatprep.subr.mxu0 0.0
  %8129 = vmatpush1.msra.mxu0 0.0
  %8130 = vmatprep.subr.mxu0 0.0
  %8131 = vmatpush1.msra.mxu0 0.0
  %8132 = vmatprep.subr.mxu0 0.0
  %8133 = vmatpush1.msra.mxu0 0.0
  %8134 = vmatprep.subr.mxu0 0.0
  %8135 = vmatpush1.msra.mxu0 0.0
  %8136 = vmatprep.subr.mxu0 0.0
  %8137 = vmatpush1.msra.mxu0 0.0
  %8138 = vmatprep.subr.mxu0 0.0
  %8139 = vmatpush1.msra.mxu0 0.0
  %8140 = vmatprep.subr.mxu0 0.0
  %8141 = vmatpush1.msra.mxu0 0.0
  %8142 = vmatprep.subr.mxu0 0.0
  %8143 = vmatpush1.msra.mxu0 0.0
  %8144 = vmatprep.subr.mxu0 0.0
  %8145 = vmatpush1.msra.mxu0 0.0
  %8146 = vmatprep.subr.mxu0 0.0
  %8147 = vmatpush1.msra.mxu0 0.0
  %8148 = vmatprep.subr.mxu0 0.0
  %8149 = vmatpush1.msra.mxu0 0.0
  %8150 = vmatprep.subr.mxu0 0.0
  %8151 = vmatpush1.msra.mxu0 0.0
  %8152 = vmatprep.subr.mxu0 0.0
  %8153 = vmatpush1.msra.mxu0 0.0
  %8154 = vmatprep.mubr.f32.mxu0 0.0
  %v8155 = vand.u32 %v7713, 4294901760
  %8156 = vmatmul.mubr.f32.gmra.mrb[0].mxu0 %v8155
  %v8157 = vpop.f32.mrb[0].mxu0
  %v8158 = vadd.f32 %v8086, %v8157
  %v8159 = vpop.f32.mrb[0].mxu0
  %8160 = vdwg.mxu0
  %v8161 = vmax.f32 %v8158, 0.0
  %v8163 = vsel %vm4861, %v8161, 0
  %8165 = vmatprep.subr.mxu0 0.0
  %v8166 = vand.u32 %v4866, 4294901760
  %8167 = vmatpush1.msra.mxu0 %v8166
  %8168 = vmatprep.subr.mxu0 0.0
  %8169 = vmatpush1.msra.mxu0 0.0
  %8170 = vmatprep.subr.mxu0 0.0
  %8171 = vmatpush1.msra.mxu0 0.0
  %8172 = vmatprep.subr.mxu0 0.0
  %8173 = vmatpush1.msra.mxu0 0.0
  %8174 = vmatprep.subr.mxu0 0.0
  %8175 = vmatpush1.msra.mxu0 0.0
  %8176 = vmatprep.subr.mxu0 0.0
  %8177 = vmatpush1.msra.mxu0 0.0
  %8178 = vmatprep.subr.mxu0 0.0
  %8179 = vmatpush1.msra.mxu0 0.0
  %8180 = vmatprep.subr.mxu0 0.0
  %8181 = vmatpush1.msra.mxu0 0.0
  %8182 = vmatprep.subr.mxu0 0.0
  %8183 = vmatpush1.msra.mxu0 0.0
  %8184 = vmatprep.subr.mxu0 0.0
  %8185 = vmatpush1.msra.mxu0 0.0
  %8186 = vmatprep.subr.mxu0 0.0
  %8187 = vmatpush1.msra.mxu0 0.0
  %8188 = vmatprep.subr.mxu0 0.0
  %8189 = vmatpush1.msra.mxu0 0.0
  %8190 = vmatprep.subr.mxu0 0.0
  %8191 = vmatpush1.msra.mxu0 0.0
  %8192 = vmatprep.subr.mxu0 0.0
  %8193 = vmatpush1.msra.mxu0 0.0
  %8194 = vmatprep.subr.mxu0 0.0
  %8195 = vmatpush1.msra.mxu0 0.0
  %8196 = vmatprep.subr.mxu0 0.0
  %8197 = vmatpush1.msra.mxu0 0.0
  %8198 = vmatprep.subr.mxu0 0.0
  %8199 = vmatpush1.msra.mxu0 0.0
  %8200 = vmatprep.subr.mxu0 0.0
  %8201 = vmatpush1.msra.mxu0 0.0
  %8202 = vmatprep.subr.mxu0 0.0
  %8203 = vmatpush1.msra.mxu0 0.0
  %8204 = vmatprep.subr.mxu0 0.0
  %8205 = vmatpush1.msra.mxu0 0.0
  %8206 = vmatprep.subr.mxu0 0.0
  %8207 = vmatpush1.msra.mxu0 0.0
  %8208 = vmatprep.subr.mxu0 0.0
  %8209 = vmatpush1.msra.mxu0 0.0
  %8210 = vmatprep.subr.mxu0 0.0
  %8211 = vmatpush1.msra.mxu0 0.0
  %8212 = vmatprep.subr.mxu0 0.0
  %8213 = vmatpush1.msra.mxu0 0.0
  %8214 = vmatprep.subr.mxu0 0.0
  %8215 = vmatpush1.msra.mxu0 0.0
  %8216 = vmatprep.subr.mxu0 0.0
  %8217 = vmatpush1.msra.mxu0 0.0
  %8218 = vmatprep.subr.mxu0 0.0
  %8219 = vmatpush1.msra.mxu0 0.0
  %8220 = vmatprep.subr.mxu0 0.0
  %8221 = vmatpush1.msra.mxu0 0.0
  %8222 = vmatprep.subr.mxu0 0.0
  %8223 = vmatpush1.msra.mxu0 0.0
  %8224 = vmatprep.subr.mxu0 0.0
  %8225 = vmatpush1.msra.mxu0 0.0
  %8226 = vmatprep.subr.mxu0 0.0
  %8227 = vmatpush1.msra.mxu0 0.0
  %8228 = vmatprep.subr.mxu0 0.0
  %8229 = vmatpush1.msra.mxu0 0.0
  %8230 = vmatprep.mubr.f32.mxu0 0.0
  %v8231 = vand.u32 %v8163, 4294901760
  %v8232 = vsub.f32 %v8163, %v8231
  %v8233 = vand.u32 %v8232, 4294901760
  %v8234 = vsub.f32 %v8232, %v8233
  %v8235 = vand.u32 %v8234, 4294901760
  %8236 = vmatmul.mubr.f32.gmra.mrb[0].mxu0 %v8235
  %v8237 = vpop.f32.mrb[0].mxu0
  %v8238 = vadd.f32 %v4860, %v8237
  %v8239 = vpop.f32.mrb[0].mxu0
  %8240 = vdwg.mxu0
  %8241 = vmatprep.subr.mxu0 0.0
  %v8242 = vand.u32 %v4866, 4294901760
  %v8243 = vsub.f32 %v4866, %v8242
  %v8244 = vand.u32 %v8243, 4294901760
  %v8245 = vsub.f32 %v8243, %v8244
  %v8246 = vand.u32 %v8245, 4294901760
  %8247 = vmatpush1.msra.mxu0 %v8246
  %8248 = vmatprep.subr.mxu0 0.0
  %8249 = vmatpush1.msra.mxu0 0.0
  %8250 = vmatprep.subr.mxu0 0.0
  %8251 = vmatpush1.msra.mxu0 0.0
  %8252 = vmatprep.subr.mxu0 0.0
  %8253 = vmatpush1.msra.mxu0 0.0
  %8254 = vmatprep.subr.mxu0 0.0
  %8255 = vmatpush1.msra.mxu0 0.0
  %8256 = vmatprep.subr.mxu0 0.0
  %8257 = vmatpush1.msra.mxu0 0.0
  %8258 = vmatprep.subr.mxu0 0.0
  %8259 = vmatpush1.msra.mxu0 0.0
  %8260 = vmatprep.subr.mxu0 0.0
  %8261 = vmatpush1.msra.mxu0 0.0
  %8262 = vmatprep.subr.mxu0 0.0
  %8263 = vmatpush1.msra.mxu0 0.0
  %8264 = vmatprep.subr.mxu0 0.0
  %8265 = vmatpush1.msra.mxu0 0.0
  %8266 = vmatprep.subr.mxu0 0.0
  %8267 = vmatpush1.msra.mxu0 0.0
  %8268 = vmatprep.subr.mxu0 0.0
  %8269 = vmatpush1.msra.mxu0 0.0
  %8270 = vmatprep.subr.mxu0 0.0
  %8271 = vmatpush1.msra.mxu0 0.0
  %8272 = vmatprep.subr.mxu0 0.0
  %8273 = vmatpush1.msra.mxu0 0.0
  %8274 = vmatprep.subr.mxu0 0.0
  %8275 = vmatpush1.msra.mxu0 0.0
  %8276 = vmatprep.subr.mxu0 0.0
  %8277 = vmatpush1.msra.mxu0 0.0
  %8278 = vmatprep.subr.mxu0 0.0
  %8279 = vmatpush1.msra.mxu0 0.0
  %8280 = vmatprep.subr.mxu0 0.0
  %8281 = vmatpush1.msra.mxu0 0.0
  %8282 = vmatprep.subr.mxu0 0.0
  %8283 = vmatpush1.msra.mxu0 0.0
  %8284 = vmatprep.subr.mxu0 0.0
  %8285 = vmatpush1.msra.mxu0 0.0
  %8286 = vmatprep.subr.mxu0 0.0
  %8287 = vmatpush1.msra.mxu0 0.0
  %8288 = vmatprep.subr.mxu0 0.0
  %8289 = vmatpush1.msra.mxu0 0.0
  %8290 = vmatprep.subr.mxu0 0.0
  %8291 = vmatpush1.msra.mxu0 0.0
  %8292 = vmatprep.subr.mxu0 0.0
  %8293 = vmatpush1.msra.mxu0 0.0
  %8294 = vmatprep.subr.mxu0 0.0
  %8295 = vmatpush1.msra.mxu0 0.0
  %8296 = vmatprep.subr.mxu0 0.0
  %8297 = vmatpush1.msra.mxu0 0.0
  %8298 = vmatprep.subr.mxu0 0.0
  %8299 = vmatpush1.msra.mxu0 0.0
  %8300 = vmatprep.subr.mxu0 0.0
  %8301 = vmatpush1.msra.mxu0 0.0
  %8302 = vmatprep.subr.mxu0 0.0
  %8303 = vmatpush1.msra.mxu0 0.0
  %8304 = vmatprep.subr.mxu0 0.0
  %8305 = vmatpush1.msra.mxu0 0.0
  %8306 = vmatprep.subr.mxu0 0.0
  %8307 = vmatpush1.msra.mxu0 0.0
  %8308 = vmatprep.subr.mxu0 0.0
  %8309 = vmatpush1.msra.mxu0 0.0
  %8310 = vmatprep.mubr.f32.mxu0 0.0
  %v8311 = vand.u32 %v8163, 4294901760
  %8312 = vmatmul.mubr.f32.gmra.mrb[0].mxu0 %v8311
  %v8313 = vpop.f32.mrb[0].mxu0
  %v8314 = vadd.f32 %v8238, %v8313
  %v8315 = vpop.f32.mrb[0].mxu0
  %8316 = vdwg.mxu0
  %8317 = vmatprep.subr.mxu0 0.0
  %v8318 = vand.u32 %v4866, 4294901760
  %v8319 = vsub.f32 %v4866, %v8318
  %8320 = vmatpush1.msra.mxu0 %v8319
  %8321 = vmatprep.subr.mxu0 0.0
  %8322 = vmatpush1.msra.mxu0 0.0
  %8323 = vmatprep.subr.mxu0 0.0
  %8324 = vmatpush1.msra.mxu0 0.0
  %8325 = vmatprep.subr.mxu0 0.0
  %8326 = vmatpush1.msra.mxu0 0.0
  %8327 = vmatprep.subr.mxu0 0.0
  %8328 = vmatpush1.msra.mxu0 0.0
  %8329 = vmatprep.subr.mxu0 0.0
  %8330 = vmatpush1.msra.mxu0 0.0
  %8331 = vmatprep.subr.mxu0 0.0
  %8332 = vmatpush1.msra.mxu0 0.0
  %8333 = vmatprep.subr.mxu0 0.0
  %8334 = vmatpush1.msra.mxu0 0.0
  %8335 = vmatprep.subr.mxu0 0.0
  %8336 = vmatpush1.msra.mxu0 0.0
  %8337 = vmatprep.subr.mxu0 0.0
  %8338 = vmatpush1.msra.mxu0 0.0
  %8339 = vmatprep.subr.mxu0 0.0
  %8340 = vmatpush1.msra.mxu0 0.0
  %8341 = vmatprep.subr.mxu0 0.0
  %8342 = vmatpush1.msra.mxu0 0.0
  %8343 = vmatprep.subr.mxu0 0.0
  %8344 = vmatpush1.msra.mxu0 0.0
  %8345 = vmatprep.subr.mxu0 0.0
  %8346 = vmatpush1.msra.mxu0 0.0
  %8347 = vmatprep.subr.mxu0 0.0
  %8348 = vmatpush1.msra.mxu0 0.0
  %8349 = vmatprep.subr.mxu0 0.0
  %8350 = vmatpush1.msra.mxu0 0.0
  %8351 = vmatprep.subr.mxu0 0.0
  %8352 = vmatpush1.msra.mxu0 0.0
  %8353 = vmatprep.subr.mxu0 0.0
  %8354 = vmatpush1.msra.mxu0 0.0
  %8355 = vmatprep.subr.mxu0 0.0
  %8356 = vmatpush1.msra.mxu0 0.0
  %8357 = vmatprep.subr.mxu0 0.0
  %8358 = vmatpush1.msra.mxu0 0.0
  %8359 = vmatprep.subr.mxu0 0.0
  %8360 = vmatpush1.msra.mxu0 0.0
  %8361 = vmatprep.subr.mxu0 0.0
  %8362 = vmatpush1.msra.mxu0 0.0
  %8363 = vmatprep.subr.mxu0 0.0
  %8364 = vmatpush1.msra.mxu0 0.0
  %8365 = vmatprep.subr.mxu0 0.0
  %8366 = vmatpush1.msra.mxu0 0.0
  %8367 = vmatprep.subr.mxu0 0.0
  %8368 = vmatpush1.msra.mxu0 0.0
  %8369 = vmatprep.subr.mxu0 0.0
  %8370 = vmatpush1.msra.mxu0 0.0
  %8371 = vmatprep.subr.mxu0 0.0
  %8372 = vmatpush1.msra.mxu0 0.0
  %8373 = vmatprep.subr.mxu0 0.0
  %8374 = vmatpush1.msra.mxu0 0.0
  %8375 = vmatprep.subr.mxu0 0.0
  %8376 = vmatpush1.msra.mxu0 0.0
  %8377 = vmatprep.subr.mxu0 0.0
  %8378 = vmatpush1.msra.mxu0 0.0
  %8379 = vmatprep.subr.mxu0 0.0
  %8380 = vmatpush1.msra.mxu0 0.0
  %8381 = vmatprep.subr.mxu0 0.0
  %8382 = vmatpush1.msra.mxu0 0.0
  %8383 = vmatprep.mubr.f32.mxu0 0.0
  %v8384 = vand.u32 %v8163, 4294901760
  %v8385 = vsub.f32 %v8163, %v8384
  %8386 = vmatmul.mubr.f32.gmra.mrb[0].mxu0 %v8385
  %v8387 = vpop.f32.mrb[0].mxu0
  %v8388 = vadd.f32 %v8314, %v8387
  %v8389 = vpop.f32.mrb[0].mxu0
  %8390 = vdwg.mxu0
  %8391 = vmatprep.subr.mxu0 0.0
  %v8392 = vand.u32 %v4866, 4294901760
  %8393 = vmatpush1.msra.mxu0 %v8392
  %8394 = vmatprep.subr.mxu0 0.0
  %8395 = vmatpush1.msra.mxu0 0.0
  %8396 = vmatprep.subr.mxu0 0.0
  %8397 = vmatpush1.msra.mxu0 0.0
  %8398 = vmatprep.subr.mxu0 0.0
  %8399 = vmatpush1.msra.mxu0 0.0
  %8400 = vmatprep.subr.mxu0 0.0
  %8401 = vmatpush1.msra.mxu0 0.0
  %8402 = vmatprep.subr.mxu0 0.0
  %8403 = vmatpush1.msra.mxu0 0.0
  %8404 = vmatprep.subr.mxu0 0.0
  %8405 = vmatpush1.msra.mxu0 0.0
  %8406 = vmatprep.subr.mxu0 0.0
  %8407 = vmatpush1.msra.mxu0 0.0
  %8408 = vmatprep.subr.mxu0 0.0
  %8409 = vmatpush1.msra.mxu0 0.0
  %8410 = vmatprep.subr.mxu0 0.0
  %8411 = vmatpush1.msra.mxu0 0.0
  %8412 = vmatprep.subr.mxu0 0.0
  %8413 = vmatpush1.msra.mxu0 0.0
  %8414 = vmatprep.subr.mxu0 0.0
  %8415 = vmatpush1.msra.mxu0 0.0
  %8416 = vmatprep.subr.mxu0 0.0
  %8417 = vmatpush1.msra.mxu0 0.0
  %8418 = vmatprep.subr.mxu0 0.0
  %8419 = vmatpush1.msra.mxu0 0.0
  %8420 = vmatprep.subr.mxu0 0.0
  %8421 = vmatpush1.msra.mxu0 0.0
  %8422 = vmatprep.subr.mxu0 0.0
  %8423 = vmatpush1.msra.mxu0 0.0
  %8424 = vmatprep.subr.mxu0 0.0
  %8425 = vmatpush1.msra.mxu0 0.0
  %8426 = vmatprep.subr.mxu0 0.0
  %8427 = vmatpush1.msra.mxu0 0.0
  %8428 = vmatprep.subr.mxu0 0.0
  %8429 = vmatpush1.msra.mxu0 0.0
  %8430 = vmatprep.subr.mxu0 0.0
  %8431 = vmatpush1.msra.mxu0 0.0
  %8432 = vmatprep.subr.mxu0 0.0
  %8433 = vmatpush1.msra.mxu0 0.0
  %8434 = vmatprep.subr.mxu0 0.0
  %8435 = vmatpush1.msra.mxu0 0.0
  %8436 = vmatprep.subr.mxu0 0.0
  %8437 = vmatpush1.msra.mxu0 0.0
  %8438 = vmatprep.subr.mxu0 0.0
  %8439 = vmatpush1.msra.mxu0 0.0
  %8440 = vmatprep.subr.mxu0 0.0
  %8441 = vmatpush1.msra.mxu0 0.0
  %8442 = vmatprep.subr.mxu0 0.0
  %8443 = vmatpush1.msra.mxu0 0.0
  %8444 = vmatprep.subr.mxu0 0.0
  %8445 = vmatpush1.msra.mxu0 0.0
  %8446 = vmatprep.subr.mxu0 0.0
  %8447 = vmatpush1.msra.mxu0 0.0
  %8448 = vmatprep.subr.mxu0 0.0
  %8449 = vmatpush1.msra.mxu0 0.0
  %8450 = vmatprep.subr.mxu0 0.0
  %8451 = vmatpush1.msra.mxu0 0.0
  %8452 = vmatprep.subr.mxu0 0.0
  %8453 = vmatpush1.msra.mxu0 0.0
  %8454 = vmatprep.subr.mxu0 0.0
  %8455 = vmatpush1.msra.mxu0 0.0
  %8456 = vmatprep.mubr.f32.mxu0 0.0
  %v8457 = vand.u32 %v8163, 4294901760
  %v8458 = vsub.f32 %v8163, %v8457
  %v8459 = vand.u32 %v8458, 4294901760
  %8460 = vmatmul.mubr.f32.gmra.mrb[0].mxu0 %v8459
  %v8461 = vpop.f32.mrb[0].mxu0
  %v8462 = vadd.f32 %v8388, %v8461
  %v8463 = vpop.f32.mrb[0].mxu0
  %8464 = vdwg.mxu0
  %8465 = vmatprep.subr.mxu0 0.0
  %v8466 = vand.u32 %v4866, 4294901760
  %v8467 = vsub.f32 %v4866, %v8466
  %v8468 = vand.u32 %v8467, 4294901760
  %8469 = vmatpush1.msra.mxu0 %v8468
  %8470 = vmatprep.subr.mxu0 0.0
  %8471 = vmatpush1.msra.mxu0 0.0
  %8472 = vmatprep.subr.mxu0 0.0
  %8473 = vmatpush1.msra.mxu0 0.0
  %8474 = vmatprep.subr.mxu0 0.0
  %8475 = vmatpush1.msra.mxu0 0.0
  %8476 = vmatprep.subr.mxu0 0.0
  %8477 = vmatpush1.msra.mxu0 0.0
  %8478 = vmatprep.subr.mxu0 0.0
  %8479 = vmatpush1.msra.mxu0 0.0
  %8480 = vmatprep.subr.mxu0 0.0
  %8481 = vmatpush1.msra.mxu0 0.0
  %8482 = vmatprep.subr.mxu0 0.0
  %8483 = vmatpush1.msra.mxu0 0.0
  %8484 = vmatprep.subr.mxu0 0.0
  %8485 = vmatpush1.msra.mxu0 0.0
  %8486 = vmatprep.subr.mxu0 0.0
  %8487 = vmatpush1.msra.mxu0 0.0
  %8488 = vmatprep.subr.mxu0 0.0
  %8489 = vmatpush1.msra.mxu0 0.0
  %8490 = vmatprep.subr.mxu0 0.0
  %8491 = vmatpush1.msra.mxu0 0.0
  %8492 = vmatprep.subr.mxu0 0.0
  %8493 = vmatpush1.msra.mxu0 0.0
  %8494 = vmatprep.subr.mxu0 0.0
  %8495 = vmatpush1.msra.mxu0 0.0
  %8496 = vmatprep.subr.mxu0 0.0
  %8497 = vmatpush1.msra.mxu0 0.0
  %8498 = vmatprep.subr.mxu0 0.0
  %8499 = vmatpush1.msra.mxu0 0.0
  %8500 = vmatprep.subr.mxu0 0.0
  %8501 = vmatpush1.msra.mxu0 0.0
  %8502 = vmatprep.subr.mxu0 0.0
  %8503 = vmatpush1.msra.mxu0 0.0
  %8504 = vmatprep.subr.mxu0 0.0
  %8505 = vmatpush1.msra.mxu0 0.0
  %8506 = vmatprep.subr.mxu0 0.0
  %8507 = vmatpush1.msra.mxu0 0.0
  %8508 = vmatprep.subr.mxu0 0.0
  %8509 = vmatpush1.msra.mxu0 0.0
  %8510 = vmatprep.subr.mxu0 0.0
  %8511 = vmatpush1.msra.mxu0 0.0
  %8512 = vmatprep.subr.mxu0 0.0
  %8513 = vmatpush1.msra.mxu0 0.0
  %8514 = vmatprep.subr.mxu0 0.0
  %8515 = vmatpush1.msra.mxu0 0.0
  %8516 = vmatprep.subr.mxu0 0.0
  %8517 = vmatpush1.msra.mxu0 0.0
  %8518 = vmatprep.subr.mxu0 0.0
  %8519 = vmatpush1.msra.mxu0 0.0
  %8520 = vmatprep.subr.mxu0 0.0
  %8521 = vmatpush1.msra.mxu0 0.0
  %8522 = vmatprep.subr.mxu0 0.0
  %8523 = vmatpush1.msra.mxu0 0.0
  %8524 = vmatprep.subr.mxu0 0.0
  %8525 = vmatpush1.msra.mxu0 0.0
  %8526 = vmatprep.subr.mxu0 0.0
  %8527 = vmatpush1.msra.mxu0 0.0
  %8528 = vmatprep.subr.mxu0 0.0
  %8529 = vmatpush1.msra.mxu0 0.0
  %8530 = vmatprep.subr.mxu0 0.0
  %8531 = vmatpush1.msra.mxu0 0.0
  %8532 = vmatprep.mubr.f32.mxu0 0.0
  %v8533 = vand.u32 %v8163, 4294901760
  %8534 = vmatmul.mubr.f32.gmra.mrb[0].mxu0 %v8533
  %v8535 = vpop.f32.mrb[0].mxu0
  %v8536 = vadd.f32 %v8462, %v8535
  %v8537 = vpop.f32.mrb[0].mxu0
  %8538 = vdwg.mxu0
  %8539 = vmatprep.subr.mxu0 0.0
  %v8540 = vand.u32 %v4866, 4294901760
  %8541 = vmatpush1.msra.mxu0 %v8540
  %8542 = vmatprep.subr.mxu0 0.0
  %8543 = vmatpush1.msra.mxu0 0.0
  %8544 = vmatprep.subr.mxu0 0.0
  %8545 = vmatpush1.msra.mxu0 0.0
  %8546 = vmatprep.subr.mxu0 0.0
  %8547 = vmatpush1.msra.mxu0 0.0
  %8548 = vmatprep.subr.mxu0 0.0
  %8549 = vmatpush1.msra.mxu0 0.0
  %8550 = vmatprep.subr.mxu0 0.0
  %8551 = vmatpush1.msra.mxu0 0.0
  %8552 = vmatprep.subr.mxu0 0.0
  %8553 = vmatpush1.msra.mxu0 0.0
  %8554 = vmatprep.subr.mxu0 0.0
  %8555 = vmatpush1.msra.mxu0 0.0
  %8556 = vmatprep.subr.mxu0 0.0
  %8557 = vmatpush1.msra.mxu0 0.0
  %8558 = vmatprep.subr.mxu0 0.0
  %8559 = vmatpush1.msra.mxu0 0.0
  %8560 = vmatprep.subr.mxu0 0.0
  %8561 = vmatpush1.msra.mxu0 0.0
  %8562 = vmatprep.subr.mxu0 0.0
  %8563 = vmatpush1.msra.mxu0 0.0
  %8564 = vmatprep.subr.mxu0 0.0
  %8565 = vmatpush1.msra.mxu0 0.0
  %8566 = vmatprep.subr.mxu0 0.0
  %8567 = vmatpush1.msra.mxu0 0.0
  %8568 = vmatprep.subr.mxu0 0.0
  %8569 = vmatpush1.msra.mxu0 0.0
  %8570 = vmatprep.subr.mxu0 0.0
  %8571 = vmatpush1.msra.mxu0 0.0
  %8572 = vmatprep.subr.mxu0 0.0
  %8573 = vmatpush1.msra.mxu0 0.0
  %8574 = vmatprep.subr.mxu0 0.0
  %8575 = vmatpush1.msra.mxu0 0.0
  %8576 = vmatprep.subr.mxu0 0.0
  %8577 = vmatpush1.msra.mxu0 0.0
  %8578 = vmatprep.subr.mxu0 0.0
  %8579 = vmatpush1.msra.mxu0 0.0
  %8580 = vmatprep.subr.mxu0 0.0
  %8581 = vmatpush1.msra.mxu0 0.0
  %8582 = vmatprep.subr.mxu0 0.0
  %8583 = vmatpush1.msra.mxu0 0.0
  %8584 = vmatprep.subr.mxu0 0.0
  %8585 = vmatpush1.msra.mxu0 0.0
  %8586 = vmatprep.subr.mxu0 0.0
  %8587 = vmatpush1.msra.mxu0 0.0
  %8588 = vmatprep.subr.mxu0 0.0
  %8589 = vmatpush1.msra.mxu0 0.0
  %8590 = vmatprep.subr.mxu0 0.0
  %8591 = vmatpush1.msra.mxu0 0.0
  %8592 = vmatprep.subr.mxu0 0.0
  %8593 = vmatpush1.msra.mxu0 0.0
  %8594 = vmatprep.subr.mxu0 0.0
  %8595 = vmatpush1.msra.mxu0 0.0
  %8596 = vmatprep.subr.mxu0 0.0
  %8597 = vmatpush1.msra.mxu0 0.0
  %8598 = vmatprep.subr.mxu0 0.0
  %8599 = vmatpush1.msra.mxu0 0.0
  %8600 = vmatprep.subr.mxu0 0.0
  %8601 = vmatpush1.msra.mxu0 0.0
  %8602 = vmatprep.subr.mxu0 0.0
  %8603 = vmatpush1.msra.mxu0 0.0
  %8604 = vmatprep.mubr.f32.mxu0 0.0
  %v8605 = vand.u32 %v8163, 4294901760
  %8606 = vmatmul.mubr.f32.gmra.mrb[0].mxu0 %v8605
  %v8607 = vpop.f32.mrb[0].mxu0
  %v8608 = vadd.f32 %v8536, %v8607
  %v8609 = vpop.f32.mrb[0].mxu0
  %8610 = vdwg.mxu0
  %v8611 = vxor.u32 %v8608, 2147483648
  %v8612 = vmul.f32 %v8611, 1.442695
  %v8613 = vpow.pop %v8612
  %v8614 = vadd.f32 %v8613, 1.0
  %v8615 = vrcp.pop %v8614
  %v8616 = vmul.f32 1.0, %v8615
  %v8618 = vsel %vm4406, %v8616, 0
  %8620 = vmatprep.subr.mxu0 0.0
  %v8621 = vand.u32 %v6292, 4294901760
  %8622 = vmatpush1.msra.mxu0 %v8621
  %8623 = vmatprep.subr.mxu0 0.0
  %8624 = vmatpush1.msra.mxu0 0.0
  %8625 = vmatprep.subr.mxu0 0.0
  %8626 = vmatpush1.msra.mxu0 0.0
  %8627 = vmatprep.subr.mxu0 0.0
  %8628 = vmatpush1.msra.mxu0 0.0
  %8629 = vmatprep.subr.mxu0 0.0
  %8630 = vmatpush1.msra.mxu0 0.0
  %8631 = vmatprep.subr.mxu0 0.0
  %8632 = vmatpush1.msra.mxu0 0.0
  %8633 = vmatprep.subr.mxu0 0.0
  %8634 = vmatpush1.msra.mxu0 0.0
  %8635 = vmatprep.subr.mxu0 0.0
  %8636 = vmatpush1.msra.mxu0 0.0
  %8637 = vmatprep.subr.mxu0 0.0
  %8638 = vmatpush1.msra.mxu0 0.0
  %8639 = vmatprep.subr.mxu0 0.0
  %8640 = vmatpush1.msra.mxu0 0.0
  %8641 = vmatprep.subr.mxu0 0.0
  %8642 = vmatpush1.msra.mxu0 0.0
  %8643 = vmatprep.subr.mxu0 0.0
  %8644 = vmatpush1.msra.mxu0 0.0
  %8645 = vmatprep.subr.mxu0 0.0
  %8646 = vmatpush1.msra.mxu0 0.0
  %8647 = vmatprep.subr.mxu0 0.0
  %8648 = vmatpush1.msra.mxu0 0.0
  %8649 = vmatprep.subr.mxu0 0.0
  %8650 = vmatpush1.msra.mxu0 0.0
  %8651 = vmatprep.subr.mxu0 0.0
  %8652 = vmatpush1.msra.mxu0 0.0
  %8653 = vmatprep.subr.mxu0 0.0
  %8654 = vmatpush1.msra.mxu0 0.0
  %8655 = vmatprep.subr.mxu0 0.0
  %8656 = vmatpush1.msra.mxu0 0.0
  %8657 = vmatprep.subr.mxu0 0.0
  %8658 = vmatpush1.msra.mxu0 0.0
  %8659 = vmatprep.subr.mxu0 0.0
  %8660 = vmatpush1.msra.mxu0 0.0
  %8661 = vmatprep.subr.mxu0 0.0
  %8662 = vmatpush1.msra.mxu0 0.0
  %8663 = vmatprep.subr.mxu0 0.0
  %8664 = vmatpush1.msra.mxu0 0.0
  %8665 = vmatprep.subr.mxu0 0.0
  %8666 = vmatpush1.msra.mxu0 0.0
  %8667 = vmatprep.subr.mxu0 0.0
  %8668 = vmatpush1.msra.mxu0 0.0
  %8669 = vmatprep.subr.mxu0 0.0
  %8670 = vmatpush1.msra.mxu0 0.0
  %8671 = vmatprep.subr.mxu0 0.0
  %8672 = vmatpush1.msra.mxu0 0.0
  %8673 = vmatprep.subr.mxu0 0.0
  %8674 = vmatpush1.msra.mxu0 0.0
  %8675 = vmatprep.subr.mxu0 0.0
  %8676 = vmatpush1.msra.mxu0 0.0
  %8677 = vmatprep.subr.mxu0 0.0
  %8678 = vmatpush1.msra.mxu0 0.0
  %8679 = vmatprep.subr.mxu0 0.0
  %8680 = vmatpush1.msra.mxu0 0.0
  %8681 = vmatprep.subr.mxu0 0.0
  %8682 = vmatpush1.msra.mxu0 0.0
  %8683 = vmatprep.subr.mxu0 0.0
  %8684 = vmatpush1.msra.mxu0 0.0
  %8685 = vmatprep.mubr.f32.mxu0 0.0
  %v8686 = vand.u32 %v8618, 4294901760
  %v8687 = vsub.f32 %v8618, %v8686
  %v8688 = vand.u32 %v8687, 4294901760
  %v8689 = vsub.f32 %v8687, %v8688
  %v8690 = vand.u32 %v8689, 4294901760
  %8691 = vmatmul.mubr.f32.gmra.mrb[0].mxu0 %v8690
  %v8692 = vpop.f32.mrb[0].mxu0
  %v8693 = vadd.f32 0.0, %v8692
  %v8694 = vpop.f32.mrb[0].mxu0
  %8695 = vdwg.mxu0
  %8696 = vmatprep.subr.mxu0 0.0
  %v8697 = vand.u32 %v6292, 4294901760
  %v8698 = vsub.f32 %v6292, %v8697
  %v8699 = vand.u32 %v8698, 4294901760
  %v8700 = vsub.f32 %v8698, %v8699
  %v8701 = vand.u32 %v8700, 4294901760
  %8702 = vmatpush1.msra.mxu0 %v8701
  %8703 = vmatprep.subr.mxu0 0.0
  %8704 = vmatpush1.msra.mxu0 0.0
  %8705 = vmatprep.subr.mxu0 0.0
  %8706 = vmatpush1.msra.mxu0 0.0
  %8707 = vmatprep.subr.mxu0 0.0
  %8708 = vmatpush1.msra.mxu0 0.0
  %8709 = vmatprep.subr.mxu0 0.0
  %8710 = vmatpush1.msra.mxu0 0.0
  %8711 = vmatprep.subr.mxu0 0.0
  %8712 = vmatpush1.msra.mxu0 0.0
  %8713 = vmatprep.subr.mxu0 0.0
  %8714 = vmatpush1.msra.mxu0 0.0
  %8715 = vmatprep.subr.mxu0 0.0
  %8716 = vmatpush1.msra.mxu0 0.0
  %8717 = vmatprep.subr.mxu0 0.0
  %8718 = vmatpush1.msra.mxu0 0.0
  %8719 = vmatprep.subr.mxu0 0.0
  %8720 = vmatpush1.msra.mxu0 0.0
  %8721 = vmatprep.subr.mxu0 0.0
  %8722 = vmatpush1.msra.mxu0 0.0
  %8723 = vmatprep.subr.mxu0 0.0
  %8724 = vmatpush1.msra.mxu0 0.0
  %8725 = vmatprep.subr.mxu0 0.0
  %8726 = vmatpush1.msra.mxu0 0.0
  %8727 = vmatprep.subr.mxu0 0.0
  %8728 = vmatpush1.msra.mxu0 0.0
  %8729 = vmatprep.subr.mxu0 0.0
  %8730 = vmatpush1.msra.mxu0 0.0
  %8731 = vmatprep.subr.mxu0 0.0
  %8732 = vmatpush1.msra.mxu0 0.0
  %8733 = vmatprep.subr.mxu0 0.0
  %8734 = vmatpush1.msra.mxu0 0.0
  %8735 = vmatprep.subr.mxu0 0.0
  %8736 = vmatpush1.msra.mxu0 0.0
  %8737 = vmatprep.subr.mxu0 0.0
  %8738 = vmatpush1.msra.mxu0 0.0
  %8739 = vmatprep.subr.mxu0 0.0
  %8740 = vmatpush1.msra.mxu0 0.0
  %8741 = vmatprep.subr.mxu0 0.0
  %8742 = vmatpush1.msra.mxu0 0.0
  %8743 = vmatprep.subr.mxu0 0.0
  %8744 = vmatpush1.msra.mxu0 0.0
  %8745 = vmatprep.subr.mxu0 0.0
  %8746 = vmatpush1.msra.mxu0 0.0
  %8747 = vmatprep.subr.mxu0 0.0
  %8748 = vmatpush1.msra.mxu0 0.0
  %8749 = vmatprep.subr.mxu0 0.0
  %8750 = vmatpush1.msra.mxu0 0.0
  %8751 = vmatprep.subr.mxu0 0.0
  %8752 = vmatpush1.msra.mxu0 0.0
  %8753 = vmatprep.subr.mxu0 0.0
  %8754 = vmatpush1.msra.mxu0 0.0
  %8755 = vmatprep.subr.mxu0 0.0
  %8756 = vmatpush1.msra.mxu0 0.0
  %8757 = vmatprep.subr.mxu0 0.0
  %8758 = vmatpush1.msra.mxu0 0.0
  %8759 = vmatprep.subr.mxu0 0.0
  %8760 = vmatpush1.msra.mxu0 0.0
  %8761 = vmatprep.subr.mxu0 0.0
  %8762 = vmatpush1.msra.mxu0 0.0
  %8763 = vmatprep.subr.mxu0 0.0
  %8764 = vmatpush1.msra.mxu0 0.0
  %8765 = vmatprep.mubr.f32.mxu0 0.0
  %v8766 = vand.u32 %v8618, 4294901760
  %8767 = vmatmul.mubr.f32.gmra.mrb[0].mxu0 %v8766
  %v8768 = vpop.f32.mrb[0].mxu0
  %v8769 = vadd.f32 %v8693, %v8768
  %v8770 = vpop.f32.mrb[0].mxu0
  %8771 = vdwg.mxu0
  %8772 = vmatprep.subr.mxu0 0.0
  %v8773 = vand.u32 %v6292, 4294901760
  %v8774 = vsub.f32 %v6292, %v8773
  %8775 = vmatpush1.msra.mxu0 %v8774
  %8776 = vmatprep.subr.mxu0 0.0
  %8777 = vmatpush1.msra.mxu0 0.0
  %8778 = vmatprep.subr.mxu0 0.0
  %8779 = vmatpush1.msra.mxu0 0.0
  %8780 = vmatprep.subr.mxu0 0.0
  %8781 = vmatpush1.msra.mxu0 0.0
  %8782 = vmatprep.subr.mxu0 0.0
  %8783 = vmatpush1.msra.mxu0 0.0
  %8784 = vmatprep.subr.mxu0 0.0
  %8785 = vmatpush1.msra.mxu0 0.0
  %8786 = vmatprep.subr.mxu0 0.0
  %8787 = vmatpush1.msra.mxu0 0.0
  %8788 = vmatprep.subr.mxu0 0.0
  %8789 = vmatpush1.msra.mxu0 0.0
  %8790 = vmatprep.subr.mxu0 0.0
  %8791 = vmatpush1.msra.mxu0 0.0
  %8792 = vmatprep.subr.mxu0 0.0
  %8793 = vmatpush1.msra.mxu0 0.0
  %8794 = vmatprep.subr.mxu0 0.0
  %8795 = vmatpush1.msra.mxu0 0.0
  %8796 = vmatprep.subr.mxu0 0.0
  %8797 = vmatpush1.msra.mxu0 0.0
  %8798 = vmatprep.subr.mxu0 0.0
  %8799 = vmatpush1.msra.mxu0 0.0
  %8800 = vmatprep.subr.mxu0 0.0
  %8801 = vmatpush1.msra.mxu0 0.0
  %8802 = vmatprep.subr.mxu0 0.0
  %8803 = vmatpush1.msra.mxu0 0.0
  %8804 = vmatprep.subr.mxu0 0.0
  %8805 = vmatpush1.msra.mxu0 0.0
  %8806 = vmatprep.subr.mxu0 0.0
  %8807 = vmatpush1.msra.mxu0 0.0
  %8808 = vmatprep.subr.mxu0 0.0
  %8809 = vmatpush1.msra.mxu0 0.0
  %8810 = vmatprep.subr.mxu0 0.0
  %8811 = vmatpush1.msra.mxu0 0.0
  %8812 = vmatprep.subr.mxu0 0.0
  %8813 = vmatpush1.msra.mxu0 0.0
  %8814 = vmatprep.subr.mxu0 0.0
  %8815 = vmatpush1.msra.mxu0 0.0
  %8816 = vmatprep.subr.mxu0 0.0
  %8817 = vmatpush1.msra.mxu0 0.0
  %8818 = vmatprep.subr.mxu0 0.0
  %8819 = vmatpush1.msra.mxu0 0.0
  %8820 = vmatprep.subr.mxu0 0.0
  %8821 = vmatpush1.msra.mxu0 0.0
  %8822 = vmatprep.subr.mxu0 0.0
  %8823 = vmatpush1.msra.mxu0 0.0
  %8824 = vmatprep.subr.mxu0 0.0
  %8825 = vmatpush1.msra.mxu0 0.0
  %8826 = vmatprep.subr.mxu0 0.0
  %8827 = vmatpush1.msra.mxu0 0.0
  %8828 = vmatprep.subr.mxu0 0.0
  %8829 = vmatpush1.msra.mxu0 0.0
  %8830 = vmatprep.subr.mxu0 0.0
  %8831 = vmatpush1.msra.mxu0 0.0
  %8832 = vmatprep.subr.mxu0 0.0
  %8833 = vmatpush1.msra.mxu0 0.0
  %8834 = vmatprep.subr.mxu0 0.0
  %8835 = vmatpush1.msra.mxu0 0.0
  %8836 = vmatprep.subr.mxu0 0.0
  %8837 = vmatpush1.msra.mxu0 0.0
  %8838 = vmatprep.mubr.f32.mxu0 0.0
  %v8839 = vand.u32 %v8618, 4294901760
  %v8840 = vsub.f32 %v8618, %v8839
  %8841 = vmatmul.mubr.f32.gmra.mrb[0].mxu0 %v8840
  %v8842 = vpop.f32.mrb[0].mxu0
  %v8843 = vadd.f32 %v8769, %v8842
  %v8844 = vpop.f32.mrb[0].mxu0
  %8845 = vdwg.mxu0
  %8846 = vmatprep.subr.mxu0 0.0
  %v8847 = vand.u32 %v6292, 4294901760
  %8848 = vmatpush1.msra.mxu0 %v8847
  %8849 = vmatprep.subr.mxu0 0.0
  %8850 = vmatpush1.msra.mxu0 0.0
  %8851 = vmatprep.subr.mxu0 0.0
  %8852 = vmatpush1.msra.mxu0 0.0
  %8853 = vmatprep.subr.mxu0 0.0
  %8854 = vmatpush1.msra.mxu0 0.0
  %8855 = vmatprep.subr.mxu0 0.0
  %8856 = vmatpush1.msra.mxu0 0.0
  %8857 = vmatprep.subr.mxu0 0.0
  %8858 = vmatpush1.msra.mxu0 0.0
  %8859 = vmatprep.subr.mxu0 0.0
  %8860 = vmatpush1.msra.mxu0 0.0
  %8861 = vmatprep.subr.mxu0 0.0
  %8862 = vmatpush1.msra.mxu0 0.0
  %8863 = vmatprep.subr.mxu0 0.0
  %8864 = vmatpush1.msra.mxu0 0.0
  %8865 = vmatprep.subr.mxu0 0.0
  %8866 = vmatpush1.msra.mxu0 0.0
  %8867 = vmatprep.subr.mxu0 0.0
  %8868 = vmatpush1.msra.mxu0 0.0
  %8869 = vmatprep.subr.mxu0 0.0
  %8870 = vmatpush1.msra.mxu0 0.0
  %8871 = vmatprep.subr.mxu0 0.0
  %8872 = vmatpush1.msra.mxu0 0.0
  %8873 = vmatprep.subr.mxu0 0.0
  %8874 = vmatpush1.msra.mxu0 0.0
  %8875 = vmatprep.subr.mxu0 0.0
  %8876 = vmatpush1.msra.mxu0 0.0
  %8877 = vmatprep.subr.mxu0 0.0
  %8878 = vmatpush1.msra.mxu0 0.0
  %8879 = vmatprep.subr.mxu0 0.0
  %8880 = vmatpush1.msra.mxu0 0.0
  %8881 = vmatprep.subr.mxu0 0.0
  %8882 = vmatpush1.msra.mxu0 0.0
  %8883 = vmatprep.subr.mxu0 0.0
  %8884 = vmatpush1.msra.mxu0 0.0
  %8885 = vmatprep.subr.mxu0 0.0
  %8886 = vmatpush1.msra.mxu0 0.0
  %8887 = vmatprep.subr.mxu0 0.0
  %8888 = vmatpush1.msra.mxu0 0.0
  %8889 = vmatprep.subr.mxu0 0.0
  %8890 = vmatpush1.msra.mxu0 0.0
  %8891 = vmatprep.subr.mxu0 0.0
  %8892 = vmatpush1.msra.mxu0 0.0
  %8893 = vmatprep.subr.mxu0 0.0
  %8894 = vmatpush1.msra.mxu0 0.0
  %8895 = vmatprep.subr.mxu0 0.0
  %8896 = vmatpush1.msra.mxu0 0.0
  %8897 = vmatprep.subr.mxu0 0.0
  %8898 = vmatpush1.msra.mxu0 0.0
  %8899 = vmatprep.subr.mxu0 0.0
  %8900 = vmatpush1.msra.mxu0 0.0
  %8901 = vmatprep.subr.mxu0 0.0
  %8902 = vmatpush1.msra.mxu0 0.0
  %8903 = vmatprep.subr.mxu0 0.0
  %8904 = vmatpush1.msra.mxu0 0.0
  %8905 = vmatprep.subr.mxu0 0.0
  %8906 = vmatpush1.msra.mxu0 0.0
  %8907 = vmatprep.subr.mxu0 0.0
  %8908 = vmatpush1.msra.mxu0 0.0
  %8909 = vmatprep.subr.mxu0 0.0
  %8910 = vmatpush1.msra.mxu0 0.0
  %8911 = vmatprep.mubr.f32.mxu0 0.0
  %v8912 = vand.u32 %v8618, 4294901760
  %v8913 = vsub.f32 %v8618, %v8912
  %v8914 = vand.u32 %v8913, 4294901760
  %8915 = vmatmul.mubr.f32.gmra.mrb[0].mxu0 %v8914
  %v8916 = vpop.f32.mrb[0].mxu0
  %v8917 = vadd.f32 %v8843, %v8916
  %v8918 = vpop.f32.mrb[0].mxu0
  %8919 = vdwg.mxu0
  %8920 = vmatprep.subr.mxu0 0.0
  %v8921 = vand.u32 %v6292, 4294901760
  %v8922 = vsub.f32 %v6292, %v8921
  %v8923 = vand.u32 %v8922, 4294901760
  %8924 = vmatpush1.msra.mxu0 %v8923
  %8925 = vmatprep.subr.mxu0 0.0
  %8926 = vmatpush1.msra.mxu0 0.0
  %8927 = vmatprep.subr.mxu0 0.0
  %8928 = vmatpush1.msra.mxu0 0.0
  %8929 = vmatprep.subr.mxu0 0.0
  %8930 = vmatpush1.msra.mxu0 0.0
  %8931 = vmatprep.subr.mxu0 0.0
  %8932 = vmatpush1.msra.mxu0 0.0
  %8933 = vmatprep.subr.mxu0 0.0
  %8934 = vmatpush1.msra.mxu0 0.0
  %8935 = vmatprep.subr.mxu0 0.0
  %8936 = vmatpush1.msra.mxu0 0.0
  %8937 = vmatprep.subr.mxu0 0.0
  %8938 = vmatpush1.msra.mxu0 0.0
  %8939 = vmatprep.subr.mxu0 0.0
  %8940 = vmatpush1.msra.mxu0 0.0
  %8941 = vmatprep.subr.mxu0 0.0
  %8942 = vmatpush1.msra.mxu0 0.0
  %8943 = vmatprep.subr.mxu0 0.0
  %8944 = vmatpush1.msra.mxu0 0.0
  %8945 = vmatprep.subr.mxu0 0.0
  %8946 = vmatpush1.msra.mxu0 0.0
  %8947 = vmatprep.subr.mxu0 0.0
  %8948 = vmatpush1.msra.mxu0 0.0
  %8949 = vmatprep.subr.mxu0 0.0
  %8950 = vmatpush1.msra.mxu0 0.0
  %8951 = vmatprep.subr.mxu0 0.0
  %8952 = vmatpush1.msra.mxu0 0.0
  %8953 = vmatprep.subr.mxu0 0.0
  %8954 = vmatpush1.msra.mxu0 0.0
  %8955 = vmatprep.subr.mxu0 0.0
  %8956 = vmatpush1.msra.mxu0 0.0
  %8957 = vmatprep.subr.mxu0 0.0
  %8958 = vmatpush1.msra.mxu0 0.0
  %8959 = vmatprep.subr.mxu0 0.0
  %8960 = vmatpush1.msra.mxu0 0.0
  %8961 = vmatprep.subr.mxu0 0.0
  %8962 = vmatpush1.msra.mxu0 0.0
  %8963 = vmatprep.subr.mxu0 0.0
  %8964 = vmatpush1.msra.mxu0 0.0
  %8965 = vmatprep.subr.mxu0 0.0
  %8966 = vmatpush1.msra.mxu0 0.0
  %8967 = vmatprep.subr.mxu0 0.0
  %8968 = vmatpush1.msra.mxu0 0.0
  %8969 = vmatprep.subr.mxu0 0.0
  %8970 = vmatpush1.msra.mxu0 0.0
  %8971 = vmatprep.subr.mxu0 0.0
  %8972 = vmatpush1.msra.mxu0 0.0
  %8973 = vmatprep.subr.mxu0 0.0
  %8974 = vmatpush1.msra.mxu0 0.0
  %8975 = vmatprep.subr.mxu0 0.0
  %8976 = vmatpush1.msra.mxu0 0.0
  %8977 = vmatprep.subr.mxu0 0.0
  %8978 = vmatpush1.msra.mxu0 0.0
  %8979 = vmatprep.subr.mxu0 0.0
  %8980 = vmatpush1.msra.mxu0 0.0
  %8981 = vmatprep.subr.mxu0 0.0
  %8982 = vmatpush1.msra.mxu0 0.0
  %8983 = vmatprep.subr.mxu0 0.0
  %8984 = vmatpush1.msra.mxu0 0.0
  %8985 = vmatprep.subr.mxu0 0.0
  %8986 = vmatpush1.msra.mxu0 0.0
  %8987 = vmatprep.mubr.f32.mxu0 0.0
  %v8988 = vand.u32 %v8618, 4294901760
  %8989 = vmatmul.mubr.f32.gmra.mrb[0].mxu0 %v8988
  %v8990 = vpop.f32.mrb[0].mxu0
  %v8991 = vadd.f32 %v8917, %v8990
  %v8992 = vpop.f32.mrb[0].mxu0
  %8993 = vdwg.mxu0
  %8994 = vmatprep.subr.mxu0 0.0
  %v8995 = vand.u32 %v6292, 4294901760
  %8996 = vmatpush1.msra.mxu0 %v8995
  %8997 = vmatprep.subr.mxu0 0.0
  %8998 = vmatpush1.msra.mxu0 0.0
  %8999 = vmatprep.subr.mxu0 0.0
  %9000 = vmatpush1.msra.mxu0 0.0
  %9001 = vmatprep.subr.mxu0 0.0
  %9002 = vmatpush1.msra.mxu0 0.0
  %9003 = vmatprep.subr.mxu0 0.0
  %9004 = vmatpush1.msra.mxu0 0.0
  %9005 = vmatprep.subr.mxu0 0.0
  %9006 = vmatpush1.msra.mxu0 0.0
  %9007 = vmatprep.subr.mxu0 0.0
  %9008 = vmatpush1.msra.mxu0 0.0
  %9009 = vmatprep.subr.mxu0 0.0
  %9010 = vmatpush1.msra.mxu0 0.0
  %9011 = vmatprep.subr.mxu0 0.0
  %9012 = vmatpush1.msra.mxu0 0.0
  %9013 = vmatprep.subr.mxu0 0.0
  %9014 = vmatpush1.msra.mxu0 0.0
  %9015 = vmatprep.subr.mxu0 0.0
  %9016 = vmatpush1.msra.mxu0 0.0
  %9017 = vmatprep.subr.mxu0 0.0
  %9018 = vmatpush1.msra.mxu0 0.0
  %9019 = vmatprep.subr.mxu0 0.0
  %9020 = vmatpush1.msra.mxu0 0.0
  %9021 = vmatprep.subr.mxu0 0.0
  %9022 = vmatpush1.msra.mxu0 0.0
  %9023 = vmatprep.subr.mxu0 0.0
  %9024 = vmatpush1.msra.mxu0 0.0
  %9025 = vmatprep.subr.mxu0 0.0
  %9026 = vmatpush1.msra.mxu0 0.0
  %9027 = vmatprep.subr.mxu0 0.0
  %9028 = vmatpush1.msra.mxu0 0.0
  %9029 = vmatprep.subr.mxu0 0.0
  %9030 = vmatpush1.msra.mxu0 0.0
  %9031 = vmatprep.subr.mxu0 0.0
  %9032 = vmatpush1.msra.mxu0 0.0
  %9033 = vmatprep.subr.mxu0 0.0
  %9034 = vmatpush1.msra.mxu0 0.0
  %9035 = vmatprep.subr.mxu0 0.0
  %9036 = vmatpush1.msra.mxu0 0.0
  %9037 = vmatprep.subr.mxu0 0.0
  %9038 = vmatpush1.msra.mxu0 0.0
  %9039 = vmatprep.subr.mxu0 0.0
  %9040 = vmatpush1.msra.mxu0 0.0
  %9041 = vmatprep.subr.mxu0 0.0
  %9042 = vmatpush1.msra.mxu0 0.0
  %9043 = vmatprep.subr.mxu0 0.0
  %9044 = vmatpush1.msra.mxu0 0.0
  %9045 = vmatprep.subr.mxu0 0.0
  %9046 = vmatpush1.msra.mxu0 0.0
  %9047 = vmatprep.subr.mxu0 0.0
  %9048 = vmatpush1.msra.mxu0 0.0
  %9049 = vmatprep.subr.mxu0 0.0
  %9050 = vmatpush1.msra.mxu0 0.0
  %9051 = vmatprep.subr.mxu0 0.0
  %9052 = vmatpush1.msra.mxu0 0.0
  %9053 = vmatprep.subr.mxu0 0.0
  %9054 = vmatpush1.msra.mxu0 0.0
  %9055 = vmatprep.subr.mxu0 0.0
  %9056 = vmatpush1.msra.mxu0 0.0
  %9057 = vmatprep.subr.mxu0 0.0
  %9058 = vmatpush1.msra.mxu0 0.0
  %9059 = vmatprep.mubr.f32.mxu0 0.0
  %v9060 = vand.u32 %v8618, 4294901760
  %9061 = vmatmul.mubr.f32.gmra.mrb[0].mxu0 %v9060
  %v9062 = vpop.f32.mrb[0].mxu0
  %v9063 = vadd.f32 %v8991, %v9062
  %v9064 = vpop.f32.mrb[0].mxu0
  %9065 = vdwg.mxu0
  %s9066 = scalar_lea.vmem %s7, 8
  %9067 = vst.msk [vmem:[%s9066] sm:$0x3f] %vm5769, %v9063
  // Predicated region
  $region30: #{tpu_custom_call.1} parent=0 // pred_check
    _
  $region31: #{tpu_custom_call.1} parent=0 // pred_check_branch
    %9069 = sbr.rel (0) target = $region33
  $region32: #{tpu_custom_call.1} parent=0 // pred_region
    _
  $region33: #{tpu_custom_call.1} parent=0 // pred_fallthru
    _
  // Predicated region
  $region34: #{tpu_custom_call.1} parent=0 // pred_check
    _
  $region35: #{tpu_custom_call.1} parent=0 // pred_check_branch
    %9071 = sbr.rel (0) target = $region37
  $region36: #{tpu_custom_call.1} parent=0 // pred_region
    _
  $region37: #{tpu_custom_call.1} parent=0 // pred_fallthru
    _

</llo_original>
